<compile_context>
chip_gen: v5e
topology: v5e:2x2
jax: 0.10.0
libtpu: 0.0.40
codegen_flags: <defaults>
</compile_context>

<pallas_src>
import numpy as np

import jax
import jax.numpy as jnp
from jax import lax
from jax.experimental import pallas as pl
from jax.experimental.pallas import tpu as pltpu

SENT = 30                          # sentence_size
EMB = 256                          # word_embedding_dimension
CH = 16                            # channels after the torch reshape
W = EMB // CH                      # 16, conv kernel width (= full width)
KS = (3, 4, 5, 6, 8, 10)           # conv kernel heights (conv3..conv8)
LENS = tuple(SENT - k + 1 for k in KS)                       # (28,27,26,25,23,21)
COFFS = tuple(int(x) for x in np.cumsum((0,) + LENS[:-1]))   # column offsets
NCOL = 256                         # conv-output columns, padded lane-dense (150 used)
NUM_CLASSES = 2
OUT_DIM = NUM_CLASSES * SENT       # 60 (linear1 output)
OPAD = 128                         # output lanes (60 padded to 128)


# -------------------------- constant packing ------------------------------- #

def pack_constants(params):
    w1t = np.asarray(params['w1'], np.float32).T             # (4, 256)
    b1 = np.asarray(params['b1'], np.float32).reshape(1, EMB)

    wl = np.asarray(params['wl'], np.float32)                 # (60, 6)
    wconv = np.zeros((SENT, EMB, NCOL), np.float32)
    cb = np.zeros((1, NCOL), np.float32)
    pool = np.zeros((NCOL, OPAD), np.float32)

    for i, (k, L, off) in enumerate(zip(KS, LENS, COFFS)):
        wk = np.asarray(params[f'conv{k}_w'], np.float32)[0]  # (CH, k, W)
        bk = float(np.asarray(params[f'conv{k}_b'], np.float32)[0])
        for l in range(L):
            col = off + l
            cb[0, col] = bk
            pool[col, :OUT_DIM] = wl[:, i] / float(L)          # AvgPool + linear1 fold
            for c in range(CH):
                for dh in range(k):
                    # torch x_nchw[b, c, l+dh, w] == e[b, f // EMB, f % EMB] with
                    # f = c*(SENT*W) + (l+dh)*W + w.  f is a multiple of W at w=0,
                    # so the 16 w-lanes are contiguous inside a single e row.
                    f0 = c * (SENT * W) + (l + dh) * W
                    s, em0 = divmod(f0, EMB)
                    wconv[s, em0:em0 + W, col] += wk[c, dh, :]

    bl = np.zeros((1, OPAD), np.float32)
    bl[0, :OUT_DIM] = np.asarray(params['bl'], np.float32)

    arrays = dict(w1t=w1t, b1=b1, wconv=wconv, cb=cb, pool=pool, bl=bl)
    return {k: jnp.asarray(v) for k, v in arrays.items()}


# ----------------------------- wrapper ------------------------------------- #

def _round_up(a, m):
    return -(-a // m) * m


def make_forward(params, batch_size, tile_batch=128):
    # batch tile: multiple of 8 (sublane alignment of the (30*tb, 4) input
    # block, the (tb, 128) output block and the (tb, 256) accumulator).
    tb = min(_round_up(tile_batch, 8), _round_up(batch_size, 8))
    # prefer >= 2 grid steps so the 'parallel' batch axis can shard across the
    # two TensorCores on v7x whenever there is enough work.
    if batch_size >= 16 and _round_up(batch_size, tb) // tb < 2:
        tb = _round_up(-(-batch_size // 2), 8)
    bp = _round_up(batch_size, tb)          # padded batch
    num_tiles = bp // tb

    c = pack_constants(params)              # host-side, once, outside the jit

    def fused_kernel(x_ref, w1_ref, b1_ref, wc_ref, cb_ref, p_ref, bl_ref,
                     o_ref, acc_ref):
        # x_ref : (SENT*tb, 4)      rows ordered (s, b) inside the batch tile
        # w1_ref: (4, 256)          bbox_embedding weight (transposed)
        # b1_ref: (1, 256)
        # wc_ref: (30, 256, 256)    conv filters with the NCHW reshape folded in
        # cb_ref: (1, 256)          conv biases broadcast over output positions
        # p_ref : (256, 128)        AvgPool (1/L_i) + Linear(6,60), folded
        # bl_ref: (1, 128)          linear1 bias (padded)
        # o_ref : (tb, 128)         lane-dense output block
        # acc_ref: (tb, 256) f32    VMEM accumulator (all conv outputs, padded)
        acc_ref[...] = jnp.zeros_like(acc_ref)
        w1 = w1_ref[...]
        b1 = jnp.broadcast_to(b1_ref[...], (tb, EMB))          # hoisted out of loop
        for s in range(SENT):                                  # fully unrolled
            x_s = x_ref[pl.ds(s * tb, tb), :]                  # (tb, 4)
            e_s = jnp.maximum(
                jnp.dot(x_s, w1, preferred_element_type=jnp.float32) + b1, 0.0)
            acc_ref[...] += jnp.dot(e_s, wc_ref[s],
                                    preferred_element_type=jnp.float32)
        conv = jnp.maximum(acc_ref[...] + cb_ref[...], 0.0)    # ReLU(conv + bias)
        o_ref[...] = (jnp.dot(conv, p_ref[...],
                              preferred_element_type=jnp.float32) + bl_ref[...])

    call = pl.pallas_call(
        fused_kernel,
        out_shape=jax.ShapeDtypeStruct((bp, OPAD), jnp.float32),
        grid=(num_tiles,),
        in_specs=[
            pl.BlockSpec((SENT * tb, 4), lambda i: (i, 0)),
            pl.BlockSpec((4, EMB), lambda i: (0, 0)),
            pl.BlockSpec((1, EMB), lambda i: (0, 0)),
            pl.BlockSpec((SENT, EMB, NCOL), lambda i: (0, 0, 0)),
            pl.BlockSpec((1, NCOL), lambda i: (0, 0)),
            pl.BlockSpec((NCOL, OPAD), lambda i: (0, 0)),
            pl.BlockSpec((1, OPAD), lambda i: (0, 0)),
        ],
        out_specs=pl.BlockSpec((tb, OPAD), lambda i: (i, 0)),
        scratch_shapes=[pltpu.VMEM((tb, NCOL), jnp.float32)],
        compiler_params=pltpu.CompilerParams(
            dimension_semantics=("parallel",),
            vmem_limit_bytes=40 << 20),
    )

    def fwd(x_bbox):
        B, seg, four = x_bbox.shape
        assert B == batch_size and seg == SENT and four == 4
        xp = jnp.pad(x_bbox.astype(jnp.float32), ((0, bp - B), (0, 0), (0, 0)))
        # arrange input rows as (tile, s, b) so each grid step reads one
        # contiguous (SENT*tb, 4) block; this is the only relayout left and it
        # only touches the raw 480 B/sample input.
        xa = (xp.reshape(num_tiles, tb, SENT, 4)
                .transpose(0, 2, 1, 3)
                .reshape(num_tiles * SENT * tb, 4))
        out = call(xa, c['w1t'], c['b1'], c['wconv'], c['cb'], c['pool'], c['bl'])
        return out[:B, :OUT_DIM].reshape(B, 1, OUT_DIM), None

    return jax.jit(fwd)


# -------------------------- reference (plain JAX) -------------------------- #

def reference_forward(x_bbox, p):
    B = x_bbox.shape[0]
    e = jax.nn.relu(x_bbox @ p['w1'].T + p['b1'])              # (B,30,256)
    x = e.reshape(B, CH, SENT, W)                              # NCHW
    feats = []
    for k in KS:
        wk = p[f'conv{k}_w']
        bk = p[f'conv{k}_b']
        o = lax.conv_general_dilated(
            x, wk, (1, 1), 'VALID',
            dimension_numbers=('NCHW', 'OIHW', 'NCHW'))        # (B,1,L,1)
        o = jax.nn.relu(o + bk.reshape(1, 1, 1, 1))
        feats.append(jnp.mean(o, axis=2, keepdims=True))       # (B,1,1,1)
    f = jnp.concatenate(feats, axis=-1).reshape(B, 1, len(KS))
    return f @ p['wl'].T + p['bl']


# ------------------------------ params ------------------------------------- #

def init_params(seed=42):
    key = jax.random.PRNGKey(seed)
    ks = jax.random.split(key, 4 + 2 * len(KS))
    p = {}
    p['w1'] = 0.1 * jax.random.normal(ks[0], (EMB, 4), jnp.float32)
    p['b1'] = 0.1 * jax.random.normal(ks[1], (EMB,), jnp.float32)
    for i, k in enumerate(KS):
        p[f'conv{k}_w'] = 0.1 * jax.random.normal(
            ks[2 + 2 * i], (1, CH, k, W), jnp.float32)
        p[f'conv{k}_b'] = 0.1 * jax.random.normal(
            ks[3 + 2 * i], (1,), jnp.float32)
    p['wl'] = 0.1 * jax.random.normal(ks[-2], (OUT_DIM, len(KS)), jnp.float32)
    p['bl'] = 0.1 * jax.random.normal(ks[-1], (OUT_DIM,), jnp.float32)
    return p


# ------------------------------- main -------------------------------------- #

if __name__ == "__main__":
    B = 2
    x_bbox = jax.random.normal(jax.random.PRNGKey(0), (B, SENT, 4), jnp.float32)
    params = init_params()

    fwd = make_forward(params, B)
    out, aux = fwd(x_bbox)
    out = jax.block_until_ready(out)

    ref = reference_forward(x_bbox, params)
    assert out.shape == (B, 1, OUT_DIM), out.shape
    assert aux is None
    max_err = float(jnp.max(jnp.abs(out - ref)))
    assert jnp.allclose(out, ref, rtol=1e-4, atol=1e-4), max_err

    print("KERNEL_OK")
</pallas_src>

<mosaic_0001>
module attributes {stable_mosaic.version = 11 : i64} {
  func.func @fused_kernel(%arg0: i32, %arg1: memref<240x4xf32, #tpu.memory_space<vmem>>, %arg2: memref<4x256xf32, #tpu.memory_space<vmem>>, %arg3: memref<1x256xf32, #tpu.memory_space<vmem>>, %arg4: memref<30x256x256xf32, #tpu.memory_space<vmem>>, %arg5: memref<1x256xf32, #tpu.memory_space<vmem>>, %arg6: memref<256x128xf32, #tpu.memory_space<vmem>>, %arg7: memref<1x128xf32, #tpu.memory_space<vmem>>, %arg8: memref<8x128xf32, #tpu.memory_space<vmem>>, %arg9: memref<8x256xf32, #tpu.memory_space<vmem>>) attributes {dimension_semantics = [#tpu.dimension_semantics<parallel>], iteration_bounds = array<i64: 1>, scalar_prefetch = 0 : i64, scratch_operands = 1 : i64, tpu.core_type = #tpu.core_type<tc>, window_params = [{transform_indices = @transform_0, window_bounds = array<i64: 240, 4>}, {pipeline_mode = #tpu.pipeline_mode<synchronous>, transform_indices = @transform_1, window_bounds = array<i64: 4, 256>}, {pipeline_mode = #tpu.pipeline_mode<synchronous>, transform_indices = @transform_2, window_bounds = array<i64: 1, 256>}, {pipeline_mode = #tpu.pipeline_mode<synchronous>, transform_indices = @transform_3, window_bounds = array<i64: 30, 256, 256>}, {pipeline_mode = #tpu.pipeline_mode<synchronous>, transform_indices = @transform_4, window_bounds = array<i64: 1, 256>}, {pipeline_mode = #tpu.pipeline_mode<synchronous>, transform_indices = @transform_5, window_bounds = array<i64: 256, 128>}, {pipeline_mode = #tpu.pipeline_mode<synchronous>, transform_indices = @transform_6, window_bounds = array<i64: 1, 128>}, {transform_indices = @transform_7, window_bounds = array<i64: 8, 128>}]} {
    %cst = arith.constant 0.000000e+00 : f32
    %0 = vector.broadcast %cst : f32 to vector<8x256xf32>
    %c0 = arith.constant 0 : index
    %c0_0 = arith.constant 0 : index
    %1 = vector.load %arg9[%c0, %c0_0] : memref<8x256xf32, #tpu.memory_space<vmem>>, vector<8x256xf32>
    tpu.vector_store %arg9[%c0, %c0_0], %0 {strides = array<i32>} : memref<8x256xf32, #tpu.memory_space<vmem>>, vector<8x256xf32>,
    %c0_1 = arith.constant 0 : index
    %c0_2 = arith.constant 0 : index
    %2 = vector.load %arg2[%c0_1, %c0_2] : memref<4x256xf32, #tpu.memory_space<vmem>>, vector<4x256xf32>
    %c0_3 = arith.constant 0 : index
    %c0_4 = arith.constant 0 : index
    %3 = vector.load %arg3[%c0_3, %c0_4] : memref<1x256xf32, #tpu.memory_space<vmem>>, vector<1x256xf32>
    %4 = vector.shape_cast %3 : vector<1x256xf32> to vector<1x256xf32>
    %5 = vector.broadcast %4 : vector<1x256xf32> to vector<8x256xf32>
    %c0_5 = arith.constant 0 : index
    %c0_6 = arith.constant 0 : index
    %6 = vector.load %arg1[%c0_5, %c0_6] : memref<240x4xf32, #tpu.memory_space<vmem>>, vector<8x4xf32>
    %cst_7 = arith.constant dense<0.000000e+00> : vector<8x256xf32>
    %7 = tpu.matmul %6, %2, %cst_7 {dimension_numbers = #tpu.dot_dimension_numbers<[1], [0], [0], [1], [0, 0, 1, 1], [], []>} : vector<8x4xf32>, vector<4x256xf32>, vector<8x256xf32> -> vector<8x256xf32>
    %8 = arith.addf %7, %5 : vector<8x256xf32>
    %cst_8 = arith.constant 0.000000e+00 : f32
    %9 = vector.broadcast %cst_8 : f32 to vector<8x256xf32>
    %10 = arith.maximumf %8, %9 : vector<8x256xf32>
    %c0_9 = arith.constant 0 : index
    %c0_10 = arith.constant 0 : index
    %11 = vector.load %arg9[%c0_9, %c0_10] : memref<8x256xf32, #tpu.memory_space<vmem>>, vector<8x256xf32>
    %c0_11 = arith.constant 0 : index
    %c0_12 = arith.constant 0 : index
    %c0_13 = arith.constant 0 : index
    %12 = vector.load %arg4[%c0_11, %c0_12, %c0_13] : memref<30x256x256xf32, #tpu.memory_space<vmem>>, vector<1x256x256xf32>
    %13 = vector.shape_cast %12 : vector<1x256x256xf32> to vector<256x256xf32>
    %cst_14 = arith.constant dense<0.000000e+00> : vector<8x256xf32>
    %14 = tpu.matmul %10, %13, %cst_14 {dimension_numbers = #tpu.dot_dimension_numbers<[1], [0], [0], [1], [0, 0, 1, 1], [], []>} : vector<8x256xf32>, vector<256x256xf32>, vector<8x256xf32> -> vector<8x256xf32>
    %15 = arith.addf %11, %14 : vector<8x256xf32>
    %c0_15 = arith.constant 0 : index
    %c0_16 = arith.constant 0 : index
    %16 = vector.load %arg9[%c0_15, %c0_16] : memref<8x256xf32, #tpu.memory_space<vmem>>, vector<8x256xf32>
    tpu.vector_store %arg9[%c0_15, %c0_16], %15 {strides = array<i32>} : memref<8x256xf32, #tpu.memory_space<vmem>>, vector<8x256xf32>,
    %c8 = arith.constant 8 : index
    %c0_17 = arith.constant 0 : index
    %17 = vector.load %arg1[%c8, %c0_17] : memref<240x4xf32, #tpu.memory_space<vmem>>, vector<8x4xf32>
    %cst_18 = arith.constant dense<0.000000e+00> : vector<8x256xf32>
    %18 = tpu.matmul %17, %2, %cst_18 {dimension_numbers = #tpu.dot_dimension_numbers<[1], [0], [0], [1], [0, 0, 1, 1], [], []>} : vector<8x4xf32>, vector<4x256xf32>, vector<8x256xf32> -> vector<8x256xf32>
    %19 = arith.addf %18, %5 : vector<8x256xf32>
    %cst_19 = arith.constant 0.000000e+00 : f32
    %20 = vector.broadcast %cst_19 : f32 to vector<8x256xf32>
    %21 = arith.maximumf %19, %20 : vector<8x256xf32>
    %c0_20 = arith.constant 0 : index
    %c0_21 = arith.constant 0 : index
    %22 = vector.load %arg9[%c0_20, %c0_21] : memref<8x256xf32, #tpu.memory_space<vmem>>, vector<8x256xf32>
    %c1 = arith.constant 1 : index
    %c0_22 = arith.constant 0 : index
    %c0_23 = arith.constant 0 : index
    %23 = vector.load %arg4[%c1, %c0_22, %c0_23] : memref<30x256x256xf32, #tpu.memory_space<vmem>>, vector<1x256x256xf32>
    %24 = vector.shape_cast %23 : vector<1x256x256xf32> to vector<256x256xf32>
    %cst_24 = arith.constant dense<0.000000e+00> : vector<8x256xf32>
    %25 = tpu.matmul %21, %24, %cst_24 {dimension_numbers = #tpu.dot_dimension_numbers<[1], [0], [0], [1], [0, 0, 1, 1], [], []>} : vector<8x256xf32>, vector<256x256xf32>, vector<8x256xf32> -> vector<8x256xf32>
    %26 = arith.addf %22, %25 : vector<8x256xf32>
    %c0_25 = arith.constant 0 : index
    %c0_26 = arith.constant 0 : index
    %27 = vector.load %arg9[%c0_25, %c0_26] : memref<8x256xf32, #tpu.memory_space<vmem>>, vector<8x256xf32>
    tpu.vector_store %arg9[%c0_25, %c0_26], %26 {strides = array<i32>} : memref<8x256xf32, #tpu.memory_space<vmem>>, vector<8x256xf32>,
    %c16 = arith.constant 16 : index
    %c0_27 = arith.constant 0 : index
    %28 = vector.load %arg1[%c16, %c0_27] : memref<240x4xf32, #tpu.memory_space<vmem>>, vector<8x4xf32>
    %cst_28 = arith.constant dense<0.000000e+00> : vector<8x256xf32>
    %29 = tpu.matmul %28, %2, %cst_28 {dimension_numbers = #tpu.dot_dimension_numbers<[1], [0], [0], [1], [0, 0, 1, 1], [], []>} : vector<8x4xf32>, vector<4x256xf32>, vector<8x256xf32> -> vector<8x256xf32>
    %30 = arith.addf %29, %5 : vector<8x256xf32>
    %cst_29 = arith.constant 0.000000e+00 : f32
    %31 = vector.broadcast %cst_29 : f32 to vector<8x256xf32>
    %32 = arith.maximumf %30, %31 : vector<8x256xf32>
    %c0_30 = arith.constant 0 : index
    %c0_31 = arith.constant 0 : index
    %33 = vector.load %arg9[%c0_30, %c0_31] : memref<8x256xf32, #tpu.memory_space<vmem>>, vector<8x256xf32>
    %c2 = arith.constant 2 : index
    %c0_32 = arith.constant 0 : index
    %c0_33 = arith.constant 0 : index
    %34 = vector.load %arg4[%c2, %c0_32, %c0_33] : memref<30x256x256xf32, #tpu.memory_space<vmem>>, vector<1x256x256xf32>
    %35 = vector.shape_cast %34 : vector<1x256x256xf32> to vector<256x256xf32>
    %cst_34 = arith.constant dense<0.000000e+00> : vector<8x256xf32>
    %36 = tpu.matmul %32, %35, %cst_34 {dimension_numbers = #tpu.dot_dimension_numbers<[1], [0], [0], [1], [0, 0, 1, 1], [], []>} : vector<8x256xf32>, vector<256x256xf32>, vector<8x256xf32> -> vector<8x256xf32>
    %37 = arith.addf %33, %36 : vector<8x256xf32>
    %c0_35 = arith.constant 0 : index
    %c0_36 = arith.constant 0 : index
    %38 = vector.load %arg9[%c0_35, %c0_36] : memref<8x256xf32, #tpu.memory_space<vmem>>, vector<8x256xf32>
    tpu.vector_store %arg9[%c0_35, %c0_36], %37 {strides = array<i32>} : memref<8x256xf32, #tpu.memory_space<vmem>>, vector<8x256xf32>,
    %c24 = arith.constant 24 : index
    %c0_37 = arith.constant 0 : index
    %39 = vector.load %arg1[%c24, %c0_37] : memref<240x4xf32, #tpu.memory_space<vmem>>, vector<8x4xf32>
    %cst_38 = arith.constant dense<0.000000e+00> : vector<8x256xf32>
    %40 = tpu.matmul %39, %2, %cst_38 {dimension_numbers = #tpu.dot_dimension_numbers<[1], [0], [0], [1], [0, 0, 1, 1], [], []>} : vector<8x4xf32>, vector<4x256xf32>, vector<8x256xf32> -> vector<8x256xf32>
    %41 = arith.addf %40, %5 : vector<8x256xf32>
    %cst_39 = arith.constant 0.000000e+00 : f32
    %42 = vector.broadcast %cst_39 : f32 to vector<8x256xf32>
    %43 = arith.maximumf %41, %42 : vector<8x256xf32>
    %c0_40 = arith.constant 0 : index
    %c0_41 = arith.constant 0 : index
    %44 = vector.load %arg9[%c0_40, %c0_41] : memref<8x256xf32, #tpu.memory_space<vmem>>, vector<8x256xf32>
    %c3 = arith.constant 3 : index
    %c0_42 = arith.constant 0 : index
    %c0_43 = arith.constant 0 : index
    %45 = vector.load %arg4[%c3, %c0_42, %c0_43] : memref<30x256x256xf32, #tpu.memory_space<vmem>>, vector<1x256x256xf32>
    %46 = vector.shape_cast %45 : vector<1x256x256xf32> to vector<256x256xf32>
    %cst_44 = arith.constant dense<0.000000e+00> : vector<8x256xf32>
    %47 = tpu.matmul %43, %46, %cst_44 {dimension_numbers = #tpu.dot_dimension_numbers<[1], [0], [0], [1], [0, 0, 1, 1], [], []>} : vector<8x256xf32>, vector<256x256xf32>, vector<8x256xf32> -> vector<8x256xf32>
    %48 = arith.addf %44, %47 : vector<8x256xf32>
    %c0_45 = arith.constant 0 : index
    %c0_46 = arith.constant 0 : index
    %49 = vector.load %arg9[%c0_45, %c0_46] : memref<8x256xf32, #tpu.memory_space<vmem>>, vector<8x256xf32>
    tpu.vector_store %arg9[%c0_45, %c0_46], %48 {strides = array<i32>} : memref<8x256xf32, #tpu.memory_space<vmem>>, vector<8x256xf32>,
    %c32 = arith.constant 32 : index
    %c0_47 = arith.constant 0 : index
    %50 = vector.load %arg1[%c32, %c0_47] : memref<240x4xf32, #tpu.memory_space<vmem>>, vector<8x4xf32>
    %cst_48 = arith.constant dense<0.000000e+00> : vector<8x256xf32>
    %51 = tpu.matmul %50, %2, %cst_48 {dimension_numbers = #tpu.dot_dimension_numbers<[1], [0], [0], [1], [0, 0, 1, 1], [], []>} : vector<8x4xf32>, vector<4x256xf32>, vector<8x256xf32> -> vector<8x256xf32>
    %52 = arith.addf %51, %5 : vector<8x256xf32>
    %cst_49 = arith.constant 0.000000e+00 : f32
    %53 = vector.broadcast %cst_49 : f32 to vector<8x256xf32>
    %54 = arith.maximumf %52, %53 : vector<8x256xf32>
    %c0_50 = arith.constant 0 : index
    %c0_51 = arith.constant 0 : index
    %55 = vector.load %arg9[%c0_50, %c0_51] : memref<8x256xf32, #tpu.memory_space<vmem>>, vector<8x256xf32>
    %c4 = arith.constant 4 : index
    %c0_52 = arith.constant 0 : index
    %c0_53 = arith.constant 0 : index
    %56 = vector.load %arg4[%c4, %c0_52, %c0_53] : memref<30x256x256xf32, #tpu.memory_space<vmem>>, vector<1x256x256xf32>
    %57 = vector.shape_cast %56 : vector<1x256x256xf32> to vector<256x256xf32>
    %cst_54 = arith.constant dense<0.000000e+00> : vector<8x256xf32>
    %58 = tpu.matmul %54, %57, %cst_54 {dimension_numbers = #tpu.dot_dimension_numbers<[1], [0], [0], [1], [0, 0, 1, 1], [], []>} : vector<8x256xf32>, vector<256x256xf32>, vector<8x256xf32> -> vector<8x256xf32>
    %59 = arith.addf %55, %58 : vector<8x256xf32>
    %c0_55 = arith.constant 0 : index
    %c0_56 = arith.constant 0 : index
    %60 = vector.load %arg9[%c0_55, %c0_56] : memref<8x256xf32, #tpu.memory_space<vmem>>, vector<8x256xf32>
    tpu.vector_store %arg9[%c0_55, %c0_56], %59 {strides = array<i32>} : memref<8x256xf32, #tpu.memory_space<vmem>>, vector<8x256xf32>,
    %c40 = arith.constant 40 : index
    %c0_57 = arith.constant 0 : index
    %61 = vector.load %arg1[%c40, %c0_57] : memref<240x4xf32, #tpu.memory_space<vmem>>, vector<8x4xf32>
    %cst_58 = arith.constant dense<0.000000e+00> : vector<8x256xf32>
    %62 = tpu.matmul %61, %2, %cst_58 {dimension_numbers = #tpu.dot_dimension_numbers<[1], [0], [0], [1], [0, 0, 1, 1], [], []>} : vector<8x4xf32>, vector<4x256xf32>, vector<8x256xf32> -> vector<8x256xf32>
    %63 = arith.addf %62, %5 : vector<8x256xf32>
    %cst_59 = arith.constant 0.000000e+00 : f32
    %64 = vector.broadcast %cst_59 : f32 to vector<8x256xf32>
    %65 = arith.maximumf %63, %64 : vector<8x256xf32>
    %c0_60 = arith.constant 0 : index
    %c0_61 = arith.constant 0 : index
    %66 = vector.load %arg9[%c0_60, %c0_61] : memref<8x256xf32, #tpu.memory_space<vmem>>, vector<8x256xf32>
    %c5 = arith.constant 5 : index
    %c0_62 = arith.constant 0 : index
    %c0_63 = arith.constant 0 : index
    %67 = vector.load %arg4[%c5, %c0_62, %c0_63] : memref<30x256x256xf32, #tpu.memory_space<vmem>>, vector<1x256x256xf32>
    %68 = vector.shape_cast %67 : vector<1x256x256xf32> to vector<256x256xf32>
    %cst_64 = arith.constant dense<0.000000e+00> : vector<8x256xf32>
    %69 = tpu.matmul %65, %68, %cst_64 {dimension_numbers = #tpu.dot_dimension_numbers<[1], [0], [0], [1], [0, 0, 1, 1], [], []>} : vector<8x256xf32>, vector<256x256xf32>, vector<8x256xf32> -> vector<8x256xf32>
    %70 = arith.addf %66, %69 : vector<8x256xf32>
    %c0_65 = arith.constant 0 : index
    %c0_66 = arith.constant 0 : index
    %71 = vector.load %arg9[%c0_65, %c0_66] : memref<8x256xf32, #tpu.memory_space<vmem>>, vector<8x256xf32>
    tpu.vector_store %arg9[%c0_65, %c0_66], %70 {strides = array<i32>} : memref<8x256xf32, #tpu.memory_space<vmem>>, vector<8x256xf32>,
    %c48 = arith.constant 48 : index
    %c0_67 = arith.constant 0 : index
    %72 = vector.load %arg1[%c48, %c0_67] : memref<240x4xf32, #tpu.memory_space<vmem>>, vector<8x4xf32>
    %cst_68 = arith.constant dense<0.000000e+00> : vector<8x256xf32>
    %73 = tpu.matmul %72, %2, %cst_68 {dimension_numbers = #tpu.dot_dimension_numbers<[1], [0], [0], [1], [0, 0, 1, 1], [], []>} : vector<8x4xf32>, vector<4x256xf32>, vector<8x256xf32> -> vector<8x256xf32>
    %74 = arith.addf %73, %5 : vector<8x256xf32>
    %cst_69 = arith.constant 0.000000e+00 : f32
    %75 = vector.broadcast %cst_69 : f32 to vector<8x256xf32>
    %76 = arith.maximumf %74, %75 : vector<8x256xf32>
    %c0_70 = arith.constant 0 : index
    %c0_71 = arith.constant 0 : index
    %77 = vector.load %arg9[%c0_70, %c0_71] : memref<8x256xf32, #tpu.memory_space<vmem>>, vector<8x256xf32>
    %c6 = arith.constant 6 : index
    %c0_72 = arith.constant 0 : index
    %c0_73 = arith.constant 0 : index
    %78 = vector.load %arg4[%c6, %c0_72, %c0_73] : memref<30x256x256xf32, #tpu.memory_space<vmem>>, vector<1x256x256xf32>
    %79 = vector.shape_cast %78 : vector<1x256x256xf32> to vector<256x256xf32>
    %cst_74 = arith.constant dense<0.000000e+00> : vector<8x256xf32>
    %80 = tpu.matmul %76, %79, %cst_74 {dimension_numbers = #tpu.dot_dimension_numbers<[1], [0], [0], [1], [0, 0, 1, 1], [], []>} : vector<8x256xf32>, vector<256x256xf32>, vector<8x256xf32> -> vector<8x256xf32>
    %81 = arith.addf %77, %80 : vector<8x256xf32>
    %c0_75 = arith.constant 0 : index
    %c0_76 = arith.constant 0 : index
    %82 = vector.load %arg9[%c0_75, %c0_76] : memref<8x256xf32, #tpu.memory_space<vmem>>, vector<8x256xf32>
    tpu.vector_store %arg9[%c0_75, %c0_76], %81 {strides = array<i32>} : memref<8x256xf32, #tpu.memory_space<vmem>>, vector<8x256xf32>,
    %c56 = arith.constant 56 : index
    %c0_77 = arith.constant 0 : index
    %83 = vector.load %arg1[%c56, %c0_77] : memref<240x4xf32, #tpu.memory_space<vmem>>, vector<8x4xf32>
    %cst_78 = arith.constant dense<0.000000e+00> : vector<8x256xf32>
    %84 = tpu.matmul %83, %2, %cst_78 {dimension_numbers = #tpu.dot_dimension_numbers<[1], [0], [0], [1], [0, 0, 1, 1], [], []>} : vector<8x4xf32>, vector<4x256xf32>, vector<8x256xf32> -> vector<8x256xf32>
    %85 = arith.addf %84, %5 : vector<8x256xf32>
    %cst_79 = arith.constant 0.000000e+00 : f32
    %86 = vector.broadcast %cst_79 : f32 to vector<8x256xf32>
    %87 = arith.maximumf %85, %86 : vector<8x256xf32>
    %c0_80 = arith.constant 0 : index
    %c0_81 = arith.constant 0 : index
    %88 = vector.load %arg9[%c0_80, %c0_81] : memref<8x256xf32, #tpu.memory_space<vmem>>, vector<8x256xf32>
    %c7 = arith.constant 7 : index
    %c0_82 = arith.constant 0 : index
    %c0_83 = arith.constant 0 : index
    %89 = vector.load %arg4[%c7, %c0_82, %c0_83] : memref<30x256x256xf32, #tpu.memory_space<vmem>>, vector<1x256x256xf32>
    %90 = vector.shape_cast %89 : vector<1x256x256xf32> to vector<256x256xf32>
    %cst_84 = arith.constant dense<0.000000e+00> : vector<8x256xf32>
    %91 = tpu.matmul %87, %90, %cst_84 {dimension_numbers = #tpu.dot_dimension_numbers<[1], [0], [0], [1], [0, 0, 1, 1], [], []>} : vector<8x256xf32>, vector<256x256xf32>, vector<8x256xf32> -> vector<8x256xf32>
    %92 = arith.addf %88, %91 : vector<8x256xf32>
    %c0_85 = arith.constant 0 : index
    %c0_86 = arith.constant 0 : index
    %93 = vector.load %arg9[%c0_85, %c0_86] : memref<8x256xf32, #tpu.memory_space<vmem>>, vector<8x256xf32>
    tpu.vector_store %arg9[%c0_85, %c0_86], %92 {strides = array<i32>} : memref<8x256xf32, #tpu.memory_space<vmem>>, vector<8x256xf32>,
    %c64 = arith.constant 64 : index
    %c0_87 = arith.constant 0 : index
    %94 = vector.load %arg1[%c64, %c0_87] : memref<240x4xf32, #tpu.memory_space<vmem>>, vector<8x4xf32>
    %cst_88 = arith.constant dense<0.000000e+00> : vector<8x256xf32>
    %95 = tpu.matmul %94, %2, %cst_88 {dimension_numbers = #tpu.dot_dimension_numbers<[1], [0], [0], [1], [0, 0, 1, 1], [], []>} : vector<8x4xf32>, vector<4x256xf32>, vector<8x256xf32> -> vector<8x256xf32>
    %96 = arith.addf %95, %5 : vector<8x256xf32>
    %cst_89 = arith.constant 0.000000e+00 : f32
    %97 = vector.broadcast %cst_89 : f32 to vector<8x256xf32>
    %98 = arith.maximumf %96, %97 : vector<8x256xf32>
    %c0_90 = arith.constant 0 : index
    %c0_91 = arith.constant 0 : index
    %99 = vector.load %arg9[%c0_90, %c0_91] : memref<8x256xf32, #tpu.memory_space<vmem>>, vector<8x256xf32>
    %c8_92 = arith.constant 8 : index
    %c0_93 = arith.constant 0 : index
    %c0_94 = arith.constant 0 : index
    %100 = vector.load %arg4[%c8_92, %c0_93, %c0_94] : memref<30x256x256xf32, #tpu.memory_space<vmem>>, vector<1x256x256xf32>
    %101 = vector.shape_cast %100 : vector<1x256x256xf32> to vector<256x256xf32>
    %cst_95 = arith.constant dense<0.000000e+00> : vector<8x256xf32>
    %102 = tpu.matmul %98, %101, %cst_95 {dimension_numbers = #tpu.dot_dimension_numbers<[1], [0], [0], [1], [0, 0, 1, 1], [], []>} : vector<8x256xf32>, vector<256x256xf32>, vector<8x256xf32> -> vector<8x256xf32>
    %103 = arith.addf %99, %102 : vector<8x256xf32>
    %c0_96 = arith.constant 0 : index
    %c0_97 = arith.constant 0 : index
    %104 = vector.load %arg9[%c0_96, %c0_97] : memref<8x256xf32, #tpu.memory_space<vmem>>, vector<8x256xf32>
    tpu.vector_store %arg9[%c0_96, %c0_97], %103 {strides = array<i32>} : memref<8x256xf32, #tpu.memory_space<vmem>>, vector<8x256xf32>,
    %c72 = arith.constant 72 : index
    %c0_98 = arith.constant 0 : index
    %105 = vector.load %arg1[%c72, %c0_98] : memref<240x4xf32, #tpu.memory_space<vmem>>, vector<8x4xf32>
    %cst_99 = arith.constant dense<0.000000e+00> : vector<8x256xf32>
    %106 = tpu.matmul %105, %2, %cst_99 {dimension_numbers = #tpu.dot_dimension_numbers<[1], [0], [0], [1], [0, 0, 1, 1], [], []>} : vector<8x4xf32>, vector<4x256xf32>, vector<8x256xf32> -> vector<8x256xf32>
    %107 = arith.addf %106, %5 : vector<8x256xf32>
    %cst_100 = arith.constant 0.000000e+00 : f32
    %108 = vector.broadcast %cst_100 : f32 to vector<8x256xf32>
    %109 = arith.maximumf %107, %108 : vector<8x256xf32>
    %c0_101 = arith.constant 0 : index
    %c0_102 = arith.constant 0 : index
    %110 = vector.load %arg9[%c0_101, %c0_102] : memref<8x256xf32, #tpu.memory_space<vmem>>, vector<8x256xf32>
    %c9 = arith.constant 9 : index
    %c0_103 = arith.constant 0 : index
    %c0_104 = arith.constant 0 : index
    %111 = vector.load %arg4[%c9, %c0_103, %c0_104] : memref<30x256x256xf32, #tpu.memory_space<vmem>>, vector<1x256x256xf32>
    %112 = vector.shape_cast %111 : vector<1x256x256xf32> to vector<256x256xf32>
    %cst_105 = arith.constant dense<0.000000e+00> : vector<8x256xf32>
    %113 = tpu.matmul %109, %112, %cst_105 {dimension_numbers = #tpu.dot_dimension_numbers<[1], [0], [0], [1], [0, 0, 1, 1], [], []>} : vector<8x256xf32>, vector<256x256xf32>, vector<8x256xf32> -> vector<8x256xf32>
    %114 = arith.addf %110, %113 : vector<8x256xf32>
    %c0_106 = arith.constant 0 : index
    %c0_107 = arith.constant 0 : index
    %115 = vector.load %arg9[%c0_106, %c0_107] : memref<8x256xf32, #tpu.memory_space<vmem>>, vector<8x256xf32>
    tpu.vector_store %arg9[%c0_106, %c0_107], %114 {strides = array<i32>} : memref<8x256xf32, #tpu.memory_space<vmem>>, vector<8x256xf32>,
    %c80 = arith.constant 80 : index
    %c0_108 = arith.constant 0 : index
    %116 = vector.load %arg1[%c80, %c0_108] : memref<240x4xf32, #tpu.memory_space<vmem>>, vector<8x4xf32>
    %cst_109 = arith.constant dense<0.000000e+00> : vector<8x256xf32>
    %117 = tpu.matmul %116, %2, %cst_109 {dimension_numbers = #tpu.dot_dimension_numbers<[1], [0], [0], [1], [0, 0, 1, 1], [], []>} : vector<8x4xf32>, vector<4x256xf32>, vector<8x256xf32> -> vector<8x256xf32>
    %118 = arith.addf %117, %5 : vector<8x256xf32>
    %cst_110 = arith.constant 0.000000e+00 : f32
    %119 = vector.broadcast %cst_110 : f32 to vector<8x256xf32>
    %120 = arith.maximumf %118, %119 : vector<8x256xf32>
    %c0_111 = arith.constant 0 : index
    %c0_112 = arith.constant 0 : index
    %121 = vector.load %arg9[%c0_111, %c0_112] : memref<8x256xf32, #tpu.memory_space<vmem>>, vector<8x256xf32>
    %c10 = arith.constant 10 : index
    %c0_113 = arith.constant 0 : index
    %c0_114 = arith.constant 0 : index
    %122 = vector.load %arg4[%c10, %c0_113, %c0_114] : memref<30x256x256xf32, #tpu.memory_space<vmem>>, vector<1x256x256xf32>
    %123 = vector.shape_cast %122 : vector<1x256x256xf32> to vector<256x256xf32>
    %cst_115 = arith.constant dense<0.000000e+00> : vector<8x256xf32>
    %124 = tpu.matmul %120, %123, %cst_115 {dimension_numbers = #tpu.dot_dimension_numbers<[1], [0], [0], [1], [0, 0, 1, 1], [], []>} : vector<8x256xf32>, vector<256x256xf32>, vector<8x256xf32> -> vector<8x256xf32>
    %125 = arith.addf %121, %124 : vector<8x256xf32>
    %c0_116 = arith.constant 0 : index
    %c0_117 = arith.constant 0 : index
    %126 = vector.load %arg9[%c0_116, %c0_117] : memref<8x256xf32, #tpu.memory_space<vmem>>, vector<8x256xf32>
    tpu.vector_store %arg9[%c0_116, %c0_117], %125 {strides = array<i32>} : memref<8x256xf32, #tpu.memory_space<vmem>>, vector<8x256xf32>,
    %c88 = arith.constant 88 : index
    %c0_118 = arith.constant 0 : index
    %127 = vector.load %arg1[%c88, %c0_118] : memref<240x4xf32, #tpu.memory_space<vmem>>, vector<8x4xf32>
    %cst_119 = arith.constant dense<0.000000e+00> : vector<8x256xf32>
    %128 = tpu.matmul %127, %2, %cst_119 {dimension_numbers = #tpu.dot_dimension_numbers<[1], [0], [0], [1], [0, 0, 1, 1], [], []>} : vector<8x4xf32>, vector<4x256xf32>, vector<8x256xf32> -> vector<8x256xf32>
    %129 = arith.addf %128, %5 : vector<8x256xf32>
    %cst_120 = arith.constant 0.000000e+00 : f32
    %130 = vector.broadcast %cst_120 : f32 to vector<8x256xf32>
    %131 = arith.maximumf %129, %130 : vector<8x256xf32>
    %c0_121 = arith.constant 0 : index
    %c0_122 = arith.constant 0 : index
    %132 = vector.load %arg9[%c0_121, %c0_122] : memref<8x256xf32, #tpu.memory_space<vmem>>, vector<8x256xf32>
    %c11 = arith.constant 11 : index
    %c0_123 = arith.constant 0 : index
    %c0_124 = arith.constant 0 : index
    %133 = vector.load %arg4[%c11, %c0_123, %c0_124] : memref<30x256x256xf32, #tpu.memory_space<vmem>>, vector<1x256x256xf32>
    %134 = vector.shape_cast %133 : vector<1x256x256xf32> to vector<256x256xf32>
    %cst_125 = arith.constant dense<0.000000e+00> : vector<8x256xf32>
    %135 = tpu.matmul %131, %134, %cst_125 {dimension_numbers = #tpu.dot_dimension_numbers<[1], [0], [0], [1], [0, 0, 1, 1], [], []>} : vector<8x256xf32>, vector<256x256xf32>, vector<8x256xf32> -> vector<8x256xf32>
    %136 = arith.addf %132, %135 : vector<8x256xf32>
    %c0_126 = arith.constant 0 : index
    %c0_127 = arith.constant 0 : index
    %137 = vector.load %arg9[%c0_126, %c0_127] : memref<8x256xf32, #tpu.memory_space<vmem>>, vector<8x256xf32>
    tpu.vector_store %arg9[%c0_126, %c0_127], %136 {strides = array<i32>} : memref<8x256xf32, #tpu.memory_space<vmem>>, vector<8x256xf32>,
    %c96 = arith.constant 96 : index
    %c0_128 = arith.constant 0 : index
    %138 = vector.load %arg1[%c96, %c0_128] : memref<240x4xf32, #tpu.memory_space<vmem>>, vector<8x4xf32>
    %cst_129 = arith.constant dense<0.000000e+00> : vector<8x256xf32>
    %139 = tpu.matmul %138, %2, %cst_129 {dimension_numbers = #tpu.dot_dimension_numbers<[1], [0], [0], [1], [0, 0, 1, 1], [], []>} : vector<8x4xf32>, vector<4x256xf32>, vector<8x256xf32> -> vector<8x256xf32>
    %140 = arith.addf %139, %5 : vector<8x256xf32>
    %cst_130 = arith.constant 0.000000e+00 : f32
    %141 = vector.broadcast %cst_130 : f32 to vector<8x256xf32>
    %142 = arith.maximumf %140, %141 : vector<8x256xf32>
    %c0_131 = arith.constant 0 : index
    %c0_132 = arith.constant 0 : index
    %143 = vector.load %arg9[%c0_131, %c0_132] : memref<8x256xf32, #tpu.memory_space<vmem>>, vector<8x256xf32>
    %c12 = arith.constant 12 : index
    %c0_133 = arith.constant 0 : index
    %c0_134 = arith.constant 0 : index
    %144 = vector.load %arg4[%c12, %c0_133, %c0_134] : memref<30x256x256xf32, #tpu.memory_space<vmem>>, vector<1x256x256xf32>
    %145 = vector.shape_cast %144 : vector<1x256x256xf32> to vector<256x256xf32>
    %cst_135 = arith.constant dense<0.000000e+00> : vector<8x256xf32>
    %146 = tpu.matmul %142, %145, %cst_135 {dimension_numbers = #tpu.dot_dimension_numbers<[1], [0], [0], [1], [0, 0, 1, 1], [], []>} : vector<8x256xf32>, vector<256x256xf32>, vector<8x256xf32> -> vector<8x256xf32>
    %147 = arith.addf %143, %146 : vector<8x256xf32>
    %c0_136 = arith.constant 0 : index
    %c0_137 = arith.constant 0 : index
    %148 = vector.load %arg9[%c0_136, %c0_137] : memref<8x256xf32, #tpu.memory_space<vmem>>, vector<8x256xf32>
    tpu.vector_store %arg9[%c0_136, %c0_137], %147 {strides = array<i32>} : memref<8x256xf32, #tpu.memory_space<vmem>>, vector<8x256xf32>,
    %c104 = arith.constant 104 : index
    %c0_138 = arith.constant 0 : index
    %149 = vector.load %arg1[%c104, %c0_138] : memref<240x4xf32, #tpu.memory_space<vmem>>, vector<8x4xf32>
    %cst_139 = arith.constant dense<0.000000e+00> : vector<8x256xf32>
    %150 = tpu.matmul %149, %2, %cst_139 {dimension_numbers = #tpu.dot_dimension_numbers<[1], [0], [0], [1], [0, 0, 1, 1], [], []>} : vector<8x4xf32>, vector<4x256xf32>, vector<8x256xf32> -> vector<8x256xf32>
    %151 = arith.addf %150, %5 : vector<8x256xf32>
    %cst_140 = arith.constant 0.000000e+00 : f32
    %152 = vector.broadcast %cst_140 : f32 to vector<8x256xf32>
    %153 = arith.maximumf %151, %152 : vector<8x256xf32>
    %c0_141 = arith.constant 0 : index
    %c0_142 = arith.constant 0 : index
    %154 = vector.load %arg9[%c0_141, %c0_142] : memref<8x256xf32, #tpu.memory_space<vmem>>, vector<8x256xf32>
    %c13 = arith.constant 13 : index
    %c0_143 = arith.constant 0 : index
    %c0_144 = arith.constant 0 : index
    %155 = vector.load %arg4[%c13, %c0_143, %c0_144] : memref<30x256x256xf32, #tpu.memory_space<vmem>>, vector<1x256x256xf32>
    %156 = vector.shape_cast %155 : vector<1x256x256xf32> to vector<256x256xf32>
    %cst_145 = arith.constant dense<0.000000e+00> : vector<8x256xf32>
    %157 = tpu.matmul %153, %156, %cst_145 {dimension_numbers = #tpu.dot_dimension_numbers<[1], [0], [0], [1], [0, 0, 1, 1], [], []>} : vector<8x256xf32>, vector<256x256xf32>, vector<8x256xf32> -> vector<8x256xf32>
    %158 = arith.addf %154, %157 : vector<8x256xf32>
    %c0_146 = arith.constant 0 : index
    %c0_147 = arith.constant 0 : index
    %159 = vector.load %arg9[%c0_146, %c0_147] : memref<8x256xf32, #tpu.memory_space<vmem>>, vector<8x256xf32>
    tpu.vector_store %arg9[%c0_146, %c0_147], %158 {strides = array<i32>} : memref<8x256xf32, #tpu.memory_space<vmem>>, vector<8x256xf32>,
    %c112 = arith.constant 112 : index
    %c0_148 = arith.constant 0 : index
    %160 = vector.load %arg1[%c112, %c0_148] : memref<240x4xf32, #tpu.memory_space<vmem>>, vector<8x4xf32>
    %cst_149 = arith.constant dense<0.000000e+00> : vector<8x256xf32>
    %161 = tpu.matmul %160, %2, %cst_149 {dimension_numbers = #tpu.dot_dimension_numbers<[1], [0], [0], [1], [0, 0, 1, 1], [], []>} : vector<8x4xf32>, vector<4x256xf32>, vector<8x256xf32> -> vector<8x256xf32>
    %162 = arith.addf %161, %5 : vector<8x256xf32>
    %cst_150 = arith.constant 0.000000e+00 : f32
    %163 = vector.broadcast %cst_150 : f32 to vector<8x256xf32>
    %164 = arith.maximumf %162, %163 : vector<8x256xf32>
    %c0_151 = arith.constant 0 : index
    %c0_152 = arith.constant 0 : index
    %165 = vector.load %arg9[%c0_151, %c0_152] : memref<8x256xf32, #tpu.memory_space<vmem>>, vector<8x256xf32>
    %c14 = arith.constant 14 : index
    %c0_153 = arith.constant 0 : index
    %c0_154 = arith.constant 0 : index
    %166 = vector.load %arg4[%c14, %c0_153, %c0_154] : memref<30x256x256xf32, #tpu.memory_space<vmem>>, vector<1x256x256xf32>
    %167 = vector.shape_cast %166 : vector<1x256x256xf32> to vector<256x256xf32>
    %cst_155 = arith.constant dense<0.000000e+00> : vector<8x256xf32>
    %168 = tpu.matmul %164, %167, %cst_155 {dimension_numbers = #tpu.dot_dimension_numbers<[1], [0], [0], [1], [0, 0, 1, 1], [], []>} : vector<8x256xf32>, vector<256x256xf32>, vector<8x256xf32> -> vector<8x256xf32>
    %169 = arith.addf %165, %168 : vector<8x256xf32>
    %c0_156 = arith.constant 0 : index
    %c0_157 = arith.constant 0 : index
    %170 = vector.load %arg9[%c0_156, %c0_157] : memref<8x256xf32, #tpu.memory_space<vmem>>, vector<8x256xf32>
    tpu.vector_store %arg9[%c0_156, %c0_157], %169 {strides = array<i32>} : memref<8x256xf32, #tpu.memory_space<vmem>>, vector<8x256xf32>,
    %c120 = arith.constant 120 : index
    %c0_158 = arith.constant 0 : index
    %171 = vector.load %arg1[%c120, %c0_158] : memref<240x4xf32, #tpu.memory_space<vmem>>, vector<8x4xf32>
    %cst_159 = arith.constant dense<0.000000e+00> : vector<8x256xf32>
    %172 = tpu.matmul %171, %2, %cst_159 {dimension_numbers = #tpu.dot_dimension_numbers<[1], [0], [0], [1], [0, 0, 1, 1], [], []>} : vector<8x4xf32>, vector<4x256xf32>, vector<8x256xf32> -> vector<8x256xf32>
    %173 = arith.addf %172, %5 : vector<8x256xf32>
    %cst_160 = arith.constant 0.000000e+00 : f32
    %174 = vector.broadcast %cst_160 : f32 to vector<8x256xf32>
    %175 = arith.maximumf %173, %174 : vector<8x256xf32>
    %c0_161 = arith.constant 0 : index
    %c0_162 = arith.constant 0 : index
    %176 = vector.load %arg9[%c0_161, %c0_162] : memref<8x256xf32, #tpu.memory_space<vmem>>, vector<8x256xf32>
    %c15 = arith.constant 15 : index
    %c0_163 = arith.constant 0 : index
    %c0_164 = arith.constant 0 : index
    %177 = vector.load %arg4[%c15, %c0_163, %c0_164] : memref<30x256x256xf32, #tpu.memory_space<vmem>>, vector<1x256x256xf32>
    %178 = vector.shape_cast %177 : vector<1x256x256xf32> to vector<256x256xf32>
    %cst_165 = arith.constant dense<0.000000e+00> : vector<8x256xf32>
    %179 = tpu.matmul %175, %178, %cst_165 {dimension_numbers = #tpu.dot_dimension_numbers<[1], [0], [0], [1], [0, 0, 1, 1], [], []>} : vector<8x256xf32>, vector<256x256xf32>, vector<8x256xf32> -> vector<8x256xf32>
    %180 = arith.addf %176, %179 : vector<8x256xf32>
    %c0_166 = arith.constant 0 : index
    %c0_167 = arith.constant 0 : index
    %181 = vector.load %arg9[%c0_166, %c0_167] : memref<8x256xf32, #tpu.memory_space<vmem>>, vector<8x256xf32>
    tpu.vector_store %arg9[%c0_166, %c0_167], %180 {strides = array<i32>} : memref<8x256xf32, #tpu.memory_space<vmem>>, vector<8x256xf32>,
    %c128 = arith.constant 128 : index
    %c0_168 = arith.constant 0 : index
    %182 = vector.load %arg1[%c128, %c0_168] : memref<240x4xf32, #tpu.memory_space<vmem>>, vector<8x4xf32>
    %cst_169 = arith.constant dense<0.000000e+00> : vector<8x256xf32>
    %183 = tpu.matmul %182, %2, %cst_169 {dimension_numbers = #tpu.dot_dimension_numbers<[1], [0], [0], [1], [0, 0, 1, 1], [], []>} : vector<8x4xf32>, vector<4x256xf32>, vector<8x256xf32> -> vector<8x256xf32>
    %184 = arith.addf %183, %5 : vector<8x256xf32>
    %cst_170 = arith.constant 0.000000e+00 : f32
    %185 = vector.broadcast %cst_170 : f32 to vector<8x256xf32>
    %186 = arith.maximumf %184, %185 : vector<8x256xf32>
    %c0_171 = arith.constant 0 : index
    %c0_172 = arith.constant 0 : index
    %187 = vector.load %arg9[%c0_171, %c0_172] : memref<8x256xf32, #tpu.memory_space<vmem>>, vector<8x256xf32>
    %c16_173 = arith.constant 16 : index
    %c0_174 = arith.constant 0 : index
    %c0_175 = arith.constant 0 : index
    %188 = vector.load %arg4[%c16_173, %c0_174, %c0_175] : memref<30x256x256xf32, #tpu.memory_space<vmem>>, vector<1x256x256xf32>
    %189 = vector.shape_cast %188 : vector<1x256x256xf32> to vector<256x256xf32>
    %cst_176 = arith.constant dense<0.000000e+00> : vector<8x256xf32>
    %190 = tpu.matmul %186, %189, %cst_176 {dimension_numbers = #tpu.dot_dimension_numbers<[1], [0], [0], [1], [0, 0, 1, 1], [], []>} : vector<8x256xf32>, vector<256x256xf32>, vector<8x256xf32> -> vector<8x256xf32>
    %191 = arith.addf %187, %190 : vector<8x256xf32>
    %c0_177 = arith.constant 0 : index
    %c0_178 = arith.constant 0 : index
    %192 = vector.load %arg9[%c0_177, %c0_178] : memref<8x256xf32, #tpu.memory_space<vmem>>, vector<8x256xf32>
    tpu.vector_store %arg9[%c0_177, %c0_178], %191 {strides = array<i32>} : memref<8x256xf32, #tpu.memory_space<vmem>>, vector<8x256xf32>,
    %c136 = arith.constant 136 : index
    %c0_179 = arith.constant 0 : index
    %193 = vector.load %arg1[%c136, %c0_179] : memref<240x4xf32, #tpu.memory_space<vmem>>, vector<8x4xf32>
    %cst_180 = arith.constant dense<0.000000e+00> : vector<8x256xf32>
    %194 = tpu.matmul %193, %2, %cst_180 {dimension_numbers = #tpu.dot_dimension_numbers<[1], [0], [0], [1], [0, 0, 1, 1], [], []>} : vector<8x4xf32>, vector<4x256xf32>, vector<8x256xf32> -> vector<8x256xf32>
    %195 = arith.addf %194, %5 : vector<8x256xf32>
    %cst_181 = arith.constant 0.000000e+00 : f32
    %196 = vector.broadcast %cst_181 : f32 to vector<8x256xf32>
    %197 = arith.maximumf %195, %196 : vector<8x256xf32>
    %c0_182 = arith.constant 0 : index
    %c0_183 = arith.constant 0 : index
    %198 = vector.load %arg9[%c0_182, %c0_183] : memref<8x256xf32, #tpu.memory_space<vmem>>, vector<8x256xf32>
    %c17 = arith.constant 17 : index
    %c0_184 = arith.constant 0 : index
    %c0_185 = arith.constant 0 : index
    %199 = vector.load %arg4[%c17, %c0_184, %c0_185] : memref<30x256x256xf32, #tpu.memory_space<vmem>>, vector<1x256x256xf32>
    %200 = vector.shape_cast %199 : vector<1x256x256xf32> to vector<256x256xf32>
    %cst_186 = arith.constant dense<0.000000e+00> : vector<8x256xf32>
    %201 = tpu.matmul %197, %200, %cst_186 {dimension_numbers = #tpu.dot_dimension_numbers<[1], [0], [0], [1], [0, 0, 1, 1], [], []>} : vector<8x256xf32>, vector<256x256xf32>, vector<8x256xf32> -> vector<8x256xf32>
    %202 = arith.addf %198, %201 : vector<8x256xf32>
    %c0_187 = arith.constant 0 : index
    %c0_188 = arith.constant 0 : index
    %203 = vector.load %arg9[%c0_187, %c0_188] : memref<8x256xf32, #tpu.memory_space<vmem>>, vector<8x256xf32>
    tpu.vector_store %arg9[%c0_187, %c0_188], %202 {strides = array<i32>} : memref<8x256xf32, #tpu.memory_space<vmem>>, vector<8x256xf32>,
    %c144 = arith.constant 144 : index
    %c0_189 = arith.constant 0 : index
    %204 = vector.load %arg1[%c144, %c0_189] : memref<240x4xf32, #tpu.memory_space<vmem>>, vector<8x4xf32>
    %cst_190 = arith.constant dense<0.000000e+00> : vector<8x256xf32>
    %205 = tpu.matmul %204, %2, %cst_190 {dimension_numbers = #tpu.dot_dimension_numbers<[1], [0], [0], [1], [0, 0, 1, 1], [], []>} : vector<8x4xf32>, vector<4x256xf32>, vector<8x256xf32> -> vector<8x256xf32>
    %206 = arith.addf %205, %5 : vector<8x256xf32>
    %cst_191 = arith.constant 0.000000e+00 : f32
    %207 = vector.broadcast %cst_191 : f32 to vector<8x256xf32>
    %208 = arith.maximumf %206, %207 : vector<8x256xf32>
    %c0_192 = arith.constant 0 : index
    %c0_193 = arith.constant 0 : index
    %209 = vector.load %arg9[%c0_192, %c0_193] : memref<8x256xf32, #tpu.memory_space<vmem>>, vector<8x256xf32>
    %c18 = arith.constant 18 : index
    %c0_194 = arith.constant 0 : index
    %c0_195 = arith.constant 0 : index
    %210 = vector.load %arg4[%c18, %c0_194, %c0_195] : memref<30x256x256xf32, #tpu.memory_space<vmem>>, vector<1x256x256xf32>
    %211 = vector.shape_cast %210 : vector<1x256x256xf32> to vector<256x256xf32>
    %cst_196 = arith.constant dense<0.000000e+00> : vector<8x256xf32>
    %212 = tpu.matmul %208, %211, %cst_196 {dimension_numbers = #tpu.dot_dimension_numbers<[1], [0], [0], [1], [0, 0, 1, 1], [], []>} : vector<8x256xf32>, vector<256x256xf32>, vector<8x256xf32> -> vector<8x256xf32>
    %213 = arith.addf %209, %212 : vector<8x256xf32>
    %c0_197 = arith.constant 0 : index
    %c0_198 = arith.constant 0 : index
    %214 = vector.load %arg9[%c0_197, %c0_198] : memref<8x256xf32, #tpu.memory_space<vmem>>, vector<8x256xf32>
    tpu.vector_store %arg9[%c0_197, %c0_198], %213 {strides = array<i32>} : memref<8x256xf32, #tpu.memory_space<vmem>>, vector<8x256xf32>,
    %c152 = arith.constant 152 : index
    %c0_199 = arith.constant 0 : index
    %215 = vector.load %arg1[%c152, %c0_199] : memref<240x4xf32, #tpu.memory_space<vmem>>, vector<8x4xf32>
    %cst_200 = arith.constant dense<0.000000e+00> : vector<8x256xf32>
    %216 = tpu.matmul %215, %2, %cst_200 {dimension_numbers = #tpu.dot_dimension_numbers<[1], [0], [0], [1], [0, 0, 1, 1], [], []>} : vector<8x4xf32>, vector<4x256xf32>, vector<8x256xf32> -> vector<8x256xf32>
    %217 = arith.addf %216, %5 : vector<8x256xf32>
    %cst_201 = arith.constant 0.000000e+00 : f32
    %218 = vector.broadcast %cst_201 : f32 to vector<8x256xf32>
    %219 = arith.maximumf %217, %218 : vector<8x256xf32>
    %c0_202 = arith.constant 0 : index
    %c0_203 = arith.constant 0 : index
    %220 = vector.load %arg9[%c0_202, %c0_203] : memref<8x256xf32, #tpu.memory_space<vmem>>, vector<8x256xf32>
    %c19 = arith.constant 19 : index
    %c0_204 = arith.constant 0 : index
    %c0_205 = arith.constant 0 : index
    %221 = vector.load %arg4[%c19, %c0_204, %c0_205] : memref<30x256x256xf32, #tpu.memory_space<vmem>>, vector<1x256x256xf32>
    %222 = vector.shape_cast %221 : vector<1x256x256xf32> to vector<256x256xf32>
    %cst_206 = arith.constant dense<0.000000e+00> : vector<8x256xf32>
    %223 = tpu.matmul %219, %222, %cst_206 {dimension_numbers = #tpu.dot_dimension_numbers<[1], [0], [0], [1], [0, 0, 1, 1], [], []>} : vector<8x256xf32>, vector<256x256xf32>, vector<8x256xf32> -> vector<8x256xf32>
    %224 = arith.addf %220, %223 : vector<8x256xf32>
    %c0_207 = arith.constant 0 : index
    %c0_208 = arith.constant 0 : index
    %225 = vector.load %arg9[%c0_207, %c0_208] : memref<8x256xf32, #tpu.memory_space<vmem>>, vector<8x256xf32>
    tpu.vector_store %arg9[%c0_207, %c0_208], %224 {strides = array<i32>} : memref<8x256xf32, #tpu.memory_space<vmem>>, vector<8x256xf32>,
    %c160 = arith.constant 160 : index
    %c0_209 = arith.constant 0 : index
    %226 = vector.load %arg1[%c160, %c0_209] : memref<240x4xf32, #tpu.memory_space<vmem>>, vector<8x4xf32>
    %cst_210 = arith.constant dense<0.000000e+00> : vector<8x256xf32>
    %227 = tpu.matmul %226, %2, %cst_210 {dimension_numbers = #tpu.dot_dimension_numbers<[1], [0], [0], [1], [0, 0, 1, 1], [], []>} : vector<8x4xf32>, vector<4x256xf32>, vector<8x256xf32> -> vector<8x256xf32>
    %228 = arith.addf %227, %5 : vector<8x256xf32>
    %cst_211 = arith.constant 0.000000e+00 : f32
    %229 = vector.broadcast %cst_211 : f32 to vector<8x256xf32>
    %230 = arith.maximumf %228, %229 : vector<8x256xf32>
    %c0_212 = arith.constant 0 : index
    %c0_213 = arith.constant 0 : index
    %231 = vector.load %arg9[%c0_212, %c0_213] : memref<8x256xf32, #tpu.memory_space<vmem>>, vector<8x256xf32>
    %c20 = arith.constant 20 : index
    %c0_214 = arith.constant 0 : index
    %c0_215 = arith.constant 0 : index
    %232 = vector.load %arg4[%c20, %c0_214, %c0_215] : memref<30x256x256xf32, #tpu.memory_space<vmem>>, vector<1x256x256xf32>
    %233 = vector.shape_cast %232 : vector<1x256x256xf32> to vector<256x256xf32>
    %cst_216 = arith.constant dense<0.000000e+00> : vector<8x256xf32>
    %234 = tpu.matmul %230, %233, %cst_216 {dimension_numbers = #tpu.dot_dimension_numbers<[1], [0], [0], [1], [0, 0, 1, 1], [], []>} : vector<8x256xf32>, vector<256x256xf32>, vector<8x256xf32> -> vector<8x256xf32>
    %235 = arith.addf %231, %234 : vector<8x256xf32>
    %c0_217 = arith.constant 0 : index
    %c0_218 = arith.constant 0 : index
    %236 = vector.load %arg9[%c0_217, %c0_218] : memref<8x256xf32, #tpu.memory_space<vmem>>, vector<8x256xf32>
    tpu.vector_store %arg9[%c0_217, %c0_218], %235 {strides = array<i32>} : memref<8x256xf32, #tpu.memory_space<vmem>>, vector<8x256xf32>,
    %c168 = arith.constant 168 : index
    %c0_219 = arith.constant 0 : index
    %237 = vector.load %arg1[%c168, %c0_219] : memref<240x4xf32, #tpu.memory_space<vmem>>, vector<8x4xf32>
    %cst_220 = arith.constant dense<0.000000e+00> : vector<8x256xf32>
    %238 = tpu.matmul %237, %2, %cst_220 {dimension_numbers = #tpu.dot_dimension_numbers<[1], [0], [0], [1], [0, 0, 1, 1], [], []>} : vector<8x4xf32>, vector<4x256xf32>, vector<8x256xf32> -> vector<8x256xf32>
    %239 = arith.addf %238, %5 : vector<8x256xf32>
    %cst_221 = arith.constant 0.000000e+00 : f32
    %240 = vector.broadcast %cst_221 : f32 to vector<8x256xf32>
    %241 = arith.maximumf %239, %240 : vector<8x256xf32>
    %c0_222 = arith.constant 0 : index
    %c0_223 = arith.constant 0 : index
    %242 = vector.load %arg9[%c0_222, %c0_223] : memref<8x256xf32, #tpu.memory_space<vmem>>, vector<8x256xf32>
    %c21 = arith.constant 21 : index
    %c0_224 = arith.constant 0 : index
    %c0_225 = arith.constant 0 : index
    %243 = vector.load %arg4[%c21, %c0_224, %c0_225] : memref<30x256x256xf32, #tpu.memory_space<vmem>>, vector<1x256x256xf32>
    %244 = vector.shape_cast %243 : vector<1x256x256xf32> to vector<256x256xf32>
    %cst_226 = arith.constant dense<0.000000e+00> : vector<8x256xf32>
    %245 = tpu.matmul %241, %244, %cst_226 {dimension_numbers = #tpu.dot_dimension_numbers<[1], [0], [0], [1], [0, 0, 1, 1], [], []>} : vector<8x256xf32>, vector<256x256xf32>, vector<8x256xf32> -> vector<8x256xf32>
    %246 = arith.addf %242, %245 : vector<8x256xf32>
    %c0_227 = arith.constant 0 : index
    %c0_228 = arith.constant 0 : index
    %247 = vector.load %arg9[%c0_227, %c0_228] : memref<8x256xf32, #tpu.memory_space<vmem>>, vector<8x256xf32>
    tpu.vector_store %arg9[%c0_227, %c0_228], %246 {strides = array<i32>} : memref<8x256xf32, #tpu.memory_space<vmem>>, vector<8x256xf32>,
    %c176 = arith.constant 176 : index
    %c0_229 = arith.constant 0 : index
    %248 = vector.load %arg1[%c176, %c0_229] : memref<240x4xf32, #tpu.memory_space<vmem>>, vector<8x4xf32>
    %cst_230 = arith.constant dense<0.000000e+00> : vector<8x256xf32>
    %249 = tpu.matmul %248, %2, %cst_230 {dimension_numbers = #tpu.dot_dimension_numbers<[1], [0], [0], [1], [0, 0, 1, 1], [], []>} : vector<8x4xf32>, vector<4x256xf32>, vector<8x256xf32> -> vector<8x256xf32>
    %250 = arith.addf %249, %5 : vector<8x256xf32>
    %cst_231 = arith.constant 0.000000e+00 : f32
    %251 = vector.broadcast %cst_231 : f32 to vector<8x256xf32>
    %252 = arith.maximumf %250, %251 : vector<8x256xf32>
    %c0_232 = arith.constant 0 : index
    %c0_233 = arith.constant 0 : index
    %253 = vector.load %arg9[%c0_232, %c0_233] : memref<8x256xf32, #tpu.memory_space<vmem>>, vector<8x256xf32>
    %c22 = arith.constant 22 : index
    %c0_234 = arith.constant 0 : index
    %c0_235 = arith.constant 0 : index
    %254 = vector.load %arg4[%c22, %c0_234, %c0_235] : memref<30x256x256xf32, #tpu.memory_space<vmem>>, vector<1x256x256xf32>
    %255 = vector.shape_cast %254 : vector<1x256x256xf32> to vector<256x256xf32>
    %cst_236 = arith.constant dense<0.000000e+00> : vector<8x256xf32>
    %256 = tpu.matmul %252, %255, %cst_236 {dimension_numbers = #tpu.dot_dimension_numbers<[1], [0], [0], [1], [0, 0, 1, 1], [], []>} : vector<8x256xf32>, vector<256x256xf32>, vector<8x256xf32> -> vector<8x256xf32>
    %257 = arith.addf %253, %256 : vector<8x256xf32>
    %c0_237 = arith.constant 0 : index
    %c0_238 = arith.constant 0 : index
    %258 = vector.load %arg9[%c0_237, %c0_238] : memref<8x256xf32, #tpu.memory_space<vmem>>, vector<8x256xf32>
    tpu.vector_store %arg9[%c0_237, %c0_238], %257 {strides = array<i32>} : memref<8x256xf32, #tpu.memory_space<vmem>>, vector<8x256xf32>,
    %c184 = arith.constant 184 : index
    %c0_239 = arith.constant 0 : index
    %259 = vector.load %arg1[%c184, %c0_239] : memref<240x4xf32, #tpu.memory_space<vmem>>, vector<8x4xf32>
    %cst_240 = arith.constant dense<0.000000e+00> : vector<8x256xf32>
    %260 = tpu.matmul %259, %2, %cst_240 {dimension_numbers = #tpu.dot_dimension_numbers<[1], [0], [0], [1], [0, 0, 1, 1], [], []>} : vector<8x4xf32>, vector<4x256xf32>, vector<8x256xf32> -> vector<8x256xf32>
    %261 = arith.addf %260, %5 : vector<8x256xf32>
    %cst_241 = arith.constant 0.000000e+00 : f32
    %262 = vector.broadcast %cst_241 : f32 to vector<8x256xf32>
    %263 = arith.maximumf %261, %262 : vector<8x256xf32>
    %c0_242 = arith.constant 0 : index
    %c0_243 = arith.constant 0 : index
    %264 = vector.load %arg9[%c0_242, %c0_243] : memref<8x256xf32, #tpu.memory_space<vmem>>, vector<8x256xf32>
    %c23 = arith.constant 23 : index
    %c0_244 = arith.constant 0 : index
    %c0_245 = arith.constant 0 : index
    %265 = vector.load %arg4[%c23, %c0_244, %c0_245] : memref<30x256x256xf32, #tpu.memory_space<vmem>>, vector<1x256x256xf32>
    %266 = vector.shape_cast %265 : vector<1x256x256xf32> to vector<256x256xf32>
    %cst_246 = arith.constant dense<0.000000e+00> : vector<8x256xf32>
    %267 = tpu.matmul %263, %266, %cst_246 {dimension_numbers = #tpu.dot_dimension_numbers<[1], [0], [0], [1], [0, 0, 1, 1], [], []>} : vector<8x256xf32>, vector<256x256xf32>, vector<8x256xf32> -> vector<8x256xf32>
    %268 = arith.addf %264, %267 : vector<8x256xf32>
    %c0_247 = arith.constant 0 : index
    %c0_248 = arith.constant 0 : index
    %269 = vector.load %arg9[%c0_247, %c0_248] : memref<8x256xf32, #tpu.memory_space<vmem>>, vector<8x256xf32>
    tpu.vector_store %arg9[%c0_247, %c0_248], %268 {strides = array<i32>} : memref<8x256xf32, #tpu.memory_space<vmem>>, vector<8x256xf32>,
    %c192 = arith.constant 192 : index
    %c0_249 = arith.constant 0 : index
    %270 = vector.load %arg1[%c192, %c0_249] : memref<240x4xf32, #tpu.memory_space<vmem>>, vector<8x4xf32>
    %cst_250 = arith.constant dense<0.000000e+00> : vector<8x256xf32>
    %271 = tpu.matmul %270, %2, %cst_250 {dimension_numbers = #tpu.dot_dimension_numbers<[1], [0], [0], [1], [0, 0, 1, 1], [], []>} : vector<8x4xf32>, vector<4x256xf32>, vector<8x256xf32> -> vector<8x256xf32>
    %272 = arith.addf %271, %5 : vector<8x256xf32>
    %cst_251 = arith.constant 0.000000e+00 : f32
    %273 = vector.broadcast %cst_251 : f32 to vector<8x256xf32>
    %274 = arith.maximumf %272, %273 : vector<8x256xf32>
    %c0_252 = arith.constant 0 : index
    %c0_253 = arith.constant 0 : index
    %275 = vector.load %arg9[%c0_252, %c0_253] : memref<8x256xf32, #tpu.memory_space<vmem>>, vector<8x256xf32>
    %c24_254 = arith.constant 24 : index
    %c0_255 = arith.constant 0 : index
    %c0_256 = arith.constant 0 : index
    %276 = vector.load %arg4[%c24_254, %c0_255, %c0_256] : memref<30x256x256xf32, #tpu.memory_space<vmem>>, vector<1x256x256xf32>
    %277 = vector.shape_cast %276 : vector<1x256x256xf32> to vector<256x256xf32>
    %cst_257 = arith.constant dense<0.000000e+00> : vector<8x256xf32>
    %278 = tpu.matmul %274, %277, %cst_257 {dimension_numbers = #tpu.dot_dimension_numbers<[1], [0], [0], [1], [0, 0, 1, 1], [], []>} : vector<8x256xf32>, vector<256x256xf32>, vector<8x256xf32> -> vector<8x256xf32>
    %279 = arith.addf %275, %278 : vector<8x256xf32>
    %c0_258 = arith.constant 0 : index
    %c0_259 = arith.constant 0 : index
    %280 = vector.load %arg9[%c0_258, %c0_259] : memref<8x256xf32, #tpu.memory_space<vmem>>, vector<8x256xf32>
    tpu.vector_store %arg9[%c0_258, %c0_259], %279 {strides = array<i32>} : memref<8x256xf32, #tpu.memory_space<vmem>>, vector<8x256xf32>,
    %c200 = arith.constant 200 : index
    %c0_260 = arith.constant 0 : index
    %281 = vector.load %arg1[%c200, %c0_260] : memref<240x4xf32, #tpu.memory_space<vmem>>, vector<8x4xf32>
    %cst_261 = arith.constant dense<0.000000e+00> : vector<8x256xf32>
    %282 = tpu.matmul %281, %2, %cst_261 {dimension_numbers = #tpu.dot_dimension_numbers<[1], [0], [0], [1], [0, 0, 1, 1], [], []>} : vector<8x4xf32>, vector<4x256xf32>, vector<8x256xf32> -> vector<8x256xf32>
    %283 = arith.addf %282, %5 : vector<8x256xf32>
    %cst_262 = arith.constant 0.000000e+00 : f32
    %284 = vector.broadcast %cst_262 : f32 to vector<8x256xf32>
    %285 = arith.maximumf %283, %284 : vector<8x256xf32>
    %c0_263 = arith.constant 0 : index
    %c0_264 = arith.constant 0 : index
    %286 = vector.load %arg9[%c0_263, %c0_264] : memref<8x256xf32, #tpu.memory_space<vmem>>, vector<8x256xf32>
    %c25 = arith.constant 25 : index
    %c0_265 = arith.constant 0 : index
    %c0_266 = arith.constant 0 : index
    %287 = vector.load %arg4[%c25, %c0_265, %c0_266] : memref<30x256x256xf32, #tpu.memory_space<vmem>>, vector<1x256x256xf32>
    %288 = vector.shape_cast %287 : vector<1x256x256xf32> to vector<256x256xf32>
    %cst_267 = arith.constant dense<0.000000e+00> : vector<8x256xf32>
    %289 = tpu.matmul %285, %288, %cst_267 {dimension_numbers = #tpu.dot_dimension_numbers<[1], [0], [0], [1], [0, 0, 1, 1], [], []>} : vector<8x256xf32>, vector<256x256xf32>, vector<8x256xf32> -> vector<8x256xf32>
    %290 = arith.addf %286, %289 : vector<8x256xf32>
    %c0_268 = arith.constant 0 : index
    %c0_269 = arith.constant 0 : index
    %291 = vector.load %arg9[%c0_268, %c0_269] : memref<8x256xf32, #tpu.memory_space<vmem>>, vector<8x256xf32>
    tpu.vector_store %arg9[%c0_268, %c0_269], %290 {strides = array<i32>} : memref<8x256xf32, #tpu.memory_space<vmem>>, vector<8x256xf32>,
    %c208 = arith.constant 208 : index
    %c0_270 = arith.constant 0 : index
    %292 = vector.load %arg1[%c208, %c0_270] : memref<240x4xf32, #tpu.memory_space<vmem>>, vector<8x4xf32>
    %cst_271 = arith.constant dense<0.000000e+00> : vector<8x256xf32>
    %293 = tpu.matmul %292, %2, %cst_271 {dimension_numbers = #tpu.dot_dimension_numbers<[1], [0], [0], [1], [0, 0, 1, 1], [], []>} : vector<8x4xf32>, vector<4x256xf32>, vector<8x256xf32> -> vector<8x256xf32>
    %294 = arith.addf %293, %5 : vector<8x256xf32>
    %cst_272 = arith.constant 0.000000e+00 : f32
    %295 = vector.broadcast %cst_272 : f32 to vector<8x256xf32>
    %296 = arith.maximumf %294, %295 : vector<8x256xf32>
    %c0_273 = arith.constant 0 : index
    %c0_274 = arith.constant 0 : index
    %297 = vector.load %arg9[%c0_273, %c0_274] : memref<8x256xf32, #tpu.memory_space<vmem>>, vector<8x256xf32>
    %c26 = arith.constant 26 : index
    %c0_275 = arith.constant 0 : index
    %c0_276 = arith.constant 0 : index
    %298 = vector.load %arg4[%c26, %c0_275, %c0_276] : memref<30x256x256xf32, #tpu.memory_space<vmem>>, vector<1x256x256xf32>
    %299 = vector.shape_cast %298 : vector<1x256x256xf32> to vector<256x256xf32>
    %cst_277 = arith.constant dense<0.000000e+00> : vector<8x256xf32>
    %300 = tpu.matmul %296, %299, %cst_277 {dimension_numbers = #tpu.dot_dimension_numbers<[1], [0], [0], [1], [0, 0, 1, 1], [], []>} : vector<8x256xf32>, vector<256x256xf32>, vector<8x256xf32> -> vector<8x256xf32>
    %301 = arith.addf %297, %300 : vector<8x256xf32>
    %c0_278 = arith.constant 0 : index
    %c0_279 = arith.constant 0 : index
    %302 = vector.load %arg9[%c0_278, %c0_279] : memref<8x256xf32, #tpu.memory_space<vmem>>, vector<8x256xf32>
    tpu.vector_store %arg9[%c0_278, %c0_279], %301 {strides = array<i32>} : memref<8x256xf32, #tpu.memory_space<vmem>>, vector<8x256xf32>,
    %c216 = arith.constant 216 : index
    %c0_280 = arith.constant 0 : index
    %303 = vector.load %arg1[%c216, %c0_280] : memref<240x4xf32, #tpu.memory_space<vmem>>, vector<8x4xf32>
    %cst_281 = arith.constant dense<0.000000e+00> : vector<8x256xf32>
    %304 = tpu.matmul %303, %2, %cst_281 {dimension_numbers = #tpu.dot_dimension_numbers<[1], [0], [0], [1], [0, 0, 1, 1], [], []>} : vector<8x4xf32>, vector<4x256xf32>, vector<8x256xf32> -> vector<8x256xf32>
    %305 = arith.addf %304, %5 : vector<8x256xf32>
    %cst_282 = arith.constant 0.000000e+00 : f32
    %306 = vector.broadcast %cst_282 : f32 to vector<8x256xf32>
    %307 = arith.maximumf %305, %306 : vector<8x256xf32>
    %c0_283 = arith.constant 0 : index
    %c0_284 = arith.constant 0 : index
    %308 = vector.load %arg9[%c0_283, %c0_284] : memref<8x256xf32, #tpu.memory_space<vmem>>, vector<8x256xf32>
    %c27 = arith.constant 27 : index
    %c0_285 = arith.constant 0 : index
    %c0_286 = arith.constant 0 : index
    %309 = vector.load %arg4[%c27, %c0_285, %c0_286] : memref<30x256x256xf32, #tpu.memory_space<vmem>>, vector<1x256x256xf32>
    %310 = vector.shape_cast %309 : vector<1x256x256xf32> to vector<256x256xf32>
    %cst_287 = arith.constant dense<0.000000e+00> : vector<8x256xf32>
    %311 = tpu.matmul %307, %310, %cst_287 {dimension_numbers = #tpu.dot_dimension_numbers<[1], [0], [0], [1], [0, 0, 1, 1], [], []>} : vector<8x256xf32>, vector<256x256xf32>, vector<8x256xf32> -> vector<8x256xf32>
    %312 = arith.addf %308, %311 : vector<8x256xf32>
    %c0_288 = arith.constant 0 : index
    %c0_289 = arith.constant 0 : index
    %313 = vector.load %arg9[%c0_288, %c0_289] : memref<8x256xf32, #tpu.memory_space<vmem>>, vector<8x256xf32>
    tpu.vector_store %arg9[%c0_288, %c0_289], %312 {strides = array<i32>} : memref<8x256xf32, #tpu.memory_space<vmem>>, vector<8x256xf32>,
    %c224 = arith.constant 224 : index
    %c0_290 = arith.constant 0 : index
    %314 = vector.load %arg1[%c224, %c0_290] : memref<240x4xf32, #tpu.memory_space<vmem>>, vector<8x4xf32>
    %cst_291 = arith.constant dense<0.000000e+00> : vector<8x256xf32>
    %315 = tpu.matmul %314, %2, %cst_291 {dimension_numbers = #tpu.dot_dimension_numbers<[1], [0], [0], [1], [0, 0, 1, 1], [], []>} : vector<8x4xf32>, vector<4x256xf32>, vector<8x256xf32> -> vector<8x256xf32>
    %316 = arith.addf %315, %5 : vector<8x256xf32>
    %cst_292 = arith.constant 0.000000e+00 : f32
    %317 = vector.broadcast %cst_292 : f32 to vector<8x256xf32>
    %318 = arith.maximumf %316, %317 : vector<8x256xf32>
    %c0_293 = arith.constant 0 : index
    %c0_294 = arith.constant 0 : index
    %319 = vector.load %arg9[%c0_293, %c0_294] : memref<8x256xf32, #tpu.memory_space<vmem>>, vector<8x256xf32>
    %c28 = arith.constant 28 : index
    %c0_295 = arith.constant 0 : index
    %c0_296 = arith.constant 0 : index
    %320 = vector.load %arg4[%c28, %c0_295, %c0_296] : memref<30x256x256xf32, #tpu.memory_space<vmem>>, vector<1x256x256xf32>
    %321 = vector.shape_cast %320 : vector<1x256x256xf32> to vector<256x256xf32>
    %cst_297 = arith.constant dense<0.000000e+00> : vector<8x256xf32>
    %322 = tpu.matmul %318, %321, %cst_297 {dimension_numbers = #tpu.dot_dimension_numbers<[1], [0], [0], [1], [0, 0, 1, 1], [], []>} : vector<8x256xf32>, vector<256x256xf32>, vector<8x256xf32> -> vector<8x256xf32>
    %323 = arith.addf %319, %322 : vector<8x256xf32>
    %c0_298 = arith.constant 0 : index
    %c0_299 = arith.constant 0 : index
    %324 = vector.load %arg9[%c0_298, %c0_299] : memref<8x256xf32, #tpu.memory_space<vmem>>, vector<8x256xf32>
    tpu.vector_store %arg9[%c0_298, %c0_299], %323 {strides = array<i32>} : memref<8x256xf32, #tpu.memory_space<vmem>>, vector<8x256xf32>,
    %c232 = arith.constant 232 : index
    %c0_300 = arith.constant 0 : index
    %325 = vector.load %arg1[%c232, %c0_300] : memref<240x4xf32, #tpu.memory_space<vmem>>, vector<8x4xf32>
    %cst_301 = arith.constant dense<0.000000e+00> : vector<8x256xf32>
    %326 = tpu.matmul %325, %2, %cst_301 {dimension_numbers = #tpu.dot_dimension_numbers<[1], [0], [0], [1], [0, 0, 1, 1], [], []>} : vector<8x4xf32>, vector<4x256xf32>, vector<8x256xf32> -> vector<8x256xf32>
    %327 = arith.addf %326, %5 : vector<8x256xf32>
    %cst_302 = arith.constant 0.000000e+00 : f32
    %328 = vector.broadcast %cst_302 : f32 to vector<8x256xf32>
    %329 = arith.maximumf %327, %328 : vector<8x256xf32>
    %c0_303 = arith.constant 0 : index
    %c0_304 = arith.constant 0 : index
    %330 = vector.load %arg9[%c0_303, %c0_304] : memref<8x256xf32, #tpu.memory_space<vmem>>, vector<8x256xf32>
    %c29 = arith.constant 29 : index
    %c0_305 = arith.constant 0 : index
    %c0_306 = arith.constant 0 : index
    %331 = vector.load %arg4[%c29, %c0_305, %c0_306] : memref<30x256x256xf32, #tpu.memory_space<vmem>>, vector<1x256x256xf32>
    %332 = vector.shape_cast %331 : vector<1x256x256xf32> to vector<256x256xf32>
    %cst_307 = arith.constant dense<0.000000e+00> : vector<8x256xf32>
    %333 = tpu.matmul %329, %332, %cst_307 {dimension_numbers = #tpu.dot_dimension_numbers<[1], [0], [0], [1], [0, 0, 1, 1], [], []>} : vector<8x256xf32>, vector<256x256xf32>, vector<8x256xf32> -> vector<8x256xf32>
    %334 = arith.addf %330, %333 : vector<8x256xf32>
    %c0_308 = arith.constant 0 : index
    %c0_309 = arith.constant 0 : index
    %335 = vector.load %arg9[%c0_308, %c0_309] : memref<8x256xf32, #tpu.memory_space<vmem>>, vector<8x256xf32>
    tpu.vector_store %arg9[%c0_308, %c0_309], %334 {strides = array<i32>} : memref<8x256xf32, #tpu.memory_space<vmem>>, vector<8x256xf32>,
    %c0_310 = arith.constant 0 : index
    %c0_311 = arith.constant 0 : index
    %336 = vector.load %arg9[%c0_310, %c0_311] : memref<8x256xf32, #tpu.memory_space<vmem>>, vector<8x256xf32>
    %c0_312 = arith.constant 0 : index
    %c0_313 = arith.constant 0 : index
    %337 = vector.load %arg5[%c0_312, %c0_313] : memref<1x256xf32, #tpu.memory_space<vmem>>, vector<1x256xf32>
    %338 = vector.broadcast %337 : vector<1x256xf32> to vector<8x256xf32>
    %339 = arith.addf %336, %338 : vector<8x256xf32>
    %cst_314 = arith.constant 0.000000e+00 : f32
    %340 = vector.broadcast %cst_314 : f32 to vector<8x256xf32>
    %341 = arith.maximumf %339, %340 : vector<8x256xf32>
    %c0_315 = arith.constant 0 : index
    %c0_316 = arith.constant 0 : index
    %342 = vector.load %arg6[%c0_315, %c0_316] : memref<256x128xf32, #tpu.memory_space<vmem>>, vector<256x128xf32>
    %cst_317 = arith.constant dense<0.000000e+00> : vector<8x128xf32>
    %343 = tpu.matmul %341, %342, %cst_317 {dimension_numbers = #tpu.dot_dimension_numbers<[1], [0], [0], [1], [0, 0, 1, 1], [], []>} : vector<8x256xf32>, vector<256x128xf32>, vector<8x128xf32> -> vector<8x128xf32>
    %c0_318 = arith.constant 0 : index
    %c0_319 = arith.constant 0 : index
    %344 = vector.load %arg7[%c0_318, %c0_319] : memref<1x128xf32, #tpu.memory_space<vmem>>, vector<1x128xf32>
    %345 = vector.broadcast %344 : vector<1x128xf32> to vector<8x128xf32>
    %346 = arith.addf %343, %345 : vector<8x128xf32>
    %c0_320 = arith.constant 0 : index
    %c0_321 = arith.constant 0 : index
    %347 = vector.load %arg8[%c0_320, %c0_321] : memref<8x128xf32, #tpu.memory_space<vmem>>, vector<8x128xf32>
    tpu.vector_store %arg8[%c0_320, %c0_321], %346 {strides = array<i32>} : memref<8x128xf32, #tpu.memory_space<vmem>>, vector<8x128xf32>,
    return
  }
  func.func @transform_0(%arg0: i32) -> (i32, i32) {
    %c0_i32 = arith.constant 0 : i32
    %c0_i32_0 = arith.constant 0 : i32
    return %arg0, %c0_i32 : i32, i32
  }
  func.func @transform_1(%arg0: i32) -> (i32, i32) {
    %c0_i32 = arith.constant 0 : i32
    %c0_i32_0 = arith.constant 0 : i32
    %c0_i32_1 = arith.constant 0 : i32
    return %c0_i32, %c0_i32_0 : i32, i32
  }
  func.func @transform_2(%arg0: i32) -> (i32, i32) {
    %c0_i32 = arith.constant 0 : i32
    %c0_i32_0 = arith.constant 0 : i32
    %c0_i32_1 = arith.constant 0 : i32
    return %c0_i32, %c0_i32_0 : i32, i32
  }
  func.func @transform_3(%arg0: i32) -> (i32, i32, i32) {
    %c0_i32 = arith.constant 0 : i32
    %c0_i32_0 = arith.constant 0 : i32
    %c0_i32_1 = arith.constant 0 : i32
    %c0_i32_2 = arith.constant 0 : i32
    return %c0_i32, %c0_i32_0, %c0_i32_1 : i32, i32, i32
  }
  func.func @transform_4(%arg0: i32) -> (i32, i32) {
    %c0_i32 = arith.constant 0 : i32
    %c0_i32_0 = arith.constant 0 : i32
    %c0_i32_1 = arith.constant 0 : i32
    return %c0_i32, %c0_i32_0 : i32, i32
  }
  func.func @transform_5(%arg0: i32) -> (i32, i32) {
    %c0_i32 = arith.constant 0 : i32
    %c0_i32_0 = arith.constant 0 : i32
    %c0_i32_1 = arith.constant 0 : i32
    return %c0_i32, %c0_i32_0 : i32, i32
  }
  func.func @transform_6(%arg0: i32) -> (i32, i32) {
    %c0_i32 = arith.constant 0 : i32
    %c0_i32_0 = arith.constant 0 : i32
    %c0_i32_1 = arith.constant 0 : i32
    return %c0_i32, %c0_i32_0 : i32, i32
  }
  func.func @transform_7(%arg0: i32) -> (i32, i32) {
    %c0_i32 = arith.constant 0 : i32
    %c0_i32_0 = arith.constant 0 : i32
    return %arg0, %c0_i32 : i32, i32
  }
}

</mosaic_0001>

<llo_original>
// kernel: fwd.1
$region0: #{fwd.1}
  #allocation0 [shape = 'u32[]', space=smem, size = 0x4, offset = 0x4, fixed_abs, tag = 'smem constant byte address 0x4 - core index']
  #allocation1 [shape = 'u32[72,128]{1,0:T(1,128)}', space=vmem, size = 0x9000, scoped, tag = 'internal scratch']
  #allocation2 [shape = 'f32[8,256]{1,0:T(8,128)}', space=vmem, size = 0x2000, scoped, tag = 'scratch operand']
  %s0 = inlined_call_operand.vmem [shape: f32[240,4], index: 0, kind: input, shape index: {}]
  %s1 = inlined_call_operand.hbm [shape: f32[4,256], index: 1, kind: input, shape index: {}]
  %s2 = inlined_call_operand.hbm [shape: f32[1,256], index: 2, kind: input, shape index: {}]
  %s3 = inlined_call_operand.hbm [shape: f32[30,256,256], index: 3, kind: input, shape index: {}]
  %s4 = inlined_call_operand.hbm [shape: f32[1,256], index: 4, kind: input, shape index: {}]
  %s5 = inlined_call_operand.hbm [shape: f32[256,128], index: 5, kind: input, shape index: {}]
  %s6 = inlined_call_operand.hbm [shape: f32[1,128], index: 6, kind: input, shape index: {}]
  %s7 = inlined_call_operand.vmem [shape: f32[8,128], index: 7, kind: output, shape index: {}]
  %s8 = sld [smem:[#allocation0]]
  $region62: #{fwd.1} parent=0
    _
  %s10 = ssub.s32 1, %s8
  %s11 = scalar_select 0, %s10, %s8
  $region1: #{fwd.1} parent=0
    #allocation3 [shape = 'u8[4096]{0}', space=vmem, size = 0x1000, scoped, tag = 'input window, operand 1, single buffered']
    #allocation4 [shape = 's32[1]{0}', space=sflag, size = 0x4, scoped, tag = 'scoped memory for fwd.1']
    #allocation5 [shape = 'u8[1024]{0}', space=vmem, size = 0x400, scoped, tag = 'input window, operand 2, single buffered']
    #allocation6 [shape = 's32[1]{0}', space=sflag, size = 0x4, scoped, tag = 'scoped memory for fwd.1']
    #allocation7 [shape = 'u8[7864320]{0}', space=vmem, size = 0x780000, scoped, tag = 'input window, operand 3, single buffered']
    #allocation8 [shape = 'u8[1024]{0}', space=vmem, size = 0x400, scoped, tag = 'input window, operand 4, single buffered']
    #allocation9 [shape = 's32[1]{0}', space=sflag, size = 0x4, scoped, tag = 'scoped memory for fwd.1']
    #allocation10 [shape = 'u8[131072]{0}', space=vmem, size = 0x20000, scoped, tag = 'input window, operand 5, single buffered']
    #allocation11 [shape = 'u8[512]{0}', space=vmem, size = 0x400, scoped, tag = 'input window, operand 6, single buffered']
    #allocation12 [shape = 's32[1]{0}', space=sflag, size = 0x4, scoped, tag = 'scoped memory for fwd.1']
    %12 = vsyncpa [#allocation4], 0
    %13 = vsyncpa [#allocation6], 0
    %14 = vsyncpa [#allocation9], 0
    %15 = vsyncpa [#allocation12], 0
    // Predicated region
    $region2: #{fwd.1} parent=1 // pred_check
      _
    $region3: #{fwd.1} parent=1 // pred_check_branch
      %17 = sbr.rel (0) target = $region5
    $region4: #{fwd.1} parent=1 // pred_region
      _
    $region5: #{fwd.1} parent=1 // pred_fallthru
      _
    // Predicated region
    $region6: #{fwd.1} parent=1 // pred_check
      _
    $region7: #{fwd.1} parent=1 // pred_check_branch
      %19 = sbr.rel (0) target = $region9
    $region8: #{fwd.1} parent=1 // pred_region
      %21 = vsyncadd [#allocation4], 0
      %s23 = sshll.u32 %s1, 4
      %s24 = int_to_ptr.hbm [resolvable:$true] %s23
      %s25 = sshll.u32 [#allocation3], 4
      %s26 = int_to_ptr.vmem [resolvable:$true] %s25
      %28 = dma.hbm_to_vmem [thread:$0]  %s24, 128, %s26, [#allocation4]
    $region9: #{fwd.1} parent=1 // pred_fallthru
      _
    // Predicated region
    $region10: #{fwd.1} parent=1 // pred_check
      _
    $region11: #{fwd.1} parent=1 // pred_check_branch
      %30 = sbr.rel (0) target = $region13
    $region12: #{fwd.1} parent=1 // pred_region
      %32 = vsyncadd [#allocation6], 0
      %s34 = sshll.u32 %s2, 4
      %s35 = int_to_ptr.hbm [resolvable:$true] %s34
      %s36 = sshll.u32 [#allocation5], 4
      %s37 = int_to_ptr.vmem [resolvable:$true] %s36
      %39 = dma.hbm_to_vmem [thread:$0]  %s35, 32, %s37, [#allocation6]
    $region13: #{fwd.1} parent=1 // pred_fallthru
      _
    // Predicated region
    $region14: #{fwd.1} parent=1 // pred_check
      _
    $region15: #{fwd.1} parent=1 // pred_check_branch
      %41 = sbr.rel (0) target = $region17
    $region16: #{fwd.1} parent=1 // pred_region
      %43 = vsyncadd [#allocation6], 0
      %s44 = sshll.u32 %s3, 4
      %s45 = int_to_ptr.hbm [resolvable:$true] %s44
      %s46 = sshll.u32 [#allocation7], 4
      %s47 = int_to_ptr.vmem [resolvable:$true] %s46
      %52 = dma.hbm_to_vmem [thread:$0]  %s45, 245760, %s47, [#allocation6], 256, 256, 16
    $region17: #{fwd.1} parent=1 // pred_fallthru
      _
    // Predicated region
    $region18: #{fwd.1} parent=1 // pred_check
      _
    $region19: #{fwd.1} parent=1 // pred_check_branch
      %54 = sbr.rel (0) target = $region21
    $region20: #{fwd.1} parent=1 // pred_region
      %56 = vsyncadd [#allocation9], 0
      %s58 = sshll.u32 %s4, 4
      %s59 = int_to_ptr.hbm [resolvable:$true] %s58
      %s60 = sshll.u32 [#allocation8], 4
      %s61 = int_to_ptr.vmem [resolvable:$true] %s60
      %63 = dma.hbm_to_vmem [thread:$0]  %s59, 32, %s61, [#allocation9]
    $region21: #{fwd.1} parent=1 // pred_fallthru
      _
    // Predicated region
    $region22: #{fwd.1} parent=1 // pred_check
      _
    $region23: #{fwd.1} parent=1 // pred_check_branch
      %65 = sbr.rel (0) target = $region25
    $region24: #{fwd.1} parent=1 // pred_region
      %67 = vsyncadd [#allocation9], 0
      %s68 = sshll.u32 %s5, 4
      %s69 = int_to_ptr.hbm [resolvable:$true] %s68
      %s70 = sshll.u32 [#allocation10], 4
      %s71 = int_to_ptr.vmem [resolvable:$true] %s70
      %76 = dma.hbm_to_vmem [thread:$0]  %s69, 4096, %s71, [#allocation9], 128, 128, 8
    $region25: #{fwd.1} parent=1 // pred_fallthru
      _
    // Predicated region
    $region26: #{fwd.1} parent=1 // pred_check
      _
    $region27: #{fwd.1} parent=1 // pred_check_branch
      %78 = sbr.rel (0) target = $region29
    $region28: #{fwd.1} parent=1 // pred_region
      %80 = vsyncadd [#allocation12], 0
      %s82 = sshll.u32 %s6, 4
      %s83 = int_to_ptr.hbm [resolvable:$true] %s82
      %s84 = sshll.u32 [#allocation11], 4
      %s85 = int_to_ptr.vmem [resolvable:$true] %s84
      %87 = dma.hbm_to_vmem [thread:$0]  %s83, 16, %s85, [#allocation12]
    $region29: #{fwd.1} parent=1 // pred_fallthru
      _
    // Predicated region
    $region30: #{fwd.1} parent=1 // pred_check
      _
    $region31: #{fwd.1} parent=1 // pred_check_branch
      %89 = sbr.rel (0) target = $region33
    $region32: #{fwd.1} parent=1 // pred_region
      %91 = dma.done [#allocation4], 128
    $region33: #{fwd.1} parent=1 // pred_fallthru
      _
    // Predicated region
    $region34: #{fwd.1} parent=1 // pred_check
      _
    $region35: #{fwd.1} parent=1 // pred_check_branch
      %93 = sbr.rel (0) target = $region37
    $region36: #{fwd.1} parent=1 // pred_region
      %95 = dma.done [#allocation6], 32
    $region37: #{fwd.1} parent=1 // pred_fallthru
      _
    // Predicated region
    $region38: #{fwd.1} parent=1 // pred_check
      _
    $region39: #{fwd.1} parent=1 // pred_check_branch
      %97 = sbr.rel (0) target = $region41
    $region40: #{fwd.1} parent=1 // pred_region
      %99 = dma.done [#allocation6], 245760
    $region41: #{fwd.1} parent=1 // pred_fallthru
      _
    // Predicated region
    $region42: #{fwd.1} parent=1 // pred_check
      _
    $region43: #{fwd.1} parent=1 // pred_check_branch
      %101 = sbr.rel (0) target = $region45
    $region44: #{fwd.1} parent=1 // pred_region
      %103 = dma.done [#allocation9], 32
    $region45: #{fwd.1} parent=1 // pred_fallthru
      _
    // Predicated region
    $region46: #{fwd.1} parent=1 // pred_check
      _
    $region47: #{fwd.1} parent=1 // pred_check_branch
      %105 = sbr.rel (0) target = $region49
    $region48: #{fwd.1} parent=1 // pred_region
      %107 = dma.done [#allocation9], 4096
    $region49: #{fwd.1} parent=1 // pred_fallthru
      _
    // Predicated region
    $region50: #{fwd.1} parent=1 // pred_check
      _
    $region51: #{fwd.1} parent=1 // pred_check_branch
      %109 = sbr.rel (0) target = $region53
    $region52: #{fwd.1} parent=1 // pred_region
      %111 = dma.done [#allocation12], 16
    $region53: #{fwd.1} parent=1 // pred_fallthru
      _
    %112 = vst [vmem:[#allocation2] sm:$0xff] 0.0
    %113 = vst [vmem:[#allocation2 + $0x8] sm:$0xff] 0.0
    %v114 = vld [vmem:[#allocation3] sm:$0xff]
    %v115 = vld [vmem:[#allocation5] sm:$0x3]
    %v117 = vperm.slane %v115, 0
    %v118 = vperm.slane %v115, 1
    %v121 = vld [vmem:[%s0] sm:$0xff]
    %123 = vst [vmem:[#allocation1] ss:$2 sm:$0xff] %v114
    %v124 = vld.sshfl [vmem:[#allocation1] sm:$0xff pattern:$0x75316420]
    %v125 = vld.sshfl [vmem:[#allocation1 + $0x8] sm:$0xff pattern:$0x75316420]
    %vm126 = vcmask 31744
    %v128 = vsel %vm126, %v121, 0
    %vm130 = vcmask 1043456
    %v131 = vsel %vm130, %v124, 0
    %v133 = vsel %vm130, %v125, 0
    %135 = vmatpush.msra.mxu0 0.0
    %136 = vmatpush.msra.mxu0 0.0
    %137 = vmatpush.msra.mxu0 0.0
    %138 = vmatpush.msra.mxu0 0.0
    %139 = vmatpush.msra.mxu0 0.0
    %140 = vmatpush.msra.mxu0 0.0
    %141 = vmatpush.msra.mxu0 0.0
    %142 = vmatpush.msra.mxu0 0.0
    %143 = vmatpush.msra.mxu0 0.0
    %144 = vmatpush.msra.mxu0 0.0
    %145 = vmatpush.msra.mxu0 0.0
    %146 = vmatpush.msra.mxu0 0.0
    %147 = vmatpush.msra.mxu0 0.0
    %148 = vmatpush.msra.mxu0 0.0
    %149 = vmatpush.msra.mxu0 0.0
    %150 = vmatpush.msra.mxu0 %v131
    %151 = vmatmul.f32.gmra.mxu0 %v128
    %v152 = vpop.f32.mrf.mxu0
    %v153 = vadd.f32 %v117, %v152
    %154 = vdwg.mxu0
    %155 = vmatpush.msra.mxu0 0.0
    %156 = vmatpush.msra.mxu0 0.0
    %157 = vmatpush.msra.mxu0 0.0
    %158 = vmatpush.msra.mxu0 0.0
    %159 = vmatpush.msra.mxu0 0.0
    %160 = vmatpush.msra.mxu0 0.0
    %161 = vmatpush.msra.mxu0 0.0
    %162 = vmatpush.msra.mxu0 0.0
    %163 = vmatpush.msra.mxu0 0.0
    %164 = vmatpush.msra.mxu0 0.0
    %165 = vmatpush.msra.mxu0 0.0
    %166 = vmatpush.msra.mxu0 0.0
    %167 = vmatpush.msra.mxu0 0.0
    %168 = vmatpush.msra.mxu0 0.0
    %169 = vmatpush.msra.mxu0 0.0
    %170 = vmatpush.msra.mxu0 %v133
    %171 = vmatmul.f32.gmra.mxu0 %v128
    %v172 = vpop.f32.mrf.mxu0
    %v173 = vadd.f32 %v118, %v172
    %174 = vdwg.mxu0
    %v175 = vmax.f32 %v153, 0.0
    %v176 = vmax.f32 %v173, 0.0
    %v177 = vld [vmem:[#allocation2] sm:$0xff]
    %v178 = vld [vmem:[#allocation2 + $0x8] sm:$0xff]
    %v179 = vld [vmem:[#allocation7] sm:$0xff]
    %v180 = vld [vmem:[#allocation7 + $0x8] sm:$0xff]
    %v181 = vld [vmem:[#allocation7 + $0x10] sm:$0xff]
    %v182 = vld [vmem:[#allocation7 + $0x18] sm:$0xff]
    %v183 = vld [vmem:[#allocation7 + $0x20] sm:$0xff]
    %v184 = vld [vmem:[#allocation7 + $0x28] sm:$0xff]
    %v185 = vld [vmem:[#allocation7 + $0x30] sm:$0xff]
    %v186 = vld [vmem:[#allocation7 + $0x38] sm:$0xff]
    %v187 = vld [vmem:[#allocation7 + $0x40] sm:$0xff]
    %v188 = vld [vmem:[#allocation7 + $0x48] sm:$0xff]
    %v189 = vld [vmem:[#allocation7 + $0x50] sm:$0xff]
    %v190 = vld [vmem:[#allocation7 + $0x58] sm:$0xff]
    %v191 = vld [vmem:[#allocation7 + $0x60] sm:$0xff]
    %v192 = vld [vmem:[#allocation7 + $0x68] sm:$0xff]
    %v193 = vld [vmem:[#allocation7 + $0x70] sm:$0xff]
    %v194 = vld [vmem:[#allocation7 + $0x78] sm:$0xff]
    %v195 = vld [vmem:[#allocation7 + $0x80] sm:$0xff]
    %v196 = vld [vmem:[#allocation7 + $0x88] sm:$0xff]
    %v197 = vld [vmem:[#allocation7 + $0x90] sm:$0xff]
    %v198 = vld [vmem:[#allocation7 + $0x98] sm:$0xff]
    %v199 = vld [vmem:[#allocation7 + $0xa0] sm:$0xff]
    %v200 = vld [vmem:[#allocation7 + $0xa8] sm:$0xff]
    %v201 = vld [vmem:[#allocation7 + $0xb0] sm:$0xff]
    %v202 = vld [vmem:[#allocation7 + $0xb8] sm:$0xff]
    %v203 = vld [vmem:[#allocation7 + $0xc0] sm:$0xff]
    %v204 = vld [vmem:[#allocation7 + $0xc8] sm:$0xff]
    %v205 = vld [vmem:[#allocation7 + $0xd0] sm:$0xff]
    %v206 = vld [vmem:[#allocation7 + $0xd8] sm:$0xff]
    %v207 = vld [vmem:[#allocation7 + $0xe0] sm:$0xff]
    %v208 = vld [vmem:[#allocation7 + $0xe8] sm:$0xff]
    %v209 = vld [vmem:[#allocation7 + $0xf0] sm:$0xff]
    %v210 = vld [vmem:[#allocation7 + $0xf8] sm:$0xff]
    %v211 = vld [vmem:[#allocation7 + $0x100] sm:$0xff]
    %v212 = vld [vmem:[#allocation7 + $0x108] sm:$0xff]
    %v213 = vld [vmem:[#allocation7 + $0x110] sm:$0xff]
    %v214 = vld [vmem:[#allocation7 + $0x118] sm:$0xff]
    %v215 = vld [vmem:[#allocation7 + $0x120] sm:$0xff]
    %v216 = vld [vmem:[#allocation7 + $0x128] sm:$0xff]
    %v217 = vld [vmem:[#allocation7 + $0x130] sm:$0xff]
    %v218 = vld [vmem:[#allocation7 + $0x138] sm:$0xff]
    %v219 = vld [vmem:[#allocation7 + $0x140] sm:$0xff]
    %v220 = vld [vmem:[#allocation7 + $0x148] sm:$0xff]
    %v221 = vld [vmem:[#allocation7 + $0x150] sm:$0xff]
    %v222 = vld [vmem:[#allocation7 + $0x158] sm:$0xff]
    %v223 = vld [vmem:[#allocation7 + $0x160] sm:$0xff]
    %v224 = vld [vmem:[#allocation7 + $0x168] sm:$0xff]
    %v225 = vld [vmem:[#allocation7 + $0x170] sm:$0xff]
    %v226 = vld [vmem:[#allocation7 + $0x178] sm:$0xff]
    %v227 = vld [vmem:[#allocation7 + $0x180] sm:$0xff]
    %v228 = vld [vmem:[#allocation7 + $0x188] sm:$0xff]
    %v229 = vld [vmem:[#allocation7 + $0x190] sm:$0xff]
    %v230 = vld [vmem:[#allocation7 + $0x198] sm:$0xff]
    %v231 = vld [vmem:[#allocation7 + $0x1a0] sm:$0xff]
    %v232 = vld [vmem:[#allocation7 + $0x1a8] sm:$0xff]
    %v233 = vld [vmem:[#allocation7 + $0x1b0] sm:$0xff]
    %v234 = vld [vmem:[#allocation7 + $0x1b8] sm:$0xff]
    %v235 = vld [vmem:[#allocation7 + $0x1c0] sm:$0xff]
    %v236 = vld [vmem:[#allocation7 + $0x1c8] sm:$0xff]
    %v237 = vld [vmem:[#allocation7 + $0x1d0] sm:$0xff]
    %v238 = vld [vmem:[#allocation7 + $0x1d8] sm:$0xff]
    %v239 = vld [vmem:[#allocation7 + $0x1e0] sm:$0xff]
    %v240 = vld [vmem:[#allocation7 + $0x1e8] sm:$0xff]
    %v241 = vld [vmem:[#allocation7 + $0x1f0] sm:$0xff]
    %v242 = vld [vmem:[#allocation7 + $0x1f8] sm:$0xff]
    %243 = vmatpush.msra.mxu0 %v209
    %244 = vmatpush.msra.mxu0 %v207
    %245 = vmatpush.msra.mxu0 %v205
    %246 = vmatpush.msra.mxu0 %v203
    %247 = vmatpush.msra.mxu0 %v201
    %248 = vmatpush.msra.mxu0 %v199
    %249 = vmatpush.msra.mxu0 %v197
    %250 = vmatpush.msra.mxu0 %v195
    %251 = vmatpush.msra.mxu0 %v193
    %252 = vmatpush.msra.mxu0 %v191
    %253 = vmatpush.msra.mxu0 %v189
    %254 = vmatpush.msra.mxu0 %v187
    %255 = vmatpush.msra.mxu0 %v185
    %256 = vmatpush.msra.mxu0 %v183
    %257 = vmatpush.msra.mxu0 %v181
    %258 = vmatpush.msra.mxu0 %v179
    %259 = vmatmul.f32.gmra.mxu0 %v175
    %v260 = vpop.f32.mrf.mxu0
    %v261 = vadd.f32 0.0, %v260
    %262 = vdwg.mxu0
    %263 = vmatpush.msra.mxu0 %v241
    %264 = vmatpush.msra.mxu0 %v239
    %265 = vmatpush.msra.mxu0 %v237
    %266 = vmatpush.msra.mxu0 %v235
    %267 = vmatpush.msra.mxu0 %v233
    %268 = vmatpush.msra.mxu0 %v231
    %269 = vmatpush.msra.mxu0 %v229
    %270 = vmatpush.msra.mxu0 %v227
    %271 = vmatpush.msra.mxu0 %v225
    %272 = vmatpush.msra.mxu0 %v223
    %273 = vmatpush.msra.mxu0 %v221
    %274 = vmatpush.msra.mxu0 %v219
    %275 = vmatpush.msra.mxu0 %v217
    %276 = vmatpush.msra.mxu0 %v215
    %277 = vmatpush.msra.mxu0 %v213
    %278 = vmatpush.msra.mxu0 %v211
    %279 = vmatmul.f32.gmra.mxu0 %v176
    %v280 = vpop.f32.mrf.mxu0
    %v281 = vadd.f32 %v261, %v280
    %282 = vdwg.mxu0
    %283 = vmatpush.msra.mxu0 %v210
    %284 = vmatpush.msra.mxu0 %v208
    %285 = vmatpush.msra.mxu0 %v206
    %286 = vmatpush.msra.mxu0 %v204
    %287 = vmatpush.msra.mxu0 %v202
    %288 = vmatpush.msra.mxu0 %v200
    %289 = vmatpush.msra.mxu0 %v198
    %290 = vmatpush.msra.mxu0 %v196
    %291 = vmatpush.msra.mxu0 %v194
    %292 = vmatpush.msra.mxu0 %v192
    %293 = vmatpush.msra.mxu0 %v190
    %294 = vmatpush.msra.mxu0 %v188
    %295 = vmatpush.msra.mxu0 %v186
    %296 = vmatpush.msra.mxu0 %v184
    %297 = vmatpush.msra.mxu0 %v182
    %298 = vmatpush.msra.mxu0 %v180
    %299 = vmatmul.f32.gmra.mxu0 %v175
    %v300 = vpop.f32.mrf.mxu0
    %v301 = vadd.f32 0.0, %v300
    %302 = vdwg.mxu0
    %303 = vmatpush.msra.mxu0 %v242
    %304 = vmatpush.msra.mxu0 %v240
    %305 = vmatpush.msra.mxu0 %v238
    %306 = vmatpush.msra.mxu0 %v236
    %307 = vmatpush.msra.mxu0 %v234
    %308 = vmatpush.msra.mxu0 %v232
    %309 = vmatpush.msra.mxu0 %v230
    %310 = vmatpush.msra.mxu0 %v228
    %311 = vmatpush.msra.mxu0 %v226
    %312 = vmatpush.msra.mxu0 %v224
    %313 = vmatpush.msra.mxu0 %v222
    %314 = vmatpush.msra.mxu0 %v220
    %315 = vmatpush.msra.mxu0 %v218
    %316 = vmatpush.msra.mxu0 %v216
    %317 = vmatpush.msra.mxu0 %v214
    %318 = vmatpush.msra.mxu0 %v212
    %319 = vmatmul.f32.gmra.mxu0 %v176
    %v320 = vpop.f32.mrf.mxu0
    %v321 = vadd.f32 %v301, %v320
    %322 = vdwg.mxu0
    %v323 = vadd.f32 %v177, %v281
    %v324 = vadd.f32 %v178, %v321
    %325 = vst [vmem:[#allocation2] sm:$0xff] %v323
    %326 = vst [vmem:[#allocation2 + $0x8] sm:$0xff] %v324
    %v327 = vld [vmem:[%s0 + $0x8] sm:$0xff]
    %328 = vst [vmem:[#allocation1] ss:$2 sm:$0xff] %v114
    %v329 = vld.sshfl [vmem:[#allocation1] sm:$0xff pattern:$0x75316420]
    %v330 = vld.sshfl [vmem:[#allocation1 + $0x8] sm:$0xff pattern:$0x75316420]
    %v332 = vsel %vm126, %v327, 0
    %v334 = vsel %vm130, %v329, 0
    %v336 = vsel %vm130, %v330, 0
    %338 = vmatpush.msra.mxu0 0.0
    %339 = vmatpush.msra.mxu0 0.0
    %340 = vmatpush.msra.mxu0 0.0
    %341 = vmatpush.msra.mxu0 0.0
    %342 = vmatpush.msra.mxu0 0.0
    %343 = vmatpush.msra.mxu0 0.0
    %344 = vmatpush.msra.mxu0 0.0
    %345 = vmatpush.msra.mxu0 0.0
    %346 = vmatpush.msra.mxu0 0.0
    %347 = vmatpush.msra.mxu0 0.0
    %348 = vmatpush.msra.mxu0 0.0
    %349 = vmatpush.msra.mxu0 0.0
    %350 = vmatpush.msra.mxu0 0.0
    %351 = vmatpush.msra.mxu0 0.0
    %352 = vmatpush.msra.mxu0 0.0
    %353 = vmatpush.msra.mxu0 %v334
    %354 = vmatmul.f32.gmra.mxu0 %v332
    %v355 = vpop.f32.mrf.mxu0
    %v356 = vadd.f32 %v117, %v355
    %357 = vdwg.mxu0
    %358 = vmatpush.msra.mxu0 0.0
    %359 = vmatpush.msra.mxu0 0.0
    %360 = vmatpush.msra.mxu0 0.0
    %361 = vmatpush.msra.mxu0 0.0
    %362 = vmatpush.msra.mxu0 0.0
    %363 = vmatpush.msra.mxu0 0.0
    %364 = vmatpush.msra.mxu0 0.0
    %365 = vmatpush.msra.mxu0 0.0
    %366 = vmatpush.msra.mxu0 0.0
    %367 = vmatpush.msra.mxu0 0.0
    %368 = vmatpush.msra.mxu0 0.0
    %369 = vmatpush.msra.mxu0 0.0
    %370 = vmatpush.msra.mxu0 0.0
    %371 = vmatpush.msra.mxu0 0.0
    %372 = vmatpush.msra.mxu0 0.0
    %373 = vmatpush.msra.mxu0 %v336
    %374 = vmatmul.f32.gmra.mxu0 %v332
    %v375 = vpop.f32.mrf.mxu0
    %v376 = vadd.f32 %v118, %v375
    %377 = vdwg.mxu0
    %v378 = vmax.f32 %v356, 0.0
    %v379 = vmax.f32 %v376, 0.0
    %v380 = vld [vmem:[#allocation2] sm:$0xff]
    %v381 = vld [vmem:[#allocation2 + $0x8] sm:$0xff]
    %s382 = scalar_lea.vmem [#allocation7], 512
    %v383 = vld [vmem:[%s382] sm:$0xff]
    %v384 = vld [vmem:[%s382 + $0x8] sm:$0xff]
    %v385 = vld [vmem:[%s382 + $0x10] sm:$0xff]
    %v386 = vld [vmem:[%s382 + $0x18] sm:$0xff]
    %v387 = vld [vmem:[%s382 + $0x20] sm:$0xff]
    %v388 = vld [vmem:[%s382 + $0x28] sm:$0xff]
    %v389 = vld [vmem:[%s382 + $0x30] sm:$0xff]
    %v390 = vld [vmem:[%s382 + $0x38] sm:$0xff]
    %v391 = vld [vmem:[%s382 + $0x40] sm:$0xff]
    %v392 = vld [vmem:[%s382 + $0x48] sm:$0xff]
    %v393 = vld [vmem:[%s382 + $0x50] sm:$0xff]
    %v394 = vld [vmem:[%s382 + $0x58] sm:$0xff]
    %v395 = vld [vmem:[%s382 + $0x60] sm:$0xff]
    %v396 = vld [vmem:[%s382 + $0x68] sm:$0xff]
    %v397 = vld [vmem:[%s382 + $0x70] sm:$0xff]
    %v398 = vld [vmem:[%s382 + $0x78] sm:$0xff]
    %v399 = vld [vmem:[%s382 + $0x80] sm:$0xff]
    %v400 = vld [vmem:[%s382 + $0x88] sm:$0xff]
    %v401 = vld [vmem:[%s382 + $0x90] sm:$0xff]
    %v402 = vld [vmem:[%s382 + $0x98] sm:$0xff]
    %v403 = vld [vmem:[%s382 + $0xa0] sm:$0xff]
    %v404 = vld [vmem:[%s382 + $0xa8] sm:$0xff]
    %v405 = vld [vmem:[%s382 + $0xb0] sm:$0xff]
    %v406 = vld [vmem:[%s382 + $0xb8] sm:$0xff]
    %v407 = vld [vmem:[%s382 + $0xc0] sm:$0xff]
    %v408 = vld [vmem:[%s382 + $0xc8] sm:$0xff]
    %v409 = vld [vmem:[%s382 + $0xd0] sm:$0xff]
    %v410 = vld [vmem:[%s382 + $0xd8] sm:$0xff]
    %v411 = vld [vmem:[%s382 + $0xe0] sm:$0xff]
    %v412 = vld [vmem:[%s382 + $0xe8] sm:$0xff]
    %v413 = vld [vmem:[%s382 + $0xf0] sm:$0xff]
    %v414 = vld [vmem:[%s382 + $0xf8] sm:$0xff]
    %v415 = vld [vmem:[%s382 + $0x100] sm:$0xff]
    %v416 = vld [vmem:[%s382 + $0x108] sm:$0xff]
    %v417 = vld [vmem:[%s382 + $0x110] sm:$0xff]
    %v418 = vld [vmem:[%s382 + $0x118] sm:$0xff]
    %v419 = vld [vmem:[%s382 + $0x120] sm:$0xff]
    %v420 = vld [vmem:[%s382 + $0x128] sm:$0xff]
    %v421 = vld [vmem:[%s382 + $0x130] sm:$0xff]
    %v422 = vld [vmem:[%s382 + $0x138] sm:$0xff]
    %v423 = vld [vmem:[%s382 + $0x140] sm:$0xff]
    %v424 = vld [vmem:[%s382 + $0x148] sm:$0xff]
    %v425 = vld [vmem:[%s382 + $0x150] sm:$0xff]
    %v426 = vld [vmem:[%s382 + $0x158] sm:$0xff]
    %v427 = vld [vmem:[%s382 + $0x160] sm:$0xff]
    %v428 = vld [vmem:[%s382 + $0x168] sm:$0xff]
    %v429 = vld [vmem:[%s382 + $0x170] sm:$0xff]
    %v430 = vld [vmem:[%s382 + $0x178] sm:$0xff]
    %v431 = vld [vmem:[%s382 + $0x180] sm:$0xff]
    %v432 = vld [vmem:[%s382 + $0x188] sm:$0xff]
    %v433 = vld [vmem:[%s382 + $0x190] sm:$0xff]
    %v434 = vld [vmem:[%s382 + $0x198] sm:$0xff]
    %v435 = vld [vmem:[%s382 + $0x1a0] sm:$0xff]
    %v436 = vld [vmem:[%s382 + $0x1a8] sm:$0xff]
    %v437 = vld [vmem:[%s382 + $0x1b0] sm:$0xff]
    %v438 = vld [vmem:[%s382 + $0x1b8] sm:$0xff]
    %v439 = vld [vmem:[%s382 + $0x1c0] sm:$0xff]
    %v440 = vld [vmem:[%s382 + $0x1c8] sm:$0xff]
    %v441 = vld [vmem:[%s382 + $0x1d0] sm:$0xff]
    %v442 = vld [vmem:[%s382 + $0x1d8] sm:$0xff]
    %v443 = vld [vmem:[%s382 + $0x1e0] sm:$0xff]
    %v444 = vld [vmem:[%s382 + $0x1e8] sm:$0xff]
    %v445 = vld [vmem:[%s382 + $0x1f0] sm:$0xff]
    %v446 = vld [vmem:[%s382 + $0x1f8] sm:$0xff]
    %447 = vmatpush.msra.mxu0 %v413
    %448 = vmatpush.msra.mxu0 %v411
    %449 = vmatpush.msra.mxu0 %v409
    %450 = vmatpush.msra.mxu0 %v407
    %451 = vmatpush.msra.mxu0 %v405
    %452 = vmatpush.msra.mxu0 %v403
    %453 = vmatpush.msra.mxu0 %v401
    %454 = vmatpush.msra.mxu0 %v399
    %455 = vmatpush.msra.mxu0 %v397
    %456 = vmatpush.msra.mxu0 %v395
    %457 = vmatpush.msra.mxu0 %v393
    %458 = vmatpush.msra.mxu0 %v391
    %459 = vmatpush.msra.mxu0 %v389
    %460 = vmatpush.msra.mxu0 %v387
    %461 = vmatpush.msra.mxu0 %v385
    %462 = vmatpush.msra.mxu0 %v383
    %463 = vmatmul.f32.gmra.mxu0 %v378
    %v464 = vpop.f32.mrf.mxu0
    %v465 = vadd.f32 0.0, %v464
    %466 = vdwg.mxu0
    %467 = vmatpush.msra.mxu0 %v445
    %468 = vmatpush.msra.mxu0 %v443
    %469 = vmatpush.msra.mxu0 %v441
    %470 = vmatpush.msra.mxu0 %v439
    %471 = vmatpush.msra.mxu0 %v437
    %472 = vmatpush.msra.mxu0 %v435
    %473 = vmatpush.msra.mxu0 %v433
    %474 = vmatpush.msra.mxu0 %v431
    %475 = vmatpush.msra.mxu0 %v429
    %476 = vmatpush.msra.mxu0 %v427
    %477 = vmatpush.msra.mxu0 %v425
    %478 = vmatpush.msra.mxu0 %v423
    %479 = vmatpush.msra.mxu0 %v421
    %480 = vmatpush.msra.mxu0 %v419
    %481 = vmatpush.msra.mxu0 %v417
    %482 = vmatpush.msra.mxu0 %v415
    %483 = vmatmul.f32.gmra.mxu0 %v379
    %v484 = vpop.f32.mrf.mxu0
    %v485 = vadd.f32 %v465, %v484
    %486 = vdwg.mxu0
    %487 = vmatpush.msra.mxu0 %v414
    %488 = vmatpush.msra.mxu0 %v412
    %489 = vmatpush.msra.mxu0 %v410
    %490 = vmatpush.msra.mxu0 %v408
    %491 = vmatpush.msra.mxu0 %v406
    %492 = vmatpush.msra.mxu0 %v404
    %493 = vmatpush.msra.mxu0 %v402
    %494 = vmatpush.msra.mxu0 %v400
    %495 = vmatpush.msra.mxu0 %v398
    %496 = vmatpush.msra.mxu0 %v396
    %497 = vmatpush.msra.mxu0 %v394
    %498 = vmatpush.msra.mxu0 %v392
    %499 = vmatpush.msra.mxu0 %v390
    %500 = vmatpush.msra.mxu0 %v388
    %501 = vmatpush.msra.mxu0 %v386
    %502 = vmatpush.msra.mxu0 %v384
    %503 = vmatmul.f32.gmra.mxu0 %v378
    %v504 = vpop.f32.mrf.mxu0
    %v505 = vadd.f32 0.0, %v504
    %506 = vdwg.mxu0
    %507 = vmatpush.msra.mxu0 %v446
    %508 = vmatpush.msra.mxu0 %v444
    %509 = vmatpush.msra.mxu0 %v442
    %510 = vmatpush.msra.mxu0 %v440
    %511 = vmatpush.msra.mxu0 %v438
    %512 = vmatpush.msra.mxu0 %v436
    %513 = vmatpush.msra.mxu0 %v434
    %514 = vmatpush.msra.mxu0 %v432
    %515 = vmatpush.msra.mxu0 %v430
    %516 = vmatpush.msra.mxu0 %v428
    %517 = vmatpush.msra.mxu0 %v426
    %518 = vmatpush.msra.mxu0 %v424
    %519 = vmatpush.msra.mxu0 %v422
    %520 = vmatpush.msra.mxu0 %v420
    %521 = vmatpush.msra.mxu0 %v418
    %522 = vmatpush.msra.mxu0 %v416
    %523 = vmatmul.f32.gmra.mxu0 %v379
    %v524 = vpop.f32.mrf.mxu0
    %v525 = vadd.f32 %v505, %v524
    %526 = vdwg.mxu0
    %v527 = vadd.f32 %v380, %v485
    %v528 = vadd.f32 %v381, %v525
    %529 = vst [vmem:[#allocation2] sm:$0xff] %v527
    %530 = vst [vmem:[#allocation2 + $0x8] sm:$0xff] %v528
    %v531 = vld [vmem:[%s0 + $0x10] sm:$0xff]
    %532 = vst [vmem:[#allocation1] ss:$2 sm:$0xff] %v114
    %v533 = vld.sshfl [vmem:[#allocation1] sm:$0xff pattern:$0x75316420]
    %v534 = vld.sshfl [vmem:[#allocation1 + $0x8] sm:$0xff pattern:$0x75316420]
    %v536 = vsel %vm126, %v531, 0
    %v538 = vsel %vm130, %v533, 0
    %v540 = vsel %vm130, %v534, 0
    %542 = vmatpush.msra.mxu0 0.0
    %543 = vmatpush.msra.mxu0 0.0
    %544 = vmatpush.msra.mxu0 0.0
    %545 = vmatpush.msra.mxu0 0.0
    %546 = vmatpush.msra.mxu0 0.0
    %547 = vmatpush.msra.mxu0 0.0
    %548 = vmatpush.msra.mxu0 0.0
    %549 = vmatpush.msra.mxu0 0.0
    %550 = vmatpush.msra.mxu0 0.0
    %551 = vmatpush.msra.mxu0 0.0
    %552 = vmatpush.msra.mxu0 0.0
    %553 = vmatpush.msra.mxu0 0.0
    %554 = vmatpush.msra.mxu0 0.0
    %555 = vmatpush.msra.mxu0 0.0
    %556 = vmatpush.msra.mxu0 0.0
    %557 = vmatpush.msra.mxu0 %v538
    %558 = vmatmul.f32.gmra.mxu0 %v536
    %v559 = vpop.f32.mrf.mxu0
    %v560 = vadd.f32 %v117, %v559
    %561 = vdwg.mxu0
    %562 = vmatpush.msra.mxu0 0.0
    %563 = vmatpush.msra.mxu0 0.0
    %564 = vmatpush.msra.mxu0 0.0
    %565 = vmatpush.msra.mxu0 0.0
    %566 = vmatpush.msra.mxu0 0.0
    %567 = vmatpush.msra.mxu0 0.0
    %568 = vmatpush.msra.mxu0 0.0
    %569 = vmatpush.msra.mxu0 0.0
    %570 = vmatpush.msra.mxu0 0.0
    %571 = vmatpush.msra.mxu0 0.0
    %572 = vmatpush.msra.mxu0 0.0
    %573 = vmatpush.msra.mxu0 0.0
    %574 = vmatpush.msra.mxu0 0.0
    %575 = vmatpush.msra.mxu0 0.0
    %576 = vmatpush.msra.mxu0 0.0
    %577 = vmatpush.msra.mxu0 %v540
    %578 = vmatmul.f32.gmra.mxu0 %v536
    %v579 = vpop.f32.mrf.mxu0
    %v580 = vadd.f32 %v118, %v579
    %581 = vdwg.mxu0
    %v582 = vmax.f32 %v560, 0.0
    %v583 = vmax.f32 %v580, 0.0
    %v584 = vld [vmem:[#allocation2] sm:$0xff]
    %v585 = vld [vmem:[#allocation2 + $0x8] sm:$0xff]
    %s586 = scalar_lea.vmem [#allocation7], 1024
    %v587 = vld [vmem:[%s586] sm:$0xff]
    %v588 = vld [vmem:[%s586 + $0x8] sm:$0xff]
    %v589 = vld [vmem:[%s586 + $0x10] sm:$0xff]
    %v590 = vld [vmem:[%s586 + $0x18] sm:$0xff]
    %v591 = vld [vmem:[%s586 + $0x20] sm:$0xff]
    %v592 = vld [vmem:[%s586 + $0x28] sm:$0xff]
    %v593 = vld [vmem:[%s586 + $0x30] sm:$0xff]
    %v594 = vld [vmem:[%s586 + $0x38] sm:$0xff]
    %v595 = vld [vmem:[%s586 + $0x40] sm:$0xff]
    %v596 = vld [vmem:[%s586 + $0x48] sm:$0xff]
    %v597 = vld [vmem:[%s586 + $0x50] sm:$0xff]
    %v598 = vld [vmem:[%s586 + $0x58] sm:$0xff]
    %v599 = vld [vmem:[%s586 + $0x60] sm:$0xff]
    %v600 = vld [vmem:[%s586 + $0x68] sm:$0xff]
    %v601 = vld [vmem:[%s586 + $0x70] sm:$0xff]
    %v602 = vld [vmem:[%s586 + $0x78] sm:$0xff]
    %v603 = vld [vmem:[%s586 + $0x80] sm:$0xff]
    %v604 = vld [vmem:[%s586 + $0x88] sm:$0xff]
    %v605 = vld [vmem:[%s586 + $0x90] sm:$0xff]
    %v606 = vld [vmem:[%s586 + $0x98] sm:$0xff]
    %v607 = vld [vmem:[%s586 + $0xa0] sm:$0xff]
    %v608 = vld [vmem:[%s586 + $0xa8] sm:$0xff]
    %v609 = vld [vmem:[%s586 + $0xb0] sm:$0xff]
    %v610 = vld [vmem:[%s586 + $0xb8] sm:$0xff]
    %v611 = vld [vmem:[%s586 + $0xc0] sm:$0xff]
    %v612 = vld [vmem:[%s586 + $0xc8] sm:$0xff]
    %v613 = vld [vmem:[%s586 + $0xd0] sm:$0xff]
    %v614 = vld [vmem:[%s586 + $0xd8] sm:$0xff]
    %v615 = vld [vmem:[%s586 + $0xe0] sm:$0xff]
    %v616 = vld [vmem:[%s586 + $0xe8] sm:$0xff]
    %v617 = vld [vmem:[%s586 + $0xf0] sm:$0xff]
    %v618 = vld [vmem:[%s586 + $0xf8] sm:$0xff]
    %v619 = vld [vmem:[%s586 + $0x100] sm:$0xff]
    %v620 = vld [vmem:[%s586 + $0x108] sm:$0xff]
    %v621 = vld [vmem:[%s586 + $0x110] sm:$0xff]
    %v622 = vld [vmem:[%s586 + $0x118] sm:$0xff]
    %v623 = vld [vmem:[%s586 + $0x120] sm:$0xff]
    %v624 = vld [vmem:[%s586 + $0x128] sm:$0xff]
    %v625 = vld [vmem:[%s586 + $0x130] sm:$0xff]
    %v626 = vld [vmem:[%s586 + $0x138] sm:$0xff]
    %v627 = vld [vmem:[%s586 + $0x140] sm:$0xff]
    %v628 = vld [vmem:[%s586 + $0x148] sm:$0xff]
    %v629 = vld [vmem:[%s586 + $0x150] sm:$0xff]
    %v630 = vld [vmem:[%s586 + $0x158] sm:$0xff]
    %v631 = vld [vmem:[%s586 + $0x160] sm:$0xff]
    %v632 = vld [vmem:[%s586 + $0x168] sm:$0xff]
    %v633 = vld [vmem:[%s586 + $0x170] sm:$0xff]
    %v634 = vld [vmem:[%s586 + $0x178] sm:$0xff]
    %v635 = vld [vmem:[%s586 + $0x180] sm:$0xff]
    %v636 = vld [vmem:[%s586 + $0x188] sm:$0xff]
    %v637 = vld [vmem:[%s586 + $0x190] sm:$0xff]
    %v638 = vld [vmem:[%s586 + $0x198] sm:$0xff]
    %v639 = vld [vmem:[%s586 + $0x1a0] sm:$0xff]
    %v640 = vld [vmem:[%s586 + $0x1a8] sm:$0xff]
    %v641 = vld [vmem:[%s586 + $0x1b0] sm:$0xff]
    %v642 = vld [vmem:[%s586 + $0x1b8] sm:$0xff]
    %v643 = vld [vmem:[%s586 + $0x1c0] sm:$0xff]
    %v644 = vld [vmem:[%s586 + $0x1c8] sm:$0xff]
    %v645 = vld [vmem:[%s586 + $0x1d0] sm:$0xff]
    %v646 = vld [vmem:[%s586 + $0x1d8] sm:$0xff]
    %v647 = vld [vmem:[%s586 + $0x1e0] sm:$0xff]
    %v648 = vld [vmem:[%s586 + $0x1e8] sm:$0xff]
    %v649 = vld [vmem:[%s586 + $0x1f0] sm:$0xff]
    %v650 = vld [vmem:[%s586 + $0x1f8] sm:$0xff]
    %651 = vmatpush.msra.mxu0 %v617
    %652 = vmatpush.msra.mxu0 %v615
    %653 = vmatpush.msra.mxu0 %v613
    %654 = vmatpush.msra.mxu0 %v611
    %655 = vmatpush.msra.mxu0 %v609
    %656 = vmatpush.msra.mxu0 %v607
    %657 = vmatpush.msra.mxu0 %v605
    %658 = vmatpush.msra.mxu0 %v603
    %659 = vmatpush.msra.mxu0 %v601
    %660 = vmatpush.msra.mxu0 %v599
    %661 = vmatpush.msra.mxu0 %v597
    %662 = vmatpush.msra.mxu0 %v595
    %663 = vmatpush.msra.mxu0 %v593
    %664 = vmatpush.msra.mxu0 %v591
    %665 = vmatpush.msra.mxu0 %v589
    %666 = vmatpush.msra.mxu0 %v587
    %667 = vmatmul.f32.gmra.mxu0 %v582
    %v668 = vpop.f32.mrf.mxu0
    %v669 = vadd.f32 0.0, %v668
    %670 = vdwg.mxu0
    %671 = vmatpush.msra.mxu0 %v649
    %672 = vmatpush.msra.mxu0 %v647
    %673 = vmatpush.msra.mxu0 %v645
    %674 = vmatpush.msra.mxu0 %v643
    %675 = vmatpush.msra.mxu0 %v641
    %676 = vmatpush.msra.mxu0 %v639
    %677 = vmatpush.msra.mxu0 %v637
    %678 = vmatpush.msra.mxu0 %v635
    %679 = vmatpush.msra.mxu0 %v633
    %680 = vmatpush.msra.mxu0 %v631
    %681 = vmatpush.msra.mxu0 %v629
    %682 = vmatpush.msra.mxu0 %v627
    %683 = vmatpush.msra.mxu0 %v625
    %684 = vmatpush.msra.mxu0 %v623
    %685 = vmatpush.msra.mxu0 %v621
    %686 = vmatpush.msra.mxu0 %v619
    %687 = vmatmul.f32.gmra.mxu0 %v583
    %v688 = vpop.f32.mrf.mxu0
    %v689 = vadd.f32 %v669, %v688
    %690 = vdwg.mxu0
    %691 = vmatpush.msra.mxu0 %v618
    %692 = vmatpush.msra.mxu0 %v616
    %693 = vmatpush.msra.mxu0 %v614
    %694 = vmatpush.msra.mxu0 %v612
    %695 = vmatpush.msra.mxu0 %v610
    %696 = vmatpush.msra.mxu0 %v608
    %697 = vmatpush.msra.mxu0 %v606
    %698 = vmatpush.msra.mxu0 %v604
    %699 = vmatpush.msra.mxu0 %v602
    %700 = vmatpush.msra.mxu0 %v600
    %701 = vmatpush.msra.mxu0 %v598
    %702 = vmatpush.msra.mxu0 %v596
    %703 = vmatpush.msra.mxu0 %v594
    %704 = vmatpush.msra.mxu0 %v592
    %705 = vmatpush.msra.mxu0 %v590
    %706 = vmatpush.msra.mxu0 %v588
    %707 = vmatmul.f32.gmra.mxu0 %v582
    %v708 = vpop.f32.mrf.mxu0
    %v709 = vadd.f32 0.0, %v708
    %710 = vdwg.mxu0
    %711 = vmatpush.msra.mxu0 %v650
    %712 = vmatpush.msra.mxu0 %v648
    %713 = vmatpush.msra.mxu0 %v646
    %714 = vmatpush.msra.mxu0 %v644
    %715 = vmatpush.msra.mxu0 %v642
    %716 = vmatpush.msra.mxu0 %v640
    %717 = vmatpush.msra.mxu0 %v638
    %718 = vmatpush.msra.mxu0 %v636
    %719 = vmatpush.msra.mxu0 %v634
    %720 = vmatpush.msra.mxu0 %v632
    %721 = vmatpush.msra.mxu0 %v630
    %722 = vmatpush.msra.mxu0 %v628
    %723 = vmatpush.msra.mxu0 %v626
    %724 = vmatpush.msra.mxu0 %v624
    %725 = vmatpush.msra.mxu0 %v622
    %726 = vmatpush.msra.mxu0 %v620
    %727 = vmatmul.f32.gmra.mxu0 %v583
    %v728 = vpop.f32.mrf.mxu0
    %v729 = vadd.f32 %v709, %v728
    %730 = vdwg.mxu0
    %v731 = vadd.f32 %v584, %v689
    %v732 = vadd.f32 %v585, %v729
    %733 = vst [vmem:[#allocation2] sm:$0xff] %v731
    %734 = vst [vmem:[#allocation2 + $0x8] sm:$0xff] %v732
    %v735 = vld [vmem:[%s0 + $0x18] sm:$0xff]
    %736 = vst [vmem:[#allocation1] ss:$2 sm:$0xff] %v114
    %v737 = vld.sshfl [vmem:[#allocation1] sm:$0xff pattern:$0x75316420]
    %v738 = vld.sshfl [vmem:[#allocation1 + $0x8] sm:$0xff pattern:$0x75316420]
    %v740 = vsel %vm126, %v735, 0
    %v742 = vsel %vm130, %v737, 0
    %v744 = vsel %vm130, %v738, 0
    %746 = vmatpush.msra.mxu0 0.0
    %747 = vmatpush.msra.mxu0 0.0
    %748 = vmatpush.msra.mxu0 0.0
    %749 = vmatpush.msra.mxu0 0.0
    %750 = vmatpush.msra.mxu0 0.0
    %751 = vmatpush.msra.mxu0 0.0
    %752 = vmatpush.msra.mxu0 0.0
    %753 = vmatpush.msra.mxu0 0.0
    %754 = vmatpush.msra.mxu0 0.0
    %755 = vmatpush.msra.mxu0 0.0
    %756 = vmatpush.msra.mxu0 0.0
    %757 = vmatpush.msra.mxu0 0.0
    %758 = vmatpush.msra.mxu0 0.0
    %759 = vmatpush.msra.mxu0 0.0
    %760 = vmatpush.msra.mxu0 0.0
    %761 = vmatpush.msra.mxu0 %v742
    %762 = vmatmul.f32.gmra.mxu0 %v740
    %v763 = vpop.f32.mrf.mxu0
    %v764 = vadd.f32 %v117, %v763
    %765 = vdwg.mxu0
    %766 = vmatpush.msra.mxu0 0.0
    %767 = vmatpush.msra.mxu0 0.0
    %768 = vmatpush.msra.mxu0 0.0
    %769 = vmatpush.msra.mxu0 0.0
    %770 = vmatpush.msra.mxu0 0.0
    %771 = vmatpush.msra.mxu0 0.0
    %772 = vmatpush.msra.mxu0 0.0
    %773 = vmatpush.msra.mxu0 0.0
    %774 = vmatpush.msra.mxu0 0.0
    %775 = vmatpush.msra.mxu0 0.0
    %776 = vmatpush.msra.mxu0 0.0
    %777 = vmatpush.msra.mxu0 0.0
    %778 = vmatpush.msra.mxu0 0.0
    %779 = vmatpush.msra.mxu0 0.0
    %780 = vmatpush.msra.mxu0 0.0
    %781 = vmatpush.msra.mxu0 %v744
    %782 = vmatmul.f32.gmra.mxu0 %v740
    %v783 = vpop.f32.mrf.mxu0
    %v784 = vadd.f32 %v118, %v783
    %785 = vdwg.mxu0
    %v786 = vmax.f32 %v764, 0.0
    %v787 = vmax.f32 %v784, 0.0
    %v788 = vld [vmem:[#allocation2] sm:$0xff]
    %v789 = vld [vmem:[#allocation2 + $0x8] sm:$0xff]
    %s790 = scalar_lea.vmem [#allocation7], 1536
    %v791 = vld [vmem:[%s790] sm:$0xff]
    %v792 = vld [vmem:[%s790 + $0x8] sm:$0xff]
    %v793 = vld [vmem:[%s790 + $0x10] sm:$0xff]
    %v794 = vld [vmem:[%s790 + $0x18] sm:$0xff]
    %v795 = vld [vmem:[%s790 + $0x20] sm:$0xff]
    %v796 = vld [vmem:[%s790 + $0x28] sm:$0xff]
    %v797 = vld [vmem:[%s790 + $0x30] sm:$0xff]
    %v798 = vld [vmem:[%s790 + $0x38] sm:$0xff]
    %v799 = vld [vmem:[%s790 + $0x40] sm:$0xff]
    %v800 = vld [vmem:[%s790 + $0x48] sm:$0xff]
    %v801 = vld [vmem:[%s790 + $0x50] sm:$0xff]
    %v802 = vld [vmem:[%s790 + $0x58] sm:$0xff]
    %v803 = vld [vmem:[%s790 + $0x60] sm:$0xff]
    %v804 = vld [vmem:[%s790 + $0x68] sm:$0xff]
    %v805 = vld [vmem:[%s790 + $0x70] sm:$0xff]
    %v806 = vld [vmem:[%s790 + $0x78] sm:$0xff]
    %v807 = vld [vmem:[%s790 + $0x80] sm:$0xff]
    %v808 = vld [vmem:[%s790 + $0x88] sm:$0xff]
    %v809 = vld [vmem:[%s790 + $0x90] sm:$0xff]
    %v810 = vld [vmem:[%s790 + $0x98] sm:$0xff]
    %v811 = vld [vmem:[%s790 + $0xa0] sm:$0xff]
    %v812 = vld [vmem:[%s790 + $0xa8] sm:$0xff]
    %v813 = vld [vmem:[%s790 + $0xb0] sm:$0xff]
    %v814 = vld [vmem:[%s790 + $0xb8] sm:$0xff]
    %v815 = vld [vmem:[%s790 + $0xc0] sm:$0xff]
    %v816 = vld [vmem:[%s790 + $0xc8] sm:$0xff]
    %v817 = vld [vmem:[%s790 + $0xd0] sm:$0xff]
    %v818 = vld [vmem:[%s790 + $0xd8] sm:$0xff]
    %v819 = vld [vmem:[%s790 + $0xe0] sm:$0xff]
    %v820 = vld [vmem:[%s790 + $0xe8] sm:$0xff]
    %v821 = vld [vmem:[%s790 + $0xf0] sm:$0xff]
    %v822 = vld [vmem:[%s790 + $0xf8] sm:$0xff]
    %v823 = vld [vmem:[%s790 + $0x100] sm:$0xff]
    %v824 = vld [vmem:[%s790 + $0x108] sm:$0xff]
    %v825 = vld [vmem:[%s790 + $0x110] sm:$0xff]
    %v826 = vld [vmem:[%s790 + $0x118] sm:$0xff]
    %v827 = vld [vmem:[%s790 + $0x120] sm:$0xff]
    %v828 = vld [vmem:[%s790 + $0x128] sm:$0xff]
    %v829 = vld [vmem:[%s790 + $0x130] sm:$0xff]
    %v830 = vld [vmem:[%s790 + $0x138] sm:$0xff]
    %v831 = vld [vmem:[%s790 + $0x140] sm:$0xff]
    %v832 = vld [vmem:[%s790 + $0x148] sm:$0xff]
    %v833 = vld [vmem:[%s790 + $0x150] sm:$0xff]
    %v834 = vld [vmem:[%s790 + $0x158] sm:$0xff]
    %v835 = vld [vmem:[%s790 + $0x160] sm:$0xff]
    %v836 = vld [vmem:[%s790 + $0x168] sm:$0xff]
    %v837 = vld [vmem:[%s790 + $0x170] sm:$0xff]
    %v838 = vld [vmem:[%s790 + $0x178] sm:$0xff]
    %v839 = vld [vmem:[%s790 + $0x180] sm:$0xff]
    %v840 = vld [vmem:[%s790 + $0x188] sm:$0xff]
    %v841 = vld [vmem:[%s790 + $0x190] sm:$0xff]
    %v842 = vld [vmem:[%s790 + $0x198] sm:$0xff]
    %v843 = vld [vmem:[%s790 + $0x1a0] sm:$0xff]
    %v844 = vld [vmem:[%s790 + $0x1a8] sm:$0xff]
    %v845 = vld [vmem:[%s790 + $0x1b0] sm:$0xff]
    %v846 = vld [vmem:[%s790 + $0x1b8] sm:$0xff]
    %v847 = vld [vmem:[%s790 + $0x1c0] sm:$0xff]
    %v848 = vld [vmem:[%s790 + $0x1c8] sm:$0xff]
    %v849 = vld [vmem:[%s790 + $0x1d0] sm:$0xff]
    %v850 = vld [vmem:[%s790 + $0x1d8] sm:$0xff]
    %v851 = vld [vmem:[%s790 + $0x1e0] sm:$0xff]
    %v852 = vld [vmem:[%s790 + $0x1e8] sm:$0xff]
    %v853 = vld [vmem:[%s790 + $0x1f0] sm:$0xff]
    %v854 = vld [vmem:[%s790 + $0x1f8] sm:$0xff]
    %855 = vmatpush.msra.mxu0 %v821
    %856 = vmatpush.msra.mxu0 %v819
    %857 = vmatpush.msra.mxu0 %v817
    %858 = vmatpush.msra.mxu0 %v815
    %859 = vmatpush.msra.mxu0 %v813
    %860 = vmatpush.msra.mxu0 %v811
    %861 = vmatpush.msra.mxu0 %v809
    %862 = vmatpush.msra.mxu0 %v807
    %863 = vmatpush.msra.mxu0 %v805
    %864 = vmatpush.msra.mxu0 %v803
    %865 = vmatpush.msra.mxu0 %v801
    %866 = vmatpush.msra.mxu0 %v799
    %867 = vmatpush.msra.mxu0 %v797
    %868 = vmatpush.msra.mxu0 %v795
    %869 = vmatpush.msra.mxu0 %v793
    %870 = vmatpush.msra.mxu0 %v791
    %871 = vmatmul.f32.gmra.mxu0 %v786
    %v872 = vpop.f32.mrf.mxu0
    %v873 = vadd.f32 0.0, %v872
    %874 = vdwg.mxu0
    %875 = vmatpush.msra.mxu0 %v853
    %876 = vmatpush.msra.mxu0 %v851
    %877 = vmatpush.msra.mxu0 %v849
    %878 = vmatpush.msra.mxu0 %v847
    %879 = vmatpush.msra.mxu0 %v845
    %880 = vmatpush.msra.mxu0 %v843
    %881 = vmatpush.msra.mxu0 %v841
    %882 = vmatpush.msra.mxu0 %v839
    %883 = vmatpush.msra.mxu0 %v837
    %884 = vmatpush.msra.mxu0 %v835
    %885 = vmatpush.msra.mxu0 %v833
    %886 = vmatpush.msra.mxu0 %v831
    %887 = vmatpush.msra.mxu0 %v829
    %888 = vmatpush.msra.mxu0 %v827
    %889 = vmatpush.msra.mxu0 %v825
    %890 = vmatpush.msra.mxu0 %v823
    %891 = vmatmul.f32.gmra.mxu0 %v787
    %v892 = vpop.f32.mrf.mxu0
    %v893 = vadd.f32 %v873, %v892
    %894 = vdwg.mxu0
    %895 = vmatpush.msra.mxu0 %v822
    %896 = vmatpush.msra.mxu0 %v820
    %897 = vmatpush.msra.mxu0 %v818
    %898 = vmatpush.msra.mxu0 %v816
    %899 = vmatpush.msra.mxu0 %v814
    %900 = vmatpush.msra.mxu0 %v812
    %901 = vmatpush.msra.mxu0 %v810
    %902 = vmatpush.msra.mxu0 %v808
    %903 = vmatpush.msra.mxu0 %v806
    %904 = vmatpush.msra.mxu0 %v804
    %905 = vmatpush.msra.mxu0 %v802
    %906 = vmatpush.msra.mxu0 %v800
    %907 = vmatpush.msra.mxu0 %v798
    %908 = vmatpush.msra.mxu0 %v796
    %909 = vmatpush.msra.mxu0 %v794
    %910 = vmatpush.msra.mxu0 %v792
    %911 = vmatmul.f32.gmra.mxu0 %v786
    %v912 = vpop.f32.mrf.mxu0
    %v913 = vadd.f32 0.0, %v912
    %914 = vdwg.mxu0
    %915 = vmatpush.msra.mxu0 %v854
    %916 = vmatpush.msra.mxu0 %v852
    %917 = vmatpush.msra.mxu0 %v850
    %918 = vmatpush.msra.mxu0 %v848
    %919 = vmatpush.msra.mxu0 %v846
    %920 = vmatpush.msra.mxu0 %v844
    %921 = vmatpush.msra.mxu0 %v842
    %922 = vmatpush.msra.mxu0 %v840
    %923 = vmatpush.msra.mxu0 %v838
    %924 = vmatpush.msra.mxu0 %v836
    %925 = vmatpush.msra.mxu0 %v834
    %926 = vmatpush.msra.mxu0 %v832
    %927 = vmatpush.msra.mxu0 %v830
    %928 = vmatpush.msra.mxu0 %v828
    %929 = vmatpush.msra.mxu0 %v826
    %930 = vmatpush.msra.mxu0 %v824
    %931 = vmatmul.f32.gmra.mxu0 %v787
    %v932 = vpop.f32.mrf.mxu0
    %v933 = vadd.f32 %v913, %v932
    %934 = vdwg.mxu0
    %v935 = vadd.f32 %v788, %v893
    %v936 = vadd.f32 %v789, %v933
    %937 = vst [vmem:[#allocation2] sm:$0xff] %v935
    %938 = vst [vmem:[#allocation2 + $0x8] sm:$0xff] %v936
    %v939 = vld [vmem:[%s0 + $0x20] sm:$0xff]
    %940 = vst [vmem:[#allocation1] ss:$2 sm:$0xff] %v114
    %v941 = vld.sshfl [vmem:[#allocation1] sm:$0xff pattern:$0x75316420]
    %v942 = vld.sshfl [vmem:[#allocation1 + $0x8] sm:$0xff pattern:$0x75316420]
    %v944 = vsel %vm126, %v939, 0
    %v946 = vsel %vm130, %v941, 0
    %v948 = vsel %vm130, %v942, 0
    %950 = vmatpush.msra.mxu0 0.0
    %951 = vmatpush.msra.mxu0 0.0
    %952 = vmatpush.msra.mxu0 0.0
    %953 = vmatpush.msra.mxu0 0.0
    %954 = vmatpush.msra.mxu0 0.0
    %955 = vmatpush.msra.mxu0 0.0
    %956 = vmatpush.msra.mxu0 0.0
    %957 = vmatpush.msra.mxu0 0.0
    %958 = vmatpush.msra.mxu0 0.0
    %959 = vmatpush.msra.mxu0 0.0
    %960 = vmatpush.msra.mxu0 0.0
    %961 = vmatpush.msra.mxu0 0.0
    %962 = vmatpush.msra.mxu0 0.0
    %963 = vmatpush.msra.mxu0 0.0
    %964 = vmatpush.msra.mxu0 0.0
    %965 = vmatpush.msra.mxu0 %v946
    %966 = vmatmul.f32.gmra.mxu0 %v944
    %v967 = vpop.f32.mrf.mxu0
    %v968 = vadd.f32 %v117, %v967
    %969 = vdwg.mxu0
    %970 = vmatpush.msra.mxu0 0.0
    %971 = vmatpush.msra.mxu0 0.0
    %972 = vmatpush.msra.mxu0 0.0
    %973 = vmatpush.msra.mxu0 0.0
    %974 = vmatpush.msra.mxu0 0.0
    %975 = vmatpush.msra.mxu0 0.0
    %976 = vmatpush.msra.mxu0 0.0
    %977 = vmatpush.msra.mxu0 0.0
    %978 = vmatpush.msra.mxu0 0.0
    %979 = vmatpush.msra.mxu0 0.0
    %980 = vmatpush.msra.mxu0 0.0
    %981 = vmatpush.msra.mxu0 0.0
    %982 = vmatpush.msra.mxu0 0.0
    %983 = vmatpush.msra.mxu0 0.0
    %984 = vmatpush.msra.mxu0 0.0
    %985 = vmatpush.msra.mxu0 %v948
    %986 = vmatmul.f32.gmra.mxu0 %v944
    %v987 = vpop.f32.mrf.mxu0
    %v988 = vadd.f32 %v118, %v987
    %989 = vdwg.mxu0
    %v990 = vmax.f32 %v968, 0.0
    %v991 = vmax.f32 %v988, 0.0
    %v992 = vld [vmem:[#allocation2] sm:$0xff]
    %v993 = vld [vmem:[#allocation2 + $0x8] sm:$0xff]
    %s994 = scalar_lea.vmem [#allocation7], 2048
    %v995 = vld [vmem:[%s994] sm:$0xff]
    %v996 = vld [vmem:[%s994 + $0x8] sm:$0xff]
    %v997 = vld [vmem:[%s994 + $0x10] sm:$0xff]
    %v998 = vld [vmem:[%s994 + $0x18] sm:$0xff]
    %v999 = vld [vmem:[%s994 + $0x20] sm:$0xff]
    %v1000 = vld [vmem:[%s994 + $0x28] sm:$0xff]
    %v1001 = vld [vmem:[%s994 + $0x30] sm:$0xff]
    %v1002 = vld [vmem:[%s994 + $0x38] sm:$0xff]
    %v1003 = vld [vmem:[%s994 + $0x40] sm:$0xff]
    %v1004 = vld [vmem:[%s994 + $0x48] sm:$0xff]
    %v1005 = vld [vmem:[%s994 + $0x50] sm:$0xff]
    %v1006 = vld [vmem:[%s994 + $0x58] sm:$0xff]
    %v1007 = vld [vmem:[%s994 + $0x60] sm:$0xff]
    %v1008 = vld [vmem:[%s994 + $0x68] sm:$0xff]
    %v1009 = vld [vmem:[%s994 + $0x70] sm:$0xff]
    %v1010 = vld [vmem:[%s994 + $0x78] sm:$0xff]
    %v1011 = vld [vmem:[%s994 + $0x80] sm:$0xff]
    %v1012 = vld [vmem:[%s994 + $0x88] sm:$0xff]
    %v1013 = vld [vmem:[%s994 + $0x90] sm:$0xff]
    %v1014 = vld [vmem:[%s994 + $0x98] sm:$0xff]
    %v1015 = vld [vmem:[%s994 + $0xa0] sm:$0xff]
    %v1016 = vld [vmem:[%s994 + $0xa8] sm:$0xff]
    %v1017 = vld [vmem:[%s994 + $0xb0] sm:$0xff]
    %v1018 = vld [vmem:[%s994 + $0xb8] sm:$0xff]
    %v1019 = vld [vmem:[%s994 + $0xc0] sm:$0xff]
    %v1020 = vld [vmem:[%s994 + $0xc8] sm:$0xff]
    %v1021 = vld [vmem:[%s994 + $0xd0] sm:$0xff]
    %v1022 = vld [vmem:[%s994 + $0xd8] sm:$0xff]
    %v1023 = vld [vmem:[%s994 + $0xe0] sm:$0xff]
    %v1024 = vld [vmem:[%s994 + $0xe8] sm:$0xff]
    %v1025 = vld [vmem:[%s994 + $0xf0] sm:$0xff]
    %v1026 = vld [vmem:[%s994 + $0xf8] sm:$0xff]
    %v1027 = vld [vmem:[%s994 + $0x100] sm:$0xff]
    %v1028 = vld [vmem:[%s994 + $0x108] sm:$0xff]
    %v1029 = vld [vmem:[%s994 + $0x110] sm:$0xff]
    %v1030 = vld [vmem:[%s994 + $0x118] sm:$0xff]
    %v1031 = vld [vmem:[%s994 + $0x120] sm:$0xff]
    %v1032 = vld [vmem:[%s994 + $0x128] sm:$0xff]
    %v1033 = vld [vmem:[%s994 + $0x130] sm:$0xff]
    %v1034 = vld [vmem:[%s994 + $0x138] sm:$0xff]
    %v1035 = vld [vmem:[%s994 + $0x140] sm:$0xff]
    %v1036 = vld [vmem:[%s994 + $0x148] sm:$0xff]
    %v1037 = vld [vmem:[%s994 + $0x150] sm:$0xff]
    %v1038 = vld [vmem:[%s994 + $0x158] sm:$0xff]
    %v1039 = vld [vmem:[%s994 + $0x160] sm:$0xff]
    %v1040 = vld [vmem:[%s994 + $0x168] sm:$0xff]
    %v1041 = vld [vmem:[%s994 + $0x170] sm:$0xff]
    %v1042 = vld [vmem:[%s994 + $0x178] sm:$0xff]
    %v1043 = vld [vmem:[%s994 + $0x180] sm:$0xff]
    %v1044 = vld [vmem:[%s994 + $0x188] sm:$0xff]
    %v1045 = vld [vmem:[%s994 + $0x190] sm:$0xff]
    %v1046 = vld [vmem:[%s994 + $0x198] sm:$0xff]
    %v1047 = vld [vmem:[%s994 + $0x1a0] sm:$0xff]
    %v1048 = vld [vmem:[%s994 + $0x1a8] sm:$0xff]
    %v1049 = vld [vmem:[%s994 + $0x1b0] sm:$0xff]
    %v1050 = vld [vmem:[%s994 + $0x1b8] sm:$0xff]
    %v1051 = vld [vmem:[%s994 + $0x1c0] sm:$0xff]
    %v1052 = vld [vmem:[%s994 + $0x1c8] sm:$0xff]
    %v1053 = vld [vmem:[%s994 + $0x1d0] sm:$0xff]
    %v1054 = vld [vmem:[%s994 + $0x1d8] sm:$0xff]
    %v1055 = vld [vmem:[%s994 + $0x1e0] sm:$0xff]
    %v1056 = vld [vmem:[%s994 + $0x1e8] sm:$0xff]
    %v1057 = vld [vmem:[%s994 + $0x1f0] sm:$0xff]
    %v1058 = vld [vmem:[%s994 + $0x1f8] sm:$0xff]
    %1059 = vmatpush.msra.mxu0 %v1025
    %1060 = vmatpush.msra.mxu0 %v1023
    %1061 = vmatpush.msra.mxu0 %v1021
    %1062 = vmatpush.msra.mxu0 %v1019
    %1063 = vmatpush.msra.mxu0 %v1017
    %1064 = vmatpush.msra.mxu0 %v1015
    %1065 = vmatpush.msra.mxu0 %v1013
    %1066 = vmatpush.msra.mxu0 %v1011
    %1067 = vmatpush.msra.mxu0 %v1009
    %1068 = vmatpush.msra.mxu0 %v1007
    %1069 = vmatpush.msra.mxu0 %v1005
    %1070 = vmatpush.msra.mxu0 %v1003
    %1071 = vmatpush.msra.mxu0 %v1001
    %1072 = vmatpush.msra.mxu0 %v999
    %1073 = vmatpush.msra.mxu0 %v997
    %1074 = vmatpush.msra.mxu0 %v995
    %1075 = vmatmul.f32.gmra.mxu0 %v990
    %v1076 = vpop.f32.mrf.mxu0
    %v1077 = vadd.f32 0.0, %v1076
    %1078 = vdwg.mxu0
    %1079 = vmatpush.msra.mxu0 %v1057
    %1080 = vmatpush.msra.mxu0 %v1055
    %1081 = vmatpush.msra.mxu0 %v1053
    %1082 = vmatpush.msra.mxu0 %v1051
    %1083 = vmatpush.msra.mxu0 %v1049
    %1084 = vmatpush.msra.mxu0 %v1047
    %1085 = vmatpush.msra.mxu0 %v1045
    %1086 = vmatpush.msra.mxu0 %v1043
    %1087 = vmatpush.msra.mxu0 %v1041
    %1088 = vmatpush.msra.mxu0 %v1039
    %1089 = vmatpush.msra.mxu0 %v1037
    %1090 = vmatpush.msra.mxu0 %v1035
    %1091 = vmatpush.msra.mxu0 %v1033
    %1092 = vmatpush.msra.mxu0 %v1031
    %1093 = vmatpush.msra.mxu0 %v1029
    %1094 = vmatpush.msra.mxu0 %v1027
    %1095 = vmatmul.f32.gmra.mxu0 %v991
    %v1096 = vpop.f32.mrf.mxu0
    %v1097 = vadd.f32 %v1077, %v1096
    %1098 = vdwg.mxu0
    %1099 = vmatpush.msra.mxu0 %v1026
    %1100 = vmatpush.msra.mxu0 %v1024
    %1101 = vmatpush.msra.mxu0 %v1022
    %1102 = vmatpush.msra.mxu0 %v1020
    %1103 = vmatpush.msra.mxu0 %v1018
    %1104 = vmatpush.msra.mxu0 %v1016
    %1105 = vmatpush.msra.mxu0 %v1014
    %1106 = vmatpush.msra.mxu0 %v1012
    %1107 = vmatpush.msra.mxu0 %v1010
    %1108 = vmatpush.msra.mxu0 %v1008
    %1109 = vmatpush.msra.mxu0 %v1006
    %1110 = vmatpush.msra.mxu0 %v1004
    %1111 = vmatpush.msra.mxu0 %v1002
    %1112 = vmatpush.msra.mxu0 %v1000
    %1113 = vmatpush.msra.mxu0 %v998
    %1114 = vmatpush.msra.mxu0 %v996
    %1115 = vmatmul.f32.gmra.mxu0 %v990
    %v1116 = vpop.f32.mrf.mxu0
    %v1117 = vadd.f32 0.0, %v1116
    %1118 = vdwg.mxu0
    %1119 = vmatpush.msra.mxu0 %v1058
    %1120 = vmatpush.msra.mxu0 %v1056
    %1121 = vmatpush.msra.mxu0 %v1054
    %1122 = vmatpush.msra.mxu0 %v1052
    %1123 = vmatpush.msra.mxu0 %v1050
    %1124 = vmatpush.msra.mxu0 %v1048
    %1125 = vmatpush.msra.mxu0 %v1046
    %1126 = vmatpush.msra.mxu0 %v1044
    %1127 = vmatpush.msra.mxu0 %v1042
    %1128 = vmatpush.msra.mxu0 %v1040
    %1129 = vmatpush.msra.mxu0 %v1038
    %1130 = vmatpush.msra.mxu0 %v1036
    %1131 = vmatpush.msra.mxu0 %v1034
    %1132 = vmatpush.msra.mxu0 %v1032
    %1133 = vmatpush.msra.mxu0 %v1030
    %1134 = vmatpush.msra.mxu0 %v1028
    %1135 = vmatmul.f32.gmra.mxu0 %v991
    %v1136 = vpop.f32.mrf.mxu0
    %v1137 = vadd.f32 %v1117, %v1136
    %1138 = vdwg.mxu0
    %v1139 = vadd.f32 %v992, %v1097
    %v1140 = vadd.f32 %v993, %v1137
    %1141 = vst [vmem:[#allocation2] sm:$0xff] %v1139
    %1142 = vst [vmem:[#allocation2 + $0x8] sm:$0xff] %v1140
    %v1143 = vld [vmem:[%s0 + $0x28] sm:$0xff]
    %1144 = vst [vmem:[#allocation1] ss:$2 sm:$0xff] %v114
    %v1145 = vld.sshfl [vmem:[#allocation1] sm:$0xff pattern:$0x75316420]
    %v1146 = vld.sshfl [vmem:[#allocation1 + $0x8] sm:$0xff pattern:$0x75316420]
    %v1148 = vsel %vm126, %v1143, 0
    %v1150 = vsel %vm130, %v1145, 0
    %v1152 = vsel %vm130, %v1146, 0
    %1154 = vmatpush.msra.mxu0 0.0
    %1155 = vmatpush.msra.mxu0 0.0
    %1156 = vmatpush.msra.mxu0 0.0
    %1157 = vmatpush.msra.mxu0 0.0
    %1158 = vmatpush.msra.mxu0 0.0
    %1159 = vmatpush.msra.mxu0 0.0
    %1160 = vmatpush.msra.mxu0 0.0
    %1161 = vmatpush.msra.mxu0 0.0
    %1162 = vmatpush.msra.mxu0 0.0
    %1163 = vmatpush.msra.mxu0 0.0
    %1164 = vmatpush.msra.mxu0 0.0
    %1165 = vmatpush.msra.mxu0 0.0
    %1166 = vmatpush.msra.mxu0 0.0
    %1167 = vmatpush.msra.mxu0 0.0
    %1168 = vmatpush.msra.mxu0 0.0
    %1169 = vmatpush.msra.mxu0 %v1150
    %1170 = vmatmul.f32.gmra.mxu0 %v1148
    %v1171 = vpop.f32.mrf.mxu0
    %v1172 = vadd.f32 %v117, %v1171
    %1173 = vdwg.mxu0
    %1174 = vmatpush.msra.mxu0 0.0
    %1175 = vmatpush.msra.mxu0 0.0
    %1176 = vmatpush.msra.mxu0 0.0
    %1177 = vmatpush.msra.mxu0 0.0
    %1178 = vmatpush.msra.mxu0 0.0
    %1179 = vmatpush.msra.mxu0 0.0
    %1180 = vmatpush.msra.mxu0 0.0
    %1181 = vmatpush.msra.mxu0 0.0
    %1182 = vmatpush.msra.mxu0 0.0
    %1183 = vmatpush.msra.mxu0 0.0
    %1184 = vmatpush.msra.mxu0 0.0
    %1185 = vmatpush.msra.mxu0 0.0
    %1186 = vmatpush.msra.mxu0 0.0
    %1187 = vmatpush.msra.mxu0 0.0
    %1188 = vmatpush.msra.mxu0 0.0
    %1189 = vmatpush.msra.mxu0 %v1152
    %1190 = vmatmul.f32.gmra.mxu0 %v1148
    %v1191 = vpop.f32.mrf.mxu0
    %v1192 = vadd.f32 %v118, %v1191
    %1193 = vdwg.mxu0
    %v1194 = vmax.f32 %v1172, 0.0
    %v1195 = vmax.f32 %v1192, 0.0
    %v1196 = vld [vmem:[#allocation2] sm:$0xff]
    %v1197 = vld [vmem:[#allocation2 + $0x8] sm:$0xff]
    %s1198 = scalar_lea.vmem [#allocation7], 2560
    %v1199 = vld [vmem:[%s1198] sm:$0xff]
    %v1200 = vld [vmem:[%s1198 + $0x8] sm:$0xff]
    %v1201 = vld [vmem:[%s1198 + $0x10] sm:$0xff]
    %v1202 = vld [vmem:[%s1198 + $0x18] sm:$0xff]
    %v1203 = vld [vmem:[%s1198 + $0x20] sm:$0xff]
    %v1204 = vld [vmem:[%s1198 + $0x28] sm:$0xff]
    %v1205 = vld [vmem:[%s1198 + $0x30] sm:$0xff]
    %v1206 = vld [vmem:[%s1198 + $0x38] sm:$0xff]
    %v1207 = vld [vmem:[%s1198 + $0x40] sm:$0xff]
    %v1208 = vld [vmem:[%s1198 + $0x48] sm:$0xff]
    %v1209 = vld [vmem:[%s1198 + $0x50] sm:$0xff]
    %v1210 = vld [vmem:[%s1198 + $0x58] sm:$0xff]
    %v1211 = vld [vmem:[%s1198 + $0x60] sm:$0xff]
    %v1212 = vld [vmem:[%s1198 + $0x68] sm:$0xff]
    %v1213 = vld [vmem:[%s1198 + $0x70] sm:$0xff]
    %v1214 = vld [vmem:[%s1198 + $0x78] sm:$0xff]
    %v1215 = vld [vmem:[%s1198 + $0x80] sm:$0xff]
    %v1216 = vld [vmem:[%s1198 + $0x88] sm:$0xff]
    %v1217 = vld [vmem:[%s1198 + $0x90] sm:$0xff]
    %v1218 = vld [vmem:[%s1198 + $0x98] sm:$0xff]
    %v1219 = vld [vmem:[%s1198 + $0xa0] sm:$0xff]
    %v1220 = vld [vmem:[%s1198 + $0xa8] sm:$0xff]
    %v1221 = vld [vmem:[%s1198 + $0xb0] sm:$0xff]
    %v1222 = vld [vmem:[%s1198 + $0xb8] sm:$0xff]
    %v1223 = vld [vmem:[%s1198 + $0xc0] sm:$0xff]
    %v1224 = vld [vmem:[%s1198 + $0xc8] sm:$0xff]
    %v1225 = vld [vmem:[%s1198 + $0xd0] sm:$0xff]
    %v1226 = vld [vmem:[%s1198 + $0xd8] sm:$0xff]
    %v1227 = vld [vmem:[%s1198 + $0xe0] sm:$0xff]
    %v1228 = vld [vmem:[%s1198 + $0xe8] sm:$0xff]
    %v1229 = vld [vmem:[%s1198 + $0xf0] sm:$0xff]
    %v1230 = vld [vmem:[%s1198 + $0xf8] sm:$0xff]
    %v1231 = vld [vmem:[%s1198 + $0x100] sm:$0xff]
    %v1232 = vld [vmem:[%s1198 + $0x108] sm:$0xff]
    %v1233 = vld [vmem:[%s1198 + $0x110] sm:$0xff]
    %v1234 = vld [vmem:[%s1198 + $0x118] sm:$0xff]
    %v1235 = vld [vmem:[%s1198 + $0x120] sm:$0xff]
    %v1236 = vld [vmem:[%s1198 + $0x128] sm:$0xff]
    %v1237 = vld [vmem:[%s1198 + $0x130] sm:$0xff]
    %v1238 = vld [vmem:[%s1198 + $0x138] sm:$0xff]
    %v1239 = vld [vmem:[%s1198 + $0x140] sm:$0xff]
    %v1240 = vld [vmem:[%s1198 + $0x148] sm:$0xff]
    %v1241 = vld [vmem:[%s1198 + $0x150] sm:$0xff]
    %v1242 = vld [vmem:[%s1198 + $0x158] sm:$0xff]
    %v1243 = vld [vmem:[%s1198 + $0x160] sm:$0xff]
    %v1244 = vld [vmem:[%s1198 + $0x168] sm:$0xff]
    %v1245 = vld [vmem:[%s1198 + $0x170] sm:$0xff]
    %v1246 = vld [vmem:[%s1198 + $0x178] sm:$0xff]
    %v1247 = vld [vmem:[%s1198 + $0x180] sm:$0xff]
    %v1248 = vld [vmem:[%s1198 + $0x188] sm:$0xff]
    %v1249 = vld [vmem:[%s1198 + $0x190] sm:$0xff]
    %v1250 = vld [vmem:[%s1198 + $0x198] sm:$0xff]
    %v1251 = vld [vmem:[%s1198 + $0x1a0] sm:$0xff]
    %v1252 = vld [vmem:[%s1198 + $0x1a8] sm:$0xff]
    %v1253 = vld [vmem:[%s1198 + $0x1b0] sm:$0xff]
    %v1254 = vld [vmem:[%s1198 + $0x1b8] sm:$0xff]
    %v1255 = vld [vmem:[%s1198 + $0x1c0] sm:$0xff]
    %v1256 = vld [vmem:[%s1198 + $0x1c8] sm:$0xff]
    %v1257 = vld [vmem:[%s1198 + $0x1d0] sm:$0xff]
    %v1258 = vld [vmem:[%s1198 + $0x1d8] sm:$0xff]
    %v1259 = vld [vmem:[%s1198 + $0x1e0] sm:$0xff]
    %v1260 = vld [vmem:[%s1198 + $0x1e8] sm:$0xff]
    %v1261 = vld [vmem:[%s1198 + $0x1f0] sm:$0xff]
    %v1262 = vld [vmem:[%s1198 + $0x1f8] sm:$0xff]
    %1263 = vmatpush.msra.mxu0 %v1229
    %1264 = vmatpush.msra.mxu0 %v1227
    %1265 = vmatpush.msra.mxu0 %v1225
    %1266 = vmatpush.msra.mxu0 %v1223
    %1267 = vmatpush.msra.mxu0 %v1221
    %1268 = vmatpush.msra.mxu0 %v1219
    %1269 = vmatpush.msra.mxu0 %v1217
    %1270 = vmatpush.msra.mxu0 %v1215
    %1271 = vmatpush.msra.mxu0 %v1213
    %1272 = vmatpush.msra.mxu0 %v1211
    %1273 = vmatpush.msra.mxu0 %v1209
    %1274 = vmatpush.msra.mxu0 %v1207
    %1275 = vmatpush.msra.mxu0 %v1205
    %1276 = vmatpush.msra.mxu0 %v1203
    %1277 = vmatpush.msra.mxu0 %v1201
    %1278 = vmatpush.msra.mxu0 %v1199
    %1279 = vmatmul.f32.gmra.mxu0 %v1194
    %v1280 = vpop.f32.mrf.mxu0
    %v1281 = vadd.f32 0.0, %v1280
    %1282 = vdwg.mxu0
    %1283 = vmatpush.msra.mxu0 %v1261
    %1284 = vmatpush.msra.mxu0 %v1259
    %1285 = vmatpush.msra.mxu0 %v1257
    %1286 = vmatpush.msra.mxu0 %v1255
    %1287 = vmatpush.msra.mxu0 %v1253
    %1288 = vmatpush.msra.mxu0 %v1251
    %1289 = vmatpush.msra.mxu0 %v1249
    %1290 = vmatpush.msra.mxu0 %v1247
    %1291 = vmatpush.msra.mxu0 %v1245
    %1292 = vmatpush.msra.mxu0 %v1243
    %1293 = vmatpush.msra.mxu0 %v1241
    %1294 = vmatpush.msra.mxu0 %v1239
    %1295 = vmatpush.msra.mxu0 %v1237
    %1296 = vmatpush.msra.mxu0 %v1235
    %1297 = vmatpush.msra.mxu0 %v1233
    %1298 = vmatpush.msra.mxu0 %v1231
    %1299 = vmatmul.f32.gmra.mxu0 %v1195
    %v1300 = vpop.f32.mrf.mxu0
    %v1301 = vadd.f32 %v1281, %v1300
    %1302 = vdwg.mxu0
    %1303 = vmatpush.msra.mxu0 %v1230
    %1304 = vmatpush.msra.mxu0 %v1228
    %1305 = vmatpush.msra.mxu0 %v1226
    %1306 = vmatpush.msra.mxu0 %v1224
    %1307 = vmatpush.msra.mxu0 %v1222
    %1308 = vmatpush.msra.mxu0 %v1220
    %1309 = vmatpush.msra.mxu0 %v1218
    %1310 = vmatpush.msra.mxu0 %v1216
    %1311 = vmatpush.msra.mxu0 %v1214
    %1312 = vmatpush.msra.mxu0 %v1212
    %1313 = vmatpush.msra.mxu0 %v1210
    %1314 = vmatpush.msra.mxu0 %v1208
    %1315 = vmatpush.msra.mxu0 %v1206
    %1316 = vmatpush.msra.mxu0 %v1204
    %1317 = vmatpush.msra.mxu0 %v1202
    %1318 = vmatpush.msra.mxu0 %v1200
    %1319 = vmatmul.f32.gmra.mxu0 %v1194
    %v1320 = vpop.f32.mrf.mxu0
    %v1321 = vadd.f32 0.0, %v1320
    %1322 = vdwg.mxu0
    %1323 = vmatpush.msra.mxu0 %v1262
    %1324 = vmatpush.msra.mxu0 %v1260
    %1325 = vmatpush.msra.mxu0 %v1258
    %1326 = vmatpush.msra.mxu0 %v1256
    %1327 = vmatpush.msra.mxu0 %v1254
    %1328 = vmatpush.msra.mxu0 %v1252
    %1329 = vmatpush.msra.mxu0 %v1250
    %1330 = vmatpush.msra.mxu0 %v1248
    %1331 = vmatpush.msra.mxu0 %v1246
    %1332 = vmatpush.msra.mxu0 %v1244
    %1333 = vmatpush.msra.mxu0 %v1242
    %1334 = vmatpush.msra.mxu0 %v1240
    %1335 = vmatpush.msra.mxu0 %v1238
    %1336 = vmatpush.msra.mxu0 %v1236
    %1337 = vmatpush.msra.mxu0 %v1234
    %1338 = vmatpush.msra.mxu0 %v1232
    %1339 = vmatmul.f32.gmra.mxu0 %v1195
    %v1340 = vpop.f32.mrf.mxu0
    %v1341 = vadd.f32 %v1321, %v1340
    %1342 = vdwg.mxu0
    %v1343 = vadd.f32 %v1196, %v1301
    %v1344 = vadd.f32 %v1197, %v1341
    %1345 = vst [vmem:[#allocation2] sm:$0xff] %v1343
    %1346 = vst [vmem:[#allocation2 + $0x8] sm:$0xff] %v1344
    %v1347 = vld [vmem:[%s0 + $0x30] sm:$0xff]
    %1348 = vst [vmem:[#allocation1] ss:$2 sm:$0xff] %v114
    %v1349 = vld.sshfl [vmem:[#allocation1] sm:$0xff pattern:$0x75316420]
    %v1350 = vld.sshfl [vmem:[#allocation1 + $0x8] sm:$0xff pattern:$0x75316420]
    %v1352 = vsel %vm126, %v1347, 0
    %v1354 = vsel %vm130, %v1349, 0
    %v1356 = vsel %vm130, %v1350, 0
    %1358 = vmatpush.msra.mxu0 0.0
    %1359 = vmatpush.msra.mxu0 0.0
    %1360 = vmatpush.msra.mxu0 0.0
    %1361 = vmatpush.msra.mxu0 0.0
    %1362 = vmatpush.msra.mxu0 0.0
    %1363 = vmatpush.msra.mxu0 0.0
    %1364 = vmatpush.msra.mxu0 0.0
    %1365 = vmatpush.msra.mxu0 0.0
    %1366 = vmatpush.msra.mxu0 0.0
    %1367 = vmatpush.msra.mxu0 0.0
    %1368 = vmatpush.msra.mxu0 0.0
    %1369 = vmatpush.msra.mxu0 0.0
    %1370 = vmatpush.msra.mxu0 0.0
    %1371 = vmatpush.msra.mxu0 0.0
    %1372 = vmatpush.msra.mxu0 0.0
    %1373 = vmatpush.msra.mxu0 %v1354
    %1374 = vmatmul.f32.gmra.mxu0 %v1352
    %v1375 = vpop.f32.mrf.mxu0
    %v1376 = vadd.f32 %v117, %v1375
    %1377 = vdwg.mxu0
    %1378 = vmatpush.msra.mxu0 0.0
    %1379 = vmatpush.msra.mxu0 0.0
    %1380 = vmatpush.msra.mxu0 0.0
    %1381 = vmatpush.msra.mxu0 0.0
    %1382 = vmatpush.msra.mxu0 0.0
    %1383 = vmatpush.msra.mxu0 0.0
    %1384 = vmatpush.msra.mxu0 0.0
    %1385 = vmatpush.msra.mxu0 0.0
    %1386 = vmatpush.msra.mxu0 0.0
    %1387 = vmatpush.msra.mxu0 0.0
    %1388 = vmatpush.msra.mxu0 0.0
    %1389 = vmatpush.msra.mxu0 0.0
    %1390 = vmatpush.msra.mxu0 0.0
    %1391 = vmatpush.msra.mxu0 0.0
    %1392 = vmatpush.msra.mxu0 0.0
    %1393 = vmatpush.msra.mxu0 %v1356
    %1394 = vmatmul.f32.gmra.mxu0 %v1352
    %v1395 = vpop.f32.mrf.mxu0
    %v1396 = vadd.f32 %v118, %v1395
    %1397 = vdwg.mxu0
    %v1398 = vmax.f32 %v1376, 0.0
    %v1399 = vmax.f32 %v1396, 0.0
    %v1400 = vld [vmem:[#allocation2] sm:$0xff]
    %v1401 = vld [vmem:[#allocation2 + $0x8] sm:$0xff]
    %s1402 = scalar_lea.vmem [#allocation7], 3072
    %v1403 = vld [vmem:[%s1402] sm:$0xff]
    %v1404 = vld [vmem:[%s1402 + $0x8] sm:$0xff]
    %v1405 = vld [vmem:[%s1402 + $0x10] sm:$0xff]
    %v1406 = vld [vmem:[%s1402 + $0x18] sm:$0xff]
    %v1407 = vld [vmem:[%s1402 + $0x20] sm:$0xff]
    %v1408 = vld [vmem:[%s1402 + $0x28] sm:$0xff]
    %v1409 = vld [vmem:[%s1402 + $0x30] sm:$0xff]
    %v1410 = vld [vmem:[%s1402 + $0x38] sm:$0xff]
    %v1411 = vld [vmem:[%s1402 + $0x40] sm:$0xff]
    %v1412 = vld [vmem:[%s1402 + $0x48] sm:$0xff]
    %v1413 = vld [vmem:[%s1402 + $0x50] sm:$0xff]
    %v1414 = vld [vmem:[%s1402 + $0x58] sm:$0xff]
    %v1415 = vld [vmem:[%s1402 + $0x60] sm:$0xff]
    %v1416 = vld [vmem:[%s1402 + $0x68] sm:$0xff]
    %v1417 = vld [vmem:[%s1402 + $0x70] sm:$0xff]
    %v1418 = vld [vmem:[%s1402 + $0x78] sm:$0xff]
    %v1419 = vld [vmem:[%s1402 + $0x80] sm:$0xff]
    %v1420 = vld [vmem:[%s1402 + $0x88] sm:$0xff]
    %v1421 = vld [vmem:[%s1402 + $0x90] sm:$0xff]
    %v1422 = vld [vmem:[%s1402 + $0x98] sm:$0xff]
    %v1423 = vld [vmem:[%s1402 + $0xa0] sm:$0xff]
    %v1424 = vld [vmem:[%s1402 + $0xa8] sm:$0xff]
    %v1425 = vld [vmem:[%s1402 + $0xb0] sm:$0xff]
    %v1426 = vld [vmem:[%s1402 + $0xb8] sm:$0xff]
    %v1427 = vld [vmem:[%s1402 + $0xc0] sm:$0xff]
    %v1428 = vld [vmem:[%s1402 + $0xc8] sm:$0xff]
    %v1429 = vld [vmem:[%s1402 + $0xd0] sm:$0xff]
    %v1430 = vld [vmem:[%s1402 + $0xd8] sm:$0xff]
    %v1431 = vld [vmem:[%s1402 + $0xe0] sm:$0xff]
    %v1432 = vld [vmem:[%s1402 + $0xe8] sm:$0xff]
    %v1433 = vld [vmem:[%s1402 + $0xf0] sm:$0xff]
    %v1434 = vld [vmem:[%s1402 + $0xf8] sm:$0xff]
    %v1435 = vld [vmem:[%s1402 + $0x100] sm:$0xff]
    %v1436 = vld [vmem:[%s1402 + $0x108] sm:$0xff]
    %v1437 = vld [vmem:[%s1402 + $0x110] sm:$0xff]
    %v1438 = vld [vmem:[%s1402 + $0x118] sm:$0xff]
    %v1439 = vld [vmem:[%s1402 + $0x120] sm:$0xff]
    %v1440 = vld [vmem:[%s1402 + $0x128] sm:$0xff]
    %v1441 = vld [vmem:[%s1402 + $0x130] sm:$0xff]
    %v1442 = vld [vmem:[%s1402 + $0x138] sm:$0xff]
    %v1443 = vld [vmem:[%s1402 + $0x140] sm:$0xff]
    %v1444 = vld [vmem:[%s1402 + $0x148] sm:$0xff]
    %v1445 = vld [vmem:[%s1402 + $0x150] sm:$0xff]
    %v1446 = vld [vmem:[%s1402 + $0x158] sm:$0xff]
    %v1447 = vld [vmem:[%s1402 + $0x160] sm:$0xff]
    %v1448 = vld [vmem:[%s1402 + $0x168] sm:$0xff]
    %v1449 = vld [vmem:[%s1402 + $0x170] sm:$0xff]
    %v1450 = vld [vmem:[%s1402 + $0x178] sm:$0xff]
    %v1451 = vld [vmem:[%s1402 + $0x180] sm:$0xff]
    %v1452 = vld [vmem:[%s1402 + $0x188] sm:$0xff]
    %v1453 = vld [vmem:[%s1402 + $0x190] sm:$0xff]
    %v1454 = vld [vmem:[%s1402 + $0x198] sm:$0xff]
    %v1455 = vld [vmem:[%s1402 + $0x1a0] sm:$0xff]
    %v1456 = vld [vmem:[%s1402 + $0x1a8] sm:$0xff]
    %v1457 = vld [vmem:[%s1402 + $0x1b0] sm:$0xff]
    %v1458 = vld [vmem:[%s1402 + $0x1b8] sm:$0xff]
    %v1459 = vld [vmem:[%s1402 + $0x1c0] sm:$0xff]
    %v1460 = vld [vmem:[%s1402 + $0x1c8] sm:$0xff]
    %v1461 = vld [vmem:[%s1402 + $0x1d0] sm:$0xff]
    %v1462 = vld [vmem:[%s1402 + $0x1d8] sm:$0xff]
    %v1463 = vld [vmem:[%s1402 + $0x1e0] sm:$0xff]
    %v1464 = vld [vmem:[%s1402 + $0x1e8] sm:$0xff]
    %v1465 = vld [vmem:[%s1402 + $0x1f0] sm:$0xff]
    %v1466 = vld [vmem:[%s1402 + $0x1f8] sm:$0xff]
    %1467 = vmatpush.msra.mxu0 %v1433
    %1468 = vmatpush.msra.mxu0 %v1431
    %1469 = vmatpush.msra.mxu0 %v1429
    %1470 = vmatpush.msra.mxu0 %v1427
    %1471 = vmatpush.msra.mxu0 %v1425
    %1472 = vmatpush.msra.mxu0 %v1423
    %1473 = vmatpush.msra.mxu0 %v1421
    %1474 = vmatpush.msra.mxu0 %v1419
    %1475 = vmatpush.msra.mxu0 %v1417
    %1476 = vmatpush.msra.mxu0 %v1415
    %1477 = vmatpush.msra.mxu0 %v1413
    %1478 = vmatpush.msra.mxu0 %v1411
    %1479 = vmatpush.msra.mxu0 %v1409
    %1480 = vmatpush.msra.mxu0 %v1407
    %1481 = vmatpush.msra.mxu0 %v1405
    %1482 = vmatpush.msra.mxu0 %v1403
    %1483 = vmatmul.f32.gmra.mxu0 %v1398
    %v1484 = vpop.f32.mrf.mxu0
    %v1485 = vadd.f32 0.0, %v1484
    %1486 = vdwg.mxu0
    %1487 = vmatpush.msra.mxu0 %v1465
    %1488 = vmatpush.msra.mxu0 %v1463
    %1489 = vmatpush.msra.mxu0 %v1461
    %1490 = vmatpush.msra.mxu0 %v1459
    %1491 = vmatpush.msra.mxu0 %v1457
    %1492 = vmatpush.msra.mxu0 %v1455
    %1493 = vmatpush.msra.mxu0 %v1453
    %1494 = vmatpush.msra.mxu0 %v1451
    %1495 = vmatpush.msra.mxu0 %v1449
    %1496 = vmatpush.msra.mxu0 %v1447
    %1497 = vmatpush.msra.mxu0 %v1445
    %1498 = vmatpush.msra.mxu0 %v1443
    %1499 = vmatpush.msra.mxu0 %v1441
    %1500 = vmatpush.msra.mxu0 %v1439
    %1501 = vmatpush.msra.mxu0 %v1437
    %1502 = vmatpush.msra.mxu0 %v1435
    %1503 = vmatmul.f32.gmra.mxu0 %v1399
    %v1504 = vpop.f32.mrf.mxu0
    %v1505 = vadd.f32 %v1485, %v1504
    %1506 = vdwg.mxu0
    %1507 = vmatpush.msra.mxu0 %v1434
    %1508 = vmatpush.msra.mxu0 %v1432
    %1509 = vmatpush.msra.mxu0 %v1430
    %1510 = vmatpush.msra.mxu0 %v1428
    %1511 = vmatpush.msra.mxu0 %v1426
    %1512 = vmatpush.msra.mxu0 %v1424
    %1513 = vmatpush.msra.mxu0 %v1422
    %1514 = vmatpush.msra.mxu0 %v1420
    %1515 = vmatpush.msra.mxu0 %v1418
    %1516 = vmatpush.msra.mxu0 %v1416
    %1517 = vmatpush.msra.mxu0 %v1414
    %1518 = vmatpush.msra.mxu0 %v1412
    %1519 = vmatpush.msra.mxu0 %v1410
    %1520 = vmatpush.msra.mxu0 %v1408
    %1521 = vmatpush.msra.mxu0 %v1406
    %1522 = vmatpush.msra.mxu0 %v1404
    %1523 = vmatmul.f32.gmra.mxu0 %v1398
    %v1524 = vpop.f32.mrf.mxu0
    %v1525 = vadd.f32 0.0, %v1524
    %1526 = vdwg.mxu0
    %1527 = vmatpush.msra.mxu0 %v1466
    %1528 = vmatpush.msra.mxu0 %v1464
    %1529 = vmatpush.msra.mxu0 %v1462
    %1530 = vmatpush.msra.mxu0 %v1460
    %1531 = vmatpush.msra.mxu0 %v1458
    %1532 = vmatpush.msra.mxu0 %v1456
    %1533 = vmatpush.msra.mxu0 %v1454
    %1534 = vmatpush.msra.mxu0 %v1452
    %1535 = vmatpush.msra.mxu0 %v1450
    %1536 = vmatpush.msra.mxu0 %v1448
    %1537 = vmatpush.msra.mxu0 %v1446
    %1538 = vmatpush.msra.mxu0 %v1444
    %1539 = vmatpush.msra.mxu0 %v1442
    %1540 = vmatpush.msra.mxu0 %v1440
    %1541 = vmatpush.msra.mxu0 %v1438
    %1542 = vmatpush.msra.mxu0 %v1436
    %1543 = vmatmul.f32.gmra.mxu0 %v1399
    %v1544 = vpop.f32.mrf.mxu0
    %v1545 = vadd.f32 %v1525, %v1544
    %1546 = vdwg.mxu0
    %v1547 = vadd.f32 %v1400, %v1505
    %v1548 = vadd.f32 %v1401, %v1545
    %1549 = vst [vmem:[#allocation2] sm:$0xff] %v1547
    %1550 = vst [vmem:[#allocation2 + $0x8] sm:$0xff] %v1548
    %v1551 = vld [vmem:[%s0 + $0x38] sm:$0xff]
    %1552 = vst [vmem:[#allocation1] ss:$2 sm:$0xff] %v114
    %v1553 = vld.sshfl [vmem:[#allocation1] sm:$0xff pattern:$0x75316420]
    %v1554 = vld.sshfl [vmem:[#allocation1 + $0x8] sm:$0xff pattern:$0x75316420]
    %v1556 = vsel %vm126, %v1551, 0
    %v1558 = vsel %vm130, %v1553, 0
    %v1560 = vsel %vm130, %v1554, 0
    %1562 = vmatpush.msra.mxu0 0.0
    %1563 = vmatpush.msra.mxu0 0.0
    %1564 = vmatpush.msra.mxu0 0.0
    %1565 = vmatpush.msra.mxu0 0.0
    %1566 = vmatpush.msra.mxu0 0.0
    %1567 = vmatpush.msra.mxu0 0.0
    %1568 = vmatpush.msra.mxu0 0.0
    %1569 = vmatpush.msra.mxu0 0.0
    %1570 = vmatpush.msra.mxu0 0.0
    %1571 = vmatpush.msra.mxu0 0.0
    %1572 = vmatpush.msra.mxu0 0.0
    %1573 = vmatpush.msra.mxu0 0.0
    %1574 = vmatpush.msra.mxu0 0.0
    %1575 = vmatpush.msra.mxu0 0.0
    %1576 = vmatpush.msra.mxu0 0.0
    %1577 = vmatpush.msra.mxu0 %v1558
    %1578 = vmatmul.f32.gmra.mxu0 %v1556
    %v1579 = vpop.f32.mrf.mxu0
    %v1580 = vadd.f32 %v117, %v1579
    %1581 = vdwg.mxu0
    %1582 = vmatpush.msra.mxu0 0.0
    %1583 = vmatpush.msra.mxu0 0.0
    %1584 = vmatpush.msra.mxu0 0.0
    %1585 = vmatpush.msra.mxu0 0.0
    %1586 = vmatpush.msra.mxu0 0.0
    %1587 = vmatpush.msra.mxu0 0.0
    %1588 = vmatpush.msra.mxu0 0.0
    %1589 = vmatpush.msra.mxu0 0.0
    %1590 = vmatpush.msra.mxu0 0.0
    %1591 = vmatpush.msra.mxu0 0.0
    %1592 = vmatpush.msra.mxu0 0.0
    %1593 = vmatpush.msra.mxu0 0.0
    %1594 = vmatpush.msra.mxu0 0.0
    %1595 = vmatpush.msra.mxu0 0.0
    %1596 = vmatpush.msra.mxu0 0.0
    %1597 = vmatpush.msra.mxu0 %v1560
    %1598 = vmatmul.f32.gmra.mxu0 %v1556
    %v1599 = vpop.f32.mrf.mxu0
    %v1600 = vadd.f32 %v118, %v1599
    %1601 = vdwg.mxu0
    %v1602 = vmax.f32 %v1580, 0.0
    %v1603 = vmax.f32 %v1600, 0.0
    %v1604 = vld [vmem:[#allocation2] sm:$0xff]
    %v1605 = vld [vmem:[#allocation2 + $0x8] sm:$0xff]
    %s1606 = scalar_lea.vmem [#allocation7], 3584
    %v1607 = vld [vmem:[%s1606] sm:$0xff]
    %v1608 = vld [vmem:[%s1606 + $0x8] sm:$0xff]
    %v1609 = vld [vmem:[%s1606 + $0x10] sm:$0xff]
    %v1610 = vld [vmem:[%s1606 + $0x18] sm:$0xff]
    %v1611 = vld [vmem:[%s1606 + $0x20] sm:$0xff]
    %v1612 = vld [vmem:[%s1606 + $0x28] sm:$0xff]
    %v1613 = vld [vmem:[%s1606 + $0x30] sm:$0xff]
    %v1614 = vld [vmem:[%s1606 + $0x38] sm:$0xff]
    %v1615 = vld [vmem:[%s1606 + $0x40] sm:$0xff]
    %v1616 = vld [vmem:[%s1606 + $0x48] sm:$0xff]
    %v1617 = vld [vmem:[%s1606 + $0x50] sm:$0xff]
    %v1618 = vld [vmem:[%s1606 + $0x58] sm:$0xff]
    %v1619 = vld [vmem:[%s1606 + $0x60] sm:$0xff]
    %v1620 = vld [vmem:[%s1606 + $0x68] sm:$0xff]
    %v1621 = vld [vmem:[%s1606 + $0x70] sm:$0xff]
    %v1622 = vld [vmem:[%s1606 + $0x78] sm:$0xff]
    %v1623 = vld [vmem:[%s1606 + $0x80] sm:$0xff]
    %v1624 = vld [vmem:[%s1606 + $0x88] sm:$0xff]
    %v1625 = vld [vmem:[%s1606 + $0x90] sm:$0xff]
    %v1626 = vld [vmem:[%s1606 + $0x98] sm:$0xff]
    %v1627 = vld [vmem:[%s1606 + $0xa0] sm:$0xff]
    %v1628 = vld [vmem:[%s1606 + $0xa8] sm:$0xff]
    %v1629 = vld [vmem:[%s1606 + $0xb0] sm:$0xff]
    %v1630 = vld [vmem:[%s1606 + $0xb8] sm:$0xff]
    %v1631 = vld [vmem:[%s1606 + $0xc0] sm:$0xff]
    %v1632 = vld [vmem:[%s1606 + $0xc8] sm:$0xff]
    %v1633 = vld [vmem:[%s1606 + $0xd0] sm:$0xff]
    %v1634 = vld [vmem:[%s1606 + $0xd8] sm:$0xff]
    %v1635 = vld [vmem:[%s1606 + $0xe0] sm:$0xff]
    %v1636 = vld [vmem:[%s1606 + $0xe8] sm:$0xff]
    %v1637 = vld [vmem:[%s1606 + $0xf0] sm:$0xff]
    %v1638 = vld [vmem:[%s1606 + $0xf8] sm:$0xff]
    %v1639 = vld [vmem:[%s1606 + $0x100] sm:$0xff]
    %v1640 = vld [vmem:[%s1606 + $0x108] sm:$0xff]
    %v1641 = vld [vmem:[%s1606 + $0x110] sm:$0xff]
    %v1642 = vld [vmem:[%s1606 + $0x118] sm:$0xff]
    %v1643 = vld [vmem:[%s1606 + $0x120] sm:$0xff]
    %v1644 = vld [vmem:[%s1606 + $0x128] sm:$0xff]
    %v1645 = vld [vmem:[%s1606 + $0x130] sm:$0xff]
    %v1646 = vld [vmem:[%s1606 + $0x138] sm:$0xff]
    %v1647 = vld [vmem:[%s1606 + $0x140] sm:$0xff]
    %v1648 = vld [vmem:[%s1606 + $0x148] sm:$0xff]
    %v1649 = vld [vmem:[%s1606 + $0x150] sm:$0xff]
    %v1650 = vld [vmem:[%s1606 + $0x158] sm:$0xff]
    %v1651 = vld [vmem:[%s1606 + $0x160] sm:$0xff]
    %v1652 = vld [vmem:[%s1606 + $0x168] sm:$0xff]
    %v1653 = vld [vmem:[%s1606 + $0x170] sm:$0xff]
    %v1654 = vld [vmem:[%s1606 + $0x178] sm:$0xff]
    %v1655 = vld [vmem:[%s1606 + $0x180] sm:$0xff]
    %v1656 = vld [vmem:[%s1606 + $0x188] sm:$0xff]
    %v1657 = vld [vmem:[%s1606 + $0x190] sm:$0xff]
    %v1658 = vld [vmem:[%s1606 + $0x198] sm:$0xff]
    %v1659 = vld [vmem:[%s1606 + $0x1a0] sm:$0xff]
    %v1660 = vld [vmem:[%s1606 + $0x1a8] sm:$0xff]
    %v1661 = vld [vmem:[%s1606 + $0x1b0] sm:$0xff]
    %v1662 = vld [vmem:[%s1606 + $0x1b8] sm:$0xff]
    %v1663 = vld [vmem:[%s1606 + $0x1c0] sm:$0xff]
    %v1664 = vld [vmem:[%s1606 + $0x1c8] sm:$0xff]
    %v1665 = vld [vmem:[%s1606 + $0x1d0] sm:$0xff]
    %v1666 = vld [vmem:[%s1606 + $0x1d8] sm:$0xff]
    %v1667 = vld [vmem:[%s1606 + $0x1e0] sm:$0xff]
    %v1668 = vld [vmem:[%s1606 + $0x1e8] sm:$0xff]
    %v1669 = vld [vmem:[%s1606 + $0x1f0] sm:$0xff]
    %v1670 = vld [vmem:[%s1606 + $0x1f8] sm:$0xff]
    %1671 = vmatpush.msra.mxu0 %v1637
    %1672 = vmatpush.msra.mxu0 %v1635
    %1673 = vmatpush.msra.mxu0 %v1633
    %1674 = vmatpush.msra.mxu0 %v1631
    %1675 = vmatpush.msra.mxu0 %v1629
    %1676 = vmatpush.msra.mxu0 %v1627
    %1677 = vmatpush.msra.mxu0 %v1625
    %1678 = vmatpush.msra.mxu0 %v1623
    %1679 = vmatpush.msra.mxu0 %v1621
    %1680 = vmatpush.msra.mxu0 %v1619
    %1681 = vmatpush.msra.mxu0 %v1617
    %1682 = vmatpush.msra.mxu0 %v1615
    %1683 = vmatpush.msra.mxu0 %v1613
    %1684 = vmatpush.msra.mxu0 %v1611
    %1685 = vmatpush.msra.mxu0 %v1609
    %1686 = vmatpush.msra.mxu0 %v1607
    %1687 = vmatmul.f32.gmra.mxu0 %v1602
    %v1688 = vpop.f32.mrf.mxu0
    %v1689 = vadd.f32 0.0, %v1688
    %1690 = vdwg.mxu0
    %1691 = vmatpush.msra.mxu0 %v1669
    %1692 = vmatpush.msra.mxu0 %v1667
    %1693 = vmatpush.msra.mxu0 %v1665
    %1694 = vmatpush.msra.mxu0 %v1663
    %1695 = vmatpush.msra.mxu0 %v1661
    %1696 = vmatpush.msra.mxu0 %v1659
    %1697 = vmatpush.msra.mxu0 %v1657
    %1698 = vmatpush.msra.mxu0 %v1655
    %1699 = vmatpush.msra.mxu0 %v1653
    %1700 = vmatpush.msra.mxu0 %v1651
    %1701 = vmatpush.msra.mxu0 %v1649
    %1702 = vmatpush.msra.mxu0 %v1647
    %1703 = vmatpush.msra.mxu0 %v1645
    %1704 = vmatpush.msra.mxu0 %v1643
    %1705 = vmatpush.msra.mxu0 %v1641
    %1706 = vmatpush.msra.mxu0 %v1639
    %1707 = vmatmul.f32.gmra.mxu0 %v1603
    %v1708 = vpop.f32.mrf.mxu0
    %v1709 = vadd.f32 %v1689, %v1708
    %1710 = vdwg.mxu0
    %1711 = vmatpush.msra.mxu0 %v1638
    %1712 = vmatpush.msra.mxu0 %v1636
    %1713 = vmatpush.msra.mxu0 %v1634
    %1714 = vmatpush.msra.mxu0 %v1632
    %1715 = vmatpush.msra.mxu0 %v1630
    %1716 = vmatpush.msra.mxu0 %v1628
    %1717 = vmatpush.msra.mxu0 %v1626
    %1718 = vmatpush.msra.mxu0 %v1624
    %1719 = vmatpush.msra.mxu0 %v1622
    %1720 = vmatpush.msra.mxu0 %v1620
    %1721 = vmatpush.msra.mxu0 %v1618
    %1722 = vmatpush.msra.mxu0 %v1616
    %1723 = vmatpush.msra.mxu0 %v1614
    %1724 = vmatpush.msra.mxu0 %v1612
    %1725 = vmatpush.msra.mxu0 %v1610
    %1726 = vmatpush.msra.mxu0 %v1608
    %1727 = vmatmul.f32.gmra.mxu0 %v1602
    %v1728 = vpop.f32.mrf.mxu0
    %v1729 = vadd.f32 0.0, %v1728
    %1730 = vdwg.mxu0
    %1731 = vmatpush.msra.mxu0 %v1670
    %1732 = vmatpush.msra.mxu0 %v1668
    %1733 = vmatpush.msra.mxu0 %v1666
    %1734 = vmatpush.msra.mxu0 %v1664
    %1735 = vmatpush.msra.mxu0 %v1662
    %1736 = vmatpush.msra.mxu0 %v1660
    %1737 = vmatpush.msra.mxu0 %v1658
    %1738 = vmatpush.msra.mxu0 %v1656
    %1739 = vmatpush.msra.mxu0 %v1654
    %1740 = vmatpush.msra.mxu0 %v1652
    %1741 = vmatpush.msra.mxu0 %v1650
    %1742 = vmatpush.msra.mxu0 %v1648
    %1743 = vmatpush.msra.mxu0 %v1646
    %1744 = vmatpush.msra.mxu0 %v1644
    %1745 = vmatpush.msra.mxu0 %v1642
    %1746 = vmatpush.msra.mxu0 %v1640
    %1747 = vmatmul.f32.gmra.mxu0 %v1603
    %v1748 = vpop.f32.mrf.mxu0
    %v1749 = vadd.f32 %v1729, %v1748
    %1750 = vdwg.mxu0
    %v1751 = vadd.f32 %v1604, %v1709
    %v1752 = vadd.f32 %v1605, %v1749
    %1753 = vst [vmem:[#allocation2] sm:$0xff] %v1751
    %1754 = vst [vmem:[#allocation2 + $0x8] sm:$0xff] %v1752
    %v1755 = vld [vmem:[%s0 + $0x40] sm:$0xff]
    %1756 = vst [vmem:[#allocation1] ss:$2 sm:$0xff] %v114
    %v1757 = vld.sshfl [vmem:[#allocation1] sm:$0xff pattern:$0x75316420]
    %v1758 = vld.sshfl [vmem:[#allocation1 + $0x8] sm:$0xff pattern:$0x75316420]
    %v1760 = vsel %vm126, %v1755, 0
    %v1762 = vsel %vm130, %v1757, 0
    %v1764 = vsel %vm130, %v1758, 0
    %1766 = vmatpush.msra.mxu0 0.0
    %1767 = vmatpush.msra.mxu0 0.0
    %1768 = vmatpush.msra.mxu0 0.0
    %1769 = vmatpush.msra.mxu0 0.0
    %1770 = vmatpush.msra.mxu0 0.0
    %1771 = vmatpush.msra.mxu0 0.0
    %1772 = vmatpush.msra.mxu0 0.0
    %1773 = vmatpush.msra.mxu0 0.0
    %1774 = vmatpush.msra.mxu0 0.0
    %1775 = vmatpush.msra.mxu0 0.0
    %1776 = vmatpush.msra.mxu0 0.0
    %1777 = vmatpush.msra.mxu0 0.0
    %1778 = vmatpush.msra.mxu0 0.0
    %1779 = vmatpush.msra.mxu0 0.0
    %1780 = vmatpush.msra.mxu0 0.0
    %1781 = vmatpush.msra.mxu0 %v1762
    %1782 = vmatmul.f32.gmra.mxu0 %v1760
    %v1783 = vpop.f32.mrf.mxu0
    %v1784 = vadd.f32 %v117, %v1783
    %1785 = vdwg.mxu0
    %1786 = vmatpush.msra.mxu0 0.0
    %1787 = vmatpush.msra.mxu0 0.0
    %1788 = vmatpush.msra.mxu0 0.0
    %1789 = vmatpush.msra.mxu0 0.0
    %1790 = vmatpush.msra.mxu0 0.0
    %1791 = vmatpush.msra.mxu0 0.0
    %1792 = vmatpush.msra.mxu0 0.0
    %1793 = vmatpush.msra.mxu0 0.0
    %1794 = vmatpush.msra.mxu0 0.0
    %1795 = vmatpush.msra.mxu0 0.0
    %1796 = vmatpush.msra.mxu0 0.0
    %1797 = vmatpush.msra.mxu0 0.0
    %1798 = vmatpush.msra.mxu0 0.0
    %1799 = vmatpush.msra.mxu0 0.0
    %1800 = vmatpush.msra.mxu0 0.0
    %1801 = vmatpush.msra.mxu0 %v1764
    %1802 = vmatmul.f32.gmra.mxu0 %v1760
    %v1803 = vpop.f32.mrf.mxu0
    %v1804 = vadd.f32 %v118, %v1803
    %1805 = vdwg.mxu0
    %v1806 = vmax.f32 %v1784, 0.0
    %v1807 = vmax.f32 %v1804, 0.0
    %v1808 = vld [vmem:[#allocation2] sm:$0xff]
    %v1809 = vld [vmem:[#allocation2 + $0x8] sm:$0xff]
    %s1810 = scalar_lea.vmem [#allocation7], 4096
    %v1811 = vld [vmem:[%s1810] sm:$0xff]
    %v1812 = vld [vmem:[%s1810 + $0x8] sm:$0xff]
    %v1813 = vld [vmem:[%s1810 + $0x10] sm:$0xff]
    %v1814 = vld [vmem:[%s1810 + $0x18] sm:$0xff]
    %v1815 = vld [vmem:[%s1810 + $0x20] sm:$0xff]
    %v1816 = vld [vmem:[%s1810 + $0x28] sm:$0xff]
    %v1817 = vld [vmem:[%s1810 + $0x30] sm:$0xff]
    %v1818 = vld [vmem:[%s1810 + $0x38] sm:$0xff]
    %v1819 = vld [vmem:[%s1810 + $0x40] sm:$0xff]
    %v1820 = vld [vmem:[%s1810 + $0x48] sm:$0xff]
    %v1821 = vld [vmem:[%s1810 + $0x50] sm:$0xff]
    %v1822 = vld [vmem:[%s1810 + $0x58] sm:$0xff]
    %v1823 = vld [vmem:[%s1810 + $0x60] sm:$0xff]
    %v1824 = vld [vmem:[%s1810 + $0x68] sm:$0xff]
    %v1825 = vld [vmem:[%s1810 + $0x70] sm:$0xff]
    %v1826 = vld [vmem:[%s1810 + $0x78] sm:$0xff]
    %v1827 = vld [vmem:[%s1810 + $0x80] sm:$0xff]
    %v1828 = vld [vmem:[%s1810 + $0x88] sm:$0xff]
    %v1829 = vld [vmem:[%s1810 + $0x90] sm:$0xff]
    %v1830 = vld [vmem:[%s1810 + $0x98] sm:$0xff]
    %v1831 = vld [vmem:[%s1810 + $0xa0] sm:$0xff]
    %v1832 = vld [vmem:[%s1810 + $0xa8] sm:$0xff]
    %v1833 = vld [vmem:[%s1810 + $0xb0] sm:$0xff]
    %v1834 = vld [vmem:[%s1810 + $0xb8] sm:$0xff]
    %v1835 = vld [vmem:[%s1810 + $0xc0] sm:$0xff]
    %v1836 = vld [vmem:[%s1810 + $0xc8] sm:$0xff]
    %v1837 = vld [vmem:[%s1810 + $0xd0] sm:$0xff]
    %v1838 = vld [vmem:[%s1810 + $0xd8] sm:$0xff]
    %v1839 = vld [vmem:[%s1810 + $0xe0] sm:$0xff]
    %v1840 = vld [vmem:[%s1810 + $0xe8] sm:$0xff]
    %v1841 = vld [vmem:[%s1810 + $0xf0] sm:$0xff]
    %v1842 = vld [vmem:[%s1810 + $0xf8] sm:$0xff]
    %v1843 = vld [vmem:[%s1810 + $0x100] sm:$0xff]
    %v1844 = vld [vmem:[%s1810 + $0x108] sm:$0xff]
    %v1845 = vld [vmem:[%s1810 + $0x110] sm:$0xff]
    %v1846 = vld [vmem:[%s1810 + $0x118] sm:$0xff]
    %v1847 = vld [vmem:[%s1810 + $0x120] sm:$0xff]
    %v1848 = vld [vmem:[%s1810 + $0x128] sm:$0xff]
    %v1849 = vld [vmem:[%s1810 + $0x130] sm:$0xff]
    %v1850 = vld [vmem:[%s1810 + $0x138] sm:$0xff]
    %v1851 = vld [vmem:[%s1810 + $0x140] sm:$0xff]
    %v1852 = vld [vmem:[%s1810 + $0x148] sm:$0xff]
    %v1853 = vld [vmem:[%s1810 + $0x150] sm:$0xff]
    %v1854 = vld [vmem:[%s1810 + $0x158] sm:$0xff]
    %v1855 = vld [vmem:[%s1810 + $0x160] sm:$0xff]
    %v1856 = vld [vmem:[%s1810 + $0x168] sm:$0xff]
    %v1857 = vld [vmem:[%s1810 + $0x170] sm:$0xff]
    %v1858 = vld [vmem:[%s1810 + $0x178] sm:$0xff]
    %v1859 = vld [vmem:[%s1810 + $0x180] sm:$0xff]
    %v1860 = vld [vmem:[%s1810 + $0x188] sm:$0xff]
    %v1861 = vld [vmem:[%s1810 + $0x190] sm:$0xff]
    %v1862 = vld [vmem:[%s1810 + $0x198] sm:$0xff]
    %v1863 = vld [vmem:[%s1810 + $0x1a0] sm:$0xff]
    %v1864 = vld [vmem:[%s1810 + $0x1a8] sm:$0xff]
    %v1865 = vld [vmem:[%s1810 + $0x1b0] sm:$0xff]
    %v1866 = vld [vmem:[%s1810 + $0x1b8] sm:$0xff]
    %v1867 = vld [vmem:[%s1810 + $0x1c0] sm:$0xff]
    %v1868 = vld [vmem:[%s1810 + $0x1c8] sm:$0xff]
    %v1869 = vld [vmem:[%s1810 + $0x1d0] sm:$0xff]
    %v1870 = vld [vmem:[%s1810 + $0x1d8] sm:$0xff]
    %v1871 = vld [vmem:[%s1810 + $0x1e0] sm:$0xff]
    %v1872 = vld [vmem:[%s1810 + $0x1e8] sm:$0xff]
    %v1873 = vld [vmem:[%s1810 + $0x1f0] sm:$0xff]
    %v1874 = vld [vmem:[%s1810 + $0x1f8] sm:$0xff]
    %1875 = vmatpush.msra.mxu0 %v1841
    %1876 = vmatpush.msra.mxu0 %v1839
    %1877 = vmatpush.msra.mxu0 %v1837
    %1878 = vmatpush.msra.mxu0 %v1835
    %1879 = vmatpush.msra.mxu0 %v1833
    %1880 = vmatpush.msra.mxu0 %v1831
    %1881 = vmatpush.msra.mxu0 %v1829
    %1882 = vmatpush.msra.mxu0 %v1827
    %1883 = vmatpush.msra.mxu0 %v1825
    %1884 = vmatpush.msra.mxu0 %v1823
    %1885 = vmatpush.msra.mxu0 %v1821
    %1886 = vmatpush.msra.mxu0 %v1819
    %1887 = vmatpush.msra.mxu0 %v1817
    %1888 = vmatpush.msra.mxu0 %v1815
    %1889 = vmatpush.msra.mxu0 %v1813
    %1890 = vmatpush.msra.mxu0 %v1811
    %1891 = vmatmul.f32.gmra.mxu0 %v1806
    %v1892 = vpop.f32.mrf.mxu0
    %v1893 = vadd.f32 0.0, %v1892
    %1894 = vdwg.mxu0
    %1895 = vmatpush.msra.mxu0 %v1873
    %1896 = vmatpush.msra.mxu0 %v1871
    %1897 = vmatpush.msra.mxu0 %v1869
    %1898 = vmatpush.msra.mxu0 %v1867
    %1899 = vmatpush.msra.mxu0 %v1865
    %1900 = vmatpush.msra.mxu0 %v1863
    %1901 = vmatpush.msra.mxu0 %v1861
    %1902 = vmatpush.msra.mxu0 %v1859
    %1903 = vmatpush.msra.mxu0 %v1857
    %1904 = vmatpush.msra.mxu0 %v1855
    %1905 = vmatpush.msra.mxu0 %v1853
    %1906 = vmatpush.msra.mxu0 %v1851
    %1907 = vmatpush.msra.mxu0 %v1849
    %1908 = vmatpush.msra.mxu0 %v1847
    %1909 = vmatpush.msra.mxu0 %v1845
    %1910 = vmatpush.msra.mxu0 %v1843
    %1911 = vmatmul.f32.gmra.mxu0 %v1807
    %v1912 = vpop.f32.mrf.mxu0
    %v1913 = vadd.f32 %v1893, %v1912
    %1914 = vdwg.mxu0
    %1915 = vmatpush.msra.mxu0 %v1842
    %1916 = vmatpush.msra.mxu0 %v1840
    %1917 = vmatpush.msra.mxu0 %v1838
    %1918 = vmatpush.msra.mxu0 %v1836
    %1919 = vmatpush.msra.mxu0 %v1834
    %1920 = vmatpush.msra.mxu0 %v1832
    %1921 = vmatpush.msra.mxu0 %v1830
    %1922 = vmatpush.msra.mxu0 %v1828
    %1923 = vmatpush.msra.mxu0 %v1826
    %1924 = vmatpush.msra.mxu0 %v1824
    %1925 = vmatpush.msra.mxu0 %v1822
    %1926 = vmatpush.msra.mxu0 %v1820
    %1927 = vmatpush.msra.mxu0 %v1818
    %1928 = vmatpush.msra.mxu0 %v1816
    %1929 = vmatpush.msra.mxu0 %v1814
    %1930 = vmatpush.msra.mxu0 %v1812
    %1931 = vmatmul.f32.gmra.mxu0 %v1806
    %v1932 = vpop.f32.mrf.mxu0
    %v1933 = vadd.f32 0.0, %v1932
    %1934 = vdwg.mxu0
    %1935 = vmatpush.msra.mxu0 %v1874
    %1936 = vmatpush.msra.mxu0 %v1872
    %1937 = vmatpush.msra.mxu0 %v1870
    %1938 = vmatpush.msra.mxu0 %v1868
    %1939 = vmatpush.msra.mxu0 %v1866
    %1940 = vmatpush.msra.mxu0 %v1864
    %1941 = vmatpush.msra.mxu0 %v1862
    %1942 = vmatpush.msra.mxu0 %v1860
    %1943 = vmatpush.msra.mxu0 %v1858
    %1944 = vmatpush.msra.mxu0 %v1856
    %1945 = vmatpush.msra.mxu0 %v1854
    %1946 = vmatpush.msra.mxu0 %v1852
    %1947 = vmatpush.msra.mxu0 %v1850
    %1948 = vmatpush.msra.mxu0 %v1848
    %1949 = vmatpush.msra.mxu0 %v1846
    %1950 = vmatpush.msra.mxu0 %v1844
    %1951 = vmatmul.f32.gmra.mxu0 %v1807
    %v1952 = vpop.f32.mrf.mxu0
    %v1953 = vadd.f32 %v1933, %v1952
    %1954 = vdwg.mxu0
    %v1955 = vadd.f32 %v1808, %v1913
    %v1956 = vadd.f32 %v1809, %v1953
    %1957 = vst [vmem:[#allocation2] sm:$0xff] %v1955
    %1958 = vst [vmem:[#allocation2 + $0x8] sm:$0xff] %v1956
    %v1959 = vld [vmem:[%s0 + $0x48] sm:$0xff]
    %1960 = vst [vmem:[#allocation1] ss:$2 sm:$0xff] %v114
    %v1961 = vld.sshfl [vmem:[#allocation1] sm:$0xff pattern:$0x75316420]
    %v1962 = vld.sshfl [vmem:[#allocation1 + $0x8] sm:$0xff pattern:$0x75316420]
    %v1964 = vsel %vm126, %v1959, 0
    %v1966 = vsel %vm130, %v1961, 0
    %v1968 = vsel %vm130, %v1962, 0
    %1970 = vmatpush.msra.mxu0 0.0
    %1971 = vmatpush.msra.mxu0 0.0
    %1972 = vmatpush.msra.mxu0 0.0
    %1973 = vmatpush.msra.mxu0 0.0
    %1974 = vmatpush.msra.mxu0 0.0
    %1975 = vmatpush.msra.mxu0 0.0
    %1976 = vmatpush.msra.mxu0 0.0
    %1977 = vmatpush.msra.mxu0 0.0
    %1978 = vmatpush.msra.mxu0 0.0
    %1979 = vmatpush.msra.mxu0 0.0
    %1980 = vmatpush.msra.mxu0 0.0
    %1981 = vmatpush.msra.mxu0 0.0
    %1982 = vmatpush.msra.mxu0 0.0
    %1983 = vmatpush.msra.mxu0 0.0
    %1984 = vmatpush.msra.mxu0 0.0
    %1985 = vmatpush.msra.mxu0 %v1966
    %1986 = vmatmul.f32.gmra.mxu0 %v1964
    %v1987 = vpop.f32.mrf.mxu0
    %v1988 = vadd.f32 %v117, %v1987
    %1989 = vdwg.mxu0
    %1990 = vmatpush.msra.mxu0 0.0
    %1991 = vmatpush.msra.mxu0 0.0
    %1992 = vmatpush.msra.mxu0 0.0
    %1993 = vmatpush.msra.mxu0 0.0
    %1994 = vmatpush.msra.mxu0 0.0
    %1995 = vmatpush.msra.mxu0 0.0
    %1996 = vmatpush.msra.mxu0 0.0
    %1997 = vmatpush.msra.mxu0 0.0
    %1998 = vmatpush.msra.mxu0 0.0
    %1999 = vmatpush.msra.mxu0 0.0
    %2000 = vmatpush.msra.mxu0 0.0
    %2001 = vmatpush.msra.mxu0 0.0
    %2002 = vmatpush.msra.mxu0 0.0
    %2003 = vmatpush.msra.mxu0 0.0
    %2004 = vmatpush.msra.mxu0 0.0
    %2005 = vmatpush.msra.mxu0 %v1968
    %2006 = vmatmul.f32.gmra.mxu0 %v1964
    %v2007 = vpop.f32.mrf.mxu0
    %v2008 = vadd.f32 %v118, %v2007
    %2009 = vdwg.mxu0
    %v2010 = vmax.f32 %v1988, 0.0
    %v2011 = vmax.f32 %v2008, 0.0
    %v2012 = vld [vmem:[#allocation2] sm:$0xff]
    %v2013 = vld [vmem:[#allocation2 + $0x8] sm:$0xff]
    %s2014 = scalar_lea.vmem [#allocation7], 4608
    %v2015 = vld [vmem:[%s2014] sm:$0xff]
    %v2016 = vld [vmem:[%s2014 + $0x8] sm:$0xff]
    %v2017 = vld [vmem:[%s2014 + $0x10] sm:$0xff]
    %v2018 = vld [vmem:[%s2014 + $0x18] sm:$0xff]
    %v2019 = vld [vmem:[%s2014 + $0x20] sm:$0xff]
    %v2020 = vld [vmem:[%s2014 + $0x28] sm:$0xff]
    %v2021 = vld [vmem:[%s2014 + $0x30] sm:$0xff]
    %v2022 = vld [vmem:[%s2014 + $0x38] sm:$0xff]
    %v2023 = vld [vmem:[%s2014 + $0x40] sm:$0xff]
    %v2024 = vld [vmem:[%s2014 + $0x48] sm:$0xff]
    %v2025 = vld [vmem:[%s2014 + $0x50] sm:$0xff]
    %v2026 = vld [vmem:[%s2014 + $0x58] sm:$0xff]
    %v2027 = vld [vmem:[%s2014 + $0x60] sm:$0xff]
    %v2028 = vld [vmem:[%s2014 + $0x68] sm:$0xff]
    %v2029 = vld [vmem:[%s2014 + $0x70] sm:$0xff]
    %v2030 = vld [vmem:[%s2014 + $0x78] sm:$0xff]
    %v2031 = vld [vmem:[%s2014 + $0x80] sm:$0xff]
    %v2032 = vld [vmem:[%s2014 + $0x88] sm:$0xff]
    %v2033 = vld [vmem:[%s2014 + $0x90] sm:$0xff]
    %v2034 = vld [vmem:[%s2014 + $0x98] sm:$0xff]
    %v2035 = vld [vmem:[%s2014 + $0xa0] sm:$0xff]
    %v2036 = vld [vmem:[%s2014 + $0xa8] sm:$0xff]
    %v2037 = vld [vmem:[%s2014 + $0xb0] sm:$0xff]
    %v2038 = vld [vmem:[%s2014 + $0xb8] sm:$0xff]
    %v2039 = vld [vmem:[%s2014 + $0xc0] sm:$0xff]
    %v2040 = vld [vmem:[%s2014 + $0xc8] sm:$0xff]
    %v2041 = vld [vmem:[%s2014 + $0xd0] sm:$0xff]
    %v2042 = vld [vmem:[%s2014 + $0xd8] sm:$0xff]
    %v2043 = vld [vmem:[%s2014 + $0xe0] sm:$0xff]
    %v2044 = vld [vmem:[%s2014 + $0xe8] sm:$0xff]
    %v2045 = vld [vmem:[%s2014 + $0xf0] sm:$0xff]
    %v2046 = vld [vmem:[%s2014 + $0xf8] sm:$0xff]
    %v2047 = vld [vmem:[%s2014 + $0x100] sm:$0xff]
    %v2048 = vld [vmem:[%s2014 + $0x108] sm:$0xff]
    %v2049 = vld [vmem:[%s2014 + $0x110] sm:$0xff]
    %v2050 = vld [vmem:[%s2014 + $0x118] sm:$0xff]
    %v2051 = vld [vmem:[%s2014 + $0x120] sm:$0xff]
    %v2052 = vld [vmem:[%s2014 + $0x128] sm:$0xff]
    %v2053 = vld [vmem:[%s2014 + $0x130] sm:$0xff]
    %v2054 = vld [vmem:[%s2014 + $0x138] sm:$0xff]
    %v2055 = vld [vmem:[%s2014 + $0x140] sm:$0xff]
    %v2056 = vld [vmem:[%s2014 + $0x148] sm:$0xff]
    %v2057 = vld [vmem:[%s2014 + $0x150] sm:$0xff]
    %v2058 = vld [vmem:[%s2014 + $0x158] sm:$0xff]
    %v2059 = vld [vmem:[%s2014 + $0x160] sm:$0xff]
    %v2060 = vld [vmem:[%s2014 + $0x168] sm:$0xff]
    %v2061 = vld [vmem:[%s2014 + $0x170] sm:$0xff]
    %v2062 = vld [vmem:[%s2014 + $0x178] sm:$0xff]
    %v2063 = vld [vmem:[%s2014 + $0x180] sm:$0xff]
    %v2064 = vld [vmem:[%s2014 + $0x188] sm:$0xff]
    %v2065 = vld [vmem:[%s2014 + $0x190] sm:$0xff]
    %v2066 = vld [vmem:[%s2014 + $0x198] sm:$0xff]
    %v2067 = vld [vmem:[%s2014 + $0x1a0] sm:$0xff]
    %v2068 = vld [vmem:[%s2014 + $0x1a8] sm:$0xff]
    %v2069 = vld [vmem:[%s2014 + $0x1b0] sm:$0xff]
    %v2070 = vld [vmem:[%s2014 + $0x1b8] sm:$0xff]
    %v2071 = vld [vmem:[%s2014 + $0x1c0] sm:$0xff]
    %v2072 = vld [vmem:[%s2014 + $0x1c8] sm:$0xff]
    %v2073 = vld [vmem:[%s2014 + $0x1d0] sm:$0xff]
    %v2074 = vld [vmem:[%s2014 + $0x1d8] sm:$0xff]
    %v2075 = vld [vmem:[%s2014 + $0x1e0] sm:$0xff]
    %v2076 = vld [vmem:[%s2014 + $0x1e8] sm:$0xff]
    %v2077 = vld [vmem:[%s2014 + $0x1f0] sm:$0xff]
    %v2078 = vld [vmem:[%s2014 + $0x1f8] sm:$0xff]
    %2079 = vmatpush.msra.mxu0 %v2045
    %2080 = vmatpush.msra.mxu0 %v2043
    %2081 = vmatpush.msra.mxu0 %v2041
    %2082 = vmatpush.msra.mxu0 %v2039
    %2083 = vmatpush.msra.mxu0 %v2037
    %2084 = vmatpush.msra.mxu0 %v2035
    %2085 = vmatpush.msra.mxu0 %v2033
    %2086 = vmatpush.msra.mxu0 %v2031
    %2087 = vmatpush.msra.mxu0 %v2029
    %2088 = vmatpush.msra.mxu0 %v2027
    %2089 = vmatpush.msra.mxu0 %v2025
    %2090 = vmatpush.msra.mxu0 %v2023
    %2091 = vmatpush.msra.mxu0 %v2021
    %2092 = vmatpush.msra.mxu0 %v2019
    %2093 = vmatpush.msra.mxu0 %v2017
    %2094 = vmatpush.msra.mxu0 %v2015
    %2095 = vmatmul.f32.gmra.mxu0 %v2010
    %v2096 = vpop.f32.mrf.mxu0
    %v2097 = vadd.f32 0.0, %v2096
    %2098 = vdwg.mxu0
    %2099 = vmatpush.msra.mxu0 %v2077
    %2100 = vmatpush.msra.mxu0 %v2075
    %2101 = vmatpush.msra.mxu0 %v2073
    %2102 = vmatpush.msra.mxu0 %v2071
    %2103 = vmatpush.msra.mxu0 %v2069
    %2104 = vmatpush.msra.mxu0 %v2067
    %2105 = vmatpush.msra.mxu0 %v2065
    %2106 = vmatpush.msra.mxu0 %v2063
    %2107 = vmatpush.msra.mxu0 %v2061
    %2108 = vmatpush.msra.mxu0 %v2059
    %2109 = vmatpush.msra.mxu0 %v2057
    %2110 = vmatpush.msra.mxu0 %v2055
    %2111 = vmatpush.msra.mxu0 %v2053
    %2112 = vmatpush.msra.mxu0 %v2051
    %2113 = vmatpush.msra.mxu0 %v2049
    %2114 = vmatpush.msra.mxu0 %v2047
    %2115 = vmatmul.f32.gmra.mxu0 %v2011
    %v2116 = vpop.f32.mrf.mxu0
    %v2117 = vadd.f32 %v2097, %v2116
    %2118 = vdwg.mxu0
    %2119 = vmatpush.msra.mxu0 %v2046
    %2120 = vmatpush.msra.mxu0 %v2044
    %2121 = vmatpush.msra.mxu0 %v2042
    %2122 = vmatpush.msra.mxu0 %v2040
    %2123 = vmatpush.msra.mxu0 %v2038
    %2124 = vmatpush.msra.mxu0 %v2036
    %2125 = vmatpush.msra.mxu0 %v2034
    %2126 = vmatpush.msra.mxu0 %v2032
    %2127 = vmatpush.msra.mxu0 %v2030
    %2128 = vmatpush.msra.mxu0 %v2028
    %2129 = vmatpush.msra.mxu0 %v2026
    %2130 = vmatpush.msra.mxu0 %v2024
    %2131 = vmatpush.msra.mxu0 %v2022
    %2132 = vmatpush.msra.mxu0 %v2020
    %2133 = vmatpush.msra.mxu0 %v2018
    %2134 = vmatpush.msra.mxu0 %v2016
    %2135 = vmatmul.f32.gmra.mxu0 %v2010
    %v2136 = vpop.f32.mrf.mxu0
    %v2137 = vadd.f32 0.0, %v2136
    %2138 = vdwg.mxu0
    %2139 = vmatpush.msra.mxu0 %v2078
    %2140 = vmatpush.msra.mxu0 %v2076
    %2141 = vmatpush.msra.mxu0 %v2074
    %2142 = vmatpush.msra.mxu0 %v2072
    %2143 = vmatpush.msra.mxu0 %v2070
    %2144 = vmatpush.msra.mxu0 %v2068
    %2145 = vmatpush.msra.mxu0 %v2066
    %2146 = vmatpush.msra.mxu0 %v2064
    %2147 = vmatpush.msra.mxu0 %v2062
    %2148 = vmatpush.msra.mxu0 %v2060
    %2149 = vmatpush.msra.mxu0 %v2058
    %2150 = vmatpush.msra.mxu0 %v2056
    %2151 = vmatpush.msra.mxu0 %v2054
    %2152 = vmatpush.msra.mxu0 %v2052
    %2153 = vmatpush.msra.mxu0 %v2050
    %2154 = vmatpush.msra.mxu0 %v2048
    %2155 = vmatmul.f32.gmra.mxu0 %v2011
    %v2156 = vpop.f32.mrf.mxu0
    %v2157 = vadd.f32 %v2137, %v2156
    %2158 = vdwg.mxu0
    %v2159 = vadd.f32 %v2012, %v2117
    %v2160 = vadd.f32 %v2013, %v2157
    %2161 = vst [vmem:[#allocation2] sm:$0xff] %v2159
    %2162 = vst [vmem:[#allocation2 + $0x8] sm:$0xff] %v2160
    %v2163 = vld [vmem:[%s0 + $0x50] sm:$0xff]
    %2164 = vst [vmem:[#allocation1] ss:$2 sm:$0xff] %v114
    %v2165 = vld.sshfl [vmem:[#allocation1] sm:$0xff pattern:$0x75316420]
    %v2166 = vld.sshfl [vmem:[#allocation1 + $0x8] sm:$0xff pattern:$0x75316420]
    %v2168 = vsel %vm126, %v2163, 0
    %v2170 = vsel %vm130, %v2165, 0
    %v2172 = vsel %vm130, %v2166, 0
    %2174 = vmatpush.msra.mxu0 0.0
    %2175 = vmatpush.msra.mxu0 0.0
    %2176 = vmatpush.msra.mxu0 0.0
    %2177 = vmatpush.msra.mxu0 0.0
    %2178 = vmatpush.msra.mxu0 0.0
    %2179 = vmatpush.msra.mxu0 0.0
    %2180 = vmatpush.msra.mxu0 0.0
    %2181 = vmatpush.msra.mxu0 0.0
    %2182 = vmatpush.msra.mxu0 0.0
    %2183 = vmatpush.msra.mxu0 0.0
    %2184 = vmatpush.msra.mxu0 0.0
    %2185 = vmatpush.msra.mxu0 0.0
    %2186 = vmatpush.msra.mxu0 0.0
    %2187 = vmatpush.msra.mxu0 0.0
    %2188 = vmatpush.msra.mxu0 0.0
    %2189 = vmatpush.msra.mxu0 %v2170
    %2190 = vmatmul.f32.gmra.mxu0 %v2168
    %v2191 = vpop.f32.mrf.mxu0
    %v2192 = vadd.f32 %v117, %v2191
    %2193 = vdwg.mxu0
    %2194 = vmatpush.msra.mxu0 0.0
    %2195 = vmatpush.msra.mxu0 0.0
    %2196 = vmatpush.msra.mxu0 0.0
    %2197 = vmatpush.msra.mxu0 0.0
    %2198 = vmatpush.msra.mxu0 0.0
    %2199 = vmatpush.msra.mxu0 0.0
    %2200 = vmatpush.msra.mxu0 0.0
    %2201 = vmatpush.msra.mxu0 0.0
    %2202 = vmatpush.msra.mxu0 0.0
    %2203 = vmatpush.msra.mxu0 0.0
    %2204 = vmatpush.msra.mxu0 0.0
    %2205 = vmatpush.msra.mxu0 0.0
    %2206 = vmatpush.msra.mxu0 0.0
    %2207 = vmatpush.msra.mxu0 0.0
    %2208 = vmatpush.msra.mxu0 0.0
    %2209 = vmatpush.msra.mxu0 %v2172
    %2210 = vmatmul.f32.gmra.mxu0 %v2168
    %v2211 = vpop.f32.mrf.mxu0
    %v2212 = vadd.f32 %v118, %v2211
    %2213 = vdwg.mxu0
    %v2214 = vmax.f32 %v2192, 0.0
    %v2215 = vmax.f32 %v2212, 0.0
    %v2216 = vld [vmem:[#allocation2] sm:$0xff]
    %v2217 = vld [vmem:[#allocation2 + $0x8] sm:$0xff]
    %s2218 = scalar_lea.vmem [#allocation7], 5120
    %v2219 = vld [vmem:[%s2218] sm:$0xff]
    %v2220 = vld [vmem:[%s2218 + $0x8] sm:$0xff]
    %v2221 = vld [vmem:[%s2218 + $0x10] sm:$0xff]
    %v2222 = vld [vmem:[%s2218 + $0x18] sm:$0xff]
    %v2223 = vld [vmem:[%s2218 + $0x20] sm:$0xff]
    %v2224 = vld [vmem:[%s2218 + $0x28] sm:$0xff]
    %v2225 = vld [vmem:[%s2218 + $0x30] sm:$0xff]
    %v2226 = vld [vmem:[%s2218 + $0x38] sm:$0xff]
    %v2227 = vld [vmem:[%s2218 + $0x40] sm:$0xff]
    %v2228 = vld [vmem:[%s2218 + $0x48] sm:$0xff]
    %v2229 = vld [vmem:[%s2218 + $0x50] sm:$0xff]
    %v2230 = vld [vmem:[%s2218 + $0x58] sm:$0xff]
    %v2231 = vld [vmem:[%s2218 + $0x60] sm:$0xff]
    %v2232 = vld [vmem:[%s2218 + $0x68] sm:$0xff]
    %v2233 = vld [vmem:[%s2218 + $0x70] sm:$0xff]
    %v2234 = vld [vmem:[%s2218 + $0x78] sm:$0xff]
    %v2235 = vld [vmem:[%s2218 + $0x80] sm:$0xff]
    %v2236 = vld [vmem:[%s2218 + $0x88] sm:$0xff]
    %v2237 = vld [vmem:[%s2218 + $0x90] sm:$0xff]
    %v2238 = vld [vmem:[%s2218 + $0x98] sm:$0xff]
    %v2239 = vld [vmem:[%s2218 + $0xa0] sm:$0xff]
    %v2240 = vld [vmem:[%s2218 + $0xa8] sm:$0xff]
    %v2241 = vld [vmem:[%s2218 + $0xb0] sm:$0xff]
    %v2242 = vld [vmem:[%s2218 + $0xb8] sm:$0xff]
    %v2243 = vld [vmem:[%s2218 + $0xc0] sm:$0xff]
    %v2244 = vld [vmem:[%s2218 + $0xc8] sm:$0xff]
    %v2245 = vld [vmem:[%s2218 + $0xd0] sm:$0xff]
    %v2246 = vld [vmem:[%s2218 + $0xd8] sm:$0xff]
    %v2247 = vld [vmem:[%s2218 + $0xe0] sm:$0xff]
    %v2248 = vld [vmem:[%s2218 + $0xe8] sm:$0xff]
    %v2249 = vld [vmem:[%s2218 + $0xf0] sm:$0xff]
    %v2250 = vld [vmem:[%s2218 + $0xf8] sm:$0xff]
    %v2251 = vld [vmem:[%s2218 + $0x100] sm:$0xff]
    %v2252 = vld [vmem:[%s2218 + $0x108] sm:$0xff]
    %v2253 = vld [vmem:[%s2218 + $0x110] sm:$0xff]
    %v2254 = vld [vmem:[%s2218 + $0x118] sm:$0xff]
    %v2255 = vld [vmem:[%s2218 + $0x120] sm:$0xff]
    %v2256 = vld [vmem:[%s2218 + $0x128] sm:$0xff]
    %v2257 = vld [vmem:[%s2218 + $0x130] sm:$0xff]
    %v2258 = vld [vmem:[%s2218 + $0x138] sm:$0xff]
    %v2259 = vld [vmem:[%s2218 + $0x140] sm:$0xff]
    %v2260 = vld [vmem:[%s2218 + $0x148] sm:$0xff]
    %v2261 = vld [vmem:[%s2218 + $0x150] sm:$0xff]
    %v2262 = vld [vmem:[%s2218 + $0x158] sm:$0xff]
    %v2263 = vld [vmem:[%s2218 + $0x160] sm:$0xff]
    %v2264 = vld [vmem:[%s2218 + $0x168] sm:$0xff]
    %v2265 = vld [vmem:[%s2218 + $0x170] sm:$0xff]
    %v2266 = vld [vmem:[%s2218 + $0x178] sm:$0xff]
    %v2267 = vld [vmem:[%s2218 + $0x180] sm:$0xff]
    %v2268 = vld [vmem:[%s2218 + $0x188] sm:$0xff]
    %v2269 = vld [vmem:[%s2218 + $0x190] sm:$0xff]
    %v2270 = vld [vmem:[%s2218 + $0x198] sm:$0xff]
    %v2271 = vld [vmem:[%s2218 + $0x1a0] sm:$0xff]
    %v2272 = vld [vmem:[%s2218 + $0x1a8] sm:$0xff]
    %v2273 = vld [vmem:[%s2218 + $0x1b0] sm:$0xff]
    %v2274 = vld [vmem:[%s2218 + $0x1b8] sm:$0xff]
    %v2275 = vld [vmem:[%s2218 + $0x1c0] sm:$0xff]
    %v2276 = vld [vmem:[%s2218 + $0x1c8] sm:$0xff]
    %v2277 = vld [vmem:[%s2218 + $0x1d0] sm:$0xff]
    %v2278 = vld [vmem:[%s2218 + $0x1d8] sm:$0xff]
    %v2279 = vld [vmem:[%s2218 + $0x1e0] sm:$0xff]
    %v2280 = vld [vmem:[%s2218 + $0x1e8] sm:$0xff]
    %v2281 = vld [vmem:[%s2218 + $0x1f0] sm:$0xff]
    %v2282 = vld [vmem:[%s2218 + $0x1f8] sm:$0xff]
    %2283 = vmatpush.msra.mxu0 %v2249
    %2284 = vmatpush.msra.mxu0 %v2247
    %2285 = vmatpush.msra.mxu0 %v2245
    %2286 = vmatpush.msra.mxu0 %v2243
    %2287 = vmatpush.msra.mxu0 %v2241
    %2288 = vmatpush.msra.mxu0 %v2239
    %2289 = vmatpush.msra.mxu0 %v2237
    %2290 = vmatpush.msra.mxu0 %v2235
    %2291 = vmatpush.msra.mxu0 %v2233
    %2292 = vmatpush.msra.mxu0 %v2231
    %2293 = vmatpush.msra.mxu0 %v2229
    %2294 = vmatpush.msra.mxu0 %v2227
    %2295 = vmatpush.msra.mxu0 %v2225
    %2296 = vmatpush.msra.mxu0 %v2223
    %2297 = vmatpush.msra.mxu0 %v2221
    %2298 = vmatpush.msra.mxu0 %v2219
    %2299 = vmatmul.f32.gmra.mxu0 %v2214
    %v2300 = vpop.f32.mrf.mxu0
    %v2301 = vadd.f32 0.0, %v2300
    %2302 = vdwg.mxu0
    %2303 = vmatpush.msra.mxu0 %v2281
    %2304 = vmatpush.msra.mxu0 %v2279
    %2305 = vmatpush.msra.mxu0 %v2277
    %2306 = vmatpush.msra.mxu0 %v2275
    %2307 = vmatpush.msra.mxu0 %v2273
    %2308 = vmatpush.msra.mxu0 %v2271
    %2309 = vmatpush.msra.mxu0 %v2269
    %2310 = vmatpush.msra.mxu0 %v2267
    %2311 = vmatpush.msra.mxu0 %v2265
    %2312 = vmatpush.msra.mxu0 %v2263
    %2313 = vmatpush.msra.mxu0 %v2261
    %2314 = vmatpush.msra.mxu0 %v2259
    %2315 = vmatpush.msra.mxu0 %v2257
    %2316 = vmatpush.msra.mxu0 %v2255
    %2317 = vmatpush.msra.mxu0 %v2253
    %2318 = vmatpush.msra.mxu0 %v2251
    %2319 = vmatmul.f32.gmra.mxu0 %v2215
    %v2320 = vpop.f32.mrf.mxu0
    %v2321 = vadd.f32 %v2301, %v2320
    %2322 = vdwg.mxu0
    %2323 = vmatpush.msra.mxu0 %v2250
    %2324 = vmatpush.msra.mxu0 %v2248
    %2325 = vmatpush.msra.mxu0 %v2246
    %2326 = vmatpush.msra.mxu0 %v2244
    %2327 = vmatpush.msra.mxu0 %v2242
    %2328 = vmatpush.msra.mxu0 %v2240
    %2329 = vmatpush.msra.mxu0 %v2238
    %2330 = vmatpush.msra.mxu0 %v2236
    %2331 = vmatpush.msra.mxu0 %v2234
    %2332 = vmatpush.msra.mxu0 %v2232
    %2333 = vmatpush.msra.mxu0 %v2230
    %2334 = vmatpush.msra.mxu0 %v2228
    %2335 = vmatpush.msra.mxu0 %v2226
    %2336 = vmatpush.msra.mxu0 %v2224
    %2337 = vmatpush.msra.mxu0 %v2222
    %2338 = vmatpush.msra.mxu0 %v2220
    %2339 = vmatmul.f32.gmra.mxu0 %v2214
    %v2340 = vpop.f32.mrf.mxu0
    %v2341 = vadd.f32 0.0, %v2340
    %2342 = vdwg.mxu0
    %2343 = vmatpush.msra.mxu0 %v2282
    %2344 = vmatpush.msra.mxu0 %v2280
    %2345 = vmatpush.msra.mxu0 %v2278
    %2346 = vmatpush.msra.mxu0 %v2276
    %2347 = vmatpush.msra.mxu0 %v2274
    %2348 = vmatpush.msra.mxu0 %v2272
    %2349 = vmatpush.msra.mxu0 %v2270
    %2350 = vmatpush.msra.mxu0 %v2268
    %2351 = vmatpush.msra.mxu0 %v2266
    %2352 = vmatpush.msra.mxu0 %v2264
    %2353 = vmatpush.msra.mxu0 %v2262
    %2354 = vmatpush.msra.mxu0 %v2260
    %2355 = vmatpush.msra.mxu0 %v2258
    %2356 = vmatpush.msra.mxu0 %v2256
    %2357 = vmatpush.msra.mxu0 %v2254
    %2358 = vmatpush.msra.mxu0 %v2252
    %2359 = vmatmul.f32.gmra.mxu0 %v2215
    %v2360 = vpop.f32.mrf.mxu0
    %v2361 = vadd.f32 %v2341, %v2360
    %2362 = vdwg.mxu0
    %v2363 = vadd.f32 %v2216, %v2321
    %v2364 = vadd.f32 %v2217, %v2361
    %2365 = vst [vmem:[#allocation2] sm:$0xff] %v2363
    %2366 = vst [vmem:[#allocation2 + $0x8] sm:$0xff] %v2364
    %v2367 = vld [vmem:[%s0 + $0x58] sm:$0xff]
    %2368 = vst [vmem:[#allocation1] ss:$2 sm:$0xff] %v114
    %v2369 = vld.sshfl [vmem:[#allocation1] sm:$0xff pattern:$0x75316420]
    %v2370 = vld.sshfl [vmem:[#allocation1 + $0x8] sm:$0xff pattern:$0x75316420]
    %v2372 = vsel %vm126, %v2367, 0
    %v2374 = vsel %vm130, %v2369, 0
    %v2376 = vsel %vm130, %v2370, 0
    %2378 = vmatpush.msra.mxu0 0.0
    %2379 = vmatpush.msra.mxu0 0.0
    %2380 = vmatpush.msra.mxu0 0.0
    %2381 = vmatpush.msra.mxu0 0.0
    %2382 = vmatpush.msra.mxu0 0.0
    %2383 = vmatpush.msra.mxu0 0.0
    %2384 = vmatpush.msra.mxu0 0.0
    %2385 = vmatpush.msra.mxu0 0.0
    %2386 = vmatpush.msra.mxu0 0.0
    %2387 = vmatpush.msra.mxu0 0.0
    %2388 = vmatpush.msra.mxu0 0.0
    %2389 = vmatpush.msra.mxu0 0.0
    %2390 = vmatpush.msra.mxu0 0.0
    %2391 = vmatpush.msra.mxu0 0.0
    %2392 = vmatpush.msra.mxu0 0.0
    %2393 = vmatpush.msra.mxu0 %v2374
    %2394 = vmatmul.f32.gmra.mxu0 %v2372
    %v2395 = vpop.f32.mrf.mxu0
    %v2396 = vadd.f32 %v117, %v2395
    %2397 = vdwg.mxu0
    %2398 = vmatpush.msra.mxu0 0.0
    %2399 = vmatpush.msra.mxu0 0.0
    %2400 = vmatpush.msra.mxu0 0.0
    %2401 = vmatpush.msra.mxu0 0.0
    %2402 = vmatpush.msra.mxu0 0.0
    %2403 = vmatpush.msra.mxu0 0.0
    %2404 = vmatpush.msra.mxu0 0.0
    %2405 = vmatpush.msra.mxu0 0.0
    %2406 = vmatpush.msra.mxu0 0.0
    %2407 = vmatpush.msra.mxu0 0.0
    %2408 = vmatpush.msra.mxu0 0.0
    %2409 = vmatpush.msra.mxu0 0.0
    %2410 = vmatpush.msra.mxu0 0.0
    %2411 = vmatpush.msra.mxu0 0.0
    %2412 = vmatpush.msra.mxu0 0.0
    %2413 = vmatpush.msra.mxu0 %v2376
    %2414 = vmatmul.f32.gmra.mxu0 %v2372
    %v2415 = vpop.f32.mrf.mxu0
    %v2416 = vadd.f32 %v118, %v2415
    %2417 = vdwg.mxu0
    %v2418 = vmax.f32 %v2396, 0.0
    %v2419 = vmax.f32 %v2416, 0.0
    %v2420 = vld [vmem:[#allocation2] sm:$0xff]
    %v2421 = vld [vmem:[#allocation2 + $0x8] sm:$0xff]
    %s2422 = scalar_lea.vmem [#allocation7], 5632
    %v2423 = vld [vmem:[%s2422] sm:$0xff]
    %v2424 = vld [vmem:[%s2422 + $0x8] sm:$0xff]
    %v2425 = vld [vmem:[%s2422 + $0x10] sm:$0xff]
    %v2426 = vld [vmem:[%s2422 + $0x18] sm:$0xff]
    %v2427 = vld [vmem:[%s2422 + $0x20] sm:$0xff]
    %v2428 = vld [vmem:[%s2422 + $0x28] sm:$0xff]
    %v2429 = vld [vmem:[%s2422 + $0x30] sm:$0xff]
    %v2430 = vld [vmem:[%s2422 + $0x38] sm:$0xff]
    %v2431 = vld [vmem:[%s2422 + $0x40] sm:$0xff]
    %v2432 = vld [vmem:[%s2422 + $0x48] sm:$0xff]
    %v2433 = vld [vmem:[%s2422 + $0x50] sm:$0xff]
    %v2434 = vld [vmem:[%s2422 + $0x58] sm:$0xff]
    %v2435 = vld [vmem:[%s2422 + $0x60] sm:$0xff]
    %v2436 = vld [vmem:[%s2422 + $0x68] sm:$0xff]
    %v2437 = vld [vmem:[%s2422 + $0x70] sm:$0xff]
    %v2438 = vld [vmem:[%s2422 + $0x78] sm:$0xff]
    %v2439 = vld [vmem:[%s2422 + $0x80] sm:$0xff]
    %v2440 = vld [vmem:[%s2422 + $0x88] sm:$0xff]
    %v2441 = vld [vmem:[%s2422 + $0x90] sm:$0xff]
    %v2442 = vld [vmem:[%s2422 + $0x98] sm:$0xff]
    %v2443 = vld [vmem:[%s2422 + $0xa0] sm:$0xff]
    %v2444 = vld [vmem:[%s2422 + $0xa8] sm:$0xff]
    %v2445 = vld [vmem:[%s2422 + $0xb0] sm:$0xff]
    %v2446 = vld [vmem:[%s2422 + $0xb8] sm:$0xff]
    %v2447 = vld [vmem:[%s2422 + $0xc0] sm:$0xff]
    %v2448 = vld [vmem:[%s2422 + $0xc8] sm:$0xff]
    %v2449 = vld [vmem:[%s2422 + $0xd0] sm:$0xff]
    %v2450 = vld [vmem:[%s2422 + $0xd8] sm:$0xff]
    %v2451 = vld [vmem:[%s2422 + $0xe0] sm:$0xff]
    %v2452 = vld [vmem:[%s2422 + $0xe8] sm:$0xff]
    %v2453 = vld [vmem:[%s2422 + $0xf0] sm:$0xff]
    %v2454 = vld [vmem:[%s2422 + $0xf8] sm:$0xff]
    %v2455 = vld [vmem:[%s2422 + $0x100] sm:$0xff]
    %v2456 = vld [vmem:[%s2422 + $0x108] sm:$0xff]
    %v2457 = vld [vmem:[%s2422 + $0x110] sm:$0xff]
    %v2458 = vld [vmem:[%s2422 + $0x118] sm:$0xff]
    %v2459 = vld [vmem:[%s2422 + $0x120] sm:$0xff]
    %v2460 = vld [vmem:[%s2422 + $0x128] sm:$0xff]
    %v2461 = vld [vmem:[%s2422 + $0x130] sm:$0xff]
    %v2462 = vld [vmem:[%s2422 + $0x138] sm:$0xff]
    %v2463 = vld [vmem:[%s2422 + $0x140] sm:$0xff]
    %v2464 = vld [vmem:[%s2422 + $0x148] sm:$0xff]
    %v2465 = vld [vmem:[%s2422 + $0x150] sm:$0xff]
    %v2466 = vld [vmem:[%s2422 + $0x158] sm:$0xff]
    %v2467 = vld [vmem:[%s2422 + $0x160] sm:$0xff]
    %v2468 = vld [vmem:[%s2422 + $0x168] sm:$0xff]
    %v2469 = vld [vmem:[%s2422 + $0x170] sm:$0xff]
    %v2470 = vld [vmem:[%s2422 + $0x178] sm:$0xff]
    %v2471 = vld [vmem:[%s2422 + $0x180] sm:$0xff]
    %v2472 = vld [vmem:[%s2422 + $0x188] sm:$0xff]
    %v2473 = vld [vmem:[%s2422 + $0x190] sm:$0xff]
    %v2474 = vld [vmem:[%s2422 + $0x198] sm:$0xff]
    %v2475 = vld [vmem:[%s2422 + $0x1a0] sm:$0xff]
    %v2476 = vld [vmem:[%s2422 + $0x1a8] sm:$0xff]
    %v2477 = vld [vmem:[%s2422 + $0x1b0] sm:$0xff]
    %v2478 = vld [vmem:[%s2422 + $0x1b8] sm:$0xff]
    %v2479 = vld [vmem:[%s2422 + $0x1c0] sm:$0xff]
    %v2480 = vld [vmem:[%s2422 + $0x1c8] sm:$0xff]
    %v2481 = vld [vmem:[%s2422 + $0x1d0] sm:$0xff]
    %v2482 = vld [vmem:[%s2422 + $0x1d8] sm:$0xff]
    %v2483 = vld [vmem:[%s2422 + $0x1e0] sm:$0xff]
    %v2484 = vld [vmem:[%s2422 + $0x1e8] sm:$0xff]
    %v2485 = vld [vmem:[%s2422 + $0x1f0] sm:$0xff]
    %v2486 = vld [vmem:[%s2422 + $0x1f8] sm:$0xff]
    %2487 = vmatpush.msra.mxu0 %v2453
    %2488 = vmatpush.msra.mxu0 %v2451
    %2489 = vmatpush.msra.mxu0 %v2449
    %2490 = vmatpush.msra.mxu0 %v2447
    %2491 = vmatpush.msra.mxu0 %v2445
    %2492 = vmatpush.msra.mxu0 %v2443
    %2493 = vmatpush.msra.mxu0 %v2441
    %2494 = vmatpush.msra.mxu0 %v2439
    %2495 = vmatpush.msra.mxu0 %v2437
    %2496 = vmatpush.msra.mxu0 %v2435
    %2497 = vmatpush.msra.mxu0 %v2433
    %2498 = vmatpush.msra.mxu0 %v2431
    %2499 = vmatpush.msra.mxu0 %v2429
    %2500 = vmatpush.msra.mxu0 %v2427
    %2501 = vmatpush.msra.mxu0 %v2425
    %2502 = vmatpush.msra.mxu0 %v2423
    %2503 = vmatmul.f32.gmra.mxu0 %v2418
    %v2504 = vpop.f32.mrf.mxu0
    %v2505 = vadd.f32 0.0, %v2504
    %2506 = vdwg.mxu0
    %2507 = vmatpush.msra.mxu0 %v2485
    %2508 = vmatpush.msra.mxu0 %v2483
    %2509 = vmatpush.msra.mxu0 %v2481
    %2510 = vmatpush.msra.mxu0 %v2479
    %2511 = vmatpush.msra.mxu0 %v2477
    %2512 = vmatpush.msra.mxu0 %v2475
    %2513 = vmatpush.msra.mxu0 %v2473
    %2514 = vmatpush.msra.mxu0 %v2471
    %2515 = vmatpush.msra.mxu0 %v2469
    %2516 = vmatpush.msra.mxu0 %v2467
    %2517 = vmatpush.msra.mxu0 %v2465
    %2518 = vmatpush.msra.mxu0 %v2463
    %2519 = vmatpush.msra.mxu0 %v2461
    %2520 = vmatpush.msra.mxu0 %v2459
    %2521 = vmatpush.msra.mxu0 %v2457
    %2522 = vmatpush.msra.mxu0 %v2455
    %2523 = vmatmul.f32.gmra.mxu0 %v2419
    %v2524 = vpop.f32.mrf.mxu0
    %v2525 = vadd.f32 %v2505, %v2524
    %2526 = vdwg.mxu0
    %2527 = vmatpush.msra.mxu0 %v2454
    %2528 = vmatpush.msra.mxu0 %v2452
    %2529 = vmatpush.msra.mxu0 %v2450
    %2530 = vmatpush.msra.mxu0 %v2448
    %2531 = vmatpush.msra.mxu0 %v2446
    %2532 = vmatpush.msra.mxu0 %v2444
    %2533 = vmatpush.msra.mxu0 %v2442
    %2534 = vmatpush.msra.mxu0 %v2440
    %2535 = vmatpush.msra.mxu0 %v2438
    %2536 = vmatpush.msra.mxu0 %v2436
    %2537 = vmatpush.msra.mxu0 %v2434
    %2538 = vmatpush.msra.mxu0 %v2432
    %2539 = vmatpush.msra.mxu0 %v2430
    %2540 = vmatpush.msra.mxu0 %v2428
    %2541 = vmatpush.msra.mxu0 %v2426
    %2542 = vmatpush.msra.mxu0 %v2424
    %2543 = vmatmul.f32.gmra.mxu0 %v2418
    %v2544 = vpop.f32.mrf.mxu0
    %v2545 = vadd.f32 0.0, %v2544
    %2546 = vdwg.mxu0
    %2547 = vmatpush.msra.mxu0 %v2486
    %2548 = vmatpush.msra.mxu0 %v2484
    %2549 = vmatpush.msra.mxu0 %v2482
    %2550 = vmatpush.msra.mxu0 %v2480
    %2551 = vmatpush.msra.mxu0 %v2478
    %2552 = vmatpush.msra.mxu0 %v2476
    %2553 = vmatpush.msra.mxu0 %v2474
    %2554 = vmatpush.msra.mxu0 %v2472
    %2555 = vmatpush.msra.mxu0 %v2470
    %2556 = vmatpush.msra.mxu0 %v2468
    %2557 = vmatpush.msra.mxu0 %v2466
    %2558 = vmatpush.msra.mxu0 %v2464
    %2559 = vmatpush.msra.mxu0 %v2462
    %2560 = vmatpush.msra.mxu0 %v2460
    %2561 = vmatpush.msra.mxu0 %v2458
    %2562 = vmatpush.msra.mxu0 %v2456
    %2563 = vmatmul.f32.gmra.mxu0 %v2419
    %v2564 = vpop.f32.mrf.mxu0
    %v2565 = vadd.f32 %v2545, %v2564
    %2566 = vdwg.mxu0
    %v2567 = vadd.f32 %v2420, %v2525
    %v2568 = vadd.f32 %v2421, %v2565
    %2569 = vst [vmem:[#allocation2] sm:$0xff] %v2567
    %2570 = vst [vmem:[#allocation2 + $0x8] sm:$0xff] %v2568
    %v2571 = vld [vmem:[%s0 + $0x60] sm:$0xff]
    %2572 = vst [vmem:[#allocation1] ss:$2 sm:$0xff] %v114
    %v2573 = vld.sshfl [vmem:[#allocation1] sm:$0xff pattern:$0x75316420]
    %v2574 = vld.sshfl [vmem:[#allocation1 + $0x8] sm:$0xff pattern:$0x75316420]
    %v2576 = vsel %vm126, %v2571, 0
    %v2578 = vsel %vm130, %v2573, 0
    %v2580 = vsel %vm130, %v2574, 0
    %2582 = vmatpush.msra.mxu0 0.0
    %2583 = vmatpush.msra.mxu0 0.0
    %2584 = vmatpush.msra.mxu0 0.0
    %2585 = vmatpush.msra.mxu0 0.0
    %2586 = vmatpush.msra.mxu0 0.0
    %2587 = vmatpush.msra.mxu0 0.0
    %2588 = vmatpush.msra.mxu0 0.0
    %2589 = vmatpush.msra.mxu0 0.0
    %2590 = vmatpush.msra.mxu0 0.0
    %2591 = vmatpush.msra.mxu0 0.0
    %2592 = vmatpush.msra.mxu0 0.0
    %2593 = vmatpush.msra.mxu0 0.0
    %2594 = vmatpush.msra.mxu0 0.0
    %2595 = vmatpush.msra.mxu0 0.0
    %2596 = vmatpush.msra.mxu0 0.0
    %2597 = vmatpush.msra.mxu0 %v2578
    %2598 = vmatmul.f32.gmra.mxu0 %v2576
    %v2599 = vpop.f32.mrf.mxu0
    %v2600 = vadd.f32 %v117, %v2599
    %2601 = vdwg.mxu0
    %2602 = vmatpush.msra.mxu0 0.0
    %2603 = vmatpush.msra.mxu0 0.0
    %2604 = vmatpush.msra.mxu0 0.0
    %2605 = vmatpush.msra.mxu0 0.0
    %2606 = vmatpush.msra.mxu0 0.0
    %2607 = vmatpush.msra.mxu0 0.0
    %2608 = vmatpush.msra.mxu0 0.0
    %2609 = vmatpush.msra.mxu0 0.0
    %2610 = vmatpush.msra.mxu0 0.0
    %2611 = vmatpush.msra.mxu0 0.0
    %2612 = vmatpush.msra.mxu0 0.0
    %2613 = vmatpush.msra.mxu0 0.0
    %2614 = vmatpush.msra.mxu0 0.0
    %2615 = vmatpush.msra.mxu0 0.0
    %2616 = vmatpush.msra.mxu0 0.0
    %2617 = vmatpush.msra.mxu0 %v2580
    %2618 = vmatmul.f32.gmra.mxu0 %v2576
    %v2619 = vpop.f32.mrf.mxu0
    %v2620 = vadd.f32 %v118, %v2619
    %2621 = vdwg.mxu0
    %v2622 = vmax.f32 %v2600, 0.0
    %v2623 = vmax.f32 %v2620, 0.0
    %v2624 = vld [vmem:[#allocation2] sm:$0xff]
    %v2625 = vld [vmem:[#allocation2 + $0x8] sm:$0xff]
    %s2626 = scalar_lea.vmem [#allocation7], 6144
    %v2627 = vld [vmem:[%s2626] sm:$0xff]
    %v2628 = vld [vmem:[%s2626 + $0x8] sm:$0xff]
    %v2629 = vld [vmem:[%s2626 + $0x10] sm:$0xff]
    %v2630 = vld [vmem:[%s2626 + $0x18] sm:$0xff]
    %v2631 = vld [vmem:[%s2626 + $0x20] sm:$0xff]
    %v2632 = vld [vmem:[%s2626 + $0x28] sm:$0xff]
    %v2633 = vld [vmem:[%s2626 + $0x30] sm:$0xff]
    %v2634 = vld [vmem:[%s2626 + $0x38] sm:$0xff]
    %v2635 = vld [vmem:[%s2626 + $0x40] sm:$0xff]
    %v2636 = vld [vmem:[%s2626 + $0x48] sm:$0xff]
    %v2637 = vld [vmem:[%s2626 + $0x50] sm:$0xff]
    %v2638 = vld [vmem:[%s2626 + $0x58] sm:$0xff]
    %v2639 = vld [vmem:[%s2626 + $0x60] sm:$0xff]
    %v2640 = vld [vmem:[%s2626 + $0x68] sm:$0xff]
    %v2641 = vld [vmem:[%s2626 + $0x70] sm:$0xff]
    %v2642 = vld [vmem:[%s2626 + $0x78] sm:$0xff]
    %v2643 = vld [vmem:[%s2626 + $0x80] sm:$0xff]
    %v2644 = vld [vmem:[%s2626 + $0x88] sm:$0xff]
    %v2645 = vld [vmem:[%s2626 + $0x90] sm:$0xff]
    %v2646 = vld [vmem:[%s2626 + $0x98] sm:$0xff]
    %v2647 = vld [vmem:[%s2626 + $0xa0] sm:$0xff]
    %v2648 = vld [vmem:[%s2626 + $0xa8] sm:$0xff]
    %v2649 = vld [vmem:[%s2626 + $0xb0] sm:$0xff]
    %v2650 = vld [vmem:[%s2626 + $0xb8] sm:$0xff]
    %v2651 = vld [vmem:[%s2626 + $0xc0] sm:$0xff]
    %v2652 = vld [vmem:[%s2626 + $0xc8] sm:$0xff]
    %v2653 = vld [vmem:[%s2626 + $0xd0] sm:$0xff]
    %v2654 = vld [vmem:[%s2626 + $0xd8] sm:$0xff]
    %v2655 = vld [vmem:[%s2626 + $0xe0] sm:$0xff]
    %v2656 = vld [vmem:[%s2626 + $0xe8] sm:$0xff]
    %v2657 = vld [vmem:[%s2626 + $0xf0] sm:$0xff]
    %v2658 = vld [vmem:[%s2626 + $0xf8] sm:$0xff]
    %v2659 = vld [vmem:[%s2626 + $0x100] sm:$0xff]
    %v2660 = vld [vmem:[%s2626 + $0x108] sm:$0xff]
    %v2661 = vld [vmem:[%s2626 + $0x110] sm:$0xff]
    %v2662 = vld [vmem:[%s2626 + $0x118] sm:$0xff]
    %v2663 = vld [vmem:[%s2626 + $0x120] sm:$0xff]
    %v2664 = vld [vmem:[%s2626 + $0x128] sm:$0xff]
    %v2665 = vld [vmem:[%s2626 + $0x130] sm:$0xff]
    %v2666 = vld [vmem:[%s2626 + $0x138] sm:$0xff]
    %v2667 = vld [vmem:[%s2626 + $0x140] sm:$0xff]
    %v2668 = vld [vmem:[%s2626 + $0x148] sm:$0xff]
    %v2669 = vld [vmem:[%s2626 + $0x150] sm:$0xff]
    %v2670 = vld [vmem:[%s2626 + $0x158] sm:$0xff]
    %v2671 = vld [vmem:[%s2626 + $0x160] sm:$0xff]
    %v2672 = vld [vmem:[%s2626 + $0x168] sm:$0xff]
    %v2673 = vld [vmem:[%s2626 + $0x170] sm:$0xff]
    %v2674 = vld [vmem:[%s2626 + $0x178] sm:$0xff]
    %v2675 = vld [vmem:[%s2626 + $0x180] sm:$0xff]
    %v2676 = vld [vmem:[%s2626 + $0x188] sm:$0xff]
    %v2677 = vld [vmem:[%s2626 + $0x190] sm:$0xff]
    %v2678 = vld [vmem:[%s2626 + $0x198] sm:$0xff]
    %v2679 = vld [vmem:[%s2626 + $0x1a0] sm:$0xff]
    %v2680 = vld [vmem:[%s2626 + $0x1a8] sm:$0xff]
    %v2681 = vld [vmem:[%s2626 + $0x1b0] sm:$0xff]
    %v2682 = vld [vmem:[%s2626 + $0x1b8] sm:$0xff]
    %v2683 = vld [vmem:[%s2626 + $0x1c0] sm:$0xff]
    %v2684 = vld [vmem:[%s2626 + $0x1c8] sm:$0xff]
    %v2685 = vld [vmem:[%s2626 + $0x1d0] sm:$0xff]
    %v2686 = vld [vmem:[%s2626 + $0x1d8] sm:$0xff]
    %v2687 = vld [vmem:[%s2626 + $0x1e0] sm:$0xff]
    %v2688 = vld [vmem:[%s2626 + $0x1e8] sm:$0xff]
    %v2689 = vld [vmem:[%s2626 + $0x1f0] sm:$0xff]
    %v2690 = vld [vmem:[%s2626 + $0x1f8] sm:$0xff]
    %2691 = vmatpush.msra.mxu0 %v2657
    %2692 = vmatpush.msra.mxu0 %v2655
    %2693 = vmatpush.msra.mxu0 %v2653
    %2694 = vmatpush.msra.mxu0 %v2651
    %2695 = vmatpush.msra.mxu0 %v2649
    %2696 = vmatpush.msra.mxu0 %v2647
    %2697 = vmatpush.msra.mxu0 %v2645
    %2698 = vmatpush.msra.mxu0 %v2643
    %2699 = vmatpush.msra.mxu0 %v2641
    %2700 = vmatpush.msra.mxu0 %v2639
    %2701 = vmatpush.msra.mxu0 %v2637
    %2702 = vmatpush.msra.mxu0 %v2635
    %2703 = vmatpush.msra.mxu0 %v2633
    %2704 = vmatpush.msra.mxu0 %v2631
    %2705 = vmatpush.msra.mxu0 %v2629
    %2706 = vmatpush.msra.mxu0 %v2627
    %2707 = vmatmul.f32.gmra.mxu0 %v2622
    %v2708 = vpop.f32.mrf.mxu0
    %v2709 = vadd.f32 0.0, %v2708
    %2710 = vdwg.mxu0
    %2711 = vmatpush.msra.mxu0 %v2689
    %2712 = vmatpush.msra.mxu0 %v2687
    %2713 = vmatpush.msra.mxu0 %v2685
    %2714 = vmatpush.msra.mxu0 %v2683
    %2715 = vmatpush.msra.mxu0 %v2681
    %2716 = vmatpush.msra.mxu0 %v2679
    %2717 = vmatpush.msra.mxu0 %v2677
    %2718 = vmatpush.msra.mxu0 %v2675
    %2719 = vmatpush.msra.mxu0 %v2673
    %2720 = vmatpush.msra.mxu0 %v2671
    %2721 = vmatpush.msra.mxu0 %v2669
    %2722 = vmatpush.msra.mxu0 %v2667
    %2723 = vmatpush.msra.mxu0 %v2665
    %2724 = vmatpush.msra.mxu0 %v2663
    %2725 = vmatpush.msra.mxu0 %v2661
    %2726 = vmatpush.msra.mxu0 %v2659
    %2727 = vmatmul.f32.gmra.mxu0 %v2623
    %v2728 = vpop.f32.mrf.mxu0
    %v2729 = vadd.f32 %v2709, %v2728
    %2730 = vdwg.mxu0
    %2731 = vmatpush.msra.mxu0 %v2658
    %2732 = vmatpush.msra.mxu0 %v2656
    %2733 = vmatpush.msra.mxu0 %v2654
    %2734 = vmatpush.msra.mxu0 %v2652
    %2735 = vmatpush.msra.mxu0 %v2650
    %2736 = vmatpush.msra.mxu0 %v2648
    %2737 = vmatpush.msra.mxu0 %v2646
    %2738 = vmatpush.msra.mxu0 %v2644
    %2739 = vmatpush.msra.mxu0 %v2642
    %2740 = vmatpush.msra.mxu0 %v2640
    %2741 = vmatpush.msra.mxu0 %v2638
    %2742 = vmatpush.msra.mxu0 %v2636
    %2743 = vmatpush.msra.mxu0 %v2634
    %2744 = vmatpush.msra.mxu0 %v2632
    %2745 = vmatpush.msra.mxu0 %v2630
    %2746 = vmatpush.msra.mxu0 %v2628
    %2747 = vmatmul.f32.gmra.mxu0 %v2622
    %v2748 = vpop.f32.mrf.mxu0
    %v2749 = vadd.f32 0.0, %v2748
    %2750 = vdwg.mxu0
    %2751 = vmatpush.msra.mxu0 %v2690
    %2752 = vmatpush.msra.mxu0 %v2688
    %2753 = vmatpush.msra.mxu0 %v2686
    %2754 = vmatpush.msra.mxu0 %v2684
    %2755 = vmatpush.msra.mxu0 %v2682
    %2756 = vmatpush.msra.mxu0 %v2680
    %2757 = vmatpush.msra.mxu0 %v2678
    %2758 = vmatpush.msra.mxu0 %v2676
    %2759 = vmatpush.msra.mxu0 %v2674
    %2760 = vmatpush.msra.mxu0 %v2672
    %2761 = vmatpush.msra.mxu0 %v2670
    %2762 = vmatpush.msra.mxu0 %v2668
    %2763 = vmatpush.msra.mxu0 %v2666
    %2764 = vmatpush.msra.mxu0 %v2664
    %2765 = vmatpush.msra.mxu0 %v2662
    %2766 = vmatpush.msra.mxu0 %v2660
    %2767 = vmatmul.f32.gmra.mxu0 %v2623
    %v2768 = vpop.f32.mrf.mxu0
    %v2769 = vadd.f32 %v2749, %v2768
    %2770 = vdwg.mxu0
    %v2771 = vadd.f32 %v2624, %v2729
    %v2772 = vadd.f32 %v2625, %v2769
    %2773 = vst [vmem:[#allocation2] sm:$0xff] %v2771
    %2774 = vst [vmem:[#allocation2 + $0x8] sm:$0xff] %v2772
    %v2775 = vld [vmem:[%s0 + $0x68] sm:$0xff]
    %2776 = vst [vmem:[#allocation1] ss:$2 sm:$0xff] %v114
    %v2777 = vld.sshfl [vmem:[#allocation1] sm:$0xff pattern:$0x75316420]
    %v2778 = vld.sshfl [vmem:[#allocation1 + $0x8] sm:$0xff pattern:$0x75316420]
    %v2780 = vsel %vm126, %v2775, 0
    %v2782 = vsel %vm130, %v2777, 0
    %v2784 = vsel %vm130, %v2778, 0
    %2786 = vmatpush.msra.mxu0 0.0
    %2787 = vmatpush.msra.mxu0 0.0
    %2788 = vmatpush.msra.mxu0 0.0
    %2789 = vmatpush.msra.mxu0 0.0
    %2790 = vmatpush.msra.mxu0 0.0
    %2791 = vmatpush.msra.mxu0 0.0
    %2792 = vmatpush.msra.mxu0 0.0
    %2793 = vmatpush.msra.mxu0 0.0
    %2794 = vmatpush.msra.mxu0 0.0
    %2795 = vmatpush.msra.mxu0 0.0
    %2796 = vmatpush.msra.mxu0 0.0
    %2797 = vmatpush.msra.mxu0 0.0
    %2798 = vmatpush.msra.mxu0 0.0
    %2799 = vmatpush.msra.mxu0 0.0
    %2800 = vmatpush.msra.mxu0 0.0
    %2801 = vmatpush.msra.mxu0 %v2782
    %2802 = vmatmul.f32.gmra.mxu0 %v2780
    %v2803 = vpop.f32.mrf.mxu0
    %v2804 = vadd.f32 %v117, %v2803
    %2805 = vdwg.mxu0
    %2806 = vmatpush.msra.mxu0 0.0
    %2807 = vmatpush.msra.mxu0 0.0
    %2808 = vmatpush.msra.mxu0 0.0
    %2809 = vmatpush.msra.mxu0 0.0
    %2810 = vmatpush.msra.mxu0 0.0
    %2811 = vmatpush.msra.mxu0 0.0
    %2812 = vmatpush.msra.mxu0 0.0
    %2813 = vmatpush.msra.mxu0 0.0
    %2814 = vmatpush.msra.mxu0 0.0
    %2815 = vmatpush.msra.mxu0 0.0
    %2816 = vmatpush.msra.mxu0 0.0
    %2817 = vmatpush.msra.mxu0 0.0
    %2818 = vmatpush.msra.mxu0 0.0
    %2819 = vmatpush.msra.mxu0 0.0
    %2820 = vmatpush.msra.mxu0 0.0
    %2821 = vmatpush.msra.mxu0 %v2784
    %2822 = vmatmul.f32.gmra.mxu0 %v2780
    %v2823 = vpop.f32.mrf.mxu0
    %v2824 = vadd.f32 %v118, %v2823
    %2825 = vdwg.mxu0
    %v2826 = vmax.f32 %v2804, 0.0
    %v2827 = vmax.f32 %v2824, 0.0
    %v2828 = vld [vmem:[#allocation2] sm:$0xff]
    %v2829 = vld [vmem:[#allocation2 + $0x8] sm:$0xff]
    %s2830 = scalar_lea.vmem [#allocation7], 6656
    %v2831 = vld [vmem:[%s2830] sm:$0xff]
    %v2832 = vld [vmem:[%s2830 + $0x8] sm:$0xff]
    %v2833 = vld [vmem:[%s2830 + $0x10] sm:$0xff]
    %v2834 = vld [vmem:[%s2830 + $0x18] sm:$0xff]
    %v2835 = vld [vmem:[%s2830 + $0x20] sm:$0xff]
    %v2836 = vld [vmem:[%s2830 + $0x28] sm:$0xff]
    %v2837 = vld [vmem:[%s2830 + $0x30] sm:$0xff]
    %v2838 = vld [vmem:[%s2830 + $0x38] sm:$0xff]
    %v2839 = vld [vmem:[%s2830 + $0x40] sm:$0xff]
    %v2840 = vld [vmem:[%s2830 + $0x48] sm:$0xff]
    %v2841 = vld [vmem:[%s2830 + $0x50] sm:$0xff]
    %v2842 = vld [vmem:[%s2830 + $0x58] sm:$0xff]
    %v2843 = vld [vmem:[%s2830 + $0x60] sm:$0xff]
    %v2844 = vld [vmem:[%s2830 + $0x68] sm:$0xff]
    %v2845 = vld [vmem:[%s2830 + $0x70] sm:$0xff]
    %v2846 = vld [vmem:[%s2830 + $0x78] sm:$0xff]
    %v2847 = vld [vmem:[%s2830 + $0x80] sm:$0xff]
    %v2848 = vld [vmem:[%s2830 + $0x88] sm:$0xff]
    %v2849 = vld [vmem:[%s2830 + $0x90] sm:$0xff]
    %v2850 = vld [vmem:[%s2830 + $0x98] sm:$0xff]
    %v2851 = vld [vmem:[%s2830 + $0xa0] sm:$0xff]
    %v2852 = vld [vmem:[%s2830 + $0xa8] sm:$0xff]
    %v2853 = vld [vmem:[%s2830 + $0xb0] sm:$0xff]
    %v2854 = vld [vmem:[%s2830 + $0xb8] sm:$0xff]
    %v2855 = vld [vmem:[%s2830 + $0xc0] sm:$0xff]
    %v2856 = vld [vmem:[%s2830 + $0xc8] sm:$0xff]
    %v2857 = vld [vmem:[%s2830 + $0xd0] sm:$0xff]
    %v2858 = vld [vmem:[%s2830 + $0xd8] sm:$0xff]
    %v2859 = vld [vmem:[%s2830 + $0xe0] sm:$0xff]
    %v2860 = vld [vmem:[%s2830 + $0xe8] sm:$0xff]
    %v2861 = vld [vmem:[%s2830 + $0xf0] sm:$0xff]
    %v2862 = vld [vmem:[%s2830 + $0xf8] sm:$0xff]
    %v2863 = vld [vmem:[%s2830 + $0x100] sm:$0xff]
    %v2864 = vld [vmem:[%s2830 + $0x108] sm:$0xff]
    %v2865 = vld [vmem:[%s2830 + $0x110] sm:$0xff]
    %v2866 = vld [vmem:[%s2830 + $0x118] sm:$0xff]
    %v2867 = vld [vmem:[%s2830 + $0x120] sm:$0xff]
    %v2868 = vld [vmem:[%s2830 + $0x128] sm:$0xff]
    %v2869 = vld [vmem:[%s2830 + $0x130] sm:$0xff]
    %v2870 = vld [vmem:[%s2830 + $0x138] sm:$0xff]
    %v2871 = vld [vmem:[%s2830 + $0x140] sm:$0xff]
    %v2872 = vld [vmem:[%s2830 + $0x148] sm:$0xff]
    %v2873 = vld [vmem:[%s2830 + $0x150] sm:$0xff]
    %v2874 = vld [vmem:[%s2830 + $0x158] sm:$0xff]
    %v2875 = vld [vmem:[%s2830 + $0x160] sm:$0xff]
    %v2876 = vld [vmem:[%s2830 + $0x168] sm:$0xff]
    %v2877 = vld [vmem:[%s2830 + $0x170] sm:$0xff]
    %v2878 = vld [vmem:[%s2830 + $0x178] sm:$0xff]
    %v2879 = vld [vmem:[%s2830 + $0x180] sm:$0xff]
    %v2880 = vld [vmem:[%s2830 + $0x188] sm:$0xff]
    %v2881 = vld [vmem:[%s2830 + $0x190] sm:$0xff]
    %v2882 = vld [vmem:[%s2830 + $0x198] sm:$0xff]
    %v2883 = vld [vmem:[%s2830 + $0x1a0] sm:$0xff]
    %v2884 = vld [vmem:[%s2830 + $0x1a8] sm:$0xff]
    %v2885 = vld [vmem:[%s2830 + $0x1b0] sm:$0xff]
    %v2886 = vld [vmem:[%s2830 + $0x1b8] sm:$0xff]
    %v2887 = vld [vmem:[%s2830 + $0x1c0] sm:$0xff]
    %v2888 = vld [vmem:[%s2830 + $0x1c8] sm:$0xff]
    %v2889 = vld [vmem:[%s2830 + $0x1d0] sm:$0xff]
    %v2890 = vld [vmem:[%s2830 + $0x1d8] sm:$0xff]
    %v2891 = vld [vmem:[%s2830 + $0x1e0] sm:$0xff]
    %v2892 = vld [vmem:[%s2830 + $0x1e8] sm:$0xff]
    %v2893 = vld [vmem:[%s2830 + $0x1f0] sm:$0xff]
    %v2894 = vld [vmem:[%s2830 + $0x1f8] sm:$0xff]
    %2895 = vmatpush.msra.mxu0 %v2861
    %2896 = vmatpush.msra.mxu0 %v2859
    %2897 = vmatpush.msra.mxu0 %v2857
    %2898 = vmatpush.msra.mxu0 %v2855
    %2899 = vmatpush.msra.mxu0 %v2853
    %2900 = vmatpush.msra.mxu0 %v2851
    %2901 = vmatpush.msra.mxu0 %v2849
    %2902 = vmatpush.msra.mxu0 %v2847
    %2903 = vmatpush.msra.mxu0 %v2845
    %2904 = vmatpush.msra.mxu0 %v2843
    %2905 = vmatpush.msra.mxu0 %v2841
    %2906 = vmatpush.msra.mxu0 %v2839
    %2907 = vmatpush.msra.mxu0 %v2837
    %2908 = vmatpush.msra.mxu0 %v2835
    %2909 = vmatpush.msra.mxu0 %v2833
    %2910 = vmatpush.msra.mxu0 %v2831
    %2911 = vmatmul.f32.gmra.mxu0 %v2826
    %v2912 = vpop.f32.mrf.mxu0
    %v2913 = vadd.f32 0.0, %v2912
    %2914 = vdwg.mxu0
    %2915 = vmatpush.msra.mxu0 %v2893
    %2916 = vmatpush.msra.mxu0 %v2891
    %2917 = vmatpush.msra.mxu0 %v2889
    %2918 = vmatpush.msra.mxu0 %v2887
    %2919 = vmatpush.msra.mxu0 %v2885
    %2920 = vmatpush.msra.mxu0 %v2883
    %2921 = vmatpush.msra.mxu0 %v2881
    %2922 = vmatpush.msra.mxu0 %v2879
    %2923 = vmatpush.msra.mxu0 %v2877
    %2924 = vmatpush.msra.mxu0 %v2875
    %2925 = vmatpush.msra.mxu0 %v2873
    %2926 = vmatpush.msra.mxu0 %v2871
    %2927 = vmatpush.msra.mxu0 %v2869
    %2928 = vmatpush.msra.mxu0 %v2867
    %2929 = vmatpush.msra.mxu0 %v2865
    %2930 = vmatpush.msra.mxu0 %v2863
    %2931 = vmatmul.f32.gmra.mxu0 %v2827
    %v2932 = vpop.f32.mrf.mxu0
    %v2933 = vadd.f32 %v2913, %v2932
    %2934 = vdwg.mxu0
    %2935 = vmatpush.msra.mxu0 %v2862
    %2936 = vmatpush.msra.mxu0 %v2860
    %2937 = vmatpush.msra.mxu0 %v2858
    %2938 = vmatpush.msra.mxu0 %v2856
    %2939 = vmatpush.msra.mxu0 %v2854
    %2940 = vmatpush.msra.mxu0 %v2852
    %2941 = vmatpush.msra.mxu0 %v2850
    %2942 = vmatpush.msra.mxu0 %v2848
    %2943 = vmatpush.msra.mxu0 %v2846
    %2944 = vmatpush.msra.mxu0 %v2844
    %2945 = vmatpush.msra.mxu0 %v2842
    %2946 = vmatpush.msra.mxu0 %v2840
    %2947 = vmatpush.msra.mxu0 %v2838
    %2948 = vmatpush.msra.mxu0 %v2836
    %2949 = vmatpush.msra.mxu0 %v2834
    %2950 = vmatpush.msra.mxu0 %v2832
    %2951 = vmatmul.f32.gmra.mxu0 %v2826
    %v2952 = vpop.f32.mrf.mxu0
    %v2953 = vadd.f32 0.0, %v2952
    %2954 = vdwg.mxu0
    %2955 = vmatpush.msra.mxu0 %v2894
    %2956 = vmatpush.msra.mxu0 %v2892
    %2957 = vmatpush.msra.mxu0 %v2890
    %2958 = vmatpush.msra.mxu0 %v2888
    %2959 = vmatpush.msra.mxu0 %v2886
    %2960 = vmatpush.msra.mxu0 %v2884
    %2961 = vmatpush.msra.mxu0 %v2882
    %2962 = vmatpush.msra.mxu0 %v2880
    %2963 = vmatpush.msra.mxu0 %v2878
    %2964 = vmatpush.msra.mxu0 %v2876
    %2965 = vmatpush.msra.mxu0 %v2874
    %2966 = vmatpush.msra.mxu0 %v2872
    %2967 = vmatpush.msra.mxu0 %v2870
    %2968 = vmatpush.msra.mxu0 %v2868
    %2969 = vmatpush.msra.mxu0 %v2866
    %2970 = vmatpush.msra.mxu0 %v2864
    %2971 = vmatmul.f32.gmra.mxu0 %v2827
    %v2972 = vpop.f32.mrf.mxu0
    %v2973 = vadd.f32 %v2953, %v2972
    %2974 = vdwg.mxu0
    %v2975 = vadd.f32 %v2828, %v2933
    %v2976 = vadd.f32 %v2829, %v2973
    %2977 = vst [vmem:[#allocation2] sm:$0xff] %v2975
    %2978 = vst [vmem:[#allocation2 + $0x8] sm:$0xff] %v2976
    %v2979 = vld [vmem:[%s0 + $0x70] sm:$0xff]
    %2980 = vst [vmem:[#allocation1] ss:$2 sm:$0xff] %v114
    %v2981 = vld.sshfl [vmem:[#allocation1] sm:$0xff pattern:$0x75316420]
    %v2982 = vld.sshfl [vmem:[#allocation1 + $0x8] sm:$0xff pattern:$0x75316420]
    %v2984 = vsel %vm126, %v2979, 0
    %v2986 = vsel %vm130, %v2981, 0
    %v2988 = vsel %vm130, %v2982, 0
    %2990 = vmatpush.msra.mxu0 0.0
    %2991 = vmatpush.msra.mxu0 0.0
    %2992 = vmatpush.msra.mxu0 0.0
    %2993 = vmatpush.msra.mxu0 0.0
    %2994 = vmatpush.msra.mxu0 0.0
    %2995 = vmatpush.msra.mxu0 0.0
    %2996 = vmatpush.msra.mxu0 0.0
    %2997 = vmatpush.msra.mxu0 0.0
    %2998 = vmatpush.msra.mxu0 0.0
    %2999 = vmatpush.msra.mxu0 0.0
    %3000 = vmatpush.msra.mxu0 0.0
    %3001 = vmatpush.msra.mxu0 0.0
    %3002 = vmatpush.msra.mxu0 0.0
    %3003 = vmatpush.msra.mxu0 0.0
    %3004 = vmatpush.msra.mxu0 0.0
    %3005 = vmatpush.msra.mxu0 %v2986
    %3006 = vmatmul.f32.gmra.mxu0 %v2984
    %v3007 = vpop.f32.mrf.mxu0
    %v3008 = vadd.f32 %v117, %v3007
    %3009 = vdwg.mxu0
    %3010 = vmatpush.msra.mxu0 0.0
    %3011 = vmatpush.msra.mxu0 0.0
    %3012 = vmatpush.msra.mxu0 0.0
    %3013 = vmatpush.msra.mxu0 0.0
    %3014 = vmatpush.msra.mxu0 0.0
    %3015 = vmatpush.msra.mxu0 0.0
    %3016 = vmatpush.msra.mxu0 0.0
    %3017 = vmatpush.msra.mxu0 0.0
    %3018 = vmatpush.msra.mxu0 0.0
    %3019 = vmatpush.msra.mxu0 0.0
    %3020 = vmatpush.msra.mxu0 0.0
    %3021 = vmatpush.msra.mxu0 0.0
    %3022 = vmatpush.msra.mxu0 0.0
    %3023 = vmatpush.msra.mxu0 0.0
    %3024 = vmatpush.msra.mxu0 0.0
    %3025 = vmatpush.msra.mxu0 %v2988
    %3026 = vmatmul.f32.gmra.mxu0 %v2984
    %v3027 = vpop.f32.mrf.mxu0
    %v3028 = vadd.f32 %v118, %v3027
    %3029 = vdwg.mxu0
    %v3030 = vmax.f32 %v3008, 0.0
    %v3031 = vmax.f32 %v3028, 0.0
    %v3032 = vld [vmem:[#allocation2] sm:$0xff]
    %v3033 = vld [vmem:[#allocation2 + $0x8] sm:$0xff]
    %s3034 = scalar_lea.vmem [#allocation7], 7168
    %v3035 = vld [vmem:[%s3034] sm:$0xff]
    %v3036 = vld [vmem:[%s3034 + $0x8] sm:$0xff]
    %v3037 = vld [vmem:[%s3034 + $0x10] sm:$0xff]
    %v3038 = vld [vmem:[%s3034 + $0x18] sm:$0xff]
    %v3039 = vld [vmem:[%s3034 + $0x20] sm:$0xff]
    %v3040 = vld [vmem:[%s3034 + $0x28] sm:$0xff]
    %v3041 = vld [vmem:[%s3034 + $0x30] sm:$0xff]
    %v3042 = vld [vmem:[%s3034 + $0x38] sm:$0xff]
    %v3043 = vld [vmem:[%s3034 + $0x40] sm:$0xff]
    %v3044 = vld [vmem:[%s3034 + $0x48] sm:$0xff]
    %v3045 = vld [vmem:[%s3034 + $0x50] sm:$0xff]
    %v3046 = vld [vmem:[%s3034 + $0x58] sm:$0xff]
    %v3047 = vld [vmem:[%s3034 + $0x60] sm:$0xff]
    %v3048 = vld [vmem:[%s3034 + $0x68] sm:$0xff]
    %v3049 = vld [vmem:[%s3034 + $0x70] sm:$0xff]
    %v3050 = vld [vmem:[%s3034 + $0x78] sm:$0xff]
    %v3051 = vld [vmem:[%s3034 + $0x80] sm:$0xff]
    %v3052 = vld [vmem:[%s3034 + $0x88] sm:$0xff]
    %v3053 = vld [vmem:[%s3034 + $0x90] sm:$0xff]
    %v3054 = vld [vmem:[%s3034 + $0x98] sm:$0xff]
    %v3055 = vld [vmem:[%s3034 + $0xa0] sm:$0xff]
    %v3056 = vld [vmem:[%s3034 + $0xa8] sm:$0xff]
    %v3057 = vld [vmem:[%s3034 + $0xb0] sm:$0xff]
    %v3058 = vld [vmem:[%s3034 + $0xb8] sm:$0xff]
    %v3059 = vld [vmem:[%s3034 + $0xc0] sm:$0xff]
    %v3060 = vld [vmem:[%s3034 + $0xc8] sm:$0xff]
    %v3061 = vld [vmem:[%s3034 + $0xd0] sm:$0xff]
    %v3062 = vld [vmem:[%s3034 + $0xd8] sm:$0xff]
    %v3063 = vld [vmem:[%s3034 + $0xe0] sm:$0xff]
    %v3064 = vld [vmem:[%s3034 + $0xe8] sm:$0xff]
    %v3065 = vld [vmem:[%s3034 + $0xf0] sm:$0xff]
    %v3066 = vld [vmem:[%s3034 + $0xf8] sm:$0xff]
    %v3067 = vld [vmem:[%s3034 + $0x100] sm:$0xff]
    %v3068 = vld [vmem:[%s3034 + $0x108] sm:$0xff]
    %v3069 = vld [vmem:[%s3034 + $0x110] sm:$0xff]
    %v3070 = vld [vmem:[%s3034 + $0x118] sm:$0xff]
    %v3071 = vld [vmem:[%s3034 + $0x120] sm:$0xff]
    %v3072 = vld [vmem:[%s3034 + $0x128] sm:$0xff]
    %v3073 = vld [vmem:[%s3034 + $0x130] sm:$0xff]
    %v3074 = vld [vmem:[%s3034 + $0x138] sm:$0xff]
    %v3075 = vld [vmem:[%s3034 + $0x140] sm:$0xff]
    %v3076 = vld [vmem:[%s3034 + $0x148] sm:$0xff]
    %v3077 = vld [vmem:[%s3034 + $0x150] sm:$0xff]
    %v3078 = vld [vmem:[%s3034 + $0x158] sm:$0xff]
    %v3079 = vld [vmem:[%s3034 + $0x160] sm:$0xff]
    %v3080 = vld [vmem:[%s3034 + $0x168] sm:$0xff]
    %v3081 = vld [vmem:[%s3034 + $0x170] sm:$0xff]
    %v3082 = vld [vmem:[%s3034 + $0x178] sm:$0xff]
    %v3083 = vld [vmem:[%s3034 + $0x180] sm:$0xff]
    %v3084 = vld [vmem:[%s3034 + $0x188] sm:$0xff]
    %v3085 = vld [vmem:[%s3034 + $0x190] sm:$0xff]
    %v3086 = vld [vmem:[%s3034 + $0x198] sm:$0xff]
    %v3087 = vld [vmem:[%s3034 + $0x1a0] sm:$0xff]
    %v3088 = vld [vmem:[%s3034 + $0x1a8] sm:$0xff]
    %v3089 = vld [vmem:[%s3034 + $0x1b0] sm:$0xff]
    %v3090 = vld [vmem:[%s3034 + $0x1b8] sm:$0xff]
    %v3091 = vld [vmem:[%s3034 + $0x1c0] sm:$0xff]
    %v3092 = vld [vmem:[%s3034 + $0x1c8] sm:$0xff]
    %v3093 = vld [vmem:[%s3034 + $0x1d0] sm:$0xff]
    %v3094 = vld [vmem:[%s3034 + $0x1d8] sm:$0xff]
    %v3095 = vld [vmem:[%s3034 + $0x1e0] sm:$0xff]
    %v3096 = vld [vmem:[%s3034 + $0x1e8] sm:$0xff]
    %v3097 = vld [vmem:[%s3034 + $0x1f0] sm:$0xff]
    %v3098 = vld [vmem:[%s3034 + $0x1f8] sm:$0xff]
    %3099 = vmatpush.msra.mxu0 %v3065
    %3100 = vmatpush.msra.mxu0 %v3063
    %3101 = vmatpush.msra.mxu0 %v3061
    %3102 = vmatpush.msra.mxu0 %v3059
    %3103 = vmatpush.msra.mxu0 %v3057
    %3104 = vmatpush.msra.mxu0 %v3055
    %3105 = vmatpush.msra.mxu0 %v3053
    %3106 = vmatpush.msra.mxu0 %v3051
    %3107 = vmatpush.msra.mxu0 %v3049
    %3108 = vmatpush.msra.mxu0 %v3047
    %3109 = vmatpush.msra.mxu0 %v3045
    %3110 = vmatpush.msra.mxu0 %v3043
    %3111 = vmatpush.msra.mxu0 %v3041
    %3112 = vmatpush.msra.mxu0 %v3039
    %3113 = vmatpush.msra.mxu0 %v3037
    %3114 = vmatpush.msra.mxu0 %v3035
    %3115 = vmatmul.f32.gmra.mxu0 %v3030
    %v3116 = vpop.f32.mrf.mxu0
    %v3117 = vadd.f32 0.0, %v3116
    %3118 = vdwg.mxu0
    %3119 = vmatpush.msra.mxu0 %v3097
    %3120 = vmatpush.msra.mxu0 %v3095
    %3121 = vmatpush.msra.mxu0 %v3093
    %3122 = vmatpush.msra.mxu0 %v3091
    %3123 = vmatpush.msra.mxu0 %v3089
    %3124 = vmatpush.msra.mxu0 %v3087
    %3125 = vmatpush.msra.mxu0 %v3085
    %3126 = vmatpush.msra.mxu0 %v3083
    %3127 = vmatpush.msra.mxu0 %v3081
    %3128 = vmatpush.msra.mxu0 %v3079
    %3129 = vmatpush.msra.mxu0 %v3077
    %3130 = vmatpush.msra.mxu0 %v3075
    %3131 = vmatpush.msra.mxu0 %v3073
    %3132 = vmatpush.msra.mxu0 %v3071
    %3133 = vmatpush.msra.mxu0 %v3069
    %3134 = vmatpush.msra.mxu0 %v3067
    %3135 = vmatmul.f32.gmra.mxu0 %v3031
    %v3136 = vpop.f32.mrf.mxu0
    %v3137 = vadd.f32 %v3117, %v3136
    %3138 = vdwg.mxu0
    %3139 = vmatpush.msra.mxu0 %v3066
    %3140 = vmatpush.msra.mxu0 %v3064
    %3141 = vmatpush.msra.mxu0 %v3062
    %3142 = vmatpush.msra.mxu0 %v3060
    %3143 = vmatpush.msra.mxu0 %v3058
    %3144 = vmatpush.msra.mxu0 %v3056
    %3145 = vmatpush.msra.mxu0 %v3054
    %3146 = vmatpush.msra.mxu0 %v3052
    %3147 = vmatpush.msra.mxu0 %v3050
    %3148 = vmatpush.msra.mxu0 %v3048
    %3149 = vmatpush.msra.mxu0 %v3046
    %3150 = vmatpush.msra.mxu0 %v3044
    %3151 = vmatpush.msra.mxu0 %v3042
    %3152 = vmatpush.msra.mxu0 %v3040
    %3153 = vmatpush.msra.mxu0 %v3038
    %3154 = vmatpush.msra.mxu0 %v3036
    %3155 = vmatmul.f32.gmra.mxu0 %v3030
    %v3156 = vpop.f32.mrf.mxu0
    %v3157 = vadd.f32 0.0, %v3156
    %3158 = vdwg.mxu0
    %3159 = vmatpush.msra.mxu0 %v3098
    %3160 = vmatpush.msra.mxu0 %v3096
    %3161 = vmatpush.msra.mxu0 %v3094
    %3162 = vmatpush.msra.mxu0 %v3092
    %3163 = vmatpush.msra.mxu0 %v3090
    %3164 = vmatpush.msra.mxu0 %v3088
    %3165 = vmatpush.msra.mxu0 %v3086
    %3166 = vmatpush.msra.mxu0 %v3084
    %3167 = vmatpush.msra.mxu0 %v3082
    %3168 = vmatpush.msra.mxu0 %v3080
    %3169 = vmatpush.msra.mxu0 %v3078
    %3170 = vmatpush.msra.mxu0 %v3076
    %3171 = vmatpush.msra.mxu0 %v3074
    %3172 = vmatpush.msra.mxu0 %v3072
    %3173 = vmatpush.msra.mxu0 %v3070
    %3174 = vmatpush.msra.mxu0 %v3068
    %3175 = vmatmul.f32.gmra.mxu0 %v3031
    %v3176 = vpop.f32.mrf.mxu0
    %v3177 = vadd.f32 %v3157, %v3176
    %3178 = vdwg.mxu0
    %v3179 = vadd.f32 %v3032, %v3137
    %v3180 = vadd.f32 %v3033, %v3177
    %3181 = vst [vmem:[#allocation2] sm:$0xff] %v3179
    %3182 = vst [vmem:[#allocation2 + $0x8] sm:$0xff] %v3180
    %v3183 = vld [vmem:[%s0 + $0x78] sm:$0xff]
    %3184 = vst [vmem:[#allocation1] ss:$2 sm:$0xff] %v114
    %v3185 = vld.sshfl [vmem:[#allocation1] sm:$0xff pattern:$0x75316420]
    %v3186 = vld.sshfl [vmem:[#allocation1 + $0x8] sm:$0xff pattern:$0x75316420]
    %v3188 = vsel %vm126, %v3183, 0
    %v3190 = vsel %vm130, %v3185, 0
    %v3192 = vsel %vm130, %v3186, 0
    %3194 = vmatpush.msra.mxu0 0.0
    %3195 = vmatpush.msra.mxu0 0.0
    %3196 = vmatpush.msra.mxu0 0.0
    %3197 = vmatpush.msra.mxu0 0.0
    %3198 = vmatpush.msra.mxu0 0.0
    %3199 = vmatpush.msra.mxu0 0.0
    %3200 = vmatpush.msra.mxu0 0.0
    %3201 = vmatpush.msra.mxu0 0.0
    %3202 = vmatpush.msra.mxu0 0.0
    %3203 = vmatpush.msra.mxu0 0.0
    %3204 = vmatpush.msra.mxu0 0.0
    %3205 = vmatpush.msra.mxu0 0.0
    %3206 = vmatpush.msra.mxu0 0.0
    %3207 = vmatpush.msra.mxu0 0.0
    %3208 = vmatpush.msra.mxu0 0.0
    %3209 = vmatpush.msra.mxu0 %v3190
    %3210 = vmatmul.f32.gmra.mxu0 %v3188
    %v3211 = vpop.f32.mrf.mxu0
    %v3212 = vadd.f32 %v117, %v3211
    %3213 = vdwg.mxu0
    %3214 = vmatpush.msra.mxu0 0.0
    %3215 = vmatpush.msra.mxu0 0.0
    %3216 = vmatpush.msra.mxu0 0.0
    %3217 = vmatpush.msra.mxu0 0.0
    %3218 = vmatpush.msra.mxu0 0.0
    %3219 = vmatpush.msra.mxu0 0.0
    %3220 = vmatpush.msra.mxu0 0.0
    %3221 = vmatpush.msra.mxu0 0.0
    %3222 = vmatpush.msra.mxu0 0.0
    %3223 = vmatpush.msra.mxu0 0.0
    %3224 = vmatpush.msra.mxu0 0.0
    %3225 = vmatpush.msra.mxu0 0.0
    %3226 = vmatpush.msra.mxu0 0.0
    %3227 = vmatpush.msra.mxu0 0.0
    %3228 = vmatpush.msra.mxu0 0.0
    %3229 = vmatpush.msra.mxu0 %v3192
    %3230 = vmatmul.f32.gmra.mxu0 %v3188
    %v3231 = vpop.f32.mrf.mxu0
    %v3232 = vadd.f32 %v118, %v3231
    %3233 = vdwg.mxu0
    %v3234 = vmax.f32 %v3212, 0.0
    %v3235 = vmax.f32 %v3232, 0.0
    %v3236 = vld [vmem:[#allocation2] sm:$0xff]
    %v3237 = vld [vmem:[#allocation2 + $0x8] sm:$0xff]
    %s3238 = scalar_lea.vmem [#allocation7], 7680
    %v3239 = vld [vmem:[%s3238] sm:$0xff]
    %v3240 = vld [vmem:[%s3238 + $0x8] sm:$0xff]
    %v3241 = vld [vmem:[%s3238 + $0x10] sm:$0xff]
    %v3242 = vld [vmem:[%s3238 + $0x18] sm:$0xff]
    %v3243 = vld [vmem:[%s3238 + $0x20] sm:$0xff]
    %v3244 = vld [vmem:[%s3238 + $0x28] sm:$0xff]
    %v3245 = vld [vmem:[%s3238 + $0x30] sm:$0xff]
    %v3246 = vld [vmem:[%s3238 + $0x38] sm:$0xff]
    %v3247 = vld [vmem:[%s3238 + $0x40] sm:$0xff]
    %v3248 = vld [vmem:[%s3238 + $0x48] sm:$0xff]
    %v3249 = vld [vmem:[%s3238 + $0x50] sm:$0xff]
    %v3250 = vld [vmem:[%s3238 + $0x58] sm:$0xff]
    %v3251 = vld [vmem:[%s3238 + $0x60] sm:$0xff]
    %v3252 = vld [vmem:[%s3238 + $0x68] sm:$0xff]
    %v3253 = vld [vmem:[%s3238 + $0x70] sm:$0xff]
    %v3254 = vld [vmem:[%s3238 + $0x78] sm:$0xff]
    %v3255 = vld [vmem:[%s3238 + $0x80] sm:$0xff]
    %v3256 = vld [vmem:[%s3238 + $0x88] sm:$0xff]
    %v3257 = vld [vmem:[%s3238 + $0x90] sm:$0xff]
    %v3258 = vld [vmem:[%s3238 + $0x98] sm:$0xff]
    %v3259 = vld [vmem:[%s3238 + $0xa0] sm:$0xff]
    %v3260 = vld [vmem:[%s3238 + $0xa8] sm:$0xff]
    %v3261 = vld [vmem:[%s3238 + $0xb0] sm:$0xff]
    %v3262 = vld [vmem:[%s3238 + $0xb8] sm:$0xff]
    %v3263 = vld [vmem:[%s3238 + $0xc0] sm:$0xff]
    %v3264 = vld [vmem:[%s3238 + $0xc8] sm:$0xff]
    %v3265 = vld [vmem:[%s3238 + $0xd0] sm:$0xff]
    %v3266 = vld [vmem:[%s3238 + $0xd8] sm:$0xff]
    %v3267 = vld [vmem:[%s3238 + $0xe0] sm:$0xff]
    %v3268 = vld [vmem:[%s3238 + $0xe8] sm:$0xff]
    %v3269 = vld [vmem:[%s3238 + $0xf0] sm:$0xff]
    %v3270 = vld [vmem:[%s3238 + $0xf8] sm:$0xff]
    %v3271 = vld [vmem:[%s3238 + $0x100] sm:$0xff]
    %v3272 = vld [vmem:[%s3238 + $0x108] sm:$0xff]
    %v3273 = vld [vmem:[%s3238 + $0x110] sm:$0xff]
    %v3274 = vld [vmem:[%s3238 + $0x118] sm:$0xff]
    %v3275 = vld [vmem:[%s3238 + $0x120] sm:$0xff]
    %v3276 = vld [vmem:[%s3238 + $0x128] sm:$0xff]
    %v3277 = vld [vmem:[%s3238 + $0x130] sm:$0xff]
    %v3278 = vld [vmem:[%s3238 + $0x138] sm:$0xff]
    %v3279 = vld [vmem:[%s3238 + $0x140] sm:$0xff]
    %v3280 = vld [vmem:[%s3238 + $0x148] sm:$0xff]
    %v3281 = vld [vmem:[%s3238 + $0x150] sm:$0xff]
    %v3282 = vld [vmem:[%s3238 + $0x158] sm:$0xff]
    %v3283 = vld [vmem:[%s3238 + $0x160] sm:$0xff]
    %v3284 = vld [vmem:[%s3238 + $0x168] sm:$0xff]
    %v3285 = vld [vmem:[%s3238 + $0x170] sm:$0xff]
    %v3286 = vld [vmem:[%s3238 + $0x178] sm:$0xff]
    %v3287 = vld [vmem:[%s3238 + $0x180] sm:$0xff]
    %v3288 = vld [vmem:[%s3238 + $0x188] sm:$0xff]
    %v3289 = vld [vmem:[%s3238 + $0x190] sm:$0xff]
    %v3290 = vld [vmem:[%s3238 + $0x198] sm:$0xff]
    %v3291 = vld [vmem:[%s3238 + $0x1a0] sm:$0xff]
    %v3292 = vld [vmem:[%s3238 + $0x1a8] sm:$0xff]
    %v3293 = vld [vmem:[%s3238 + $0x1b0] sm:$0xff]
    %v3294 = vld [vmem:[%s3238 + $0x1b8] sm:$0xff]
    %v3295 = vld [vmem:[%s3238 + $0x1c0] sm:$0xff]
    %v3296 = vld [vmem:[%s3238 + $0x1c8] sm:$0xff]
    %v3297 = vld [vmem:[%s3238 + $0x1d0] sm:$0xff]
    %v3298 = vld [vmem:[%s3238 + $0x1d8] sm:$0xff]
    %v3299 = vld [vmem:[%s3238 + $0x1e0] sm:$0xff]
    %v3300 = vld [vmem:[%s3238 + $0x1e8] sm:$0xff]
    %v3301 = vld [vmem:[%s3238 + $0x1f0] sm:$0xff]
    %v3302 = vld [vmem:[%s3238 + $0x1f8] sm:$0xff]
    %3303 = vmatpush.msra.mxu0 %v3269
    %3304 = vmatpush.msra.mxu0 %v3267
    %3305 = vmatpush.msra.mxu0 %v3265
    %3306 = vmatpush.msra.mxu0 %v3263
    %3307 = vmatpush.msra.mxu0 %v3261
    %3308 = vmatpush.msra.mxu0 %v3259
    %3309 = vmatpush.msra.mxu0 %v3257
    %3310 = vmatpush.msra.mxu0 %v3255
    %3311 = vmatpush.msra.mxu0 %v3253
    %3312 = vmatpush.msra.mxu0 %v3251
    %3313 = vmatpush.msra.mxu0 %v3249
    %3314 = vmatpush.msra.mxu0 %v3247
    %3315 = vmatpush.msra.mxu0 %v3245
    %3316 = vmatpush.msra.mxu0 %v3243
    %3317 = vmatpush.msra.mxu0 %v3241
    %3318 = vmatpush.msra.mxu0 %v3239
    %3319 = vmatmul.f32.gmra.mxu0 %v3234
    %v3320 = vpop.f32.mrf.mxu0
    %v3321 = vadd.f32 0.0, %v3320
    %3322 = vdwg.mxu0
    %3323 = vmatpush.msra.mxu0 %v3301
    %3324 = vmatpush.msra.mxu0 %v3299
    %3325 = vmatpush.msra.mxu0 %v3297
    %3326 = vmatpush.msra.mxu0 %v3295
    %3327 = vmatpush.msra.mxu0 %v3293
    %3328 = vmatpush.msra.mxu0 %v3291
    %3329 = vmatpush.msra.mxu0 %v3289
    %3330 = vmatpush.msra.mxu0 %v3287
    %3331 = vmatpush.msra.mxu0 %v3285
    %3332 = vmatpush.msra.mxu0 %v3283
    %3333 = vmatpush.msra.mxu0 %v3281
    %3334 = vmatpush.msra.mxu0 %v3279
    %3335 = vmatpush.msra.mxu0 %v3277
    %3336 = vmatpush.msra.mxu0 %v3275
    %3337 = vmatpush.msra.mxu0 %v3273
    %3338 = vmatpush.msra.mxu0 %v3271
    %3339 = vmatmul.f32.gmra.mxu0 %v3235
    %v3340 = vpop.f32.mrf.mxu0
    %v3341 = vadd.f32 %v3321, %v3340
    %3342 = vdwg.mxu0
    %3343 = vmatpush.msra.mxu0 %v3270
    %3344 = vmatpush.msra.mxu0 %v3268
    %3345 = vmatpush.msra.mxu0 %v3266
    %3346 = vmatpush.msra.mxu0 %v3264
    %3347 = vmatpush.msra.mxu0 %v3262
    %3348 = vmatpush.msra.mxu0 %v3260
    %3349 = vmatpush.msra.mxu0 %v3258
    %3350 = vmatpush.msra.mxu0 %v3256
    %3351 = vmatpush.msra.mxu0 %v3254
    %3352 = vmatpush.msra.mxu0 %v3252
    %3353 = vmatpush.msra.mxu0 %v3250
    %3354 = vmatpush.msra.mxu0 %v3248
    %3355 = vmatpush.msra.mxu0 %v3246
    %3356 = vmatpush.msra.mxu0 %v3244
    %3357 = vmatpush.msra.mxu0 %v3242
    %3358 = vmatpush.msra.mxu0 %v3240
    %3359 = vmatmul.f32.gmra.mxu0 %v3234
    %v3360 = vpop.f32.mrf.mxu0
    %v3361 = vadd.f32 0.0, %v3360
    %3362 = vdwg.mxu0
    %3363 = vmatpush.msra.mxu0 %v3302
    %3364 = vmatpush.msra.mxu0 %v3300
    %3365 = vmatpush.msra.mxu0 %v3298
    %3366 = vmatpush.msra.mxu0 %v3296
    %3367 = vmatpush.msra.mxu0 %v3294
    %3368 = vmatpush.msra.mxu0 %v3292
    %3369 = vmatpush.msra.mxu0 %v3290
    %3370 = vmatpush.msra.mxu0 %v3288
    %3371 = vmatpush.msra.mxu0 %v3286
    %3372 = vmatpush.msra.mxu0 %v3284
    %3373 = vmatpush.msra.mxu0 %v3282
    %3374 = vmatpush.msra.mxu0 %v3280
    %3375 = vmatpush.msra.mxu0 %v3278
    %3376 = vmatpush.msra.mxu0 %v3276
    %3377 = vmatpush.msra.mxu0 %v3274
    %3378 = vmatpush.msra.mxu0 %v3272
    %3379 = vmatmul.f32.gmra.mxu0 %v3235
    %v3380 = vpop.f32.mrf.mxu0
    %v3381 = vadd.f32 %v3361, %v3380
    %3382 = vdwg.mxu0
    %v3383 = vadd.f32 %v3236, %v3341
    %v3384 = vadd.f32 %v3237, %v3381
    %3385 = vst [vmem:[#allocation2] sm:$0xff] %v3383
    %3386 = vst [vmem:[#allocation2 + $0x8] sm:$0xff] %v3384
    %v3387 = vld [vmem:[%s0 + $0x80] sm:$0xff]
    %3388 = vst [vmem:[#allocation1] ss:$2 sm:$0xff] %v114
    %v3389 = vld.sshfl [vmem:[#allocation1] sm:$0xff pattern:$0x75316420]
    %v3390 = vld.sshfl [vmem:[#allocation1 + $0x8] sm:$0xff pattern:$0x75316420]
    %v3392 = vsel %vm126, %v3387, 0
    %v3394 = vsel %vm130, %v3389, 0
    %v3396 = vsel %vm130, %v3390, 0
    %3398 = vmatpush.msra.mxu0 0.0
    %3399 = vmatpush.msra.mxu0 0.0
    %3400 = vmatpush.msra.mxu0 0.0
    %3401 = vmatpush.msra.mxu0 0.0
    %3402 = vmatpush.msra.mxu0 0.0
    %3403 = vmatpush.msra.mxu0 0.0
    %3404 = vmatpush.msra.mxu0 0.0
    %3405 = vmatpush.msra.mxu0 0.0
    %3406 = vmatpush.msra.mxu0 0.0
    %3407 = vmatpush.msra.mxu0 0.0
    %3408 = vmatpush.msra.mxu0 0.0
    %3409 = vmatpush.msra.mxu0 0.0
    %3410 = vmatpush.msra.mxu0 0.0
    %3411 = vmatpush.msra.mxu0 0.0
    %3412 = vmatpush.msra.mxu0 0.0
    %3413 = vmatpush.msra.mxu0 %v3394
    %3414 = vmatmul.f32.gmra.mxu0 %v3392
    %v3415 = vpop.f32.mrf.mxu0
    %v3416 = vadd.f32 %v117, %v3415
    %3417 = vdwg.mxu0
    %3418 = vmatpush.msra.mxu0 0.0
    %3419 = vmatpush.msra.mxu0 0.0
    %3420 = vmatpush.msra.mxu0 0.0
    %3421 = vmatpush.msra.mxu0 0.0
    %3422 = vmatpush.msra.mxu0 0.0
    %3423 = vmatpush.msra.mxu0 0.0
    %3424 = vmatpush.msra.mxu0 0.0
    %3425 = vmatpush.msra.mxu0 0.0
    %3426 = vmatpush.msra.mxu0 0.0
    %3427 = vmatpush.msra.mxu0 0.0
    %3428 = vmatpush.msra.mxu0 0.0
    %3429 = vmatpush.msra.mxu0 0.0
    %3430 = vmatpush.msra.mxu0 0.0
    %3431 = vmatpush.msra.mxu0 0.0
    %3432 = vmatpush.msra.mxu0 0.0
    %3433 = vmatpush.msra.mxu0 %v3396
    %3434 = vmatmul.f32.gmra.mxu0 %v3392
    %v3435 = vpop.f32.mrf.mxu0
    %v3436 = vadd.f32 %v118, %v3435
    %3437 = vdwg.mxu0
    %v3438 = vmax.f32 %v3416, 0.0
    %v3439 = vmax.f32 %v3436, 0.0
    %v3440 = vld [vmem:[#allocation2] sm:$0xff]
    %v3441 = vld [vmem:[#allocation2 + $0x8] sm:$0xff]
    %s3442 = scalar_lea.vmem [#allocation7], 8192
    %v3443 = vld [vmem:[%s3442] sm:$0xff]
    %v3444 = vld [vmem:[%s3442 + $0x8] sm:$0xff]
    %v3445 = vld [vmem:[%s3442 + $0x10] sm:$0xff]
    %v3446 = vld [vmem:[%s3442 + $0x18] sm:$0xff]
    %v3447 = vld [vmem:[%s3442 + $0x20] sm:$0xff]
    %v3448 = vld [vmem:[%s3442 + $0x28] sm:$0xff]
    %v3449 = vld [vmem:[%s3442 + $0x30] sm:$0xff]
    %v3450 = vld [vmem:[%s3442 + $0x38] sm:$0xff]
    %v3451 = vld [vmem:[%s3442 + $0x40] sm:$0xff]
    %v3452 = vld [vmem:[%s3442 + $0x48] sm:$0xff]
    %v3453 = vld [vmem:[%s3442 + $0x50] sm:$0xff]
    %v3454 = vld [vmem:[%s3442 + $0x58] sm:$0xff]
    %v3455 = vld [vmem:[%s3442 + $0x60] sm:$0xff]
    %v3456 = vld [vmem:[%s3442 + $0x68] sm:$0xff]
    %v3457 = vld [vmem:[%s3442 + $0x70] sm:$0xff]
    %v3458 = vld [vmem:[%s3442 + $0x78] sm:$0xff]
    %v3459 = vld [vmem:[%s3442 + $0x80] sm:$0xff]
    %v3460 = vld [vmem:[%s3442 + $0x88] sm:$0xff]
    %v3461 = vld [vmem:[%s3442 + $0x90] sm:$0xff]
    %v3462 = vld [vmem:[%s3442 + $0x98] sm:$0xff]
    %v3463 = vld [vmem:[%s3442 + $0xa0] sm:$0xff]
    %v3464 = vld [vmem:[%s3442 + $0xa8] sm:$0xff]
    %v3465 = vld [vmem:[%s3442 + $0xb0] sm:$0xff]
    %v3466 = vld [vmem:[%s3442 + $0xb8] sm:$0xff]
    %v3467 = vld [vmem:[%s3442 + $0xc0] sm:$0xff]
    %v3468 = vld [vmem:[%s3442 + $0xc8] sm:$0xff]
    %v3469 = vld [vmem:[%s3442 + $0xd0] sm:$0xff]
    %v3470 = vld [vmem:[%s3442 + $0xd8] sm:$0xff]
    %v3471 = vld [vmem:[%s3442 + $0xe0] sm:$0xff]
    %v3472 = vld [vmem:[%s3442 + $0xe8] sm:$0xff]
    %v3473 = vld [vmem:[%s3442 + $0xf0] sm:$0xff]
    %v3474 = vld [vmem:[%s3442 + $0xf8] sm:$0xff]
    %v3475 = vld [vmem:[%s3442 + $0x100] sm:$0xff]
    %v3476 = vld [vmem:[%s3442 + $0x108] sm:$0xff]
    %v3477 = vld [vmem:[%s3442 + $0x110] sm:$0xff]
    %v3478 = vld [vmem:[%s3442 + $0x118] sm:$0xff]
    %v3479 = vld [vmem:[%s3442 + $0x120] sm:$0xff]
    %v3480 = vld [vmem:[%s3442 + $0x128] sm:$0xff]
    %v3481 = vld [vmem:[%s3442 + $0x130] sm:$0xff]
    %v3482 = vld [vmem:[%s3442 + $0x138] sm:$0xff]
    %v3483 = vld [vmem:[%s3442 + $0x140] sm:$0xff]
    %v3484 = vld [vmem:[%s3442 + $0x148] sm:$0xff]
    %v3485 = vld [vmem:[%s3442 + $0x150] sm:$0xff]
    %v3486 = vld [vmem:[%s3442 + $0x158] sm:$0xff]
    %v3487 = vld [vmem:[%s3442 + $0x160] sm:$0xff]
    %v3488 = vld [vmem:[%s3442 + $0x168] sm:$0xff]
    %v3489 = vld [vmem:[%s3442 + $0x170] sm:$0xff]
    %v3490 = vld [vmem:[%s3442 + $0x178] sm:$0xff]
    %v3491 = vld [vmem:[%s3442 + $0x180] sm:$0xff]
    %v3492 = vld [vmem:[%s3442 + $0x188] sm:$0xff]
    %v3493 = vld [vmem:[%s3442 + $0x190] sm:$0xff]
    %v3494 = vld [vmem:[%s3442 + $0x198] sm:$0xff]
    %v3495 = vld [vmem:[%s3442 + $0x1a0] sm:$0xff]
    %v3496 = vld [vmem:[%s3442 + $0x1a8] sm:$0xff]
    %v3497 = vld [vmem:[%s3442 + $0x1b0] sm:$0xff]
    %v3498 = vld [vmem:[%s3442 + $0x1b8] sm:$0xff]
    %v3499 = vld [vmem:[%s3442 + $0x1c0] sm:$0xff]
    %v3500 = vld [vmem:[%s3442 + $0x1c8] sm:$0xff]
    %v3501 = vld [vmem:[%s3442 + $0x1d0] sm:$0xff]
    %v3502 = vld [vmem:[%s3442 + $0x1d8] sm:$0xff]
    %v3503 = vld [vmem:[%s3442 + $0x1e0] sm:$0xff]
    %v3504 = vld [vmem:[%s3442 + $0x1e8] sm:$0xff]
    %v3505 = vld [vmem:[%s3442 + $0x1f0] sm:$0xff]
    %v3506 = vld [vmem:[%s3442 + $0x1f8] sm:$0xff]
    %3507 = vmatpush.msra.mxu0 %v3473
    %3508 = vmatpush.msra.mxu0 %v3471
    %3509 = vmatpush.msra.mxu0 %v3469
    %3510 = vmatpush.msra.mxu0 %v3467
    %3511 = vmatpush.msra.mxu0 %v3465
    %3512 = vmatpush.msra.mxu0 %v3463
    %3513 = vmatpush.msra.mxu0 %v3461
    %3514 = vmatpush.msra.mxu0 %v3459
    %3515 = vmatpush.msra.mxu0 %v3457
    %3516 = vmatpush.msra.mxu0 %v3455
    %3517 = vmatpush.msra.mxu0 %v3453
    %3518 = vmatpush.msra.mxu0 %v3451
    %3519 = vmatpush.msra.mxu0 %v3449
    %3520 = vmatpush.msra.mxu0 %v3447
    %3521 = vmatpush.msra.mxu0 %v3445
    %3522 = vmatpush.msra.mxu0 %v3443
    %3523 = vmatmul.f32.gmra.mxu0 %v3438
    %v3524 = vpop.f32.mrf.mxu0
    %v3525 = vadd.f32 0.0, %v3524
    %3526 = vdwg.mxu0
    %3527 = vmatpush.msra.mxu0 %v3505
    %3528 = vmatpush.msra.mxu0 %v3503
    %3529 = vmatpush.msra.mxu0 %v3501
    %3530 = vmatpush.msra.mxu0 %v3499
    %3531 = vmatpush.msra.mxu0 %v3497
    %3532 = vmatpush.msra.mxu0 %v3495
    %3533 = vmatpush.msra.mxu0 %v3493
    %3534 = vmatpush.msra.mxu0 %v3491
    %3535 = vmatpush.msra.mxu0 %v3489
    %3536 = vmatpush.msra.mxu0 %v3487
    %3537 = vmatpush.msra.mxu0 %v3485
    %3538 = vmatpush.msra.mxu0 %v3483
    %3539 = vmatpush.msra.mxu0 %v3481
    %3540 = vmatpush.msra.mxu0 %v3479
    %3541 = vmatpush.msra.mxu0 %v3477
    %3542 = vmatpush.msra.mxu0 %v3475
    %3543 = vmatmul.f32.gmra.mxu0 %v3439
    %v3544 = vpop.f32.mrf.mxu0
    %v3545 = vadd.f32 %v3525, %v3544
    %3546 = vdwg.mxu0
    %3547 = vmatpush.msra.mxu0 %v3474
    %3548 = vmatpush.msra.mxu0 %v3472
    %3549 = vmatpush.msra.mxu0 %v3470
    %3550 = vmatpush.msra.mxu0 %v3468
    %3551 = vmatpush.msra.mxu0 %v3466
    %3552 = vmatpush.msra.mxu0 %v3464
    %3553 = vmatpush.msra.mxu0 %v3462
    %3554 = vmatpush.msra.mxu0 %v3460
    %3555 = vmatpush.msra.mxu0 %v3458
    %3556 = vmatpush.msra.mxu0 %v3456
    %3557 = vmatpush.msra.mxu0 %v3454
    %3558 = vmatpush.msra.mxu0 %v3452
    %3559 = vmatpush.msra.mxu0 %v3450
    %3560 = vmatpush.msra.mxu0 %v3448
    %3561 = vmatpush.msra.mxu0 %v3446
    %3562 = vmatpush.msra.mxu0 %v3444
    %3563 = vmatmul.f32.gmra.mxu0 %v3438
    %v3564 = vpop.f32.mrf.mxu0
    %v3565 = vadd.f32 0.0, %v3564
    %3566 = vdwg.mxu0
    %3567 = vmatpush.msra.mxu0 %v3506
    %3568 = vmatpush.msra.mxu0 %v3504
    %3569 = vmatpush.msra.mxu0 %v3502
    %3570 = vmatpush.msra.mxu0 %v3500
    %3571 = vmatpush.msra.mxu0 %v3498
    %3572 = vmatpush.msra.mxu0 %v3496
    %3573 = vmatpush.msra.mxu0 %v3494
    %3574 = vmatpush.msra.mxu0 %v3492
    %3575 = vmatpush.msra.mxu0 %v3490
    %3576 = vmatpush.msra.mxu0 %v3488
    %3577 = vmatpush.msra.mxu0 %v3486
    %3578 = vmatpush.msra.mxu0 %v3484
    %3579 = vmatpush.msra.mxu0 %v3482
    %3580 = vmatpush.msra.mxu0 %v3480
    %3581 = vmatpush.msra.mxu0 %v3478
    %3582 = vmatpush.msra.mxu0 %v3476
    %3583 = vmatmul.f32.gmra.mxu0 %v3439
    %v3584 = vpop.f32.mrf.mxu0
    %v3585 = vadd.f32 %v3565, %v3584
    %3586 = vdwg.mxu0
    %v3587 = vadd.f32 %v3440, %v3545
    %v3588 = vadd.f32 %v3441, %v3585
    %3589 = vst [vmem:[#allocation2] sm:$0xff] %v3587
    %3590 = vst [vmem:[#allocation2 + $0x8] sm:$0xff] %v3588
    %v3591 = vld [vmem:[%s0 + $0x88] sm:$0xff]
    %3592 = vst [vmem:[#allocation1] ss:$2 sm:$0xff] %v114
    %v3593 = vld.sshfl [vmem:[#allocation1] sm:$0xff pattern:$0x75316420]
    %v3594 = vld.sshfl [vmem:[#allocation1 + $0x8] sm:$0xff pattern:$0x75316420]
    %v3596 = vsel %vm126, %v3591, 0
    %v3598 = vsel %vm130, %v3593, 0
    %v3600 = vsel %vm130, %v3594, 0
    %3602 = vmatpush.msra.mxu0 0.0
    %3603 = vmatpush.msra.mxu0 0.0
    %3604 = vmatpush.msra.mxu0 0.0
    %3605 = vmatpush.msra.mxu0 0.0
    %3606 = vmatpush.msra.mxu0 0.0
    %3607 = vmatpush.msra.mxu0 0.0
    %3608 = vmatpush.msra.mxu0 0.0
    %3609 = vmatpush.msra.mxu0 0.0
    %3610 = vmatpush.msra.mxu0 0.0
    %3611 = vmatpush.msra.mxu0 0.0
    %3612 = vmatpush.msra.mxu0 0.0
    %3613 = vmatpush.msra.mxu0 0.0
    %3614 = vmatpush.msra.mxu0 0.0
    %3615 = vmatpush.msra.mxu0 0.0
    %3616 = vmatpush.msra.mxu0 0.0
    %3617 = vmatpush.msra.mxu0 %v3598
    %3618 = vmatmul.f32.gmra.mxu0 %v3596
    %v3619 = vpop.f32.mrf.mxu0
    %v3620 = vadd.f32 %v117, %v3619
    %3621 = vdwg.mxu0
    %3622 = vmatpush.msra.mxu0 0.0
    %3623 = vmatpush.msra.mxu0 0.0
    %3624 = vmatpush.msra.mxu0 0.0
    %3625 = vmatpush.msra.mxu0 0.0
    %3626 = vmatpush.msra.mxu0 0.0
    %3627 = vmatpush.msra.mxu0 0.0
    %3628 = vmatpush.msra.mxu0 0.0
    %3629 = vmatpush.msra.mxu0 0.0
    %3630 = vmatpush.msra.mxu0 0.0
    %3631 = vmatpush.msra.mxu0 0.0
    %3632 = vmatpush.msra.mxu0 0.0
    %3633 = vmatpush.msra.mxu0 0.0
    %3634 = vmatpush.msra.mxu0 0.0
    %3635 = vmatpush.msra.mxu0 0.0
    %3636 = vmatpush.msra.mxu0 0.0
    %3637 = vmatpush.msra.mxu0 %v3600
    %3638 = vmatmul.f32.gmra.mxu0 %v3596
    %v3639 = vpop.f32.mrf.mxu0
    %v3640 = vadd.f32 %v118, %v3639
    %3641 = vdwg.mxu0
    %v3642 = vmax.f32 %v3620, 0.0
    %v3643 = vmax.f32 %v3640, 0.0
    %v3644 = vld [vmem:[#allocation2] sm:$0xff]
    %v3645 = vld [vmem:[#allocation2 + $0x8] sm:$0xff]
    %s3646 = scalar_lea.vmem [#allocation7], 8704
    %v3647 = vld [vmem:[%s3646] sm:$0xff]
    %v3648 = vld [vmem:[%s3646 + $0x8] sm:$0xff]
    %v3649 = vld [vmem:[%s3646 + $0x10] sm:$0xff]
    %v3650 = vld [vmem:[%s3646 + $0x18] sm:$0xff]
    %v3651 = vld [vmem:[%s3646 + $0x20] sm:$0xff]
    %v3652 = vld [vmem:[%s3646 + $0x28] sm:$0xff]
    %v3653 = vld [vmem:[%s3646 + $0x30] sm:$0xff]
    %v3654 = vld [vmem:[%s3646 + $0x38] sm:$0xff]
    %v3655 = vld [vmem:[%s3646 + $0x40] sm:$0xff]
    %v3656 = vld [vmem:[%s3646 + $0x48] sm:$0xff]
    %v3657 = vld [vmem:[%s3646 + $0x50] sm:$0xff]
    %v3658 = vld [vmem:[%s3646 + $0x58] sm:$0xff]
    %v3659 = vld [vmem:[%s3646 + $0x60] sm:$0xff]
    %v3660 = vld [vmem:[%s3646 + $0x68] sm:$0xff]
    %v3661 = vld [vmem:[%s3646 + $0x70] sm:$0xff]
    %v3662 = vld [vmem:[%s3646 + $0x78] sm:$0xff]
    %v3663 = vld [vmem:[%s3646 + $0x80] sm:$0xff]
    %v3664 = vld [vmem:[%s3646 + $0x88] sm:$0xff]
    %v3665 = vld [vmem:[%s3646 + $0x90] sm:$0xff]
    %v3666 = vld [vmem:[%s3646 + $0x98] sm:$0xff]
    %v3667 = vld [vmem:[%s3646 + $0xa0] sm:$0xff]
    %v3668 = vld [vmem:[%s3646 + $0xa8] sm:$0xff]
    %v3669 = vld [vmem:[%s3646 + $0xb0] sm:$0xff]
    %v3670 = vld [vmem:[%s3646 + $0xb8] sm:$0xff]
    %v3671 = vld [vmem:[%s3646 + $0xc0] sm:$0xff]
    %v3672 = vld [vmem:[%s3646 + $0xc8] sm:$0xff]
    %v3673 = vld [vmem:[%s3646 + $0xd0] sm:$0xff]
    %v3674 = vld [vmem:[%s3646 + $0xd8] sm:$0xff]
    %v3675 = vld [vmem:[%s3646 + $0xe0] sm:$0xff]
    %v3676 = vld [vmem:[%s3646 + $0xe8] sm:$0xff]
    %v3677 = vld [vmem:[%s3646 + $0xf0] sm:$0xff]
    %v3678 = vld [vmem:[%s3646 + $0xf8] sm:$0xff]
    %v3679 = vld [vmem:[%s3646 + $0x100] sm:$0xff]
    %v3680 = vld [vmem:[%s3646 + $0x108] sm:$0xff]
    %v3681 = vld [vmem:[%s3646 + $0x110] sm:$0xff]
    %v3682 = vld [vmem:[%s3646 + $0x118] sm:$0xff]
    %v3683 = vld [vmem:[%s3646 + $0x120] sm:$0xff]
    %v3684 = vld [vmem:[%s3646 + $0x128] sm:$0xff]
    %v3685 = vld [vmem:[%s3646 + $0x130] sm:$0xff]
    %v3686 = vld [vmem:[%s3646 + $0x138] sm:$0xff]
    %v3687 = vld [vmem:[%s3646 + $0x140] sm:$0xff]
    %v3688 = vld [vmem:[%s3646 + $0x148] sm:$0xff]
    %v3689 = vld [vmem:[%s3646 + $0x150] sm:$0xff]
    %v3690 = vld [vmem:[%s3646 + $0x158] sm:$0xff]
    %v3691 = vld [vmem:[%s3646 + $0x160] sm:$0xff]
    %v3692 = vld [vmem:[%s3646 + $0x168] sm:$0xff]
    %v3693 = vld [vmem:[%s3646 + $0x170] sm:$0xff]
    %v3694 = vld [vmem:[%s3646 + $0x178] sm:$0xff]
    %v3695 = vld [vmem:[%s3646 + $0x180] sm:$0xff]
    %v3696 = vld [vmem:[%s3646 + $0x188] sm:$0xff]
    %v3697 = vld [vmem:[%s3646 + $0x190] sm:$0xff]
    %v3698 = vld [vmem:[%s3646 + $0x198] sm:$0xff]
    %v3699 = vld [vmem:[%s3646 + $0x1a0] sm:$0xff]
    %v3700 = vld [vmem:[%s3646 + $0x1a8] sm:$0xff]
    %v3701 = vld [vmem:[%s3646 + $0x1b0] sm:$0xff]
    %v3702 = vld [vmem:[%s3646 + $0x1b8] sm:$0xff]
    %v3703 = vld [vmem:[%s3646 + $0x1c0] sm:$0xff]
    %v3704 = vld [vmem:[%s3646 + $0x1c8] sm:$0xff]
    %v3705 = vld [vmem:[%s3646 + $0x1d0] sm:$0xff]
    %v3706 = vld [vmem:[%s3646 + $0x1d8] sm:$0xff]
    %v3707 = vld [vmem:[%s3646 + $0x1e0] sm:$0xff]
    %v3708 = vld [vmem:[%s3646 + $0x1e8] sm:$0xff]
    %v3709 = vld [vmem:[%s3646 + $0x1f0] sm:$0xff]
    %v3710 = vld [vmem:[%s3646 + $0x1f8] sm:$0xff]
    %3711 = vmatpush.msra.mxu0 %v3677
    %3712 = vmatpush.msra.mxu0 %v3675
    %3713 = vmatpush.msra.mxu0 %v3673
    %3714 = vmatpush.msra.mxu0 %v3671
    %3715 = vmatpush.msra.mxu0 %v3669
    %3716 = vmatpush.msra.mxu0 %v3667
    %3717 = vmatpush.msra.mxu0 %v3665
    %3718 = vmatpush.msra.mxu0 %v3663
    %3719 = vmatpush.msra.mxu0 %v3661
    %3720 = vmatpush.msra.mxu0 %v3659
    %3721 = vmatpush.msra.mxu0 %v3657
    %3722 = vmatpush.msra.mxu0 %v3655
    %3723 = vmatpush.msra.mxu0 %v3653
    %3724 = vmatpush.msra.mxu0 %v3651
    %3725 = vmatpush.msra.mxu0 %v3649
    %3726 = vmatpush.msra.mxu0 %v3647
    %3727 = vmatmul.f32.gmra.mxu0 %v3642
    %v3728 = vpop.f32.mrf.mxu0
    %v3729 = vadd.f32 0.0, %v3728
    %3730 = vdwg.mxu0
    %3731 = vmatpush.msra.mxu0 %v3709
    %3732 = vmatpush.msra.mxu0 %v3707
    %3733 = vmatpush.msra.mxu0 %v3705
    %3734 = vmatpush.msra.mxu0 %v3703
    %3735 = vmatpush.msra.mxu0 %v3701
    %3736 = vmatpush.msra.mxu0 %v3699
    %3737 = vmatpush.msra.mxu0 %v3697
    %3738 = vmatpush.msra.mxu0 %v3695
    %3739 = vmatpush.msra.mxu0 %v3693
    %3740 = vmatpush.msra.mxu0 %v3691
    %3741 = vmatpush.msra.mxu0 %v3689
    %3742 = vmatpush.msra.mxu0 %v3687
    %3743 = vmatpush.msra.mxu0 %v3685
    %3744 = vmatpush.msra.mxu0 %v3683
    %3745 = vmatpush.msra.mxu0 %v3681
    %3746 = vmatpush.msra.mxu0 %v3679
    %3747 = vmatmul.f32.gmra.mxu0 %v3643
    %v3748 = vpop.f32.mrf.mxu0
    %v3749 = vadd.f32 %v3729, %v3748
    %3750 = vdwg.mxu0
    %3751 = vmatpush.msra.mxu0 %v3678
    %3752 = vmatpush.msra.mxu0 %v3676
    %3753 = vmatpush.msra.mxu0 %v3674
    %3754 = vmatpush.msra.mxu0 %v3672
    %3755 = vmatpush.msra.mxu0 %v3670
    %3756 = vmatpush.msra.mxu0 %v3668
    %3757 = vmatpush.msra.mxu0 %v3666
    %3758 = vmatpush.msra.mxu0 %v3664
    %3759 = vmatpush.msra.mxu0 %v3662
    %3760 = vmatpush.msra.mxu0 %v3660
    %3761 = vmatpush.msra.mxu0 %v3658
    %3762 = vmatpush.msra.mxu0 %v3656
    %3763 = vmatpush.msra.mxu0 %v3654
    %3764 = vmatpush.msra.mxu0 %v3652
    %3765 = vmatpush.msra.mxu0 %v3650
    %3766 = vmatpush.msra.mxu0 %v3648
    %3767 = vmatmul.f32.gmra.mxu0 %v3642
    %v3768 = vpop.f32.mrf.mxu0
    %v3769 = vadd.f32 0.0, %v3768
    %3770 = vdwg.mxu0
    %3771 = vmatpush.msra.mxu0 %v3710
    %3772 = vmatpush.msra.mxu0 %v3708
    %3773 = vmatpush.msra.mxu0 %v3706
    %3774 = vmatpush.msra.mxu0 %v3704
    %3775 = vmatpush.msra.mxu0 %v3702
    %3776 = vmatpush.msra.mxu0 %v3700
    %3777 = vmatpush.msra.mxu0 %v3698
    %3778 = vmatpush.msra.mxu0 %v3696
    %3779 = vmatpush.msra.mxu0 %v3694
    %3780 = vmatpush.msra.mxu0 %v3692
    %3781 = vmatpush.msra.mxu0 %v3690
    %3782 = vmatpush.msra.mxu0 %v3688
    %3783 = vmatpush.msra.mxu0 %v3686
    %3784 = vmatpush.msra.mxu0 %v3684
    %3785 = vmatpush.msra.mxu0 %v3682
    %3786 = vmatpush.msra.mxu0 %v3680
    %3787 = vmatmul.f32.gmra.mxu0 %v3643
    %v3788 = vpop.f32.mrf.mxu0
    %v3789 = vadd.f32 %v3769, %v3788
    %3790 = vdwg.mxu0
    %v3791 = vadd.f32 %v3644, %v3749
    %v3792 = vadd.f32 %v3645, %v3789
    %3793 = vst [vmem:[#allocation2] sm:$0xff] %v3791
    %3794 = vst [vmem:[#allocation2 + $0x8] sm:$0xff] %v3792
    %v3795 = vld [vmem:[%s0 + $0x90] sm:$0xff]
    %3796 = vst [vmem:[#allocation1] ss:$2 sm:$0xff] %v114
    %v3797 = vld.sshfl [vmem:[#allocation1] sm:$0xff pattern:$0x75316420]
    %v3798 = vld.sshfl [vmem:[#allocation1 + $0x8] sm:$0xff pattern:$0x75316420]
    %v3800 = vsel %vm126, %v3795, 0
    %v3802 = vsel %vm130, %v3797, 0
    %v3804 = vsel %vm130, %v3798, 0
    %3806 = vmatpush.msra.mxu0 0.0
    %3807 = vmatpush.msra.mxu0 0.0
    %3808 = vmatpush.msra.mxu0 0.0
    %3809 = vmatpush.msra.mxu0 0.0
    %3810 = vmatpush.msra.mxu0 0.0
    %3811 = vmatpush.msra.mxu0 0.0
    %3812 = vmatpush.msra.mxu0 0.0
    %3813 = vmatpush.msra.mxu0 0.0
    %3814 = vmatpush.msra.mxu0 0.0
    %3815 = vmatpush.msra.mxu0 0.0
    %3816 = vmatpush.msra.mxu0 0.0
    %3817 = vmatpush.msra.mxu0 0.0
    %3818 = vmatpush.msra.mxu0 0.0
    %3819 = vmatpush.msra.mxu0 0.0
    %3820 = vmatpush.msra.mxu0 0.0
    %3821 = vmatpush.msra.mxu0 %v3802
    %3822 = vmatmul.f32.gmra.mxu0 %v3800
    %v3823 = vpop.f32.mrf.mxu0
    %v3824 = vadd.f32 %v117, %v3823
    %3825 = vdwg.mxu0
    %3826 = vmatpush.msra.mxu0 0.0
    %3827 = vmatpush.msra.mxu0 0.0
    %3828 = vmatpush.msra.mxu0 0.0
    %3829 = vmatpush.msra.mxu0 0.0
    %3830 = vmatpush.msra.mxu0 0.0
    %3831 = vmatpush.msra.mxu0 0.0
    %3832 = vmatpush.msra.mxu0 0.0
    %3833 = vmatpush.msra.mxu0 0.0
    %3834 = vmatpush.msra.mxu0 0.0
    %3835 = vmatpush.msra.mxu0 0.0
    %3836 = vmatpush.msra.mxu0 0.0
    %3837 = vmatpush.msra.mxu0 0.0
    %3838 = vmatpush.msra.mxu0 0.0
    %3839 = vmatpush.msra.mxu0 0.0
    %3840 = vmatpush.msra.mxu0 0.0
    %3841 = vmatpush.msra.mxu0 %v3804
    %3842 = vmatmul.f32.gmra.mxu0 %v3800
    %v3843 = vpop.f32.mrf.mxu0
    %v3844 = vadd.f32 %v118, %v3843
    %3845 = vdwg.mxu0
    %v3846 = vmax.f32 %v3824, 0.0
    %v3847 = vmax.f32 %v3844, 0.0
    %v3848 = vld [vmem:[#allocation2] sm:$0xff]
    %v3849 = vld [vmem:[#allocation2 + $0x8] sm:$0xff]
    %s3850 = scalar_lea.vmem [#allocation7], 9216
    %v3851 = vld [vmem:[%s3850] sm:$0xff]
    %v3852 = vld [vmem:[%s3850 + $0x8] sm:$0xff]
    %v3853 = vld [vmem:[%s3850 + $0x10] sm:$0xff]
    %v3854 = vld [vmem:[%s3850 + $0x18] sm:$0xff]
    %v3855 = vld [vmem:[%s3850 + $0x20] sm:$0xff]
    %v3856 = vld [vmem:[%s3850 + $0x28] sm:$0xff]
    %v3857 = vld [vmem:[%s3850 + $0x30] sm:$0xff]
    %v3858 = vld [vmem:[%s3850 + $0x38] sm:$0xff]
    %v3859 = vld [vmem:[%s3850 + $0x40] sm:$0xff]
    %v3860 = vld [vmem:[%s3850 + $0x48] sm:$0xff]
    %v3861 = vld [vmem:[%s3850 + $0x50] sm:$0xff]
    %v3862 = vld [vmem:[%s3850 + $0x58] sm:$0xff]
    %v3863 = vld [vmem:[%s3850 + $0x60] sm:$0xff]
    %v3864 = vld [vmem:[%s3850 + $0x68] sm:$0xff]
    %v3865 = vld [vmem:[%s3850 + $0x70] sm:$0xff]
    %v3866 = vld [vmem:[%s3850 + $0x78] sm:$0xff]
    %v3867 = vld [vmem:[%s3850 + $0x80] sm:$0xff]
    %v3868 = vld [vmem:[%s3850 + $0x88] sm:$0xff]
    %v3869 = vld [vmem:[%s3850 + $0x90] sm:$0xff]
    %v3870 = vld [vmem:[%s3850 + $0x98] sm:$0xff]
    %v3871 = vld [vmem:[%s3850 + $0xa0] sm:$0xff]
    %v3872 = vld [vmem:[%s3850 + $0xa8] sm:$0xff]
    %v3873 = vld [vmem:[%s3850 + $0xb0] sm:$0xff]
    %v3874 = vld [vmem:[%s3850 + $0xb8] sm:$0xff]
    %v3875 = vld [vmem:[%s3850 + $0xc0] sm:$0xff]
    %v3876 = vld [vmem:[%s3850 + $0xc8] sm:$0xff]
    %v3877 = vld [vmem:[%s3850 + $0xd0] sm:$0xff]
    %v3878 = vld [vmem:[%s3850 + $0xd8] sm:$0xff]
    %v3879 = vld [vmem:[%s3850 + $0xe0] sm:$0xff]
    %v3880 = vld [vmem:[%s3850 + $0xe8] sm:$0xff]
    %v3881 = vld [vmem:[%s3850 + $0xf0] sm:$0xff]
    %v3882 = vld [vmem:[%s3850 + $0xf8] sm:$0xff]
    %v3883 = vld [vmem:[%s3850 + $0x100] sm:$0xff]
    %v3884 = vld [vmem:[%s3850 + $0x108] sm:$0xff]
    %v3885 = vld [vmem:[%s3850 + $0x110] sm:$0xff]
    %v3886 = vld [vmem:[%s3850 + $0x118] sm:$0xff]
    %v3887 = vld [vmem:[%s3850 + $0x120] sm:$0xff]
    %v3888 = vld [vmem:[%s3850 + $0x128] sm:$0xff]
    %v3889 = vld [vmem:[%s3850 + $0x130] sm:$0xff]
    %v3890 = vld [vmem:[%s3850 + $0x138] sm:$0xff]
    %v3891 = vld [vmem:[%s3850 + $0x140] sm:$0xff]
    %v3892 = vld [vmem:[%s3850 + $0x148] sm:$0xff]
    %v3893 = vld [vmem:[%s3850 + $0x150] sm:$0xff]
    %v3894 = vld [vmem:[%s3850 + $0x158] sm:$0xff]
    %v3895 = vld [vmem:[%s3850 + $0x160] sm:$0xff]
    %v3896 = vld [vmem:[%s3850 + $0x168] sm:$0xff]
    %v3897 = vld [vmem:[%s3850 + $0x170] sm:$0xff]
    %v3898 = vld [vmem:[%s3850 + $0x178] sm:$0xff]
    %v3899 = vld [vmem:[%s3850 + $0x180] sm:$0xff]
    %v3900 = vld [vmem:[%s3850 + $0x188] sm:$0xff]
    %v3901 = vld [vmem:[%s3850 + $0x190] sm:$0xff]
    %v3902 = vld [vmem:[%s3850 + $0x198] sm:$0xff]
    %v3903 = vld [vmem:[%s3850 + $0x1a0] sm:$0xff]
    %v3904 = vld [vmem:[%s3850 + $0x1a8] sm:$0xff]
    %v3905 = vld [vmem:[%s3850 + $0x1b0] sm:$0xff]
    %v3906 = vld [vmem:[%s3850 + $0x1b8] sm:$0xff]
    %v3907 = vld [vmem:[%s3850 + $0x1c0] sm:$0xff]
    %v3908 = vld [vmem:[%s3850 + $0x1c8] sm:$0xff]
    %v3909 = vld [vmem:[%s3850 + $0x1d0] sm:$0xff]
    %v3910 = vld [vmem:[%s3850 + $0x1d8] sm:$0xff]
    %v3911 = vld [vmem:[%s3850 + $0x1e0] sm:$0xff]
    %v3912 = vld [vmem:[%s3850 + $0x1e8] sm:$0xff]
    %v3913 = vld [vmem:[%s3850 + $0x1f0] sm:$0xff]
    %v3914 = vld [vmem:[%s3850 + $0x1f8] sm:$0xff]
    %3915 = vmatpush.msra.mxu0 %v3881
    %3916 = vmatpush.msra.mxu0 %v3879
    %3917 = vmatpush.msra.mxu0 %v3877
    %3918 = vmatpush.msra.mxu0 %v3875
    %3919 = vmatpush.msra.mxu0 %v3873
    %3920 = vmatpush.msra.mxu0 %v3871
    %3921 = vmatpush.msra.mxu0 %v3869
    %3922 = vmatpush.msra.mxu0 %v3867
    %3923 = vmatpush.msra.mxu0 %v3865
    %3924 = vmatpush.msra.mxu0 %v3863
    %3925 = vmatpush.msra.mxu0 %v3861
    %3926 = vmatpush.msra.mxu0 %v3859
    %3927 = vmatpush.msra.mxu0 %v3857
    %3928 = vmatpush.msra.mxu0 %v3855
    %3929 = vmatpush.msra.mxu0 %v3853
    %3930 = vmatpush.msra.mxu0 %v3851
    %3931 = vmatmul.f32.gmra.mxu0 %v3846
    %v3932 = vpop.f32.mrf.mxu0
    %v3933 = vadd.f32 0.0, %v3932
    %3934 = vdwg.mxu0
    %3935 = vmatpush.msra.mxu0 %v3913
    %3936 = vmatpush.msra.mxu0 %v3911
    %3937 = vmatpush.msra.mxu0 %v3909
    %3938 = vmatpush.msra.mxu0 %v3907
    %3939 = vmatpush.msra.mxu0 %v3905
    %3940 = vmatpush.msra.mxu0 %v3903
    %3941 = vmatpush.msra.mxu0 %v3901
    %3942 = vmatpush.msra.mxu0 %v3899
    %3943 = vmatpush.msra.mxu0 %v3897
    %3944 = vmatpush.msra.mxu0 %v3895
    %3945 = vmatpush.msra.mxu0 %v3893
    %3946 = vmatpush.msra.mxu0 %v3891
    %3947 = vmatpush.msra.mxu0 %v3889
    %3948 = vmatpush.msra.mxu0 %v3887
    %3949 = vmatpush.msra.mxu0 %v3885
    %3950 = vmatpush.msra.mxu0 %v3883
    %3951 = vmatmul.f32.gmra.mxu0 %v3847
    %v3952 = vpop.f32.mrf.mxu0
    %v3953 = vadd.f32 %v3933, %v3952
    %3954 = vdwg.mxu0
    %3955 = vmatpush.msra.mxu0 %v3882
    %3956 = vmatpush.msra.mxu0 %v3880
    %3957 = vmatpush.msra.mxu0 %v3878
    %3958 = vmatpush.msra.mxu0 %v3876
    %3959 = vmatpush.msra.mxu0 %v3874
    %3960 = vmatpush.msra.mxu0 %v3872
    %3961 = vmatpush.msra.mxu0 %v3870
    %3962 = vmatpush.msra.mxu0 %v3868
    %3963 = vmatpush.msra.mxu0 %v3866
    %3964 = vmatpush.msra.mxu0 %v3864
    %3965 = vmatpush.msra.mxu0 %v3862
    %3966 = vmatpush.msra.mxu0 %v3860
    %3967 = vmatpush.msra.mxu0 %v3858
    %3968 = vmatpush.msra.mxu0 %v3856
    %3969 = vmatpush.msra.mxu0 %v3854
    %3970 = vmatpush.msra.mxu0 %v3852
    %3971 = vmatmul.f32.gmra.mxu0 %v3846
    %v3972 = vpop.f32.mrf.mxu0
    %v3973 = vadd.f32 0.0, %v3972
    %3974 = vdwg.mxu0
    %3975 = vmatpush.msra.mxu0 %v3914
    %3976 = vmatpush.msra.mxu0 %v3912
    %3977 = vmatpush.msra.mxu0 %v3910
    %3978 = vmatpush.msra.mxu0 %v3908
    %3979 = vmatpush.msra.mxu0 %v3906
    %3980 = vmatpush.msra.mxu0 %v3904
    %3981 = vmatpush.msra.mxu0 %v3902
    %3982 = vmatpush.msra.mxu0 %v3900
    %3983 = vmatpush.msra.mxu0 %v3898
    %3984 = vmatpush.msra.mxu0 %v3896
    %3985 = vmatpush.msra.mxu0 %v3894
    %3986 = vmatpush.msra.mxu0 %v3892
    %3987 = vmatpush.msra.mxu0 %v3890
    %3988 = vmatpush.msra.mxu0 %v3888
    %3989 = vmatpush.msra.mxu0 %v3886
    %3990 = vmatpush.msra.mxu0 %v3884
    %3991 = vmatmul.f32.gmra.mxu0 %v3847
    %v3992 = vpop.f32.mrf.mxu0
    %v3993 = vadd.f32 %v3973, %v3992
    %3994 = vdwg.mxu0
    %v3995 = vadd.f32 %v3848, %v3953
    %v3996 = vadd.f32 %v3849, %v3993
    %3997 = vst [vmem:[#allocation2] sm:$0xff] %v3995
    %3998 = vst [vmem:[#allocation2 + $0x8] sm:$0xff] %v3996
    %v3999 = vld [vmem:[%s0 + $0x98] sm:$0xff]
    %4000 = vst [vmem:[#allocation1] ss:$2 sm:$0xff] %v114
    %v4001 = vld.sshfl [vmem:[#allocation1] sm:$0xff pattern:$0x75316420]
    %v4002 = vld.sshfl [vmem:[#allocation1 + $0x8] sm:$0xff pattern:$0x75316420]
    %v4004 = vsel %vm126, %v3999, 0
    %v4006 = vsel %vm130, %v4001, 0
    %v4008 = vsel %vm130, %v4002, 0
    %4010 = vmatpush.msra.mxu0 0.0
    %4011 = vmatpush.msra.mxu0 0.0
    %4012 = vmatpush.msra.mxu0 0.0
    %4013 = vmatpush.msra.mxu0 0.0
    %4014 = vmatpush.msra.mxu0 0.0
    %4015 = vmatpush.msra.mxu0 0.0
    %4016 = vmatpush.msra.mxu0 0.0
    %4017 = vmatpush.msra.mxu0 0.0
    %4018 = vmatpush.msra.mxu0 0.0
    %4019 = vmatpush.msra.mxu0 0.0
    %4020 = vmatpush.msra.mxu0 0.0
    %4021 = vmatpush.msra.mxu0 0.0
    %4022 = vmatpush.msra.mxu0 0.0
    %4023 = vmatpush.msra.mxu0 0.0
    %4024 = vmatpush.msra.mxu0 0.0
    %4025 = vmatpush.msra.mxu0 %v4006
    %4026 = vmatmul.f32.gmra.mxu0 %v4004
    %v4027 = vpop.f32.mrf.mxu0
    %v4028 = vadd.f32 %v117, %v4027
    %4029 = vdwg.mxu0
    %4030 = vmatpush.msra.mxu0 0.0
    %4031 = vmatpush.msra.mxu0 0.0
    %4032 = vmatpush.msra.mxu0 0.0
    %4033 = vmatpush.msra.mxu0 0.0
    %4034 = vmatpush.msra.mxu0 0.0
    %4035 = vmatpush.msra.mxu0 0.0
    %4036 = vmatpush.msra.mxu0 0.0
    %4037 = vmatpush.msra.mxu0 0.0
    %4038 = vmatpush.msra.mxu0 0.0
    %4039 = vmatpush.msra.mxu0 0.0
    %4040 = vmatpush.msra.mxu0 0.0
    %4041 = vmatpush.msra.mxu0 0.0
    %4042 = vmatpush.msra.mxu0 0.0
    %4043 = vmatpush.msra.mxu0 0.0
    %4044 = vmatpush.msra.mxu0 0.0
    %4045 = vmatpush.msra.mxu0 %v4008
    %4046 = vmatmul.f32.gmra.mxu0 %v4004
    %v4047 = vpop.f32.mrf.mxu0
    %v4048 = vadd.f32 %v118, %v4047
    %4049 = vdwg.mxu0
    %v4050 = vmax.f32 %v4028, 0.0
    %v4051 = vmax.f32 %v4048, 0.0
    %v4052 = vld [vmem:[#allocation2] sm:$0xff]
    %v4053 = vld [vmem:[#allocation2 + $0x8] sm:$0xff]
    %s4054 = scalar_lea.vmem [#allocation7], 9728
    %v4055 = vld [vmem:[%s4054] sm:$0xff]
    %v4056 = vld [vmem:[%s4054 + $0x8] sm:$0xff]
    %v4057 = vld [vmem:[%s4054 + $0x10] sm:$0xff]
    %v4058 = vld [vmem:[%s4054 + $0x18] sm:$0xff]
    %v4059 = vld [vmem:[%s4054 + $0x20] sm:$0xff]
    %v4060 = vld [vmem:[%s4054 + $0x28] sm:$0xff]
    %v4061 = vld [vmem:[%s4054 + $0x30] sm:$0xff]
    %v4062 = vld [vmem:[%s4054 + $0x38] sm:$0xff]
    %v4063 = vld [vmem:[%s4054 + $0x40] sm:$0xff]
    %v4064 = vld [vmem:[%s4054 + $0x48] sm:$0xff]
    %v4065 = vld [vmem:[%s4054 + $0x50] sm:$0xff]
    %v4066 = vld [vmem:[%s4054 + $0x58] sm:$0xff]
    %v4067 = vld [vmem:[%s4054 + $0x60] sm:$0xff]
    %v4068 = vld [vmem:[%s4054 + $0x68] sm:$0xff]
    %v4069 = vld [vmem:[%s4054 + $0x70] sm:$0xff]
    %v4070 = vld [vmem:[%s4054 + $0x78] sm:$0xff]
    %v4071 = vld [vmem:[%s4054 + $0x80] sm:$0xff]
    %v4072 = vld [vmem:[%s4054 + $0x88] sm:$0xff]
    %v4073 = vld [vmem:[%s4054 + $0x90] sm:$0xff]
    %v4074 = vld [vmem:[%s4054 + $0x98] sm:$0xff]
    %v4075 = vld [vmem:[%s4054 + $0xa0] sm:$0xff]
    %v4076 = vld [vmem:[%s4054 + $0xa8] sm:$0xff]
    %v4077 = vld [vmem:[%s4054 + $0xb0] sm:$0xff]
    %v4078 = vld [vmem:[%s4054 + $0xb8] sm:$0xff]
    %v4079 = vld [vmem:[%s4054 + $0xc0] sm:$0xff]
    %v4080 = vld [vmem:[%s4054 + $0xc8] sm:$0xff]
    %v4081 = vld [vmem:[%s4054 + $0xd0] sm:$0xff]
    %v4082 = vld [vmem:[%s4054 + $0xd8] sm:$0xff]
    %v4083 = vld [vmem:[%s4054 + $0xe0] sm:$0xff]
    %v4084 = vld [vmem:[%s4054 + $0xe8] sm:$0xff]
    %v4085 = vld [vmem:[%s4054 + $0xf0] sm:$0xff]
    %v4086 = vld [vmem:[%s4054 + $0xf8] sm:$0xff]
    %v4087 = vld [vmem:[%s4054 + $0x100] sm:$0xff]
    %v4088 = vld [vmem:[%s4054 + $0x108] sm:$0xff]
    %v4089 = vld [vmem:[%s4054 + $0x110] sm:$0xff]
    %v4090 = vld [vmem:[%s4054 + $0x118] sm:$0xff]
    %v4091 = vld [vmem:[%s4054 + $0x120] sm:$0xff]
    %v4092 = vld [vmem:[%s4054 + $0x128] sm:$0xff]
    %v4093 = vld [vmem:[%s4054 + $0x130] sm:$0xff]
    %v4094 = vld [vmem:[%s4054 + $0x138] sm:$0xff]
    %v4095 = vld [vmem:[%s4054 + $0x140] sm:$0xff]
    %v4096 = vld [vmem:[%s4054 + $0x148] sm:$0xff]
    %v4097 = vld [vmem:[%s4054 + $0x150] sm:$0xff]
    %v4098 = vld [vmem:[%s4054 + $0x158] sm:$0xff]
    %v4099 = vld [vmem:[%s4054 + $0x160] sm:$0xff]
    %v4100 = vld [vmem:[%s4054 + $0x168] sm:$0xff]
    %v4101 = vld [vmem:[%s4054 + $0x170] sm:$0xff]
    %v4102 = vld [vmem:[%s4054 + $0x178] sm:$0xff]
    %v4103 = vld [vmem:[%s4054 + $0x180] sm:$0xff]
    %v4104 = vld [vmem:[%s4054 + $0x188] sm:$0xff]
    %v4105 = vld [vmem:[%s4054 + $0x190] sm:$0xff]
    %v4106 = vld [vmem:[%s4054 + $0x198] sm:$0xff]
    %v4107 = vld [vmem:[%s4054 + $0x1a0] sm:$0xff]
    %v4108 = vld [vmem:[%s4054 + $0x1a8] sm:$0xff]
    %v4109 = vld [vmem:[%s4054 + $0x1b0] sm:$0xff]
    %v4110 = vld [vmem:[%s4054 + $0x1b8] sm:$0xff]
    %v4111 = vld [vmem:[%s4054 + $0x1c0] sm:$0xff]
    %v4112 = vld [vmem:[%s4054 + $0x1c8] sm:$0xff]
    %v4113 = vld [vmem:[%s4054 + $0x1d0] sm:$0xff]
    %v4114 = vld [vmem:[%s4054 + $0x1d8] sm:$0xff]
    %v4115 = vld [vmem:[%s4054 + $0x1e0] sm:$0xff]
    %v4116 = vld [vmem:[%s4054 + $0x1e8] sm:$0xff]
    %v4117 = vld [vmem:[%s4054 + $0x1f0] sm:$0xff]
    %v4118 = vld [vmem:[%s4054 + $0x1f8] sm:$0xff]
    %4119 = vmatpush.msra.mxu0 %v4085
    %4120 = vmatpush.msra.mxu0 %v4083
    %4121 = vmatpush.msra.mxu0 %v4081
    %4122 = vmatpush.msra.mxu0 %v4079
    %4123 = vmatpush.msra.mxu0 %v4077
    %4124 = vmatpush.msra.mxu0 %v4075
    %4125 = vmatpush.msra.mxu0 %v4073
    %4126 = vmatpush.msra.mxu0 %v4071
    %4127 = vmatpush.msra.mxu0 %v4069
    %4128 = vmatpush.msra.mxu0 %v4067
    %4129 = vmatpush.msra.mxu0 %v4065
    %4130 = vmatpush.msra.mxu0 %v4063
    %4131 = vmatpush.msra.mxu0 %v4061
    %4132 = vmatpush.msra.mxu0 %v4059
    %4133 = vmatpush.msra.mxu0 %v4057
    %4134 = vmatpush.msra.mxu0 %v4055
    %4135 = vmatmul.f32.gmra.mxu0 %v4050
    %v4136 = vpop.f32.mrf.mxu0
    %v4137 = vadd.f32 0.0, %v4136
    %4138 = vdwg.mxu0
    %4139 = vmatpush.msra.mxu0 %v4117
    %4140 = vmatpush.msra.mxu0 %v4115
    %4141 = vmatpush.msra.mxu0 %v4113
    %4142 = vmatpush.msra.mxu0 %v4111
    %4143 = vmatpush.msra.mxu0 %v4109
    %4144 = vmatpush.msra.mxu0 %v4107
    %4145 = vmatpush.msra.mxu0 %v4105
    %4146 = vmatpush.msra.mxu0 %v4103
    %4147 = vmatpush.msra.mxu0 %v4101
    %4148 = vmatpush.msra.mxu0 %v4099
    %4149 = vmatpush.msra.mxu0 %v4097
    %4150 = vmatpush.msra.mxu0 %v4095
    %4151 = vmatpush.msra.mxu0 %v4093
    %4152 = vmatpush.msra.mxu0 %v4091
    %4153 = vmatpush.msra.mxu0 %v4089
    %4154 = vmatpush.msra.mxu0 %v4087
    %4155 = vmatmul.f32.gmra.mxu0 %v4051
    %v4156 = vpop.f32.mrf.mxu0
    %v4157 = vadd.f32 %v4137, %v4156
    %4158 = vdwg.mxu0
    %4159 = vmatpush.msra.mxu0 %v4086
    %4160 = vmatpush.msra.mxu0 %v4084
    %4161 = vmatpush.msra.mxu0 %v4082
    %4162 = vmatpush.msra.mxu0 %v4080
    %4163 = vmatpush.msra.mxu0 %v4078
    %4164 = vmatpush.msra.mxu0 %v4076
    %4165 = vmatpush.msra.mxu0 %v4074
    %4166 = vmatpush.msra.mxu0 %v4072
    %4167 = vmatpush.msra.mxu0 %v4070
    %4168 = vmatpush.msra.mxu0 %v4068
    %4169 = vmatpush.msra.mxu0 %v4066
    %4170 = vmatpush.msra.mxu0 %v4064
    %4171 = vmatpush.msra.mxu0 %v4062
    %4172 = vmatpush.msra.mxu0 %v4060
    %4173 = vmatpush.msra.mxu0 %v4058
    %4174 = vmatpush.msra.mxu0 %v4056
    %4175 = vmatmul.f32.gmra.mxu0 %v4050
    %v4176 = vpop.f32.mrf.mxu0
    %v4177 = vadd.f32 0.0, %v4176
    %4178 = vdwg.mxu0
    %4179 = vmatpush.msra.mxu0 %v4118
    %4180 = vmatpush.msra.mxu0 %v4116
    %4181 = vmatpush.msra.mxu0 %v4114
    %4182 = vmatpush.msra.mxu0 %v4112
    %4183 = vmatpush.msra.mxu0 %v4110
    %4184 = vmatpush.msra.mxu0 %v4108
    %4185 = vmatpush.msra.mxu0 %v4106
    %4186 = vmatpush.msra.mxu0 %v4104
    %4187 = vmatpush.msra.mxu0 %v4102
    %4188 = vmatpush.msra.mxu0 %v4100
    %4189 = vmatpush.msra.mxu0 %v4098
    %4190 = vmatpush.msra.mxu0 %v4096
    %4191 = vmatpush.msra.mxu0 %v4094
    %4192 = vmatpush.msra.mxu0 %v4092
    %4193 = vmatpush.msra.mxu0 %v4090
    %4194 = vmatpush.msra.mxu0 %v4088
    %4195 = vmatmul.f32.gmra.mxu0 %v4051
    %v4196 = vpop.f32.mrf.mxu0
    %v4197 = vadd.f32 %v4177, %v4196
    %4198 = vdwg.mxu0
    %v4199 = vadd.f32 %v4052, %v4157
    %v4200 = vadd.f32 %v4053, %v4197
    %4201 = vst [vmem:[#allocation2] sm:$0xff] %v4199
    %4202 = vst [vmem:[#allocation2 + $0x8] sm:$0xff] %v4200
    %v4203 = vld [vmem:[%s0 + $0xa0] sm:$0xff]
    %4204 = vst [vmem:[#allocation1] ss:$2 sm:$0xff] %v114
    %v4205 = vld.sshfl [vmem:[#allocation1] sm:$0xff pattern:$0x75316420]
    %v4206 = vld.sshfl [vmem:[#allocation1 + $0x8] sm:$0xff pattern:$0x75316420]
    %v4208 = vsel %vm126, %v4203, 0
    %v4210 = vsel %vm130, %v4205, 0
    %v4212 = vsel %vm130, %v4206, 0
    %4214 = vmatpush.msra.mxu0 0.0
    %4215 = vmatpush.msra.mxu0 0.0
    %4216 = vmatpush.msra.mxu0 0.0
    %4217 = vmatpush.msra.mxu0 0.0
    %4218 = vmatpush.msra.mxu0 0.0
    %4219 = vmatpush.msra.mxu0 0.0
    %4220 = vmatpush.msra.mxu0 0.0
    %4221 = vmatpush.msra.mxu0 0.0
    %4222 = vmatpush.msra.mxu0 0.0
    %4223 = vmatpush.msra.mxu0 0.0
    %4224 = vmatpush.msra.mxu0 0.0
    %4225 = vmatpush.msra.mxu0 0.0
    %4226 = vmatpush.msra.mxu0 0.0
    %4227 = vmatpush.msra.mxu0 0.0
    %4228 = vmatpush.msra.mxu0 0.0
    %4229 = vmatpush.msra.mxu0 %v4210
    %4230 = vmatmul.f32.gmra.mxu0 %v4208
    %v4231 = vpop.f32.mrf.mxu0
    %v4232 = vadd.f32 %v117, %v4231
    %4233 = vdwg.mxu0
    %4234 = vmatpush.msra.mxu0 0.0
    %4235 = vmatpush.msra.mxu0 0.0
    %4236 = vmatpush.msra.mxu0 0.0
    %4237 = vmatpush.msra.mxu0 0.0
    %4238 = vmatpush.msra.mxu0 0.0
    %4239 = vmatpush.msra.mxu0 0.0
    %4240 = vmatpush.msra.mxu0 0.0
    %4241 = vmatpush.msra.mxu0 0.0
    %4242 = vmatpush.msra.mxu0 0.0
    %4243 = vmatpush.msra.mxu0 0.0
    %4244 = vmatpush.msra.mxu0 0.0
    %4245 = vmatpush.msra.mxu0 0.0
    %4246 = vmatpush.msra.mxu0 0.0
    %4247 = vmatpush.msra.mxu0 0.0
    %4248 = vmatpush.msra.mxu0 0.0
    %4249 = vmatpush.msra.mxu0 %v4212
    %4250 = vmatmul.f32.gmra.mxu0 %v4208
    %v4251 = vpop.f32.mrf.mxu0
    %v4252 = vadd.f32 %v118, %v4251
    %4253 = vdwg.mxu0
    %v4254 = vmax.f32 %v4232, 0.0
    %v4255 = vmax.f32 %v4252, 0.0
    %v4256 = vld [vmem:[#allocation2] sm:$0xff]
    %v4257 = vld [vmem:[#allocation2 + $0x8] sm:$0xff]
    %s4258 = scalar_lea.vmem [#allocation7], 10240
    %v4259 = vld [vmem:[%s4258] sm:$0xff]
    %v4260 = vld [vmem:[%s4258 + $0x8] sm:$0xff]
    %v4261 = vld [vmem:[%s4258 + $0x10] sm:$0xff]
    %v4262 = vld [vmem:[%s4258 + $0x18] sm:$0xff]
    %v4263 = vld [vmem:[%s4258 + $0x20] sm:$0xff]
    %v4264 = vld [vmem:[%s4258 + $0x28] sm:$0xff]
    %v4265 = vld [vmem:[%s4258 + $0x30] sm:$0xff]
    %v4266 = vld [vmem:[%s4258 + $0x38] sm:$0xff]
    %v4267 = vld [vmem:[%s4258 + $0x40] sm:$0xff]
    %v4268 = vld [vmem:[%s4258 + $0x48] sm:$0xff]
    %v4269 = vld [vmem:[%s4258 + $0x50] sm:$0xff]
    %v4270 = vld [vmem:[%s4258 + $0x58] sm:$0xff]
    %v4271 = vld [vmem:[%s4258 + $0x60] sm:$0xff]
    %v4272 = vld [vmem:[%s4258 + $0x68] sm:$0xff]
    %v4273 = vld [vmem:[%s4258 + $0x70] sm:$0xff]
    %v4274 = vld [vmem:[%s4258 + $0x78] sm:$0xff]
    %v4275 = vld [vmem:[%s4258 + $0x80] sm:$0xff]
    %v4276 = vld [vmem:[%s4258 + $0x88] sm:$0xff]
    %v4277 = vld [vmem:[%s4258 + $0x90] sm:$0xff]
    %v4278 = vld [vmem:[%s4258 + $0x98] sm:$0xff]
    %v4279 = vld [vmem:[%s4258 + $0xa0] sm:$0xff]
    %v4280 = vld [vmem:[%s4258 + $0xa8] sm:$0xff]
    %v4281 = vld [vmem:[%s4258 + $0xb0] sm:$0xff]
    %v4282 = vld [vmem:[%s4258 + $0xb8] sm:$0xff]
    %v4283 = vld [vmem:[%s4258 + $0xc0] sm:$0xff]
    %v4284 = vld [vmem:[%s4258 + $0xc8] sm:$0xff]
    %v4285 = vld [vmem:[%s4258 + $0xd0] sm:$0xff]
    %v4286 = vld [vmem:[%s4258 + $0xd8] sm:$0xff]
    %v4287 = vld [vmem:[%s4258 + $0xe0] sm:$0xff]
    %v4288 = vld [vmem:[%s4258 + $0xe8] sm:$0xff]
    %v4289 = vld [vmem:[%s4258 + $0xf0] sm:$0xff]
    %v4290 = vld [vmem:[%s4258 + $0xf8] sm:$0xff]
    %v4291 = vld [vmem:[%s4258 + $0x100] sm:$0xff]
    %v4292 = vld [vmem:[%s4258 + $0x108] sm:$0xff]
    %v4293 = vld [vmem:[%s4258 + $0x110] sm:$0xff]
    %v4294 = vld [vmem:[%s4258 + $0x118] sm:$0xff]
    %v4295 = vld [vmem:[%s4258 + $0x120] sm:$0xff]
    %v4296 = vld [vmem:[%s4258 + $0x128] sm:$0xff]
    %v4297 = vld [vmem:[%s4258 + $0x130] sm:$0xff]
    %v4298 = vld [vmem:[%s4258 + $0x138] sm:$0xff]
    %v4299 = vld [vmem:[%s4258 + $0x140] sm:$0xff]
    %v4300 = vld [vmem:[%s4258 + $0x148] sm:$0xff]
    %v4301 = vld [vmem:[%s4258 + $0x150] sm:$0xff]
    %v4302 = vld [vmem:[%s4258 + $0x158] sm:$0xff]
    %v4303 = vld [vmem:[%s4258 + $0x160] sm:$0xff]
    %v4304 = vld [vmem:[%s4258 + $0x168] sm:$0xff]
    %v4305 = vld [vmem:[%s4258 + $0x170] sm:$0xff]
    %v4306 = vld [vmem:[%s4258 + $0x178] sm:$0xff]
    %v4307 = vld [vmem:[%s4258 + $0x180] sm:$0xff]
    %v4308 = vld [vmem:[%s4258 + $0x188] sm:$0xff]
    %v4309 = vld [vmem:[%s4258 + $0x190] sm:$0xff]
    %v4310 = vld [vmem:[%s4258 + $0x198] sm:$0xff]
    %v4311 = vld [vmem:[%s4258 + $0x1a0] sm:$0xff]
    %v4312 = vld [vmem:[%s4258 + $0x1a8] sm:$0xff]
    %v4313 = vld [vmem:[%s4258 + $0x1b0] sm:$0xff]
    %v4314 = vld [vmem:[%s4258 + $0x1b8] sm:$0xff]
    %v4315 = vld [vmem:[%s4258 + $0x1c0] sm:$0xff]
    %v4316 = vld [vmem:[%s4258 + $0x1c8] sm:$0xff]
    %v4317 = vld [vmem:[%s4258 + $0x1d0] sm:$0xff]
    %v4318 = vld [vmem:[%s4258 + $0x1d8] sm:$0xff]
    %v4319 = vld [vmem:[%s4258 + $0x1e0] sm:$0xff]
    %v4320 = vld [vmem:[%s4258 + $0x1e8] sm:$0xff]
    %v4321 = vld [vmem:[%s4258 + $0x1f0] sm:$0xff]
    %v4322 = vld [vmem:[%s4258 + $0x1f8] sm:$0xff]
    %4323 = vmatpush.msra.mxu0 %v4289
    %4324 = vmatpush.msra.mxu0 %v4287
    %4325 = vmatpush.msra.mxu0 %v4285
    %4326 = vmatpush.msra.mxu0 %v4283
    %4327 = vmatpush.msra.mxu0 %v4281
    %4328 = vmatpush.msra.mxu0 %v4279
    %4329 = vmatpush.msra.mxu0 %v4277
    %4330 = vmatpush.msra.mxu0 %v4275
    %4331 = vmatpush.msra.mxu0 %v4273
    %4332 = vmatpush.msra.mxu0 %v4271
    %4333 = vmatpush.msra.mxu0 %v4269
    %4334 = vmatpush.msra.mxu0 %v4267
    %4335 = vmatpush.msra.mxu0 %v4265
    %4336 = vmatpush.msra.mxu0 %v4263
    %4337 = vmatpush.msra.mxu0 %v4261
    %4338 = vmatpush.msra.mxu0 %v4259
    %4339 = vmatmul.f32.gmra.mxu0 %v4254
    %v4340 = vpop.f32.mrf.mxu0
    %v4341 = vadd.f32 0.0, %v4340
    %4342 = vdwg.mxu0
    %4343 = vmatpush.msra.mxu0 %v4321
    %4344 = vmatpush.msra.mxu0 %v4319
    %4345 = vmatpush.msra.mxu0 %v4317
    %4346 = vmatpush.msra.mxu0 %v4315
    %4347 = vmatpush.msra.mxu0 %v4313
    %4348 = vmatpush.msra.mxu0 %v4311
    %4349 = vmatpush.msra.mxu0 %v4309
    %4350 = vmatpush.msra.mxu0 %v4307
    %4351 = vmatpush.msra.mxu0 %v4305
    %4352 = vmatpush.msra.mxu0 %v4303
    %4353 = vmatpush.msra.mxu0 %v4301
    %4354 = vmatpush.msra.mxu0 %v4299
    %4355 = vmatpush.msra.mxu0 %v4297
    %4356 = vmatpush.msra.mxu0 %v4295
    %4357 = vmatpush.msra.mxu0 %v4293
    %4358 = vmatpush.msra.mxu0 %v4291
    %4359 = vmatmul.f32.gmra.mxu0 %v4255
    %v4360 = vpop.f32.mrf.mxu0
    %v4361 = vadd.f32 %v4341, %v4360
    %4362 = vdwg.mxu0
    %4363 = vmatpush.msra.mxu0 %v4290
    %4364 = vmatpush.msra.mxu0 %v4288
    %4365 = vmatpush.msra.mxu0 %v4286
    %4366 = vmatpush.msra.mxu0 %v4284
    %4367 = vmatpush.msra.mxu0 %v4282
    %4368 = vmatpush.msra.mxu0 %v4280
    %4369 = vmatpush.msra.mxu0 %v4278
    %4370 = vmatpush.msra.mxu0 %v4276
    %4371 = vmatpush.msra.mxu0 %v4274
    %4372 = vmatpush.msra.mxu0 %v4272
    %4373 = vmatpush.msra.mxu0 %v4270
    %4374 = vmatpush.msra.mxu0 %v4268
    %4375 = vmatpush.msra.mxu0 %v4266
    %4376 = vmatpush.msra.mxu0 %v4264
    %4377 = vmatpush.msra.mxu0 %v4262
    %4378 = vmatpush.msra.mxu0 %v4260
    %4379 = vmatmul.f32.gmra.mxu0 %v4254
    %v4380 = vpop.f32.mrf.mxu0
    %v4381 = vadd.f32 0.0, %v4380
    %4382 = vdwg.mxu0
    %4383 = vmatpush.msra.mxu0 %v4322
    %4384 = vmatpush.msra.mxu0 %v4320
    %4385 = vmatpush.msra.mxu0 %v4318
    %4386 = vmatpush.msra.mxu0 %v4316
    %4387 = vmatpush.msra.mxu0 %v4314
    %4388 = vmatpush.msra.mxu0 %v4312
    %4389 = vmatpush.msra.mxu0 %v4310
    %4390 = vmatpush.msra.mxu0 %v4308
    %4391 = vmatpush.msra.mxu0 %v4306
    %4392 = vmatpush.msra.mxu0 %v4304
    %4393 = vmatpush.msra.mxu0 %v4302
    %4394 = vmatpush.msra.mxu0 %v4300
    %4395 = vmatpush.msra.mxu0 %v4298
    %4396 = vmatpush.msra.mxu0 %v4296
    %4397 = vmatpush.msra.mxu0 %v4294
    %4398 = vmatpush.msra.mxu0 %v4292
    %4399 = vmatmul.f32.gmra.mxu0 %v4255
    %v4400 = vpop.f32.mrf.mxu0
    %v4401 = vadd.f32 %v4381, %v4400
    %4402 = vdwg.mxu0
    %v4403 = vadd.f32 %v4256, %v4361
    %v4404 = vadd.f32 %v4257, %v4401
    %4405 = vst [vmem:[#allocation2] sm:$0xff] %v4403
    %4406 = vst [vmem:[#allocation2 + $0x8] sm:$0xff] %v4404
    %v4407 = vld [vmem:[%s0 + $0xa8] sm:$0xff]
    %4408 = vst [vmem:[#allocation1] ss:$2 sm:$0xff] %v114
    %v4409 = vld.sshfl [vmem:[#allocation1] sm:$0xff pattern:$0x75316420]
    %v4410 = vld.sshfl [vmem:[#allocation1 + $0x8] sm:$0xff pattern:$0x75316420]
    %v4412 = vsel %vm126, %v4407, 0
    %v4414 = vsel %vm130, %v4409, 0
    %v4416 = vsel %vm130, %v4410, 0
    %4418 = vmatpush.msra.mxu0 0.0
    %4419 = vmatpush.msra.mxu0 0.0
    %4420 = vmatpush.msra.mxu0 0.0
    %4421 = vmatpush.msra.mxu0 0.0
    %4422 = vmatpush.msra.mxu0 0.0
    %4423 = vmatpush.msra.mxu0 0.0
    %4424 = vmatpush.msra.mxu0 0.0
    %4425 = vmatpush.msra.mxu0 0.0
    %4426 = vmatpush.msra.mxu0 0.0
    %4427 = vmatpush.msra.mxu0 0.0
    %4428 = vmatpush.msra.mxu0 0.0
    %4429 = vmatpush.msra.mxu0 0.0
    %4430 = vmatpush.msra.mxu0 0.0
    %4431 = vmatpush.msra.mxu0 0.0
    %4432 = vmatpush.msra.mxu0 0.0
    %4433 = vmatpush.msra.mxu0 %v4414
    %4434 = vmatmul.f32.gmra.mxu0 %v4412
    %v4435 = vpop.f32.mrf.mxu0
    %v4436 = vadd.f32 %v117, %v4435
    %4437 = vdwg.mxu0
    %4438 = vmatpush.msra.mxu0 0.0
    %4439 = vmatpush.msra.mxu0 0.0
    %4440 = vmatpush.msra.mxu0 0.0
    %4441 = vmatpush.msra.mxu0 0.0
    %4442 = vmatpush.msra.mxu0 0.0
    %4443 = vmatpush.msra.mxu0 0.0
    %4444 = vmatpush.msra.mxu0 0.0
    %4445 = vmatpush.msra.mxu0 0.0
    %4446 = vmatpush.msra.mxu0 0.0
    %4447 = vmatpush.msra.mxu0 0.0
    %4448 = vmatpush.msra.mxu0 0.0
    %4449 = vmatpush.msra.mxu0 0.0
    %4450 = vmatpush.msra.mxu0 0.0
    %4451 = vmatpush.msra.mxu0 0.0
    %4452 = vmatpush.msra.mxu0 0.0
    %4453 = vmatpush.msra.mxu0 %v4416
    %4454 = vmatmul.f32.gmra.mxu0 %v4412
    %v4455 = vpop.f32.mrf.mxu0
    %v4456 = vadd.f32 %v118, %v4455
    %4457 = vdwg.mxu0
    %v4458 = vmax.f32 %v4436, 0.0
    %v4459 = vmax.f32 %v4456, 0.0
    %v4460 = vld [vmem:[#allocation2] sm:$0xff]
    %v4461 = vld [vmem:[#allocation2 + $0x8] sm:$0xff]
    %s4462 = scalar_lea.vmem [#allocation7], 10752
    %v4463 = vld [vmem:[%s4462] sm:$0xff]
    %v4464 = vld [vmem:[%s4462 + $0x8] sm:$0xff]
    %v4465 = vld [vmem:[%s4462 + $0x10] sm:$0xff]
    %v4466 = vld [vmem:[%s4462 + $0x18] sm:$0xff]
    %v4467 = vld [vmem:[%s4462 + $0x20] sm:$0xff]
    %v4468 = vld [vmem:[%s4462 + $0x28] sm:$0xff]
    %v4469 = vld [vmem:[%s4462 + $0x30] sm:$0xff]
    %v4470 = vld [vmem:[%s4462 + $0x38] sm:$0xff]
    %v4471 = vld [vmem:[%s4462 + $0x40] sm:$0xff]
    %v4472 = vld [vmem:[%s4462 + $0x48] sm:$0xff]
    %v4473 = vld [vmem:[%s4462 + $0x50] sm:$0xff]
    %v4474 = vld [vmem:[%s4462 + $0x58] sm:$0xff]
    %v4475 = vld [vmem:[%s4462 + $0x60] sm:$0xff]
    %v4476 = vld [vmem:[%s4462 + $0x68] sm:$0xff]
    %v4477 = vld [vmem:[%s4462 + $0x70] sm:$0xff]
    %v4478 = vld [vmem:[%s4462 + $0x78] sm:$0xff]
    %v4479 = vld [vmem:[%s4462 + $0x80] sm:$0xff]
    %v4480 = vld [vmem:[%s4462 + $0x88] sm:$0xff]
    %v4481 = vld [vmem:[%s4462 + $0x90] sm:$0xff]
    %v4482 = vld [vmem:[%s4462 + $0x98] sm:$0xff]
    %v4483 = vld [vmem:[%s4462 + $0xa0] sm:$0xff]
    %v4484 = vld [vmem:[%s4462 + $0xa8] sm:$0xff]
    %v4485 = vld [vmem:[%s4462 + $0xb0] sm:$0xff]
    %v4486 = vld [vmem:[%s4462 + $0xb8] sm:$0xff]
    %v4487 = vld [vmem:[%s4462 + $0xc0] sm:$0xff]
    %v4488 = vld [vmem:[%s4462 + $0xc8] sm:$0xff]
    %v4489 = vld [vmem:[%s4462 + $0xd0] sm:$0xff]
    %v4490 = vld [vmem:[%s4462 + $0xd8] sm:$0xff]
    %v4491 = vld [vmem:[%s4462 + $0xe0] sm:$0xff]
    %v4492 = vld [vmem:[%s4462 + $0xe8] sm:$0xff]
    %v4493 = vld [vmem:[%s4462 + $0xf0] sm:$0xff]
    %v4494 = vld [vmem:[%s4462 + $0xf8] sm:$0xff]
    %v4495 = vld [vmem:[%s4462 + $0x100] sm:$0xff]
    %v4496 = vld [vmem:[%s4462 + $0x108] sm:$0xff]
    %v4497 = vld [vmem:[%s4462 + $0x110] sm:$0xff]
    %v4498 = vld [vmem:[%s4462 + $0x118] sm:$0xff]
    %v4499 = vld [vmem:[%s4462 + $0x120] sm:$0xff]
    %v4500 = vld [vmem:[%s4462 + $0x128] sm:$0xff]
    %v4501 = vld [vmem:[%s4462 + $0x130] sm:$0xff]
    %v4502 = vld [vmem:[%s4462 + $0x138] sm:$0xff]
    %v4503 = vld [vmem:[%s4462 + $0x140] sm:$0xff]
    %v4504 = vld [vmem:[%s4462 + $0x148] sm:$0xff]
    %v4505 = vld [vmem:[%s4462 + $0x150] sm:$0xff]
    %v4506 = vld [vmem:[%s4462 + $0x158] sm:$0xff]
    %v4507 = vld [vmem:[%s4462 + $0x160] sm:$0xff]
    %v4508 = vld [vmem:[%s4462 + $0x168] sm:$0xff]
    %v4509 = vld [vmem:[%s4462 + $0x170] sm:$0xff]
    %v4510 = vld [vmem:[%s4462 + $0x178] sm:$0xff]
    %v4511 = vld [vmem:[%s4462 + $0x180] sm:$0xff]
    %v4512 = vld [vmem:[%s4462 + $0x188] sm:$0xff]
    %v4513 = vld [vmem:[%s4462 + $0x190] sm:$0xff]
    %v4514 = vld [vmem:[%s4462 + $0x198] sm:$0xff]
    %v4515 = vld [vmem:[%s4462 + $0x1a0] sm:$0xff]
    %v4516 = vld [vmem:[%s4462 + $0x1a8] sm:$0xff]
    %v4517 = vld [vmem:[%s4462 + $0x1b0] sm:$0xff]
    %v4518 = vld [vmem:[%s4462 + $0x1b8] sm:$0xff]
    %v4519 = vld [vmem:[%s4462 + $0x1c0] sm:$0xff]
    %v4520 = vld [vmem:[%s4462 + $0x1c8] sm:$0xff]
    %v4521 = vld [vmem:[%s4462 + $0x1d0] sm:$0xff]
    %v4522 = vld [vmem:[%s4462 + $0x1d8] sm:$0xff]
    %v4523 = vld [vmem:[%s4462 + $0x1e0] sm:$0xff]
    %v4524 = vld [vmem:[%s4462 + $0x1e8] sm:$0xff]
    %v4525 = vld [vmem:[%s4462 + $0x1f0] sm:$0xff]
    %v4526 = vld [vmem:[%s4462 + $0x1f8] sm:$0xff]
    %4527 = vmatpush.msra.mxu0 %v4493
    %4528 = vmatpush.msra.mxu0 %v4491
    %4529 = vmatpush.msra.mxu0 %v4489
    %4530 = vmatpush.msra.mxu0 %v4487
    %4531 = vmatpush.msra.mxu0 %v4485
    %4532 = vmatpush.msra.mxu0 %v4483
    %4533 = vmatpush.msra.mxu0 %v4481
    %4534 = vmatpush.msra.mxu0 %v4479
    %4535 = vmatpush.msra.mxu0 %v4477
    %4536 = vmatpush.msra.mxu0 %v4475
    %4537 = vmatpush.msra.mxu0 %v4473
    %4538 = vmatpush.msra.mxu0 %v4471
    %4539 = vmatpush.msra.mxu0 %v4469
    %4540 = vmatpush.msra.mxu0 %v4467
    %4541 = vmatpush.msra.mxu0 %v4465
    %4542 = vmatpush.msra.mxu0 %v4463
    %4543 = vmatmul.f32.gmra.mxu0 %v4458
    %v4544 = vpop.f32.mrf.mxu0
    %v4545 = vadd.f32 0.0, %v4544
    %4546 = vdwg.mxu0
    %4547 = vmatpush.msra.mxu0 %v4525
    %4548 = vmatpush.msra.mxu0 %v4523
    %4549 = vmatpush.msra.mxu0 %v4521
    %4550 = vmatpush.msra.mxu0 %v4519
    %4551 = vmatpush.msra.mxu0 %v4517
    %4552 = vmatpush.msra.mxu0 %v4515
    %4553 = vmatpush.msra.mxu0 %v4513
    %4554 = vmatpush.msra.mxu0 %v4511
    %4555 = vmatpush.msra.mxu0 %v4509
    %4556 = vmatpush.msra.mxu0 %v4507
    %4557 = vmatpush.msra.mxu0 %v4505
    %4558 = vmatpush.msra.mxu0 %v4503
    %4559 = vmatpush.msra.mxu0 %v4501
    %4560 = vmatpush.msra.mxu0 %v4499
    %4561 = vmatpush.msra.mxu0 %v4497
    %4562 = vmatpush.msra.mxu0 %v4495
    %4563 = vmatmul.f32.gmra.mxu0 %v4459
    %v4564 = vpop.f32.mrf.mxu0
    %v4565 = vadd.f32 %v4545, %v4564
    %4566 = vdwg.mxu0
    %4567 = vmatpush.msra.mxu0 %v4494
    %4568 = vmatpush.msra.mxu0 %v4492
    %4569 = vmatpush.msra.mxu0 %v4490
    %4570 = vmatpush.msra.mxu0 %v4488
    %4571 = vmatpush.msra.mxu0 %v4486
    %4572 = vmatpush.msra.mxu0 %v4484
    %4573 = vmatpush.msra.mxu0 %v4482
    %4574 = vmatpush.msra.mxu0 %v4480
    %4575 = vmatpush.msra.mxu0 %v4478
    %4576 = vmatpush.msra.mxu0 %v4476
    %4577 = vmatpush.msra.mxu0 %v4474
    %4578 = vmatpush.msra.mxu0 %v4472
    %4579 = vmatpush.msra.mxu0 %v4470
    %4580 = vmatpush.msra.mxu0 %v4468
    %4581 = vmatpush.msra.mxu0 %v4466
    %4582 = vmatpush.msra.mxu0 %v4464
    %4583 = vmatmul.f32.gmra.mxu0 %v4458
    %v4584 = vpop.f32.mrf.mxu0
    %v4585 = vadd.f32 0.0, %v4584
    %4586 = vdwg.mxu0
    %4587 = vmatpush.msra.mxu0 %v4526
    %4588 = vmatpush.msra.mxu0 %v4524
    %4589 = vmatpush.msra.mxu0 %v4522
    %4590 = vmatpush.msra.mxu0 %v4520
    %4591 = vmatpush.msra.mxu0 %v4518
    %4592 = vmatpush.msra.mxu0 %v4516
    %4593 = vmatpush.msra.mxu0 %v4514
    %4594 = vmatpush.msra.mxu0 %v4512
    %4595 = vmatpush.msra.mxu0 %v4510
    %4596 = vmatpush.msra.mxu0 %v4508
    %4597 = vmatpush.msra.mxu0 %v4506
    %4598 = vmatpush.msra.mxu0 %v4504
    %4599 = vmatpush.msra.mxu0 %v4502
    %4600 = vmatpush.msra.mxu0 %v4500
    %4601 = vmatpush.msra.mxu0 %v4498
    %4602 = vmatpush.msra.mxu0 %v4496
    %4603 = vmatmul.f32.gmra.mxu0 %v4459
    %v4604 = vpop.f32.mrf.mxu0
    %v4605 = vadd.f32 %v4585, %v4604
    %4606 = vdwg.mxu0
    %v4607 = vadd.f32 %v4460, %v4565
    %v4608 = vadd.f32 %v4461, %v4605
    %4609 = vst [vmem:[#allocation2] sm:$0xff] %v4607
    %4610 = vst [vmem:[#allocation2 + $0x8] sm:$0xff] %v4608
    %v4611 = vld [vmem:[%s0 + $0xb0] sm:$0xff]
    %4612 = vst [vmem:[#allocation1] ss:$2 sm:$0xff] %v114
    %v4613 = vld.sshfl [vmem:[#allocation1] sm:$0xff pattern:$0x75316420]
    %v4614 = vld.sshfl [vmem:[#allocation1 + $0x8] sm:$0xff pattern:$0x75316420]
    %v4616 = vsel %vm126, %v4611, 0
    %v4618 = vsel %vm130, %v4613, 0
    %v4620 = vsel %vm130, %v4614, 0
    %4622 = vmatpush.msra.mxu0 0.0
    %4623 = vmatpush.msra.mxu0 0.0
    %4624 = vmatpush.msra.mxu0 0.0
    %4625 = vmatpush.msra.mxu0 0.0
    %4626 = vmatpush.msra.mxu0 0.0
    %4627 = vmatpush.msra.mxu0 0.0
    %4628 = vmatpush.msra.mxu0 0.0
    %4629 = vmatpush.msra.mxu0 0.0
    %4630 = vmatpush.msra.mxu0 0.0
    %4631 = vmatpush.msra.mxu0 0.0
    %4632 = vmatpush.msra.mxu0 0.0
    %4633 = vmatpush.msra.mxu0 0.0
    %4634 = vmatpush.msra.mxu0 0.0
    %4635 = vmatpush.msra.mxu0 0.0
    %4636 = vmatpush.msra.mxu0 0.0
    %4637 = vmatpush.msra.mxu0 %v4618
    %4638 = vmatmul.f32.gmra.mxu0 %v4616
    %v4639 = vpop.f32.mrf.mxu0
    %v4640 = vadd.f32 %v117, %v4639
    %4641 = vdwg.mxu0
    %4642 = vmatpush.msra.mxu0 0.0
    %4643 = vmatpush.msra.mxu0 0.0
    %4644 = vmatpush.msra.mxu0 0.0
    %4645 = vmatpush.msra.mxu0 0.0
    %4646 = vmatpush.msra.mxu0 0.0
    %4647 = vmatpush.msra.mxu0 0.0
    %4648 = vmatpush.msra.mxu0 0.0
    %4649 = vmatpush.msra.mxu0 0.0
    %4650 = vmatpush.msra.mxu0 0.0
    %4651 = vmatpush.msra.mxu0 0.0
    %4652 = vmatpush.msra.mxu0 0.0
    %4653 = vmatpush.msra.mxu0 0.0
    %4654 = vmatpush.msra.mxu0 0.0
    %4655 = vmatpush.msra.mxu0 0.0
    %4656 = vmatpush.msra.mxu0 0.0
    %4657 = vmatpush.msra.mxu0 %v4620
    %4658 = vmatmul.f32.gmra.mxu0 %v4616
    %v4659 = vpop.f32.mrf.mxu0
    %v4660 = vadd.f32 %v118, %v4659
    %4661 = vdwg.mxu0
    %v4662 = vmax.f32 %v4640, 0.0
    %v4663 = vmax.f32 %v4660, 0.0
    %v4664 = vld [vmem:[#allocation2] sm:$0xff]
    %v4665 = vld [vmem:[#allocation2 + $0x8] sm:$0xff]
    %s4666 = scalar_lea.vmem [#allocation7], 11264
    %v4667 = vld [vmem:[%s4666] sm:$0xff]
    %v4668 = vld [vmem:[%s4666 + $0x8] sm:$0xff]
    %v4669 = vld [vmem:[%s4666 + $0x10] sm:$0xff]
    %v4670 = vld [vmem:[%s4666 + $0x18] sm:$0xff]
    %v4671 = vld [vmem:[%s4666 + $0x20] sm:$0xff]
    %v4672 = vld [vmem:[%s4666 + $0x28] sm:$0xff]
    %v4673 = vld [vmem:[%s4666 + $0x30] sm:$0xff]
    %v4674 = vld [vmem:[%s4666 + $0x38] sm:$0xff]
    %v4675 = vld [vmem:[%s4666 + $0x40] sm:$0xff]
    %v4676 = vld [vmem:[%s4666 + $0x48] sm:$0xff]
    %v4677 = vld [vmem:[%s4666 + $0x50] sm:$0xff]
    %v4678 = vld [vmem:[%s4666 + $0x58] sm:$0xff]
    %v4679 = vld [vmem:[%s4666 + $0x60] sm:$0xff]
    %v4680 = vld [vmem:[%s4666 + $0x68] sm:$0xff]
    %v4681 = vld [vmem:[%s4666 + $0x70] sm:$0xff]
    %v4682 = vld [vmem:[%s4666 + $0x78] sm:$0xff]
    %v4683 = vld [vmem:[%s4666 + $0x80] sm:$0xff]
    %v4684 = vld [vmem:[%s4666 + $0x88] sm:$0xff]
    %v4685 = vld [vmem:[%s4666 + $0x90] sm:$0xff]
    %v4686 = vld [vmem:[%s4666 + $0x98] sm:$0xff]
    %v4687 = vld [vmem:[%s4666 + $0xa0] sm:$0xff]
    %v4688 = vld [vmem:[%s4666 + $0xa8] sm:$0xff]
    %v4689 = vld [vmem:[%s4666 + $0xb0] sm:$0xff]
    %v4690 = vld [vmem:[%s4666 + $0xb8] sm:$0xff]
    %v4691 = vld [vmem:[%s4666 + $0xc0] sm:$0xff]
    %v4692 = vld [vmem:[%s4666 + $0xc8] sm:$0xff]
    %v4693 = vld [vmem:[%s4666 + $0xd0] sm:$0xff]
    %v4694 = vld [vmem:[%s4666 + $0xd8] sm:$0xff]
    %v4695 = vld [vmem:[%s4666 + $0xe0] sm:$0xff]
    %v4696 = vld [vmem:[%s4666 + $0xe8] sm:$0xff]
    %v4697 = vld [vmem:[%s4666 + $0xf0] sm:$0xff]
    %v4698 = vld [vmem:[%s4666 + $0xf8] sm:$0xff]
    %v4699 = vld [vmem:[%s4666 + $0x100] sm:$0xff]
    %v4700 = vld [vmem:[%s4666 + $0x108] sm:$0xff]
    %v4701 = vld [vmem:[%s4666 + $0x110] sm:$0xff]
    %v4702 = vld [vmem:[%s4666 + $0x118] sm:$0xff]
    %v4703 = vld [vmem:[%s4666 + $0x120] sm:$0xff]
    %v4704 = vld [vmem:[%s4666 + $0x128] sm:$0xff]
    %v4705 = vld [vmem:[%s4666 + $0x130] sm:$0xff]
    %v4706 = vld [vmem:[%s4666 + $0x138] sm:$0xff]
    %v4707 = vld [vmem:[%s4666 + $0x140] sm:$0xff]
    %v4708 = vld [vmem:[%s4666 + $0x148] sm:$0xff]
    %v4709 = vld [vmem:[%s4666 + $0x150] sm:$0xff]
    %v4710 = vld [vmem:[%s4666 + $0x158] sm:$0xff]
    %v4711 = vld [vmem:[%s4666 + $0x160] sm:$0xff]
    %v4712 = vld [vmem:[%s4666 + $0x168] sm:$0xff]
    %v4713 = vld [vmem:[%s4666 + $0x170] sm:$0xff]
    %v4714 = vld [vmem:[%s4666 + $0x178] sm:$0xff]
    %v4715 = vld [vmem:[%s4666 + $0x180] sm:$0xff]
    %v4716 = vld [vmem:[%s4666 + $0x188] sm:$0xff]
    %v4717 = vld [vmem:[%s4666 + $0x190] sm:$0xff]
    %v4718 = vld [vmem:[%s4666 + $0x198] sm:$0xff]
    %v4719 = vld [vmem:[%s4666 + $0x1a0] sm:$0xff]
    %v4720 = vld [vmem:[%s4666 + $0x1a8] sm:$0xff]
    %v4721 = vld [vmem:[%s4666 + $0x1b0] sm:$0xff]
    %v4722 = vld [vmem:[%s4666 + $0x1b8] sm:$0xff]
    %v4723 = vld [vmem:[%s4666 + $0x1c0] sm:$0xff]
    %v4724 = vld [vmem:[%s4666 + $0x1c8] sm:$0xff]
    %v4725 = vld [vmem:[%s4666 + $0x1d0] sm:$0xff]
    %v4726 = vld [vmem:[%s4666 + $0x1d8] sm:$0xff]
    %v4727 = vld [vmem:[%s4666 + $0x1e0] sm:$0xff]
    %v4728 = vld [vmem:[%s4666 + $0x1e8] sm:$0xff]
    %v4729 = vld [vmem:[%s4666 + $0x1f0] sm:$0xff]
    %v4730 = vld [vmem:[%s4666 + $0x1f8] sm:$0xff]
    %4731 = vmatpush.msra.mxu0 %v4697
    %4732 = vmatpush.msra.mxu0 %v4695
    %4733 = vmatpush.msra.mxu0 %v4693
    %4734 = vmatpush.msra.mxu0 %v4691
    %4735 = vmatpush.msra.mxu0 %v4689
    %4736 = vmatpush.msra.mxu0 %v4687
    %4737 = vmatpush.msra.mxu0 %v4685
    %4738 = vmatpush.msra.mxu0 %v4683
    %4739 = vmatpush.msra.mxu0 %v4681
    %4740 = vmatpush.msra.mxu0 %v4679
    %4741 = vmatpush.msra.mxu0 %v4677
    %4742 = vmatpush.msra.mxu0 %v4675
    %4743 = vmatpush.msra.mxu0 %v4673
    %4744 = vmatpush.msra.mxu0 %v4671
    %4745 = vmatpush.msra.mxu0 %v4669
    %4746 = vmatpush.msra.mxu0 %v4667
    %4747 = vmatmul.f32.gmra.mxu0 %v4662
    %v4748 = vpop.f32.mrf.mxu0
    %v4749 = vadd.f32 0.0, %v4748
    %4750 = vdwg.mxu0
    %4751 = vmatpush.msra.mxu0 %v4729
    %4752 = vmatpush.msra.mxu0 %v4727
    %4753 = vmatpush.msra.mxu0 %v4725
    %4754 = vmatpush.msra.mxu0 %v4723
    %4755 = vmatpush.msra.mxu0 %v4721
    %4756 = vmatpush.msra.mxu0 %v4719
    %4757 = vmatpush.msra.mxu0 %v4717
    %4758 = vmatpush.msra.mxu0 %v4715
    %4759 = vmatpush.msra.mxu0 %v4713
    %4760 = vmatpush.msra.mxu0 %v4711
    %4761 = vmatpush.msra.mxu0 %v4709
    %4762 = vmatpush.msra.mxu0 %v4707
    %4763 = vmatpush.msra.mxu0 %v4705
    %4764 = vmatpush.msra.mxu0 %v4703
    %4765 = vmatpush.msra.mxu0 %v4701
    %4766 = vmatpush.msra.mxu0 %v4699
    %4767 = vmatmul.f32.gmra.mxu0 %v4663
    %v4768 = vpop.f32.mrf.mxu0
    %v4769 = vadd.f32 %v4749, %v4768
    %4770 = vdwg.mxu0
    %4771 = vmatpush.msra.mxu0 %v4698
    %4772 = vmatpush.msra.mxu0 %v4696
    %4773 = vmatpush.msra.mxu0 %v4694
    %4774 = vmatpush.msra.mxu0 %v4692
    %4775 = vmatpush.msra.mxu0 %v4690
    %4776 = vmatpush.msra.mxu0 %v4688
    %4777 = vmatpush.msra.mxu0 %v4686
    %4778 = vmatpush.msra.mxu0 %v4684
    %4779 = vmatpush.msra.mxu0 %v4682
    %4780 = vmatpush.msra.mxu0 %v4680
    %4781 = vmatpush.msra.mxu0 %v4678
    %4782 = vmatpush.msra.mxu0 %v4676
    %4783 = vmatpush.msra.mxu0 %v4674
    %4784 = vmatpush.msra.mxu0 %v4672
    %4785 = vmatpush.msra.mxu0 %v4670
    %4786 = vmatpush.msra.mxu0 %v4668
    %4787 = vmatmul.f32.gmra.mxu0 %v4662
    %v4788 = vpop.f32.mrf.mxu0
    %v4789 = vadd.f32 0.0, %v4788
    %4790 = vdwg.mxu0
    %4791 = vmatpush.msra.mxu0 %v4730
    %4792 = vmatpush.msra.mxu0 %v4728
    %4793 = vmatpush.msra.mxu0 %v4726
    %4794 = vmatpush.msra.mxu0 %v4724
    %4795 = vmatpush.msra.mxu0 %v4722
    %4796 = vmatpush.msra.mxu0 %v4720
    %4797 = vmatpush.msra.mxu0 %v4718
    %4798 = vmatpush.msra.mxu0 %v4716
    %4799 = vmatpush.msra.mxu0 %v4714
    %4800 = vmatpush.msra.mxu0 %v4712
    %4801 = vmatpush.msra.mxu0 %v4710
    %4802 = vmatpush.msra.mxu0 %v4708
    %4803 = vmatpush.msra.mxu0 %v4706
    %4804 = vmatpush.msra.mxu0 %v4704
    %4805 = vmatpush.msra.mxu0 %v4702
    %4806 = vmatpush.msra.mxu0 %v4700
    %4807 = vmatmul.f32.gmra.mxu0 %v4663
    %v4808 = vpop.f32.mrf.mxu0
    %v4809 = vadd.f32 %v4789, %v4808
    %4810 = vdwg.mxu0
    %v4811 = vadd.f32 %v4664, %v4769
    %v4812 = vadd.f32 %v4665, %v4809
    %4813 = vst [vmem:[#allocation2] sm:$0xff] %v4811
    %4814 = vst [vmem:[#allocation2 + $0x8] sm:$0xff] %v4812
    %v4815 = vld [vmem:[%s0 + $0xb8] sm:$0xff]
    %4816 = vst [vmem:[#allocation1] ss:$2 sm:$0xff] %v114
    %v4817 = vld.sshfl [vmem:[#allocation1] sm:$0xff pattern:$0x75316420]
    %v4818 = vld.sshfl [vmem:[#allocation1 + $0x8] sm:$0xff pattern:$0x75316420]
    %v4820 = vsel %vm126, %v4815, 0
    %v4822 = vsel %vm130, %v4817, 0
    %v4824 = vsel %vm130, %v4818, 0
    %4826 = vmatpush.msra.mxu0 0.0
    %4827 = vmatpush.msra.mxu0 0.0
    %4828 = vmatpush.msra.mxu0 0.0
    %4829 = vmatpush.msra.mxu0 0.0
    %4830 = vmatpush.msra.mxu0 0.0
    %4831 = vmatpush.msra.mxu0 0.0
    %4832 = vmatpush.msra.mxu0 0.0
    %4833 = vmatpush.msra.mxu0 0.0
    %4834 = vmatpush.msra.mxu0 0.0
    %4835 = vmatpush.msra.mxu0 0.0
    %4836 = vmatpush.msra.mxu0 0.0
    %4837 = vmatpush.msra.mxu0 0.0
    %4838 = vmatpush.msra.mxu0 0.0
    %4839 = vmatpush.msra.mxu0 0.0
    %4840 = vmatpush.msra.mxu0 0.0
    %4841 = vmatpush.msra.mxu0 %v4822
    %4842 = vmatmul.f32.gmra.mxu0 %v4820
    %v4843 = vpop.f32.mrf.mxu0
    %v4844 = vadd.f32 %v117, %v4843
    %4845 = vdwg.mxu0
    %4846 = vmatpush.msra.mxu0 0.0
    %4847 = vmatpush.msra.mxu0 0.0
    %4848 = vmatpush.msra.mxu0 0.0
    %4849 = vmatpush.msra.mxu0 0.0
    %4850 = vmatpush.msra.mxu0 0.0
    %4851 = vmatpush.msra.mxu0 0.0
    %4852 = vmatpush.msra.mxu0 0.0
    %4853 = vmatpush.msra.mxu0 0.0
    %4854 = vmatpush.msra.mxu0 0.0
    %4855 = vmatpush.msra.mxu0 0.0
    %4856 = vmatpush.msra.mxu0 0.0
    %4857 = vmatpush.msra.mxu0 0.0
    %4858 = vmatpush.msra.mxu0 0.0
    %4859 = vmatpush.msra.mxu0 0.0
    %4860 = vmatpush.msra.mxu0 0.0
    %4861 = vmatpush.msra.mxu0 %v4824
    %4862 = vmatmul.f32.gmra.mxu0 %v4820
    %v4863 = vpop.f32.mrf.mxu0
    %v4864 = vadd.f32 %v118, %v4863
    %4865 = vdwg.mxu0
    %v4866 = vmax.f32 %v4844, 0.0
    %v4867 = vmax.f32 %v4864, 0.0
    %v4868 = vld [vmem:[#allocation2] sm:$0xff]
    %v4869 = vld [vmem:[#allocation2 + $0x8] sm:$0xff]
    %s4870 = scalar_lea.vmem [#allocation7], 11776
    %v4871 = vld [vmem:[%s4870] sm:$0xff]
    %v4872 = vld [vmem:[%s4870 + $0x8] sm:$0xff]
    %v4873 = vld [vmem:[%s4870 + $0x10] sm:$0xff]
    %v4874 = vld [vmem:[%s4870 + $0x18] sm:$0xff]
    %v4875 = vld [vmem:[%s4870 + $0x20] sm:$0xff]
    %v4876 = vld [vmem:[%s4870 + $0x28] sm:$0xff]
    %v4877 = vld [vmem:[%s4870 + $0x30] sm:$0xff]
    %v4878 = vld [vmem:[%s4870 + $0x38] sm:$0xff]
    %v4879 = vld [vmem:[%s4870 + $0x40] sm:$0xff]
    %v4880 = vld [vmem:[%s4870 + $0x48] sm:$0xff]
    %v4881 = vld [vmem:[%s4870 + $0x50] sm:$0xff]
    %v4882 = vld [vmem:[%s4870 + $0x58] sm:$0xff]
    %v4883 = vld [vmem:[%s4870 + $0x60] sm:$0xff]
    %v4884 = vld [vmem:[%s4870 + $0x68] sm:$0xff]
    %v4885 = vld [vmem:[%s4870 + $0x70] sm:$0xff]
    %v4886 = vld [vmem:[%s4870 + $0x78] sm:$0xff]
    %v4887 = vld [vmem:[%s4870 + $0x80] sm:$0xff]
    %v4888 = vld [vmem:[%s4870 + $0x88] sm:$0xff]
    %v4889 = vld [vmem:[%s4870 + $0x90] sm:$0xff]
    %v4890 = vld [vmem:[%s4870 + $0x98] sm:$0xff]
    %v4891 = vld [vmem:[%s4870 + $0xa0] sm:$0xff]
    %v4892 = vld [vmem:[%s4870 + $0xa8] sm:$0xff]
    %v4893 = vld [vmem:[%s4870 + $0xb0] sm:$0xff]
    %v4894 = vld [vmem:[%s4870 + $0xb8] sm:$0xff]
    %v4895 = vld [vmem:[%s4870 + $0xc0] sm:$0xff]
    %v4896 = vld [vmem:[%s4870 + $0xc8] sm:$0xff]
    %v4897 = vld [vmem:[%s4870 + $0xd0] sm:$0xff]
    %v4898 = vld [vmem:[%s4870 + $0xd8] sm:$0xff]
    %v4899 = vld [vmem:[%s4870 + $0xe0] sm:$0xff]
    %v4900 = vld [vmem:[%s4870 + $0xe8] sm:$0xff]
    %v4901 = vld [vmem:[%s4870 + $0xf0] sm:$0xff]
    %v4902 = vld [vmem:[%s4870 + $0xf8] sm:$0xff]
    %v4903 = vld [vmem:[%s4870 + $0x100] sm:$0xff]
    %v4904 = vld [vmem:[%s4870 + $0x108] sm:$0xff]
    %v4905 = vld [vmem:[%s4870 + $0x110] sm:$0xff]
    %v4906 = vld [vmem:[%s4870 + $0x118] sm:$0xff]
    %v4907 = vld [vmem:[%s4870 + $0x120] sm:$0xff]
    %v4908 = vld [vmem:[%s4870 + $0x128] sm:$0xff]
    %v4909 = vld [vmem:[%s4870 + $0x130] sm:$0xff]
    %v4910 = vld [vmem:[%s4870 + $0x138] sm:$0xff]
    %v4911 = vld [vmem:[%s4870 + $0x140] sm:$0xff]
    %v4912 = vld [vmem:[%s4870 + $0x148] sm:$0xff]
    %v4913 = vld [vmem:[%s4870 + $0x150] sm:$0xff]
    %v4914 = vld [vmem:[%s4870 + $0x158] sm:$0xff]
    %v4915 = vld [vmem:[%s4870 + $0x160] sm:$0xff]
    %v4916 = vld [vmem:[%s4870 + $0x168] sm:$0xff]
    %v4917 = vld [vmem:[%s4870 + $0x170] sm:$0xff]
    %v4918 = vld [vmem:[%s4870 + $0x178] sm:$0xff]
    %v4919 = vld [vmem:[%s4870 + $0x180] sm:$0xff]
    %v4920 = vld [vmem:[%s4870 + $0x188] sm:$0xff]
    %v4921 = vld [vmem:[%s4870 + $0x190] sm:$0xff]
    %v4922 = vld [vmem:[%s4870 + $0x198] sm:$0xff]
    %v4923 = vld [vmem:[%s4870 + $0x1a0] sm:$0xff]
    %v4924 = vld [vmem:[%s4870 + $0x1a8] sm:$0xff]
    %v4925 = vld [vmem:[%s4870 + $0x1b0] sm:$0xff]
    %v4926 = vld [vmem:[%s4870 + $0x1b8] sm:$0xff]
    %v4927 = vld [vmem:[%s4870 + $0x1c0] sm:$0xff]
    %v4928 = vld [vmem:[%s4870 + $0x1c8] sm:$0xff]
    %v4929 = vld [vmem:[%s4870 + $0x1d0] sm:$0xff]
    %v4930 = vld [vmem:[%s4870 + $0x1d8] sm:$0xff]
    %v4931 = vld [vmem:[%s4870 + $0x1e0] sm:$0xff]
    %v4932 = vld [vmem:[%s4870 + $0x1e8] sm:$0xff]
    %v4933 = vld [vmem:[%s4870 + $0x1f0] sm:$0xff]
    %v4934 = vld [vmem:[%s4870 + $0x1f8] sm:$0xff]
    %4935 = vmatpush.msra.mxu0 %v4901
    %4936 = vmatpush.msra.mxu0 %v4899
    %4937 = vmatpush.msra.mxu0 %v4897
    %4938 = vmatpush.msra.mxu0 %v4895
    %4939 = vmatpush.msra.mxu0 %v4893
    %4940 = vmatpush.msra.mxu0 %v4891
    %4941 = vmatpush.msra.mxu0 %v4889
    %4942 = vmatpush.msra.mxu0 %v4887
    %4943 = vmatpush.msra.mxu0 %v4885
    %4944 = vmatpush.msra.mxu0 %v4883
    %4945 = vmatpush.msra.mxu0 %v4881
    %4946 = vmatpush.msra.mxu0 %v4879
    %4947 = vmatpush.msra.mxu0 %v4877
    %4948 = vmatpush.msra.mxu0 %v4875
    %4949 = vmatpush.msra.mxu0 %v4873
    %4950 = vmatpush.msra.mxu0 %v4871
    %4951 = vmatmul.f32.gmra.mxu0 %v4866
    %v4952 = vpop.f32.mrf.mxu0
    %v4953 = vadd.f32 0.0, %v4952
    %4954 = vdwg.mxu0
    %4955 = vmatpush.msra.mxu0 %v4933
    %4956 = vmatpush.msra.mxu0 %v4931
    %4957 = vmatpush.msra.mxu0 %v4929
    %4958 = vmatpush.msra.mxu0 %v4927
    %4959 = vmatpush.msra.mxu0 %v4925
    %4960 = vmatpush.msra.mxu0 %v4923
    %4961 = vmatpush.msra.mxu0 %v4921
    %4962 = vmatpush.msra.mxu0 %v4919
    %4963 = vmatpush.msra.mxu0 %v4917
    %4964 = vmatpush.msra.mxu0 %v4915
    %4965 = vmatpush.msra.mxu0 %v4913
    %4966 = vmatpush.msra.mxu0 %v4911
    %4967 = vmatpush.msra.mxu0 %v4909
    %4968 = vmatpush.msra.mxu0 %v4907
    %4969 = vmatpush.msra.mxu0 %v4905
    %4970 = vmatpush.msra.mxu0 %v4903
    %4971 = vmatmul.f32.gmra.mxu0 %v4867
    %v4972 = vpop.f32.mrf.mxu0
    %v4973 = vadd.f32 %v4953, %v4972
    %4974 = vdwg.mxu0
    %4975 = vmatpush.msra.mxu0 %v4902
    %4976 = vmatpush.msra.mxu0 %v4900
    %4977 = vmatpush.msra.mxu0 %v4898
    %4978 = vmatpush.msra.mxu0 %v4896
    %4979 = vmatpush.msra.mxu0 %v4894
    %4980 = vmatpush.msra.mxu0 %v4892
    %4981 = vmatpush.msra.mxu0 %v4890
    %4982 = vmatpush.msra.mxu0 %v4888
    %4983 = vmatpush.msra.mxu0 %v4886
    %4984 = vmatpush.msra.mxu0 %v4884
    %4985 = vmatpush.msra.mxu0 %v4882
    %4986 = vmatpush.msra.mxu0 %v4880
    %4987 = vmatpush.msra.mxu0 %v4878
    %4988 = vmatpush.msra.mxu0 %v4876
    %4989 = vmatpush.msra.mxu0 %v4874
    %4990 = vmatpush.msra.mxu0 %v4872
    %4991 = vmatmul.f32.gmra.mxu0 %v4866
    %v4992 = vpop.f32.mrf.mxu0
    %v4993 = vadd.f32 0.0, %v4992
    %4994 = vdwg.mxu0
    %4995 = vmatpush.msra.mxu0 %v4934
    %4996 = vmatpush.msra.mxu0 %v4932
    %4997 = vmatpush.msra.mxu0 %v4930
    %4998 = vmatpush.msra.mxu0 %v4928
    %4999 = vmatpush.msra.mxu0 %v4926
    %5000 = vmatpush.msra.mxu0 %v4924
    %5001 = vmatpush.msra.mxu0 %v4922
    %5002 = vmatpush.msra.mxu0 %v4920
    %5003 = vmatpush.msra.mxu0 %v4918
    %5004 = vmatpush.msra.mxu0 %v4916
    %5005 = vmatpush.msra.mxu0 %v4914
    %5006 = vmatpush.msra.mxu0 %v4912
    %5007 = vmatpush.msra.mxu0 %v4910
    %5008 = vmatpush.msra.mxu0 %v4908
    %5009 = vmatpush.msra.mxu0 %v4906
    %5010 = vmatpush.msra.mxu0 %v4904
    %5011 = vmatmul.f32.gmra.mxu0 %v4867
    %v5012 = vpop.f32.mrf.mxu0
    %v5013 = vadd.f32 %v4993, %v5012
    %5014 = vdwg.mxu0
    %v5015 = vadd.f32 %v4868, %v4973
    %v5016 = vadd.f32 %v4869, %v5013
    %5017 = vst [vmem:[#allocation2] sm:$0xff] %v5015
    %5018 = vst [vmem:[#allocation2 + $0x8] sm:$0xff] %v5016
    %v5019 = vld [vmem:[%s0 + $0xc0] sm:$0xff]
    %5020 = vst [vmem:[#allocation1] ss:$2 sm:$0xff] %v114
    %v5021 = vld.sshfl [vmem:[#allocation1] sm:$0xff pattern:$0x75316420]
    %v5022 = vld.sshfl [vmem:[#allocation1 + $0x8] sm:$0xff pattern:$0x75316420]
    %v5024 = vsel %vm126, %v5019, 0
    %v5026 = vsel %vm130, %v5021, 0
    %v5028 = vsel %vm130, %v5022, 0
    %5030 = vmatpush.msra.mxu0 0.0
    %5031 = vmatpush.msra.mxu0 0.0
    %5032 = vmatpush.msra.mxu0 0.0
    %5033 = vmatpush.msra.mxu0 0.0
    %5034 = vmatpush.msra.mxu0 0.0
    %5035 = vmatpush.msra.mxu0 0.0
    %5036 = vmatpush.msra.mxu0 0.0
    %5037 = vmatpush.msra.mxu0 0.0
    %5038 = vmatpush.msra.mxu0 0.0
    %5039 = vmatpush.msra.mxu0 0.0
    %5040 = vmatpush.msra.mxu0 0.0
    %5041 = vmatpush.msra.mxu0 0.0
    %5042 = vmatpush.msra.mxu0 0.0
    %5043 = vmatpush.msra.mxu0 0.0
    %5044 = vmatpush.msra.mxu0 0.0
    %5045 = vmatpush.msra.mxu0 %v5026
    %5046 = vmatmul.f32.gmra.mxu0 %v5024
    %v5047 = vpop.f32.mrf.mxu0
    %v5048 = vadd.f32 %v117, %v5047
    %5049 = vdwg.mxu0
    %5050 = vmatpush.msra.mxu0 0.0
    %5051 = vmatpush.msra.mxu0 0.0
    %5052 = vmatpush.msra.mxu0 0.0
    %5053 = vmatpush.msra.mxu0 0.0
    %5054 = vmatpush.msra.mxu0 0.0
    %5055 = vmatpush.msra.mxu0 0.0
    %5056 = vmatpush.msra.mxu0 0.0
    %5057 = vmatpush.msra.mxu0 0.0
    %5058 = vmatpush.msra.mxu0 0.0
    %5059 = vmatpush.msra.mxu0 0.0
    %5060 = vmatpush.msra.mxu0 0.0
    %5061 = vmatpush.msra.mxu0 0.0
    %5062 = vmatpush.msra.mxu0 0.0
    %5063 = vmatpush.msra.mxu0 0.0
    %5064 = vmatpush.msra.mxu0 0.0
    %5065 = vmatpush.msra.mxu0 %v5028
    %5066 = vmatmul.f32.gmra.mxu0 %v5024
    %v5067 = vpop.f32.mrf.mxu0
    %v5068 = vadd.f32 %v118, %v5067
    %5069 = vdwg.mxu0
    %v5070 = vmax.f32 %v5048, 0.0
    %v5071 = vmax.f32 %v5068, 0.0
    %v5072 = vld [vmem:[#allocation2] sm:$0xff]
    %v5073 = vld [vmem:[#allocation2 + $0x8] sm:$0xff]
    %s5074 = scalar_lea.vmem [#allocation7], 12288
    %v5075 = vld [vmem:[%s5074] sm:$0xff]
    %v5076 = vld [vmem:[%s5074 + $0x8] sm:$0xff]
    %v5077 = vld [vmem:[%s5074 + $0x10] sm:$0xff]
    %v5078 = vld [vmem:[%s5074 + $0x18] sm:$0xff]
    %v5079 = vld [vmem:[%s5074 + $0x20] sm:$0xff]
    %v5080 = vld [vmem:[%s5074 + $0x28] sm:$0xff]
    %v5081 = vld [vmem:[%s5074 + $0x30] sm:$0xff]
    %v5082 = vld [vmem:[%s5074 + $0x38] sm:$0xff]
    %v5083 = vld [vmem:[%s5074 + $0x40] sm:$0xff]
    %v5084 = vld [vmem:[%s5074 + $0x48] sm:$0xff]
    %v5085 = vld [vmem:[%s5074 + $0x50] sm:$0xff]
    %v5086 = vld [vmem:[%s5074 + $0x58] sm:$0xff]
    %v5087 = vld [vmem:[%s5074 + $0x60] sm:$0xff]
    %v5088 = vld [vmem:[%s5074 + $0x68] sm:$0xff]
    %v5089 = vld [vmem:[%s5074 + $0x70] sm:$0xff]
    %v5090 = vld [vmem:[%s5074 + $0x78] sm:$0xff]
    %v5091 = vld [vmem:[%s5074 + $0x80] sm:$0xff]
    %v5092 = vld [vmem:[%s5074 + $0x88] sm:$0xff]
    %v5093 = vld [vmem:[%s5074 + $0x90] sm:$0xff]
    %v5094 = vld [vmem:[%s5074 + $0x98] sm:$0xff]
    %v5095 = vld [vmem:[%s5074 + $0xa0] sm:$0xff]
    %v5096 = vld [vmem:[%s5074 + $0xa8] sm:$0xff]
    %v5097 = vld [vmem:[%s5074 + $0xb0] sm:$0xff]
    %v5098 = vld [vmem:[%s5074 + $0xb8] sm:$0xff]
    %v5099 = vld [vmem:[%s5074 + $0xc0] sm:$0xff]
    %v5100 = vld [vmem:[%s5074 + $0xc8] sm:$0xff]
    %v5101 = vld [vmem:[%s5074 + $0xd0] sm:$0xff]
    %v5102 = vld [vmem:[%s5074 + $0xd8] sm:$0xff]
    %v5103 = vld [vmem:[%s5074 + $0xe0] sm:$0xff]
    %v5104 = vld [vmem:[%s5074 + $0xe8] sm:$0xff]
    %v5105 = vld [vmem:[%s5074 + $0xf0] sm:$0xff]
    %v5106 = vld [vmem:[%s5074 + $0xf8] sm:$0xff]
    %v5107 = vld [vmem:[%s5074 + $0x100] sm:$0xff]
    %v5108 = vld [vmem:[%s5074 + $0x108] sm:$0xff]
    %v5109 = vld [vmem:[%s5074 + $0x110] sm:$0xff]
    %v5110 = vld [vmem:[%s5074 + $0x118] sm:$0xff]
    %v5111 = vld [vmem:[%s5074 + $0x120] sm:$0xff]
    %v5112 = vld [vmem:[%s5074 + $0x128] sm:$0xff]
    %v5113 = vld [vmem:[%s5074 + $0x130] sm:$0xff]
    %v5114 = vld [vmem:[%s5074 + $0x138] sm:$0xff]
    %v5115 = vld [vmem:[%s5074 + $0x140] sm:$0xff]
    %v5116 = vld [vmem:[%s5074 + $0x148] sm:$0xff]
    %v5117 = vld [vmem:[%s5074 + $0x150] sm:$0xff]
    %v5118 = vld [vmem:[%s5074 + $0x158] sm:$0xff]
    %v5119 = vld [vmem:[%s5074 + $0x160] sm:$0xff]
    %v5120 = vld [vmem:[%s5074 + $0x168] sm:$0xff]
    %v5121 = vld [vmem:[%s5074 + $0x170] sm:$0xff]
    %v5122 = vld [vmem:[%s5074 + $0x178] sm:$0xff]
    %v5123 = vld [vmem:[%s5074 + $0x180] sm:$0xff]
    %v5124 = vld [vmem:[%s5074 + $0x188] sm:$0xff]
    %v5125 = vld [vmem:[%s5074 + $0x190] sm:$0xff]
    %v5126 = vld [vmem:[%s5074 + $0x198] sm:$0xff]
    %v5127 = vld [vmem:[%s5074 + $0x1a0] sm:$0xff]
    %v5128 = vld [vmem:[%s5074 + $0x1a8] sm:$0xff]
    %v5129 = vld [vmem:[%s5074 + $0x1b0] sm:$0xff]
    %v5130 = vld [vmem:[%s5074 + $0x1b8] sm:$0xff]
    %v5131 = vld [vmem:[%s5074 + $0x1c0] sm:$0xff]
    %v5132 = vld [vmem:[%s5074 + $0x1c8] sm:$0xff]
    %v5133 = vld [vmem:[%s5074 + $0x1d0] sm:$0xff]
    %v5134 = vld [vmem:[%s5074 + $0x1d8] sm:$0xff]
    %v5135 = vld [vmem:[%s5074 + $0x1e0] sm:$0xff]
    %v5136 = vld [vmem:[%s5074 + $0x1e8] sm:$0xff]
    %v5137 = vld [vmem:[%s5074 + $0x1f0] sm:$0xff]
    %v5138 = vld [vmem:[%s5074 + $0x1f8] sm:$0xff]
    %5139 = vmatpush.msra.mxu0 %v5105
    %5140 = vmatpush.msra.mxu0 %v5103
    %5141 = vmatpush.msra.mxu0 %v5101
    %5142 = vmatpush.msra.mxu0 %v5099
    %5143 = vmatpush.msra.mxu0 %v5097
    %5144 = vmatpush.msra.mxu0 %v5095
    %5145 = vmatpush.msra.mxu0 %v5093
    %5146 = vmatpush.msra.mxu0 %v5091
    %5147 = vmatpush.msra.mxu0 %v5089
    %5148 = vmatpush.msra.mxu0 %v5087
    %5149 = vmatpush.msra.mxu0 %v5085
    %5150 = vmatpush.msra.mxu0 %v5083
    %5151 = vmatpush.msra.mxu0 %v5081
    %5152 = vmatpush.msra.mxu0 %v5079
    %5153 = vmatpush.msra.mxu0 %v5077
    %5154 = vmatpush.msra.mxu0 %v5075
    %5155 = vmatmul.f32.gmra.mxu0 %v5070
    %v5156 = vpop.f32.mrf.mxu0
    %v5157 = vadd.f32 0.0, %v5156
    %5158 = vdwg.mxu0
    %5159 = vmatpush.msra.mxu0 %v5137
    %5160 = vmatpush.msra.mxu0 %v5135
    %5161 = vmatpush.msra.mxu0 %v5133
    %5162 = vmatpush.msra.mxu0 %v5131
    %5163 = vmatpush.msra.mxu0 %v5129
    %5164 = vmatpush.msra.mxu0 %v5127
    %5165 = vmatpush.msra.mxu0 %v5125
    %5166 = vmatpush.msra.mxu0 %v5123
    %5167 = vmatpush.msra.mxu0 %v5121
    %5168 = vmatpush.msra.mxu0 %v5119
    %5169 = vmatpush.msra.mxu0 %v5117
    %5170 = vmatpush.msra.mxu0 %v5115
    %5171 = vmatpush.msra.mxu0 %v5113
    %5172 = vmatpush.msra.mxu0 %v5111
    %5173 = vmatpush.msra.mxu0 %v5109
    %5174 = vmatpush.msra.mxu0 %v5107
    %5175 = vmatmul.f32.gmra.mxu0 %v5071
    %v5176 = vpop.f32.mrf.mxu0
    %v5177 = vadd.f32 %v5157, %v5176
    %5178 = vdwg.mxu0
    %5179 = vmatpush.msra.mxu0 %v5106
    %5180 = vmatpush.msra.mxu0 %v5104
    %5181 = vmatpush.msra.mxu0 %v5102
    %5182 = vmatpush.msra.mxu0 %v5100
    %5183 = vmatpush.msra.mxu0 %v5098
    %5184 = vmatpush.msra.mxu0 %v5096
    %5185 = vmatpush.msra.mxu0 %v5094
    %5186 = vmatpush.msra.mxu0 %v5092
    %5187 = vmatpush.msra.mxu0 %v5090
    %5188 = vmatpush.msra.mxu0 %v5088
    %5189 = vmatpush.msra.mxu0 %v5086
    %5190 = vmatpush.msra.mxu0 %v5084
    %5191 = vmatpush.msra.mxu0 %v5082
    %5192 = vmatpush.msra.mxu0 %v5080
    %5193 = vmatpush.msra.mxu0 %v5078
    %5194 = vmatpush.msra.mxu0 %v5076
    %5195 = vmatmul.f32.gmra.mxu0 %v5070
    %v5196 = vpop.f32.mrf.mxu0
    %v5197 = vadd.f32 0.0, %v5196
    %5198 = vdwg.mxu0
    %5199 = vmatpush.msra.mxu0 %v5138
    %5200 = vmatpush.msra.mxu0 %v5136
    %5201 = vmatpush.msra.mxu0 %v5134
    %5202 = vmatpush.msra.mxu0 %v5132
    %5203 = vmatpush.msra.mxu0 %v5130
    %5204 = vmatpush.msra.mxu0 %v5128
    %5205 = vmatpush.msra.mxu0 %v5126
    %5206 = vmatpush.msra.mxu0 %v5124
    %5207 = vmatpush.msra.mxu0 %v5122
    %5208 = vmatpush.msra.mxu0 %v5120
    %5209 = vmatpush.msra.mxu0 %v5118
    %5210 = vmatpush.msra.mxu0 %v5116
    %5211 = vmatpush.msra.mxu0 %v5114
    %5212 = vmatpush.msra.mxu0 %v5112
    %5213 = vmatpush.msra.mxu0 %v5110
    %5214 = vmatpush.msra.mxu0 %v5108
    %5215 = vmatmul.f32.gmra.mxu0 %v5071
    %v5216 = vpop.f32.mrf.mxu0
    %v5217 = vadd.f32 %v5197, %v5216
    %5218 = vdwg.mxu0
    %v5219 = vadd.f32 %v5072, %v5177
    %v5220 = vadd.f32 %v5073, %v5217
    %5221 = vst [vmem:[#allocation2] sm:$0xff] %v5219
    %5222 = vst [vmem:[#allocation2 + $0x8] sm:$0xff] %v5220
    %v5223 = vld [vmem:[%s0 + $0xc8] sm:$0xff]
    %5224 = vst [vmem:[#allocation1] ss:$2 sm:$0xff] %v114
    %v5225 = vld.sshfl [vmem:[#allocation1] sm:$0xff pattern:$0x75316420]
    %v5226 = vld.sshfl [vmem:[#allocation1 + $0x8] sm:$0xff pattern:$0x75316420]
    %v5228 = vsel %vm126, %v5223, 0
    %v5230 = vsel %vm130, %v5225, 0
    %v5232 = vsel %vm130, %v5226, 0
    %5234 = vmatpush.msra.mxu0 0.0
    %5235 = vmatpush.msra.mxu0 0.0
    %5236 = vmatpush.msra.mxu0 0.0
    %5237 = vmatpush.msra.mxu0 0.0
    %5238 = vmatpush.msra.mxu0 0.0
    %5239 = vmatpush.msra.mxu0 0.0
    %5240 = vmatpush.msra.mxu0 0.0
    %5241 = vmatpush.msra.mxu0 0.0
    %5242 = vmatpush.msra.mxu0 0.0
    %5243 = vmatpush.msra.mxu0 0.0
    %5244 = vmatpush.msra.mxu0 0.0
    %5245 = vmatpush.msra.mxu0 0.0
    %5246 = vmatpush.msra.mxu0 0.0
    %5247 = vmatpush.msra.mxu0 0.0
    %5248 = vmatpush.msra.mxu0 0.0
    %5249 = vmatpush.msra.mxu0 %v5230
    %5250 = vmatmul.f32.gmra.mxu0 %v5228
    %v5251 = vpop.f32.mrf.mxu0
    %v5252 = vadd.f32 %v117, %v5251
    %5253 = vdwg.mxu0
    %5254 = vmatpush.msra.mxu0 0.0
    %5255 = vmatpush.msra.mxu0 0.0
    %5256 = vmatpush.msra.mxu0 0.0
    %5257 = vmatpush.msra.mxu0 0.0
    %5258 = vmatpush.msra.mxu0 0.0
    %5259 = vmatpush.msra.mxu0 0.0
    %5260 = vmatpush.msra.mxu0 0.0
    %5261 = vmatpush.msra.mxu0 0.0
    %5262 = vmatpush.msra.mxu0 0.0
    %5263 = vmatpush.msra.mxu0 0.0
    %5264 = vmatpush.msra.mxu0 0.0
    %5265 = vmatpush.msra.mxu0 0.0
    %5266 = vmatpush.msra.mxu0 0.0
    %5267 = vmatpush.msra.mxu0 0.0
    %5268 = vmatpush.msra.mxu0 0.0
    %5269 = vmatpush.msra.mxu0 %v5232
    %5270 = vmatmul.f32.gmra.mxu0 %v5228
    %v5271 = vpop.f32.mrf.mxu0
    %v5272 = vadd.f32 %v118, %v5271
    %5273 = vdwg.mxu0
    %v5274 = vmax.f32 %v5252, 0.0
    %v5275 = vmax.f32 %v5272, 0.0
    %v5276 = vld [vmem:[#allocation2] sm:$0xff]
    %v5277 = vld [vmem:[#allocation2 + $0x8] sm:$0xff]
    %s5278 = scalar_lea.vmem [#allocation7], 12800
    %v5279 = vld [vmem:[%s5278] sm:$0xff]
    %v5280 = vld [vmem:[%s5278 + $0x8] sm:$0xff]
    %v5281 = vld [vmem:[%s5278 + $0x10] sm:$0xff]
    %v5282 = vld [vmem:[%s5278 + $0x18] sm:$0xff]
    %v5283 = vld [vmem:[%s5278 + $0x20] sm:$0xff]
    %v5284 = vld [vmem:[%s5278 + $0x28] sm:$0xff]
    %v5285 = vld [vmem:[%s5278 + $0x30] sm:$0xff]
    %v5286 = vld [vmem:[%s5278 + $0x38] sm:$0xff]
    %v5287 = vld [vmem:[%s5278 + $0x40] sm:$0xff]
    %v5288 = vld [vmem:[%s5278 + $0x48] sm:$0xff]
    %v5289 = vld [vmem:[%s5278 + $0x50] sm:$0xff]
    %v5290 = vld [vmem:[%s5278 + $0x58] sm:$0xff]
    %v5291 = vld [vmem:[%s5278 + $0x60] sm:$0xff]
    %v5292 = vld [vmem:[%s5278 + $0x68] sm:$0xff]
    %v5293 = vld [vmem:[%s5278 + $0x70] sm:$0xff]
    %v5294 = vld [vmem:[%s5278 + $0x78] sm:$0xff]
    %v5295 = vld [vmem:[%s5278 + $0x80] sm:$0xff]
    %v5296 = vld [vmem:[%s5278 + $0x88] sm:$0xff]
    %v5297 = vld [vmem:[%s5278 + $0x90] sm:$0xff]
    %v5298 = vld [vmem:[%s5278 + $0x98] sm:$0xff]
    %v5299 = vld [vmem:[%s5278 + $0xa0] sm:$0xff]
    %v5300 = vld [vmem:[%s5278 + $0xa8] sm:$0xff]
    %v5301 = vld [vmem:[%s5278 + $0xb0] sm:$0xff]
    %v5302 = vld [vmem:[%s5278 + $0xb8] sm:$0xff]
    %v5303 = vld [vmem:[%s5278 + $0xc0] sm:$0xff]
    %v5304 = vld [vmem:[%s5278 + $0xc8] sm:$0xff]
    %v5305 = vld [vmem:[%s5278 + $0xd0] sm:$0xff]
    %v5306 = vld [vmem:[%s5278 + $0xd8] sm:$0xff]
    %v5307 = vld [vmem:[%s5278 + $0xe0] sm:$0xff]
    %v5308 = vld [vmem:[%s5278 + $0xe8] sm:$0xff]
    %v5309 = vld [vmem:[%s5278 + $0xf0] sm:$0xff]
    %v5310 = vld [vmem:[%s5278 + $0xf8] sm:$0xff]
    %v5311 = vld [vmem:[%s5278 + $0x100] sm:$0xff]
    %v5312 = vld [vmem:[%s5278 + $0x108] sm:$0xff]
    %v5313 = vld [vmem:[%s5278 + $0x110] sm:$0xff]
    %v5314 = vld [vmem:[%s5278 + $0x118] sm:$0xff]
    %v5315 = vld [vmem:[%s5278 + $0x120] sm:$0xff]
    %v5316 = vld [vmem:[%s5278 + $0x128] sm:$0xff]
    %v5317 = vld [vmem:[%s5278 + $0x130] sm:$0xff]
    %v5318 = vld [vmem:[%s5278 + $0x138] sm:$0xff]
    %v5319 = vld [vmem:[%s5278 + $0x140] sm:$0xff]
    %v5320 = vld [vmem:[%s5278 + $0x148] sm:$0xff]
    %v5321 = vld [vmem:[%s5278 + $0x150] sm:$0xff]
    %v5322 = vld [vmem:[%s5278 + $0x158] sm:$0xff]
    %v5323 = vld [vmem:[%s5278 + $0x160] sm:$0xff]
    %v5324 = vld [vmem:[%s5278 + $0x168] sm:$0xff]
    %v5325 = vld [vmem:[%s5278 + $0x170] sm:$0xff]
    %v5326 = vld [vmem:[%s5278 + $0x178] sm:$0xff]
    %v5327 = vld [vmem:[%s5278 + $0x180] sm:$0xff]
    %v5328 = vld [vmem:[%s5278 + $0x188] sm:$0xff]
    %v5329 = vld [vmem:[%s5278 + $0x190] sm:$0xff]
    %v5330 = vld [vmem:[%s5278 + $0x198] sm:$0xff]
    %v5331 = vld [vmem:[%s5278 + $0x1a0] sm:$0xff]
    %v5332 = vld [vmem:[%s5278 + $0x1a8] sm:$0xff]
    %v5333 = vld [vmem:[%s5278 + $0x1b0] sm:$0xff]
    %v5334 = vld [vmem:[%s5278 + $0x1b8] sm:$0xff]
    %v5335 = vld [vmem:[%s5278 + $0x1c0] sm:$0xff]
    %v5336 = vld [vmem:[%s5278 + $0x1c8] sm:$0xff]
    %v5337 = vld [vmem:[%s5278 + $0x1d0] sm:$0xff]
    %v5338 = vld [vmem:[%s5278 + $0x1d8] sm:$0xff]
    %v5339 = vld [vmem:[%s5278 + $0x1e0] sm:$0xff]
    %v5340 = vld [vmem:[%s5278 + $0x1e8] sm:$0xff]
    %v5341 = vld [vmem:[%s5278 + $0x1f0] sm:$0xff]
    %v5342 = vld [vmem:[%s5278 + $0x1f8] sm:$0xff]
    %5343 = vmatpush.msra.mxu0 %v5309
    %5344 = vmatpush.msra.mxu0 %v5307
    %5345 = vmatpush.msra.mxu0 %v5305
    %5346 = vmatpush.msra.mxu0 %v5303
    %5347 = vmatpush.msra.mxu0 %v5301
    %5348 = vmatpush.msra.mxu0 %v5299
    %5349 = vmatpush.msra.mxu0 %v5297
    %5350 = vmatpush.msra.mxu0 %v5295
    %5351 = vmatpush.msra.mxu0 %v5293
    %5352 = vmatpush.msra.mxu0 %v5291
    %5353 = vmatpush.msra.mxu0 %v5289
    %5354 = vmatpush.msra.mxu0 %v5287
    %5355 = vmatpush.msra.mxu0 %v5285
    %5356 = vmatpush.msra.mxu0 %v5283
    %5357 = vmatpush.msra.mxu0 %v5281
    %5358 = vmatpush.msra.mxu0 %v5279
    %5359 = vmatmul.f32.gmra.mxu0 %v5274
    %v5360 = vpop.f32.mrf.mxu0
    %v5361 = vadd.f32 0.0, %v5360
    %5362 = vdwg.mxu0
    %5363 = vmatpush.msra.mxu0 %v5341
    %5364 = vmatpush.msra.mxu0 %v5339
    %5365 = vmatpush.msra.mxu0 %v5337
    %5366 = vmatpush.msra.mxu0 %v5335
    %5367 = vmatpush.msra.mxu0 %v5333
    %5368 = vmatpush.msra.mxu0 %v5331
    %5369 = vmatpush.msra.mxu0 %v5329
    %5370 = vmatpush.msra.mxu0 %v5327
    %5371 = vmatpush.msra.mxu0 %v5325
    %5372 = vmatpush.msra.mxu0 %v5323
    %5373 = vmatpush.msra.mxu0 %v5321
    %5374 = vmatpush.msra.mxu0 %v5319
    %5375 = vmatpush.msra.mxu0 %v5317
    %5376 = vmatpush.msra.mxu0 %v5315
    %5377 = vmatpush.msra.mxu0 %v5313
    %5378 = vmatpush.msra.mxu0 %v5311
    %5379 = vmatmul.f32.gmra.mxu0 %v5275
    %v5380 = vpop.f32.mrf.mxu0
    %v5381 = vadd.f32 %v5361, %v5380
    %5382 = vdwg.mxu0
    %5383 = vmatpush.msra.mxu0 %v5310
    %5384 = vmatpush.msra.mxu0 %v5308
    %5385 = vmatpush.msra.mxu0 %v5306
    %5386 = vmatpush.msra.mxu0 %v5304
    %5387 = vmatpush.msra.mxu0 %v5302
    %5388 = vmatpush.msra.mxu0 %v5300
    %5389 = vmatpush.msra.mxu0 %v5298
    %5390 = vmatpush.msra.mxu0 %v5296
    %5391 = vmatpush.msra.mxu0 %v5294
    %5392 = vmatpush.msra.mxu0 %v5292
    %5393 = vmatpush.msra.mxu0 %v5290
    %5394 = vmatpush.msra.mxu0 %v5288
    %5395 = vmatpush.msra.mxu0 %v5286
    %5396 = vmatpush.msra.mxu0 %v5284
    %5397 = vmatpush.msra.mxu0 %v5282
    %5398 = vmatpush.msra.mxu0 %v5280
    %5399 = vmatmul.f32.gmra.mxu0 %v5274
    %v5400 = vpop.f32.mrf.mxu0
    %v5401 = vadd.f32 0.0, %v5400
    %5402 = vdwg.mxu0
    %5403 = vmatpush.msra.mxu0 %v5342
    %5404 = vmatpush.msra.mxu0 %v5340
    %5405 = vmatpush.msra.mxu0 %v5338
    %5406 = vmatpush.msra.mxu0 %v5336
    %5407 = vmatpush.msra.mxu0 %v5334
    %5408 = vmatpush.msra.mxu0 %v5332
    %5409 = vmatpush.msra.mxu0 %v5330
    %5410 = vmatpush.msra.mxu0 %v5328
    %5411 = vmatpush.msra.mxu0 %v5326
    %5412 = vmatpush.msra.mxu0 %v5324
    %5413 = vmatpush.msra.mxu0 %v5322
    %5414 = vmatpush.msra.mxu0 %v5320
    %5415 = vmatpush.msra.mxu0 %v5318
    %5416 = vmatpush.msra.mxu0 %v5316
    %5417 = vmatpush.msra.mxu0 %v5314
    %5418 = vmatpush.msra.mxu0 %v5312
    %5419 = vmatmul.f32.gmra.mxu0 %v5275
    %v5420 = vpop.f32.mrf.mxu0
    %v5421 = vadd.f32 %v5401, %v5420
    %5422 = vdwg.mxu0
    %v5423 = vadd.f32 %v5276, %v5381
    %v5424 = vadd.f32 %v5277, %v5421
    %5425 = vst [vmem:[#allocation2] sm:$0xff] %v5423
    %5426 = vst [vmem:[#allocation2 + $0x8] sm:$0xff] %v5424
    %v5427 = vld [vmem:[%s0 + $0xd0] sm:$0xff]
    %5428 = vst [vmem:[#allocation1] ss:$2 sm:$0xff] %v114
    %v5429 = vld.sshfl [vmem:[#allocation1] sm:$0xff pattern:$0x75316420]
    %v5430 = vld.sshfl [vmem:[#allocation1 + $0x8] sm:$0xff pattern:$0x75316420]
    %v5432 = vsel %vm126, %v5427, 0
    %v5434 = vsel %vm130, %v5429, 0
    %v5436 = vsel %vm130, %v5430, 0
    %5438 = vmatpush.msra.mxu0 0.0
    %5439 = vmatpush.msra.mxu0 0.0
    %5440 = vmatpush.msra.mxu0 0.0
    %5441 = vmatpush.msra.mxu0 0.0
    %5442 = vmatpush.msra.mxu0 0.0
    %5443 = vmatpush.msra.mxu0 0.0
    %5444 = vmatpush.msra.mxu0 0.0
    %5445 = vmatpush.msra.mxu0 0.0
    %5446 = vmatpush.msra.mxu0 0.0
    %5447 = vmatpush.msra.mxu0 0.0
    %5448 = vmatpush.msra.mxu0 0.0
    %5449 = vmatpush.msra.mxu0 0.0
    %5450 = vmatpush.msra.mxu0 0.0
    %5451 = vmatpush.msra.mxu0 0.0
    %5452 = vmatpush.msra.mxu0 0.0
    %5453 = vmatpush.msra.mxu0 %v5434
    %5454 = vmatmul.f32.gmra.mxu0 %v5432
    %v5455 = vpop.f32.mrf.mxu0
    %v5456 = vadd.f32 %v117, %v5455
    %5457 = vdwg.mxu0
    %5458 = vmatpush.msra.mxu0 0.0
    %5459 = vmatpush.msra.mxu0 0.0
    %5460 = vmatpush.msra.mxu0 0.0
    %5461 = vmatpush.msra.mxu0 0.0
    %5462 = vmatpush.msra.mxu0 0.0
    %5463 = vmatpush.msra.mxu0 0.0
    %5464 = vmatpush.msra.mxu0 0.0
    %5465 = vmatpush.msra.mxu0 0.0
    %5466 = vmatpush.msra.mxu0 0.0
    %5467 = vmatpush.msra.mxu0 0.0
    %5468 = vmatpush.msra.mxu0 0.0
    %5469 = vmatpush.msra.mxu0 0.0
    %5470 = vmatpush.msra.mxu0 0.0
    %5471 = vmatpush.msra.mxu0 0.0
    %5472 = vmatpush.msra.mxu0 0.0
    %5473 = vmatpush.msra.mxu0 %v5436
    %5474 = vmatmul.f32.gmra.mxu0 %v5432
    %v5475 = vpop.f32.mrf.mxu0
    %v5476 = vadd.f32 %v118, %v5475
    %5477 = vdwg.mxu0
    %v5478 = vmax.f32 %v5456, 0.0
    %v5479 = vmax.f32 %v5476, 0.0
    %v5480 = vld [vmem:[#allocation2] sm:$0xff]
    %v5481 = vld [vmem:[#allocation2 + $0x8] sm:$0xff]
    %s5482 = scalar_lea.vmem [#allocation7], 13312
    %v5483 = vld [vmem:[%s5482] sm:$0xff]
    %v5484 = vld [vmem:[%s5482 + $0x8] sm:$0xff]
    %v5485 = vld [vmem:[%s5482 + $0x10] sm:$0xff]
    %v5486 = vld [vmem:[%s5482 + $0x18] sm:$0xff]
    %v5487 = vld [vmem:[%s5482 + $0x20] sm:$0xff]
    %v5488 = vld [vmem:[%s5482 + $0x28] sm:$0xff]
    %v5489 = vld [vmem:[%s5482 + $0x30] sm:$0xff]
    %v5490 = vld [vmem:[%s5482 + $0x38] sm:$0xff]
    %v5491 = vld [vmem:[%s5482 + $0x40] sm:$0xff]
    %v5492 = vld [vmem:[%s5482 + $0x48] sm:$0xff]
    %v5493 = vld [vmem:[%s5482 + $0x50] sm:$0xff]
    %v5494 = vld [vmem:[%s5482 + $0x58] sm:$0xff]
    %v5495 = vld [vmem:[%s5482 + $0x60] sm:$0xff]
    %v5496 = vld [vmem:[%s5482 + $0x68] sm:$0xff]
    %v5497 = vld [vmem:[%s5482 + $0x70] sm:$0xff]
    %v5498 = vld [vmem:[%s5482 + $0x78] sm:$0xff]
    %v5499 = vld [vmem:[%s5482 + $0x80] sm:$0xff]
    %v5500 = vld [vmem:[%s5482 + $0x88] sm:$0xff]
    %v5501 = vld [vmem:[%s5482 + $0x90] sm:$0xff]
    %v5502 = vld [vmem:[%s5482 + $0x98] sm:$0xff]
    %v5503 = vld [vmem:[%s5482 + $0xa0] sm:$0xff]
    %v5504 = vld [vmem:[%s5482 + $0xa8] sm:$0xff]
    %v5505 = vld [vmem:[%s5482 + $0xb0] sm:$0xff]
    %v5506 = vld [vmem:[%s5482 + $0xb8] sm:$0xff]
    %v5507 = vld [vmem:[%s5482 + $0xc0] sm:$0xff]
    %v5508 = vld [vmem:[%s5482 + $0xc8] sm:$0xff]
    %v5509 = vld [vmem:[%s5482 + $0xd0] sm:$0xff]
    %v5510 = vld [vmem:[%s5482 + $0xd8] sm:$0xff]
    %v5511 = vld [vmem:[%s5482 + $0xe0] sm:$0xff]
    %v5512 = vld [vmem:[%s5482 + $0xe8] sm:$0xff]
    %v5513 = vld [vmem:[%s5482 + $0xf0] sm:$0xff]
    %v5514 = vld [vmem:[%s5482 + $0xf8] sm:$0xff]
    %v5515 = vld [vmem:[%s5482 + $0x100] sm:$0xff]
    %v5516 = vld [vmem:[%s5482 + $0x108] sm:$0xff]
    %v5517 = vld [vmem:[%s5482 + $0x110] sm:$0xff]
    %v5518 = vld [vmem:[%s5482 + $0x118] sm:$0xff]
    %v5519 = vld [vmem:[%s5482 + $0x120] sm:$0xff]
    %v5520 = vld [vmem:[%s5482 + $0x128] sm:$0xff]
    %v5521 = vld [vmem:[%s5482 + $0x130] sm:$0xff]
    %v5522 = vld [vmem:[%s5482 + $0x138] sm:$0xff]
    %v5523 = vld [vmem:[%s5482 + $0x140] sm:$0xff]
    %v5524 = vld [vmem:[%s5482 + $0x148] sm:$0xff]
    %v5525 = vld [vmem:[%s5482 + $0x150] sm:$0xff]
    %v5526 = vld [vmem:[%s5482 + $0x158] sm:$0xff]
    %v5527 = vld [vmem:[%s5482 + $0x160] sm:$0xff]
    %v5528 = vld [vmem:[%s5482 + $0x168] sm:$0xff]
    %v5529 = vld [vmem:[%s5482 + $0x170] sm:$0xff]
    %v5530 = vld [vmem:[%s5482 + $0x178] sm:$0xff]
    %v5531 = vld [vmem:[%s5482 + $0x180] sm:$0xff]
    %v5532 = vld [vmem:[%s5482 + $0x188] sm:$0xff]
    %v5533 = vld [vmem:[%s5482 + $0x190] sm:$0xff]
    %v5534 = vld [vmem:[%s5482 + $0x198] sm:$0xff]
    %v5535 = vld [vmem:[%s5482 + $0x1a0] sm:$0xff]
    %v5536 = vld [vmem:[%s5482 + $0x1a8] sm:$0xff]
    %v5537 = vld [vmem:[%s5482 + $0x1b0] sm:$0xff]
    %v5538 = vld [vmem:[%s5482 + $0x1b8] sm:$0xff]
    %v5539 = vld [vmem:[%s5482 + $0x1c0] sm:$0xff]
    %v5540 = vld [vmem:[%s5482 + $0x1c8] sm:$0xff]
    %v5541 = vld [vmem:[%s5482 + $0x1d0] sm:$0xff]
    %v5542 = vld [vmem:[%s5482 + $0x1d8] sm:$0xff]
    %v5543 = vld [vmem:[%s5482 + $0x1e0] sm:$0xff]
    %v5544 = vld [vmem:[%s5482 + $0x1e8] sm:$0xff]
    %v5545 = vld [vmem:[%s5482 + $0x1f0] sm:$0xff]
    %v5546 = vld [vmem:[%s5482 + $0x1f8] sm:$0xff]
    %5547 = vmatpush.msra.mxu0 %v5513
    %5548 = vmatpush.msra.mxu0 %v5511
    %5549 = vmatpush.msra.mxu0 %v5509
    %5550 = vmatpush.msra.mxu0 %v5507
    %5551 = vmatpush.msra.mxu0 %v5505
    %5552 = vmatpush.msra.mxu0 %v5503
    %5553 = vmatpush.msra.mxu0 %v5501
    %5554 = vmatpush.msra.mxu0 %v5499
    %5555 = vmatpush.msra.mxu0 %v5497
    %5556 = vmatpush.msra.mxu0 %v5495
    %5557 = vmatpush.msra.mxu0 %v5493
    %5558 = vmatpush.msra.mxu0 %v5491
    %5559 = vmatpush.msra.mxu0 %v5489
    %5560 = vmatpush.msra.mxu0 %v5487
    %5561 = vmatpush.msra.mxu0 %v5485
    %5562 = vmatpush.msra.mxu0 %v5483
    %5563 = vmatmul.f32.gmra.mxu0 %v5478
    %v5564 = vpop.f32.mrf.mxu0
    %v5565 = vadd.f32 0.0, %v5564
    %5566 = vdwg.mxu0
    %5567 = vmatpush.msra.mxu0 %v5545
    %5568 = vmatpush.msra.mxu0 %v5543
    %5569 = vmatpush.msra.mxu0 %v5541
    %5570 = vmatpush.msra.mxu0 %v5539
    %5571 = vmatpush.msra.mxu0 %v5537
    %5572 = vmatpush.msra.mxu0 %v5535
    %5573 = vmatpush.msra.mxu0 %v5533
    %5574 = vmatpush.msra.mxu0 %v5531
    %5575 = vmatpush.msra.mxu0 %v5529
    %5576 = vmatpush.msra.mxu0 %v5527
    %5577 = vmatpush.msra.mxu0 %v5525
    %5578 = vmatpush.msra.mxu0 %v5523
    %5579 = vmatpush.msra.mxu0 %v5521
    %5580 = vmatpush.msra.mxu0 %v5519
    %5581 = vmatpush.msra.mxu0 %v5517
    %5582 = vmatpush.msra.mxu0 %v5515
    %5583 = vmatmul.f32.gmra.mxu0 %v5479
    %v5584 = vpop.f32.mrf.mxu0
    %v5585 = vadd.f32 %v5565, %v5584
    %5586 = vdwg.mxu0
    %5587 = vmatpush.msra.mxu0 %v5514
    %5588 = vmatpush.msra.mxu0 %v5512
    %5589 = vmatpush.msra.mxu0 %v5510
    %5590 = vmatpush.msra.mxu0 %v5508
    %5591 = vmatpush.msra.mxu0 %v5506
    %5592 = vmatpush.msra.mxu0 %v5504
    %5593 = vmatpush.msra.mxu0 %v5502
    %5594 = vmatpush.msra.mxu0 %v5500
    %5595 = vmatpush.msra.mxu0 %v5498
    %5596 = vmatpush.msra.mxu0 %v5496
    %5597 = vmatpush.msra.mxu0 %v5494
    %5598 = vmatpush.msra.mxu0 %v5492
    %5599 = vmatpush.msra.mxu0 %v5490
    %5600 = vmatpush.msra.mxu0 %v5488
    %5601 = vmatpush.msra.mxu0 %v5486
    %5602 = vmatpush.msra.mxu0 %v5484
    %5603 = vmatmul.f32.gmra.mxu0 %v5478
    %v5604 = vpop.f32.mrf.mxu0
    %v5605 = vadd.f32 0.0, %v5604
    %5606 = vdwg.mxu0
    %5607 = vmatpush.msra.mxu0 %v5546
    %5608 = vmatpush.msra.mxu0 %v5544
    %5609 = vmatpush.msra.mxu0 %v5542
    %5610 = vmatpush.msra.mxu0 %v5540
    %5611 = vmatpush.msra.mxu0 %v5538
    %5612 = vmatpush.msra.mxu0 %v5536
    %5613 = vmatpush.msra.mxu0 %v5534
    %5614 = vmatpush.msra.mxu0 %v5532
    %5615 = vmatpush.msra.mxu0 %v5530
    %5616 = vmatpush.msra.mxu0 %v5528
    %5617 = vmatpush.msra.mxu0 %v5526
    %5618 = vmatpush.msra.mxu0 %v5524
    %5619 = vmatpush.msra.mxu0 %v5522
    %5620 = vmatpush.msra.mxu0 %v5520
    %5621 = vmatpush.msra.mxu0 %v5518
    %5622 = vmatpush.msra.mxu0 %v5516
    %5623 = vmatmul.f32.gmra.mxu0 %v5479
    %v5624 = vpop.f32.mrf.mxu0
    %v5625 = vadd.f32 %v5605, %v5624
    %5626 = vdwg.mxu0
    %v5627 = vadd.f32 %v5480, %v5585
    %v5628 = vadd.f32 %v5481, %v5625
    %5629 = vst [vmem:[#allocation2] sm:$0xff] %v5627
    %5630 = vst [vmem:[#allocation2 + $0x8] sm:$0xff] %v5628
    %v5631 = vld [vmem:[%s0 + $0xd8] sm:$0xff]
    %5632 = vst [vmem:[#allocation1] ss:$2 sm:$0xff] %v114
    %v5633 = vld.sshfl [vmem:[#allocation1] sm:$0xff pattern:$0x75316420]
    %v5634 = vld.sshfl [vmem:[#allocation1 + $0x8] sm:$0xff pattern:$0x75316420]
    %v5636 = vsel %vm126, %v5631, 0
    %v5638 = vsel %vm130, %v5633, 0
    %v5640 = vsel %vm130, %v5634, 0
    %5642 = vmatpush.msra.mxu0 0.0
    %5643 = vmatpush.msra.mxu0 0.0
    %5644 = vmatpush.msra.mxu0 0.0
    %5645 = vmatpush.msra.mxu0 0.0
    %5646 = vmatpush.msra.mxu0 0.0
    %5647 = vmatpush.msra.mxu0 0.0
    %5648 = vmatpush.msra.mxu0 0.0
    %5649 = vmatpush.msra.mxu0 0.0
    %5650 = vmatpush.msra.mxu0 0.0
    %5651 = vmatpush.msra.mxu0 0.0
    %5652 = vmatpush.msra.mxu0 0.0
    %5653 = vmatpush.msra.mxu0 0.0
    %5654 = vmatpush.msra.mxu0 0.0
    %5655 = vmatpush.msra.mxu0 0.0
    %5656 = vmatpush.msra.mxu0 0.0
    %5657 = vmatpush.msra.mxu0 %v5638
    %5658 = vmatmul.f32.gmra.mxu0 %v5636
    %v5659 = vpop.f32.mrf.mxu0
    %v5660 = vadd.f32 %v117, %v5659
    %5661 = vdwg.mxu0
    %5662 = vmatpush.msra.mxu0 0.0
    %5663 = vmatpush.msra.mxu0 0.0
    %5664 = vmatpush.msra.mxu0 0.0
    %5665 = vmatpush.msra.mxu0 0.0
    %5666 = vmatpush.msra.mxu0 0.0
    %5667 = vmatpush.msra.mxu0 0.0
    %5668 = vmatpush.msra.mxu0 0.0
    %5669 = vmatpush.msra.mxu0 0.0
    %5670 = vmatpush.msra.mxu0 0.0
    %5671 = vmatpush.msra.mxu0 0.0
    %5672 = vmatpush.msra.mxu0 0.0
    %5673 = vmatpush.msra.mxu0 0.0
    %5674 = vmatpush.msra.mxu0 0.0
    %5675 = vmatpush.msra.mxu0 0.0
    %5676 = vmatpush.msra.mxu0 0.0
    %5677 = vmatpush.msra.mxu0 %v5640
    %5678 = vmatmul.f32.gmra.mxu0 %v5636
    %v5679 = vpop.f32.mrf.mxu0
    %v5680 = vadd.f32 %v118, %v5679
    %5681 = vdwg.mxu0
    %v5682 = vmax.f32 %v5660, 0.0
    %v5683 = vmax.f32 %v5680, 0.0
    %v5684 = vld [vmem:[#allocation2] sm:$0xff]
    %v5685 = vld [vmem:[#allocation2 + $0x8] sm:$0xff]
    %s5686 = scalar_lea.vmem [#allocation7], 13824
    %v5687 = vld [vmem:[%s5686] sm:$0xff]
    %v5688 = vld [vmem:[%s5686 + $0x8] sm:$0xff]
    %v5689 = vld [vmem:[%s5686 + $0x10] sm:$0xff]
    %v5690 = vld [vmem:[%s5686 + $0x18] sm:$0xff]
    %v5691 = vld [vmem:[%s5686 + $0x20] sm:$0xff]
    %v5692 = vld [vmem:[%s5686 + $0x28] sm:$0xff]
    %v5693 = vld [vmem:[%s5686 + $0x30] sm:$0xff]
    %v5694 = vld [vmem:[%s5686 + $0x38] sm:$0xff]
    %v5695 = vld [vmem:[%s5686 + $0x40] sm:$0xff]
    %v5696 = vld [vmem:[%s5686 + $0x48] sm:$0xff]
    %v5697 = vld [vmem:[%s5686 + $0x50] sm:$0xff]
    %v5698 = vld [vmem:[%s5686 + $0x58] sm:$0xff]
    %v5699 = vld [vmem:[%s5686 + $0x60] sm:$0xff]
    %v5700 = vld [vmem:[%s5686 + $0x68] sm:$0xff]
    %v5701 = vld [vmem:[%s5686 + $0x70] sm:$0xff]
    %v5702 = vld [vmem:[%s5686 + $0x78] sm:$0xff]
    %v5703 = vld [vmem:[%s5686 + $0x80] sm:$0xff]
    %v5704 = vld [vmem:[%s5686 + $0x88] sm:$0xff]
    %v5705 = vld [vmem:[%s5686 + $0x90] sm:$0xff]
    %v5706 = vld [vmem:[%s5686 + $0x98] sm:$0xff]
    %v5707 = vld [vmem:[%s5686 + $0xa0] sm:$0xff]
    %v5708 = vld [vmem:[%s5686 + $0xa8] sm:$0xff]
    %v5709 = vld [vmem:[%s5686 + $0xb0] sm:$0xff]
    %v5710 = vld [vmem:[%s5686 + $0xb8] sm:$0xff]
    %v5711 = vld [vmem:[%s5686 + $0xc0] sm:$0xff]
    %v5712 = vld [vmem:[%s5686 + $0xc8] sm:$0xff]
    %v5713 = vld [vmem:[%s5686 + $0xd0] sm:$0xff]
    %v5714 = vld [vmem:[%s5686 + $0xd8] sm:$0xff]
    %v5715 = vld [vmem:[%s5686 + $0xe0] sm:$0xff]
    %v5716 = vld [vmem:[%s5686 + $0xe8] sm:$0xff]
    %v5717 = vld [vmem:[%s5686 + $0xf0] sm:$0xff]
    %v5718 = vld [vmem:[%s5686 + $0xf8] sm:$0xff]
    %v5719 = vld [vmem:[%s5686 + $0x100] sm:$0xff]
    %v5720 = vld [vmem:[%s5686 + $0x108] sm:$0xff]
    %v5721 = vld [vmem:[%s5686 + $0x110] sm:$0xff]
    %v5722 = vld [vmem:[%s5686 + $0x118] sm:$0xff]
    %v5723 = vld [vmem:[%s5686 + $0x120] sm:$0xff]
    %v5724 = vld [vmem:[%s5686 + $0x128] sm:$0xff]
    %v5725 = vld [vmem:[%s5686 + $0x130] sm:$0xff]
    %v5726 = vld [vmem:[%s5686 + $0x138] sm:$0xff]
    %v5727 = vld [vmem:[%s5686 + $0x140] sm:$0xff]
    %v5728 = vld [vmem:[%s5686 + $0x148] sm:$0xff]
    %v5729 = vld [vmem:[%s5686 + $0x150] sm:$0xff]
    %v5730 = vld [vmem:[%s5686 + $0x158] sm:$0xff]
    %v5731 = vld [vmem:[%s5686 + $0x160] sm:$0xff]
    %v5732 = vld [vmem:[%s5686 + $0x168] sm:$0xff]
    %v5733 = vld [vmem:[%s5686 + $0x170] sm:$0xff]
    %v5734 = vld [vmem:[%s5686 + $0x178] sm:$0xff]
    %v5735 = vld [vmem:[%s5686 + $0x180] sm:$0xff]
    %v5736 = vld [vmem:[%s5686 + $0x188] sm:$0xff]
    %v5737 = vld [vmem:[%s5686 + $0x190] sm:$0xff]
    %v5738 = vld [vmem:[%s5686 + $0x198] sm:$0xff]
    %v5739 = vld [vmem:[%s5686 + $0x1a0] sm:$0xff]
    %v5740 = vld [vmem:[%s5686 + $0x1a8] sm:$0xff]
    %v5741 = vld [vmem:[%s5686 + $0x1b0] sm:$0xff]
    %v5742 = vld [vmem:[%s5686 + $0x1b8] sm:$0xff]
    %v5743 = vld [vmem:[%s5686 + $0x1c0] sm:$0xff]
    %v5744 = vld [vmem:[%s5686 + $0x1c8] sm:$0xff]
    %v5745 = vld [vmem:[%s5686 + $0x1d0] sm:$0xff]
    %v5746 = vld [vmem:[%s5686 + $0x1d8] sm:$0xff]
    %v5747 = vld [vmem:[%s5686 + $0x1e0] sm:$0xff]
    %v5748 = vld [vmem:[%s5686 + $0x1e8] sm:$0xff]
    %v5749 = vld [vmem:[%s5686 + $0x1f0] sm:$0xff]
    %v5750 = vld [vmem:[%s5686 + $0x1f8] sm:$0xff]
    %5751 = vmatpush.msra.mxu0 %v5717
    %5752 = vmatpush.msra.mxu0 %v5715
    %5753 = vmatpush.msra.mxu0 %v5713
    %5754 = vmatpush.msra.mxu0 %v5711
    %5755 = vmatpush.msra.mxu0 %v5709
    %5756 = vmatpush.msra.mxu0 %v5707
    %5757 = vmatpush.msra.mxu0 %v5705
    %5758 = vmatpush.msra.mxu0 %v5703
    %5759 = vmatpush.msra.mxu0 %v5701
    %5760 = vmatpush.msra.mxu0 %v5699
    %5761 = vmatpush.msra.mxu0 %v5697
    %5762 = vmatpush.msra.mxu0 %v5695
    %5763 = vmatpush.msra.mxu0 %v5693
    %5764 = vmatpush.msra.mxu0 %v5691
    %5765 = vmatpush.msra.mxu0 %v5689
    %5766 = vmatpush.msra.mxu0 %v5687
    %5767 = vmatmul.f32.gmra.mxu0 %v5682
    %v5768 = vpop.f32.mrf.mxu0
    %v5769 = vadd.f32 0.0, %v5768
    %5770 = vdwg.mxu0
    %5771 = vmatpush.msra.mxu0 %v5749
    %5772 = vmatpush.msra.mxu0 %v5747
    %5773 = vmatpush.msra.mxu0 %v5745
    %5774 = vmatpush.msra.mxu0 %v5743
    %5775 = vmatpush.msra.mxu0 %v5741
    %5776 = vmatpush.msra.mxu0 %v5739
    %5777 = vmatpush.msra.mxu0 %v5737
    %5778 = vmatpush.msra.mxu0 %v5735
    %5779 = vmatpush.msra.mxu0 %v5733
    %5780 = vmatpush.msra.mxu0 %v5731
    %5781 = vmatpush.msra.mxu0 %v5729
    %5782 = vmatpush.msra.mxu0 %v5727
    %5783 = vmatpush.msra.mxu0 %v5725
    %5784 = vmatpush.msra.mxu0 %v5723
    %5785 = vmatpush.msra.mxu0 %v5721
    %5786 = vmatpush.msra.mxu0 %v5719
    %5787 = vmatmul.f32.gmra.mxu0 %v5683
    %v5788 = vpop.f32.mrf.mxu0
    %v5789 = vadd.f32 %v5769, %v5788
    %5790 = vdwg.mxu0
    %5791 = vmatpush.msra.mxu0 %v5718
    %5792 = vmatpush.msra.mxu0 %v5716
    %5793 = vmatpush.msra.mxu0 %v5714
    %5794 = vmatpush.msra.mxu0 %v5712
    %5795 = vmatpush.msra.mxu0 %v5710
    %5796 = vmatpush.msra.mxu0 %v5708
    %5797 = vmatpush.msra.mxu0 %v5706
    %5798 = vmatpush.msra.mxu0 %v5704
    %5799 = vmatpush.msra.mxu0 %v5702
    %5800 = vmatpush.msra.mxu0 %v5700
    %5801 = vmatpush.msra.mxu0 %v5698
    %5802 = vmatpush.msra.mxu0 %v5696
    %5803 = vmatpush.msra.mxu0 %v5694
    %5804 = vmatpush.msra.mxu0 %v5692
    %5805 = vmatpush.msra.mxu0 %v5690
    %5806 = vmatpush.msra.mxu0 %v5688
    %5807 = vmatmul.f32.gmra.mxu0 %v5682
    %v5808 = vpop.f32.mrf.mxu0
    %v5809 = vadd.f32 0.0, %v5808
    %5810 = vdwg.mxu0
    %5811 = vmatpush.msra.mxu0 %v5750
    %5812 = vmatpush.msra.mxu0 %v5748
    %5813 = vmatpush.msra.mxu0 %v5746
    %5814 = vmatpush.msra.mxu0 %v5744
    %5815 = vmatpush.msra.mxu0 %v5742
    %5816 = vmatpush.msra.mxu0 %v5740
    %5817 = vmatpush.msra.mxu0 %v5738
    %5818 = vmatpush.msra.mxu0 %v5736
    %5819 = vmatpush.msra.mxu0 %v5734
    %5820 = vmatpush.msra.mxu0 %v5732
    %5821 = vmatpush.msra.mxu0 %v5730
    %5822 = vmatpush.msra.mxu0 %v5728
    %5823 = vmatpush.msra.mxu0 %v5726
    %5824 = vmatpush.msra.mxu0 %v5724
    %5825 = vmatpush.msra.mxu0 %v5722
    %5826 = vmatpush.msra.mxu0 %v5720
    %5827 = vmatmul.f32.gmra.mxu0 %v5683
    %v5828 = vpop.f32.mrf.mxu0
    %v5829 = vadd.f32 %v5809, %v5828
    %5830 = vdwg.mxu0
    %v5831 = vadd.f32 %v5684, %v5789
    %v5832 = vadd.f32 %v5685, %v5829
    %5833 = vst [vmem:[#allocation2] sm:$0xff] %v5831
    %5834 = vst [vmem:[#allocation2 + $0x8] sm:$0xff] %v5832
    %v5835 = vld [vmem:[%s0 + $0xe0] sm:$0xff]
    %5836 = vst [vmem:[#allocation1] ss:$2 sm:$0xff] %v114
    %v5837 = vld.sshfl [vmem:[#allocation1] sm:$0xff pattern:$0x75316420]
    %v5838 = vld.sshfl [vmem:[#allocation1 + $0x8] sm:$0xff pattern:$0x75316420]
    %v5840 = vsel %vm126, %v5835, 0
    %v5842 = vsel %vm130, %v5837, 0
    %v5844 = vsel %vm130, %v5838, 0
    %5846 = vmatpush.msra.mxu0 0.0
    %5847 = vmatpush.msra.mxu0 0.0
    %5848 = vmatpush.msra.mxu0 0.0
    %5849 = vmatpush.msra.mxu0 0.0
    %5850 = vmatpush.msra.mxu0 0.0
    %5851 = vmatpush.msra.mxu0 0.0
    %5852 = vmatpush.msra.mxu0 0.0
    %5853 = vmatpush.msra.mxu0 0.0
    %5854 = vmatpush.msra.mxu0 0.0
    %5855 = vmatpush.msra.mxu0 0.0
    %5856 = vmatpush.msra.mxu0 0.0
    %5857 = vmatpush.msra.mxu0 0.0
    %5858 = vmatpush.msra.mxu0 0.0
    %5859 = vmatpush.msra.mxu0 0.0
    %5860 = vmatpush.msra.mxu0 0.0
    %5861 = vmatpush.msra.mxu0 %v5842
    %5862 = vmatmul.f32.gmra.mxu0 %v5840
    %v5863 = vpop.f32.mrf.mxu0
    %v5864 = vadd.f32 %v117, %v5863
    %5865 = vdwg.mxu0
    %5866 = vmatpush.msra.mxu0 0.0
    %5867 = vmatpush.msra.mxu0 0.0
    %5868 = vmatpush.msra.mxu0 0.0
    %5869 = vmatpush.msra.mxu0 0.0
    %5870 = vmatpush.msra.mxu0 0.0
    %5871 = vmatpush.msra.mxu0 0.0
    %5872 = vmatpush.msra.mxu0 0.0
    %5873 = vmatpush.msra.mxu0 0.0
    %5874 = vmatpush.msra.mxu0 0.0
    %5875 = vmatpush.msra.mxu0 0.0
    %5876 = vmatpush.msra.mxu0 0.0
    %5877 = vmatpush.msra.mxu0 0.0
    %5878 = vmatpush.msra.mxu0 0.0
    %5879 = vmatpush.msra.mxu0 0.0
    %5880 = vmatpush.msra.mxu0 0.0
    %5881 = vmatpush.msra.mxu0 %v5844
    %5882 = vmatmul.f32.gmra.mxu0 %v5840
    %v5883 = vpop.f32.mrf.mxu0
    %v5884 = vadd.f32 %v118, %v5883
    %5885 = vdwg.mxu0
    %v5886 = vmax.f32 %v5864, 0.0
    %v5887 = vmax.f32 %v5884, 0.0
    %v5888 = vld [vmem:[#allocation2] sm:$0xff]
    %v5889 = vld [vmem:[#allocation2 + $0x8] sm:$0xff]
    %s5890 = scalar_lea.vmem [#allocation7], 14336
    %v5891 = vld [vmem:[%s5890] sm:$0xff]
    %v5892 = vld [vmem:[%s5890 + $0x8] sm:$0xff]
    %v5893 = vld [vmem:[%s5890 + $0x10] sm:$0xff]
    %v5894 = vld [vmem:[%s5890 + $0x18] sm:$0xff]
    %v5895 = vld [vmem:[%s5890 + $0x20] sm:$0xff]
    %v5896 = vld [vmem:[%s5890 + $0x28] sm:$0xff]
    %v5897 = vld [vmem:[%s5890 + $0x30] sm:$0xff]
    %v5898 = vld [vmem:[%s5890 + $0x38] sm:$0xff]
    %v5899 = vld [vmem:[%s5890 + $0x40] sm:$0xff]
    %v5900 = vld [vmem:[%s5890 + $0x48] sm:$0xff]
    %v5901 = vld [vmem:[%s5890 + $0x50] sm:$0xff]
    %v5902 = vld [vmem:[%s5890 + $0x58] sm:$0xff]
    %v5903 = vld [vmem:[%s5890 + $0x60] sm:$0xff]
    %v5904 = vld [vmem:[%s5890 + $0x68] sm:$0xff]
    %v5905 = vld [vmem:[%s5890 + $0x70] sm:$0xff]
    %v5906 = vld [vmem:[%s5890 + $0x78] sm:$0xff]
    %v5907 = vld [vmem:[%s5890 + $0x80] sm:$0xff]
    %v5908 = vld [vmem:[%s5890 + $0x88] sm:$0xff]
    %v5909 = vld [vmem:[%s5890 + $0x90] sm:$0xff]
    %v5910 = vld [vmem:[%s5890 + $0x98] sm:$0xff]
    %v5911 = vld [vmem:[%s5890 + $0xa0] sm:$0xff]
    %v5912 = vld [vmem:[%s5890 + $0xa8] sm:$0xff]
    %v5913 = vld [vmem:[%s5890 + $0xb0] sm:$0xff]
    %v5914 = vld [vmem:[%s5890 + $0xb8] sm:$0xff]
    %v5915 = vld [vmem:[%s5890 + $0xc0] sm:$0xff]
    %v5916 = vld [vmem:[%s5890 + $0xc8] sm:$0xff]
    %v5917 = vld [vmem:[%s5890 + $0xd0] sm:$0xff]
    %v5918 = vld [vmem:[%s5890 + $0xd8] sm:$0xff]
    %v5919 = vld [vmem:[%s5890 + $0xe0] sm:$0xff]
    %v5920 = vld [vmem:[%s5890 + $0xe8] sm:$0xff]
    %v5921 = vld [vmem:[%s5890 + $0xf0] sm:$0xff]
    %v5922 = vld [vmem:[%s5890 + $0xf8] sm:$0xff]
    %v5923 = vld [vmem:[%s5890 + $0x100] sm:$0xff]
    %v5924 = vld [vmem:[%s5890 + $0x108] sm:$0xff]
    %v5925 = vld [vmem:[%s5890 + $0x110] sm:$0xff]
    %v5926 = vld [vmem:[%s5890 + $0x118] sm:$0xff]
    %v5927 = vld [vmem:[%s5890 + $0x120] sm:$0xff]
    %v5928 = vld [vmem:[%s5890 + $0x128] sm:$0xff]
    %v5929 = vld [vmem:[%s5890 + $0x130] sm:$0xff]
    %v5930 = vld [vmem:[%s5890 + $0x138] sm:$0xff]
    %v5931 = vld [vmem:[%s5890 + $0x140] sm:$0xff]
    %v5932 = vld [vmem:[%s5890 + $0x148] sm:$0xff]
    %v5933 = vld [vmem:[%s5890 + $0x150] sm:$0xff]
    %v5934 = vld [vmem:[%s5890 + $0x158] sm:$0xff]
    %v5935 = vld [vmem:[%s5890 + $0x160] sm:$0xff]
    %v5936 = vld [vmem:[%s5890 + $0x168] sm:$0xff]
    %v5937 = vld [vmem:[%s5890 + $0x170] sm:$0xff]
    %v5938 = vld [vmem:[%s5890 + $0x178] sm:$0xff]
    %v5939 = vld [vmem:[%s5890 + $0x180] sm:$0xff]
    %v5940 = vld [vmem:[%s5890 + $0x188] sm:$0xff]
    %v5941 = vld [vmem:[%s5890 + $0x190] sm:$0xff]
    %v5942 = vld [vmem:[%s5890 + $0x198] sm:$0xff]
    %v5943 = vld [vmem:[%s5890 + $0x1a0] sm:$0xff]
    %v5944 = vld [vmem:[%s5890 + $0x1a8] sm:$0xff]
    %v5945 = vld [vmem:[%s5890 + $0x1b0] sm:$0xff]
    %v5946 = vld [vmem:[%s5890 + $0x1b8] sm:$0xff]
    %v5947 = vld [vmem:[%s5890 + $0x1c0] sm:$0xff]
    %v5948 = vld [vmem:[%s5890 + $0x1c8] sm:$0xff]
    %v5949 = vld [vmem:[%s5890 + $0x1d0] sm:$0xff]
    %v5950 = vld [vmem:[%s5890 + $0x1d8] sm:$0xff]
    %v5951 = vld [vmem:[%s5890 + $0x1e0] sm:$0xff]
    %v5952 = vld [vmem:[%s5890 + $0x1e8] sm:$0xff]
    %v5953 = vld [vmem:[%s5890 + $0x1f0] sm:$0xff]
    %v5954 = vld [vmem:[%s5890 + $0x1f8] sm:$0xff]
    %5955 = vmatpush.msra.mxu0 %v5921
    %5956 = vmatpush.msra.mxu0 %v5919
    %5957 = vmatpush.msra.mxu0 %v5917
    %5958 = vmatpush.msra.mxu0 %v5915
    %5959 = vmatpush.msra.mxu0 %v5913
    %5960 = vmatpush.msra.mxu0 %v5911
    %5961 = vmatpush.msra.mxu0 %v5909
    %5962 = vmatpush.msra.mxu0 %v5907
    %5963 = vmatpush.msra.mxu0 %v5905
    %5964 = vmatpush.msra.mxu0 %v5903
    %5965 = vmatpush.msra.mxu0 %v5901
    %5966 = vmatpush.msra.mxu0 %v5899
    %5967 = vmatpush.msra.mxu0 %v5897
    %5968 = vmatpush.msra.mxu0 %v5895
    %5969 = vmatpush.msra.mxu0 %v5893
    %5970 = vmatpush.msra.mxu0 %v5891
    %5971 = vmatmul.f32.gmra.mxu0 %v5886
    %v5972 = vpop.f32.mrf.mxu0
    %v5973 = vadd.f32 0.0, %v5972
    %5974 = vdwg.mxu0
    %5975 = vmatpush.msra.mxu0 %v5953
    %5976 = vmatpush.msra.mxu0 %v5951
    %5977 = vmatpush.msra.mxu0 %v5949
    %5978 = vmatpush.msra.mxu0 %v5947
    %5979 = vmatpush.msra.mxu0 %v5945
    %5980 = vmatpush.msra.mxu0 %v5943
    %5981 = vmatpush.msra.mxu0 %v5941
    %5982 = vmatpush.msra.mxu0 %v5939
    %5983 = vmatpush.msra.mxu0 %v5937
    %5984 = vmatpush.msra.mxu0 %v5935
    %5985 = vmatpush.msra.mxu0 %v5933
    %5986 = vmatpush.msra.mxu0 %v5931
    %5987 = vmatpush.msra.mxu0 %v5929
    %5988 = vmatpush.msra.mxu0 %v5927
    %5989 = vmatpush.msra.mxu0 %v5925
    %5990 = vmatpush.msra.mxu0 %v5923
    %5991 = vmatmul.f32.gmra.mxu0 %v5887
    %v5992 = vpop.f32.mrf.mxu0
    %v5993 = vadd.f32 %v5973, %v5992
    %5994 = vdwg.mxu0
    %5995 = vmatpush.msra.mxu0 %v5922
    %5996 = vmatpush.msra.mxu0 %v5920
    %5997 = vmatpush.msra.mxu0 %v5918
    %5998 = vmatpush.msra.mxu0 %v5916
    %5999 = vmatpush.msra.mxu0 %v5914
    %6000 = vmatpush.msra.mxu0 %v5912
    %6001 = vmatpush.msra.mxu0 %v5910
    %6002 = vmatpush.msra.mxu0 %v5908
    %6003 = vmatpush.msra.mxu0 %v5906
    %6004 = vmatpush.msra.mxu0 %v5904
    %6005 = vmatpush.msra.mxu0 %v5902
    %6006 = vmatpush.msra.mxu0 %v5900
    %6007 = vmatpush.msra.mxu0 %v5898
    %6008 = vmatpush.msra.mxu0 %v5896
    %6009 = vmatpush.msra.mxu0 %v5894
    %6010 = vmatpush.msra.mxu0 %v5892
    %6011 = vmatmul.f32.gmra.mxu0 %v5886
    %v6012 = vpop.f32.mrf.mxu0
    %v6013 = vadd.f32 0.0, %v6012
    %6014 = vdwg.mxu0
    %6015 = vmatpush.msra.mxu0 %v5954
    %6016 = vmatpush.msra.mxu0 %v5952
    %6017 = vmatpush.msra.mxu0 %v5950
    %6018 = vmatpush.msra.mxu0 %v5948
    %6019 = vmatpush.msra.mxu0 %v5946
    %6020 = vmatpush.msra.mxu0 %v5944
    %6021 = vmatpush.msra.mxu0 %v5942
    %6022 = vmatpush.msra.mxu0 %v5940
    %6023 = vmatpush.msra.mxu0 %v5938
    %6024 = vmatpush.msra.mxu0 %v5936
    %6025 = vmatpush.msra.mxu0 %v5934
    %6026 = vmatpush.msra.mxu0 %v5932
    %6027 = vmatpush.msra.mxu0 %v5930
    %6028 = vmatpush.msra.mxu0 %v5928
    %6029 = vmatpush.msra.mxu0 %v5926
    %6030 = vmatpush.msra.mxu0 %v5924
    %6031 = vmatmul.f32.gmra.mxu0 %v5887
    %v6032 = vpop.f32.mrf.mxu0
    %v6033 = vadd.f32 %v6013, %v6032
    %6034 = vdwg.mxu0
    %v6035 = vadd.f32 %v5888, %v5993
    %v6036 = vadd.f32 %v5889, %v6033
    %6037 = vst [vmem:[#allocation2] sm:$0xff] %v6035
    %6038 = vst [vmem:[#allocation2 + $0x8] sm:$0xff] %v6036
    %v6039 = vld [vmem:[%s0 + $0xe8] sm:$0xff]
    %6040 = vst [vmem:[#allocation1] ss:$2 sm:$0xff] %v114
    %v6041 = vld.sshfl [vmem:[#allocation1] sm:$0xff pattern:$0x75316420]
    %v6042 = vld.sshfl [vmem:[#allocation1 + $0x8] sm:$0xff pattern:$0x75316420]
    %v6044 = vsel %vm126, %v6039, 0
    %v6046 = vsel %vm130, %v6041, 0
    %v6048 = vsel %vm130, %v6042, 0
    %6050 = vmatpush.msra.mxu0 0.0
    %6051 = vmatpush.msra.mxu0 0.0
    %6052 = vmatpush.msra.mxu0 0.0
    %6053 = vmatpush.msra.mxu0 0.0
    %6054 = vmatpush.msra.mxu0 0.0
    %6055 = vmatpush.msra.mxu0 0.0
    %6056 = vmatpush.msra.mxu0 0.0
    %6057 = vmatpush.msra.mxu0 0.0
    %6058 = vmatpush.msra.mxu0 0.0
    %6059 = vmatpush.msra.mxu0 0.0
    %6060 = vmatpush.msra.mxu0 0.0
    %6061 = vmatpush.msra.mxu0 0.0
    %6062 = vmatpush.msra.mxu0 0.0
    %6063 = vmatpush.msra.mxu0 0.0
    %6064 = vmatpush.msra.mxu0 0.0
    %6065 = vmatpush.msra.mxu0 %v6046
    %6066 = vmatmul.f32.gmra.mxu0 %v6044
    %v6067 = vpop.f32.mrf.mxu0
    %v6068 = vadd.f32 %v117, %v6067
    %6069 = vdwg.mxu0
    %6070 = vmatpush.msra.mxu0 0.0
    %6071 = vmatpush.msra.mxu0 0.0
    %6072 = vmatpush.msra.mxu0 0.0
    %6073 = vmatpush.msra.mxu0 0.0
    %6074 = vmatpush.msra.mxu0 0.0
    %6075 = vmatpush.msra.mxu0 0.0
    %6076 = vmatpush.msra.mxu0 0.0
    %6077 = vmatpush.msra.mxu0 0.0
    %6078 = vmatpush.msra.mxu0 0.0
    %6079 = vmatpush.msra.mxu0 0.0
    %6080 = vmatpush.msra.mxu0 0.0
    %6081 = vmatpush.msra.mxu0 0.0
    %6082 = vmatpush.msra.mxu0 0.0
    %6083 = vmatpush.msra.mxu0 0.0
    %6084 = vmatpush.msra.mxu0 0.0
    %6085 = vmatpush.msra.mxu0 %v6048
    %6086 = vmatmul.f32.gmra.mxu0 %v6044
    %v6087 = vpop.f32.mrf.mxu0
    %v6088 = vadd.f32 %v118, %v6087
    %6089 = vdwg.mxu0
    %v6090 = vmax.f32 %v6068, 0.0
    %v6091 = vmax.f32 %v6088, 0.0
    %v6092 = vld [vmem:[#allocation2] sm:$0xff]
    %v6093 = vld [vmem:[#allocation2 + $0x8] sm:$0xff]
    %s6094 = scalar_lea.vmem [#allocation7], 14848
    %v6095 = vld [vmem:[%s6094] sm:$0xff]
    %v6096 = vld [vmem:[%s6094 + $0x8] sm:$0xff]
    %v6097 = vld [vmem:[%s6094 + $0x10] sm:$0xff]
    %v6098 = vld [vmem:[%s6094 + $0x18] sm:$0xff]
    %v6099 = vld [vmem:[%s6094 + $0x20] sm:$0xff]
    %v6100 = vld [vmem:[%s6094 + $0x28] sm:$0xff]
    %v6101 = vld [vmem:[%s6094 + $0x30] sm:$0xff]
    %v6102 = vld [vmem:[%s6094 + $0x38] sm:$0xff]
    %v6103 = vld [vmem:[%s6094 + $0x40] sm:$0xff]
    %v6104 = vld [vmem:[%s6094 + $0x48] sm:$0xff]
    %v6105 = vld [vmem:[%s6094 + $0x50] sm:$0xff]
    %v6106 = vld [vmem:[%s6094 + $0x58] sm:$0xff]
    %v6107 = vld [vmem:[%s6094 + $0x60] sm:$0xff]
    %v6108 = vld [vmem:[%s6094 + $0x68] sm:$0xff]
    %v6109 = vld [vmem:[%s6094 + $0x70] sm:$0xff]
    %v6110 = vld [vmem:[%s6094 + $0x78] sm:$0xff]
    %v6111 = vld [vmem:[%s6094 + $0x80] sm:$0xff]
    %v6112 = vld [vmem:[%s6094 + $0x88] sm:$0xff]
    %v6113 = vld [vmem:[%s6094 + $0x90] sm:$0xff]
    %v6114 = vld [vmem:[%s6094 + $0x98] sm:$0xff]
    %v6115 = vld [vmem:[%s6094 + $0xa0] sm:$0xff]
    %v6116 = vld [vmem:[%s6094 + $0xa8] sm:$0xff]
    %v6117 = vld [vmem:[%s6094 + $0xb0] sm:$0xff]
    %v6118 = vld [vmem:[%s6094 + $0xb8] sm:$0xff]
    %v6119 = vld [vmem:[%s6094 + $0xc0] sm:$0xff]
    %v6120 = vld [vmem:[%s6094 + $0xc8] sm:$0xff]
    %v6121 = vld [vmem:[%s6094 + $0xd0] sm:$0xff]
    %v6122 = vld [vmem:[%s6094 + $0xd8] sm:$0xff]
    %v6123 = vld [vmem:[%s6094 + $0xe0] sm:$0xff]
    %v6124 = vld [vmem:[%s6094 + $0xe8] sm:$0xff]
    %v6125 = vld [vmem:[%s6094 + $0xf0] sm:$0xff]
    %v6126 = vld [vmem:[%s6094 + $0xf8] sm:$0xff]
    %v6127 = vld [vmem:[%s6094 + $0x100] sm:$0xff]
    %v6128 = vld [vmem:[%s6094 + $0x108] sm:$0xff]
    %v6129 = vld [vmem:[%s6094 + $0x110] sm:$0xff]
    %v6130 = vld [vmem:[%s6094 + $0x118] sm:$0xff]
    %v6131 = vld [vmem:[%s6094 + $0x120] sm:$0xff]
    %v6132 = vld [vmem:[%s6094 + $0x128] sm:$0xff]
    %v6133 = vld [vmem:[%s6094 + $0x130] sm:$0xff]
    %v6134 = vld [vmem:[%s6094 + $0x138] sm:$0xff]
    %v6135 = vld [vmem:[%s6094 + $0x140] sm:$0xff]
    %v6136 = vld [vmem:[%s6094 + $0x148] sm:$0xff]
    %v6137 = vld [vmem:[%s6094 + $0x150] sm:$0xff]
    %v6138 = vld [vmem:[%s6094 + $0x158] sm:$0xff]
    %v6139 = vld [vmem:[%s6094 + $0x160] sm:$0xff]
    %v6140 = vld [vmem:[%s6094 + $0x168] sm:$0xff]
    %v6141 = vld [vmem:[%s6094 + $0x170] sm:$0xff]
    %v6142 = vld [vmem:[%s6094 + $0x178] sm:$0xff]
    %v6143 = vld [vmem:[%s6094 + $0x180] sm:$0xff]
    %v6144 = vld [vmem:[%s6094 + $0x188] sm:$0xff]
    %v6145 = vld [vmem:[%s6094 + $0x190] sm:$0xff]
    %v6146 = vld [vmem:[%s6094 + $0x198] sm:$0xff]
    %v6147 = vld [vmem:[%s6094 + $0x1a0] sm:$0xff]
    %v6148 = vld [vmem:[%s6094 + $0x1a8] sm:$0xff]
    %v6149 = vld [vmem:[%s6094 + $0x1b0] sm:$0xff]
    %v6150 = vld [vmem:[%s6094 + $0x1b8] sm:$0xff]
    %v6151 = vld [vmem:[%s6094 + $0x1c0] sm:$0xff]
    %v6152 = vld [vmem:[%s6094 + $0x1c8] sm:$0xff]
    %v6153 = vld [vmem:[%s6094 + $0x1d0] sm:$0xff]
    %v6154 = vld [vmem:[%s6094 + $0x1d8] sm:$0xff]
    %v6155 = vld [vmem:[%s6094 + $0x1e0] sm:$0xff]
    %v6156 = vld [vmem:[%s6094 + $0x1e8] sm:$0xff]
    %v6157 = vld [vmem:[%s6094 + $0x1f0] sm:$0xff]
    %v6158 = vld [vmem:[%s6094 + $0x1f8] sm:$0xff]
    %6159 = vmatpush.msra.mxu0 %v6125
    %6160 = vmatpush.msra.mxu0 %v6123
    %6161 = vmatpush.msra.mxu0 %v6121
    %6162 = vmatpush.msra.mxu0 %v6119
    %6163 = vmatpush.msra.mxu0 %v6117
    %6164 = vmatpush.msra.mxu0 %v6115
    %6165 = vmatpush.msra.mxu0 %v6113
    %6166 = vmatpush.msra.mxu0 %v6111
    %6167 = vmatpush.msra.mxu0 %v6109
    %6168 = vmatpush.msra.mxu0 %v6107
    %6169 = vmatpush.msra.mxu0 %v6105
    %6170 = vmatpush.msra.mxu0 %v6103
    %6171 = vmatpush.msra.mxu0 %v6101
    %6172 = vmatpush.msra.mxu0 %v6099
    %6173 = vmatpush.msra.mxu0 %v6097
    %6174 = vmatpush.msra.mxu0 %v6095
    %6175 = vmatmul.f32.gmra.mxu0 %v6090
    %v6176 = vpop.f32.mrf.mxu0
    %v6177 = vadd.f32 0.0, %v6176
    %6178 = vdwg.mxu0
    %6179 = vmatpush.msra.mxu0 %v6157
    %6180 = vmatpush.msra.mxu0 %v6155
    %6181 = vmatpush.msra.mxu0 %v6153
    %6182 = vmatpush.msra.mxu0 %v6151
    %6183 = vmatpush.msra.mxu0 %v6149
    %6184 = vmatpush.msra.mxu0 %v6147
    %6185 = vmatpush.msra.mxu0 %v6145
    %6186 = vmatpush.msra.mxu0 %v6143
    %6187 = vmatpush.msra.mxu0 %v6141
    %6188 = vmatpush.msra.mxu0 %v6139
    %6189 = vmatpush.msra.mxu0 %v6137
    %6190 = vmatpush.msra.mxu0 %v6135
    %6191 = vmatpush.msra.mxu0 %v6133
    %6192 = vmatpush.msra.mxu0 %v6131
    %6193 = vmatpush.msra.mxu0 %v6129
    %6194 = vmatpush.msra.mxu0 %v6127
    %6195 = vmatmul.f32.gmra.mxu0 %v6091
    %v6196 = vpop.f32.mrf.mxu0
    %v6197 = vadd.f32 %v6177, %v6196
    %6198 = vdwg.mxu0
    %6199 = vmatpush.msra.mxu0 %v6126
    %6200 = vmatpush.msra.mxu0 %v6124
    %6201 = vmatpush.msra.mxu0 %v6122
    %6202 = vmatpush.msra.mxu0 %v6120
    %6203 = vmatpush.msra.mxu0 %v6118
    %6204 = vmatpush.msra.mxu0 %v6116
    %6205 = vmatpush.msra.mxu0 %v6114
    %6206 = vmatpush.msra.mxu0 %v6112
    %6207 = vmatpush.msra.mxu0 %v6110
    %6208 = vmatpush.msra.mxu0 %v6108
    %6209 = vmatpush.msra.mxu0 %v6106
    %6210 = vmatpush.msra.mxu0 %v6104
    %6211 = vmatpush.msra.mxu0 %v6102
    %6212 = vmatpush.msra.mxu0 %v6100
    %6213 = vmatpush.msra.mxu0 %v6098
    %6214 = vmatpush.msra.mxu0 %v6096
    %6215 = vmatmul.f32.gmra.mxu0 %v6090
    %v6216 = vpop.f32.mrf.mxu0
    %v6217 = vadd.f32 0.0, %v6216
    %6218 = vdwg.mxu0
    %6219 = vmatpush.msra.mxu0 %v6158
    %6220 = vmatpush.msra.mxu0 %v6156
    %6221 = vmatpush.msra.mxu0 %v6154
    %6222 = vmatpush.msra.mxu0 %v6152
    %6223 = vmatpush.msra.mxu0 %v6150
    %6224 = vmatpush.msra.mxu0 %v6148
    %6225 = vmatpush.msra.mxu0 %v6146
    %6226 = vmatpush.msra.mxu0 %v6144
    %6227 = vmatpush.msra.mxu0 %v6142
    %6228 = vmatpush.msra.mxu0 %v6140
    %6229 = vmatpush.msra.mxu0 %v6138
    %6230 = vmatpush.msra.mxu0 %v6136
    %6231 = vmatpush.msra.mxu0 %v6134
    %6232 = vmatpush.msra.mxu0 %v6132
    %6233 = vmatpush.msra.mxu0 %v6130
    %6234 = vmatpush.msra.mxu0 %v6128
    %6235 = vmatmul.f32.gmra.mxu0 %v6091
    %v6236 = vpop.f32.mrf.mxu0
    %v6237 = vadd.f32 %v6217, %v6236
    %6238 = vdwg.mxu0
    %v6239 = vadd.f32 %v6092, %v6197
    %v6240 = vadd.f32 %v6093, %v6237
    %6241 = vst [vmem:[#allocation2] sm:$0xff] %v6239
    %6242 = vst [vmem:[#allocation2 + $0x8] sm:$0xff] %v6240
    %v6243 = vld [vmem:[#allocation2] sm:$0xff]
    %v6244 = vld [vmem:[#allocation2 + $0x8] sm:$0xff]
    %v6245 = vld [vmem:[#allocation8] sm:$0x3]
    %v6247 = vperm.slane %v6245, 0
    %v6248 = vperm.slane %v6245, 1
    %v6251 = vadd.f32 %v6243, %v6247
    %v6252 = vadd.f32 %v6244, %v6248
    %v6253 = vmax.f32 %v6251, 0.0
    %v6254 = vmax.f32 %v6252, 0.0
    %v6255 = vld [vmem:[#allocation10] sm:$0xff]
    %v6256 = vld [vmem:[#allocation10 + $0x8] sm:$0xff]
    %v6257 = vld [vmem:[#allocation10 + $0x10] sm:$0xff]
    %v6258 = vld [vmem:[#allocation10 + $0x18] sm:$0xff]
    %v6259 = vld [vmem:[#allocation10 + $0x20] sm:$0xff]
    %v6260 = vld [vmem:[#allocation10 + $0x28] sm:$0xff]
    %v6261 = vld [vmem:[#allocation10 + $0x30] sm:$0xff]
    %v6262 = vld [vmem:[#allocation10 + $0x38] sm:$0xff]
    %v6263 = vld [vmem:[#allocation10 + $0x40] sm:$0xff]
    %v6264 = vld [vmem:[#allocation10 + $0x48] sm:$0xff]
    %v6265 = vld [vmem:[#allocation10 + $0x50] sm:$0xff]
    %v6266 = vld [vmem:[#allocation10 + $0x58] sm:$0xff]
    %v6267 = vld [vmem:[#allocation10 + $0x60] sm:$0xff]
    %v6268 = vld [vmem:[#allocation10 + $0x68] sm:$0xff]
    %v6269 = vld [vmem:[#allocation10 + $0x70] sm:$0xff]
    %v6270 = vld [vmem:[#allocation10 + $0x78] sm:$0xff]
    %v6271 = vld [vmem:[#allocation10 + $0x80] sm:$0xff]
    %v6272 = vld [vmem:[#allocation10 + $0x88] sm:$0xff]
    %v6273 = vld [vmem:[#allocation10 + $0x90] sm:$0xff]
    %v6274 = vld [vmem:[#allocation10 + $0x98] sm:$0xff]
    %v6275 = vld [vmem:[#allocation10 + $0xa0] sm:$0xff]
    %v6276 = vld [vmem:[#allocation10 + $0xa8] sm:$0xff]
    %v6277 = vld [vmem:[#allocation10 + $0xb0] sm:$0xff]
    %v6278 = vld [vmem:[#allocation10 + $0xb8] sm:$0xff]
    %v6279 = vld [vmem:[#allocation10 + $0xc0] sm:$0xff]
    %v6280 = vld [vmem:[#allocation10 + $0xc8] sm:$0xff]
    %v6281 = vld [vmem:[#allocation10 + $0xd0] sm:$0xff]
    %v6282 = vld [vmem:[#allocation10 + $0xd8] sm:$0xff]
    %v6283 = vld [vmem:[#allocation10 + $0xe0] sm:$0xff]
    %v6284 = vld [vmem:[#allocation10 + $0xe8] sm:$0xff]
    %v6285 = vld [vmem:[#allocation10 + $0xf0] sm:$0xff]
    %v6286 = vld [vmem:[#allocation10 + $0xf8] sm:$0xff]
    %v6287 = vld [vmem:[#allocation11] sm:$0x1]
    %v6289 = vperm.slane %v6287, 0
    %6291 = vmatpush.msra.mxu0 %v6270
    %6292 = vmatpush.msra.mxu0 %v6269
    %6293 = vmatpush.msra.mxu0 %v6268
    %6294 = vmatpush.msra.mxu0 %v6267
    %6295 = vmatpush.msra.mxu0 %v6266
    %6296 = vmatpush.msra.mxu0 %v6265
    %6297 = vmatpush.msra.mxu0 %v6264
    %6298 = vmatpush.msra.mxu0 %v6263
    %6299 = vmatpush.msra.mxu0 %v6262
    %6300 = vmatpush.msra.mxu0 %v6261
    %6301 = vmatpush.msra.mxu0 %v6260
    %6302 = vmatpush.msra.mxu0 %v6259
    %6303 = vmatpush.msra.mxu0 %v6258
    %6304 = vmatpush.msra.mxu0 %v6257
    %6305 = vmatpush.msra.mxu0 %v6256
    %6306 = vmatpush.msra.mxu0 %v6255
    %6307 = vmatmul.f32.gmra.mxu0 %v6253
    %v6308 = vpop.f32.mrf.mxu0
    %v6309 = vadd.f32 %v6289, %v6308
    %6310 = vdwg.mxu0
    %6311 = vmatpush.msra.mxu0 %v6286
    %6312 = vmatpush.msra.mxu0 %v6285
    %6313 = vmatpush.msra.mxu0 %v6284
    %6314 = vmatpush.msra.mxu0 %v6283
    %6315 = vmatpush.msra.mxu0 %v6282
    %6316 = vmatpush.msra.mxu0 %v6281
    %6317 = vmatpush.msra.mxu0 %v6280
    %6318 = vmatpush.msra.mxu0 %v6279
    %6319 = vmatpush.msra.mxu0 %v6278
    %6320 = vmatpush.msra.mxu0 %v6277
    %6321 = vmatpush.msra.mxu0 %v6276
    %6322 = vmatpush.msra.mxu0 %v6275
    %6323 = vmatpush.msra.mxu0 %v6274
    %6324 = vmatpush.msra.mxu0 %v6273
    %6325 = vmatpush.msra.mxu0 %v6272
    %6326 = vmatpush.msra.mxu0 %v6271
    %6327 = vmatmul.f32.gmra.mxu0 %v6254
    %v6328 = vpop.f32.mrf.mxu0
    %v6329 = vadd.f32 %v6309, %v6328
    %6330 = vdwg.mxu0
    %6331 = vst [vmem:[%s7] sm:$0xff] %v6329
    // Predicated region
    $region54: #{fwd.1} parent=1 // pred_check
      _
    $region55: #{fwd.1} parent=1 // pred_check_branch
      %6333 = sbr.rel (0) target = $region57
    $region56: #{fwd.1} parent=1 // pred_region
      _
    $region57: #{fwd.1} parent=1 // pred_fallthru
      _
    // Predicated region
    $region58: #{fwd.1} parent=1 // pred_check
      _
    $region59: #{fwd.1} parent=1 // pred_check_branch
      %6335 = sbr.rel (0) target = $region61
    $region60: #{fwd.1} parent=1 // pred_region
      _
    $region61: #{fwd.1} parent=1 // pred_fallthru
      _
    %6336 = vsyncpa [#allocation4], 1
    %6337 = vsyncpa [#allocation6], 1
    %6338 = vsyncpa [#allocation9], 1
    %6339 = vsyncpa [#allocation12], 1

</llo_original>
